<compile_context>
chip_gen: v5e
topology: v5e:2x2
jax: 0.10.0
libtpu: 0.0.40
codegen_flags: <defaults>
</compile_context>

<pallas_src>
import math

import jax
import jax.numpy as jnp
from jax import lax
from jax.experimental import pallas as pl
from jax.experimental.pallas import tpu as pltpu


# Geometry implied by the module's .view(-1, 64*7*7): input must be 4x84x84.
OH1, OW1 = 20, 20          # conv1 output spatial (84-8)/4+1
OH2, OW2 = 9, 9            # conv2 output spatial (20-4)/2+1
OH3, OW3 = 7, 7            # conv3 output spatial (9-3)/1+1
C1, C2, C3 = 32, 64, 64    # output channels
K1F = 8 * 8 * 4            # conv1 im2col K = 256
K2F = 4 * 4 * C1           # conv2 im2col K = 512
K3F = 3 * 3 * C2           # conv3 im2col K = 576


# ----------------------------------------------------------------------------
# Fused kernel: BT batch samples per grid step, everything in VMEM.
# ----------------------------------------------------------------------------
def _convnet_kernel(p1_ref, w1_ref, b1_ref, w2_ref, b2_ref, w3_ref, b3_ref,
                    o_ref, act1_ref, act2_ref, x2_ref, x3_ref):
    """conv1+conv2+conv3 (+bias, ReLU) for BT samples.

    p1_ref  : (BT, 400, 256) bf16  conv1 im2col; rows are (h_eo, w_eo) with
              both spatial axes in (even | odd) order.
    w*_ref  : bf16 weights reshaped to (K, Cout); 1/255 folded into w1.
    b*_ref  : (1, Cout) f32 biases.
    o_ref   : (BT, 49, 64) f32     conv3 output, rows = (oh, ow) raster.
    act1_ref: (20, 20, 32) bf16    conv1 acts [h_eo, w_eo, c].
    act2_ref: (9, 9, 64)   bf16    conv2 acts [oh, ow, c].
    x2_ref  : (81, 512)    bf16    conv2 im2col scratch.
    x3_ref  : (49, 576)    bf16    conv3 im2col scratch.
    """
    bt = p1_ref.shape[0]
    # Bias loads hoisted once per kernel invocation.
    bias1 = b1_ref[...]
    bias2 = b2_ref[...]
    bias3 = b3_ref[...]

    half_rows = (OH1 // 2) * OW1      # 200 conv1 output positions per chunk

    for b in range(bt):
        # ---- conv1: two (200,256)@(256,32) MXU matmuls ----------------------
        for c in range(2):
            a1 = jnp.dot(p1_ref[b, c * half_rows:(c + 1) * half_rows, :],
                         w1_ref[...], preferred_element_type=jnp.float32)
            a1 = jnp.maximum(a1 + bias1, 0.0).astype(jnp.bfloat16)
            act1_ref[c * (OH1 // 2):(c + 1) * (OH1 // 2), :, :] = (
                a1.reshape(OH1 // 2, OW1, C1))

        # ---- conv2: k=4, s=2 as ONE (81,512)@(512,64) matmul ----------------
        # (even|odd) layout on both axes makes every tap a contiguous slice:
        # tap (i,j) starts at h0/w0 = (parity)*10 + (offset//2).
        for i in range(4):
            h0 = (i & 1) * (OH1 // 2) + (i >> 1)
            for j in range(4):
                w0 = (j & 1) * (OW1 // 2) + (j >> 1)
                t = i * 4 + j
                x2_ref[:, t * C1:(t + 1) * C1] = (
                    act1_ref[h0:h0 + OH2, w0:w0 + OW2, :].reshape(OH2 * OW2, C1))
        a2 = jnp.dot(x2_ref[...], w2_ref[...],
                     preferred_element_type=jnp.float32)          # (81, 64)
        a2 = jnp.maximum(a2 + bias2, 0.0).astype(jnp.bfloat16)
        act2_ref[...] = a2.reshape(OH2, OW2, C2)

        # ---- conv3: k=3, s=1 as ONE (49,576)@(576,64) matmul ----------------
        for i in range(3):
            for j in range(3):
                t = i * 3 + j
                x3_ref[:, t * C2:(t + 1) * C2] = (
                    act2_ref[i:i + OH3, j:j + OW3, :].reshape(OH3 * OW3, C2))
        a3 = jnp.dot(x3_ref[...], w3_ref[...],
                     preferred_element_type=jnp.float32)          # (49, 64)
        o_ref[b] = jnp.maximum(a3 + bias3, 0.0)                   # one store


# ----------------------------------------------------------------------------
# Host-side glue: conv1 im2col built purely with reshape / transpose / 4 slices
# (no 64-slice stack, no gather), bf16, with BOTH spatial axes of the conv1
# output permuted to (even | odd) order.
# ----------------------------------------------------------------------------
def _conv1_patches(x_nchw):
    n = x_nchw.shape[0]
    xb = x_nchw.astype(jnp.bfloat16).reshape(n, 4, 21, 4, 21, 4)
    # block offsets dh, dw in {0,1} cover kernel taps kh = 4*dh + rh, etc.
    blocks = jnp.stack(
        [jnp.stack([xb[:, :, dh:dh + OH1, :, dw:dw + OW1, :] for dw in (0, 1)],
                   axis=0) for dh in (0, 1)],
        axis=0)                                   # (2, 2, n, c, 20, 4, 20, 4)
    p = jnp.transpose(blocks, (2, 4, 6, 0, 5, 1, 7, 3))
    p = p.reshape(n, OH1, OW1, K1F)               # features ordered (kh, kw, c)
    # (even | odd) permutation of both spatial axes, via reshape/transpose.
    p = p.reshape(n, OH1 // 2, 2, OW1 // 2, 2, K1F)
    p = jnp.transpose(p, (0, 2, 1, 4, 3, 5))
    return p.reshape(n, OH1 * OW1, K1F)           # (n, 400, 256) bf16


def _pick_batch_tile(n):
    # Prefer >= 2 grid steps (keeps both v7x TensorCores busy) while tiling up
    # to 4 samples per step to amortize the per-step overhead.
    for bt in (4, 2, 1):
        if n % bt == 0 and n // bt >= 2:
            return bt
    return n


def init_conv_params(key, cout, cin, k):
    fan_in = cin * k * k
    bound = 1.0 / math.sqrt(fan_in)
    kw_, kb_ = jax.random.split(key)
    w = jax.random.uniform(kw_, (cout, cin, k, k), jnp.float32, -bound, bound)
    b = jax.random.uniform(kb_, (cout,), jnp.float32, -bound, bound)
    return w, b


# ----------------------------------------------------------------------------
# ConvNet forward (fused Pallas kernel).
# ----------------------------------------------------------------------------
def convnet_forward(x_nchw, params):
    (w1, b1), (w2, b2), (w3, b3) = params
    n = x_nchw.shape[0]
    bt = _pick_batch_tile(n)

    p1 = _conv1_patches(x_nchw)                               # (n, 400, 256)

    # Weight prep: (Cout,Cin,KH,KW) -> (KH*KW*Cin, Cout) matching the im2col
    # column order; x/255 folded into conv1; bf16 for the MXU.
    w1m = (jnp.transpose(w1, (2, 3, 1, 0)).reshape(K1F, C1)
           / 255.0).astype(jnp.bfloat16)
    w2m = jnp.transpose(w2, (2, 3, 1, 0)).reshape(K2F, C2).astype(jnp.bfloat16)
    w3m = jnp.transpose(w3, (2, 3, 1, 0)).reshape(K3F, C3).astype(jnp.bfloat16)
    b1m = b1.reshape(1, C1).astype(jnp.float32)
    b2m = b2.reshape(1, C2).astype(jnp.float32)
    b3m = b3.reshape(1, C3).astype(jnp.float32)

    flops = 2 * n * (OH1 * OW1 * K1F * C1
                     + OH2 * OW2 * K2F * C2
                     + OH3 * OW3 * K3F * C3)
    bytes_accessed = (p1.size * 2                       # bf16 patches in
                      + n * OH3 * OW3 * C3 * 4          # f32 output out
                      + (w1m.size + w2m.size + w3m.size) * 2
                      + (C1 + C2 + C3) * 4)

    out = pl.pallas_call(
        _convnet_kernel,
        out_shape=jax.ShapeDtypeStruct((n, OH3 * OW3, C3), jnp.float32),
        grid=(n // bt,),
        in_specs=[
            pl.BlockSpec((bt, OH1 * OW1, K1F), lambda g: (g, 0, 0)),
            pl.BlockSpec((K1F, C1), lambda g: (0, 0)),       # VMEM-resident
            pl.BlockSpec((1, C1), lambda g: (0, 0)),
            pl.BlockSpec((K2F, C2), lambda g: (0, 0)),
            pl.BlockSpec((1, C2), lambda g: (0, 0)),
            pl.BlockSpec((K3F, C3), lambda g: (0, 0)),
            pl.BlockSpec((1, C3), lambda g: (0, 0)),
        ],
        out_specs=pl.BlockSpec((bt, OH3 * OW3, C3), lambda g: (g, 0, 0)),
        scratch_shapes=[
            pltpu.VMEM((OH1, OW1, C1), jnp.bfloat16),     # conv1 activations
            pltpu.VMEM((OH2, OW2, C2), jnp.bfloat16),     # conv2 activations
            pltpu.VMEM((OH2 * OW2, K2F), jnp.bfloat16),   # conv2 im2col (81,512)
            pltpu.VMEM((OH3 * OW3, K3F), jnp.bfloat16),   # conv3 im2col (49,576)
        ],
        compiler_params=pltpu.CompilerParams(
            dimension_semantics=("parallel",),            # megacore on v7x
        ),
        cost_estimate=pl.CostEstimate(
            flops=flops, transcendentals=0, bytes_accessed=bytes_accessed),
    )(p1, w1m, b1m, w2m, b2m, w3m, b3m)

    # PyTorch's .view(-1, 64*7*7) flattens NCHW; only this tiny final slab
    # (12.5 KB/sample) gets reordered outside the kernel.
    return jnp.transpose(out.reshape(n, OH3, OW3, C3),
                         (0, 3, 1, 2)).reshape(n, C3 * OH3 * OW3)


# ----------------------------------------------------------------------------
# Pure-JAX reference for the correctness check.
# ----------------------------------------------------------------------------
def convnet_reference(x_nchw, params):
    (w1, b1), (w2, b2), (w3, b3) = params
    x = x_nchw.astype(jnp.float32) / 255.0
    dn = ("NCHW", "OIHW", "NCHW")

    def conv(x, w, b, s):
        y = lax.conv_general_dilated(x, w, (s, s), "VALID", dimension_numbers=dn)
        return jax.nn.relu(y + b.reshape(1, -1, 1, 1))

    x = conv(x, w1, b1, 4)
    x = conv(x, w2, b2, 2)
    x = conv(x, w3, b3, 1)
    return x.reshape(x.shape[0], -1)


if __name__ == "__main__":
    key = jax.random.PRNGKey(0)
    k_in, k1, k2, k3 = jax.random.split(key, 4)

    # The module's final .view(-1, 64*7*7) pins the spatial size to 84x84
    # (Atari DQN frames): input is (batch=2, channels=4, 84, 84) uint8.
    x = jax.random.randint(k_in, (2, 4, 84, 84), 0, 256, dtype=jnp.int32).astype(
        jnp.uint8
    )

    params = (
        init_conv_params(k1, 32, 4, 8),
        init_conv_params(k2, 64, 32, 4),
        init_conv_params(k3, 64, 64, 3),
    )

    fwd = jax.jit(convnet_forward)
    out = jax.block_until_ready(fwd(x, params))
    assert out.shape == (2, 64 * 7 * 7), out.shape

    ref = jax.block_until_ready(convnet_reference(x, params))
    assert jnp.allclose(out, ref, rtol=5e-2, atol=5e-2), (
        float(jnp.max(jnp.abs(out - ref)))
    )

    print("KERNEL_OK")
</pallas_src>

<mosaic_0001>
module attributes {stable_mosaic.version = 11 : i64} {
  func.func @_convnet_kernel(%arg0: i32, %arg1: memref<1x400x256xbf16, #tpu.memory_space<vmem>>, %arg2: memref<256x32xbf16, #tpu.memory_space<vmem>>, %arg3: memref<1x32xf32, #tpu.memory_space<vmem>>, %arg4: memref<512x64xbf16, #tpu.memory_space<vmem>>, %arg5: memref<1x64xf32, #tpu.memory_space<vmem>>, %arg6: memref<576x64xbf16, #tpu.memory_space<vmem>>, %arg7: memref<1x64xf32, #tpu.memory_space<vmem>>, %arg8: memref<1x49x64xf32, #tpu.memory_space<vmem>>, %arg9: memref<20x20x32xbf16, #tpu.memory_space<vmem>>, %arg10: memref<9x9x64xbf16, #tpu.memory_space<vmem>>, %arg11: memref<81x512xbf16, #tpu.memory_space<vmem>>, %arg12: memref<49x576xbf16, #tpu.memory_space<vmem>>) attributes {dimension_semantics = [#tpu.dimension_semantics<parallel>], iteration_bounds = array<i64: 2>, scalar_prefetch = 0 : i64, scratch_operands = 4 : i64, tpu.core_type = #tpu.core_type<tc>, window_params = [{transform_indices = @transform_0, window_bounds = array<i64: 1, 400, 256>}, {pipeline_mode = #tpu.pipeline_mode<synchronous>, transform_indices = @transform_1, window_bounds = array<i64: 256, 32>}, {pipeline_mode = #tpu.pipeline_mode<synchronous>, transform_indices = @transform_2, window_bounds = array<i64: 1, 32>}, {pipeline_mode = #tpu.pipeline_mode<synchronous>, transform_indices = @transform_3, window_bounds = array<i64: 512, 64>}, {pipeline_mode = #tpu.pipeline_mode<synchronous>, transform_indices = @transform_4, window_bounds = array<i64: 1, 64>}, {pipeline_mode = #tpu.pipeline_mode<synchronous>, transform_indices = @transform_5, window_bounds = array<i64: 576, 64>}, {pipeline_mode = #tpu.pipeline_mode<synchronous>, transform_indices = @transform_6, window_bounds = array<i64: 1, 64>}, {transform_indices = @transform_7, window_bounds = array<i64: 1, 49, 64>}]} {
    %c0 = arith.constant 0 : index
    %c0_0 = arith.constant 0 : index
    %0 = vector.load %arg3[%c0, %c0_0] : memref<1x32xf32, #tpu.memory_space<vmem>>, vector<1x32xf32>
    %c0_1 = arith.constant 0 : index
    %c0_2 = arith.constant 0 : index
    %1 = vector.load %arg5[%c0_1, %c0_2] : memref<1x64xf32, #tpu.memory_space<vmem>>, vector<1x64xf32>
    %c0_3 = arith.constant 0 : index
    %c0_4 = arith.constant 0 : index
    %2 = vector.load %arg7[%c0_3, %c0_4] : memref<1x64xf32, #tpu.memory_space<vmem>>, vector<1x64xf32>
    %c0_5 = arith.constant 0 : index
    %c0_6 = arith.constant 0 : index
    %c0_7 = arith.constant 0 : index
    %3 = vector.load %arg1[%c0_5, %c0_6, %c0_7] : memref<1x400x256xbf16, #tpu.memory_space<vmem>>, vector<1x200x256xbf16>
    %4 = vector.shape_cast %3 : vector<1x200x256xbf16> to vector<200x256xbf16>
    %c0_8 = arith.constant 0 : index
    %c0_9 = arith.constant 0 : index
    %5 = vector.load %arg2[%c0_8, %c0_9] : memref<256x32xbf16, #tpu.memory_space<vmem>>, vector<256x32xbf16>
    %cst = arith.constant dense<0.000000e+00> : vector<200x32xf32>
    %6 = tpu.matmul %4, %5, %cst {dimension_numbers = #tpu.dot_dimension_numbers<[1], [0], [0], [1], [0, 0, 1, 1], [], []>} : vector<200x256xbf16>, vector<256x32xbf16>, vector<200x32xf32> -> vector<200x32xf32>
    %7 = vector.broadcast %0 : vector<1x32xf32> to vector<200x32xf32>
    %8 = arith.addf %6, %7 : vector<200x32xf32>
    %cst_10 = arith.constant 0.000000e+00 : f32
    %9 = vector.broadcast %cst_10 : f32 to vector<200x32xf32>
    %10 = arith.maximumf %8, %9 : vector<200x32xf32>
    %11 = arith.truncf %10 : vector<200x32xf32> to vector<200x32xbf16>
    %12 = vector.shape_cast %11 : vector<200x32xbf16> to vector<10x20x32xbf16>
    %c0_11 = arith.constant 0 : index
    %c0_12 = arith.constant 0 : index
    %c0_13 = arith.constant 0 : index
    %13 = vector.load %arg9[%c0_11, %c0_12, %c0_13] : memref<20x20x32xbf16, #tpu.memory_space<vmem>>, vector<10x20x32xbf16>
    tpu.vector_store %arg9[%c0_11, %c0_12, %c0_13], %12 {strides = array<i32>} : memref<20x20x32xbf16, #tpu.memory_space<vmem>>, vector<10x20x32xbf16>,
    %c0_14 = arith.constant 0 : index
    %c200 = arith.constant 200 : index
    %c0_15 = arith.constant 0 : index
    %14 = vector.load %arg1[%c0_14, %c200, %c0_15] : memref<1x400x256xbf16, #tpu.memory_space<vmem>>, vector<1x200x256xbf16>
    %15 = vector.shape_cast %14 : vector<1x200x256xbf16> to vector<200x256xbf16>
    %c0_16 = arith.constant 0 : index
    %c0_17 = arith.constant 0 : index
    %16 = vector.load %arg2[%c0_16, %c0_17] : memref<256x32xbf16, #tpu.memory_space<vmem>>, vector<256x32xbf16>
    %cst_18 = arith.constant dense<0.000000e+00> : vector<200x32xf32>
    %17 = tpu.matmul %15, %16, %cst_18 {dimension_numbers = #tpu.dot_dimension_numbers<[1], [0], [0], [1], [0, 0, 1, 1], [], []>} : vector<200x256xbf16>, vector<256x32xbf16>, vector<200x32xf32> -> vector<200x32xf32>
    %18 = vector.broadcast %0 : vector<1x32xf32> to vector<200x32xf32>
    %19 = arith.addf %17, %18 : vector<200x32xf32>
    %cst_19 = arith.constant 0.000000e+00 : f32
    %20 = vector.broadcast %cst_19 : f32 to vector<200x32xf32>
    %21 = arith.maximumf %19, %20 : vector<200x32xf32>
    %22 = arith.truncf %21 : vector<200x32xf32> to vector<200x32xbf16>
    %23 = vector.shape_cast %22 : vector<200x32xbf16> to vector<10x20x32xbf16>
    %c10 = arith.constant 10 : index
    %c0_20 = arith.constant 0 : index
    %c0_21 = arith.constant 0 : index
    %24 = vector.load %arg9[%c10, %c0_20, %c0_21] : memref<20x20x32xbf16, #tpu.memory_space<vmem>>, vector<10x20x32xbf16>
    tpu.vector_store %arg9[%c10, %c0_20, %c0_21], %23 {strides = array<i32>} : memref<20x20x32xbf16, #tpu.memory_space<vmem>>, vector<10x20x32xbf16>,
    %c0_22 = arith.constant 0 : index
    %c0_23 = arith.constant 0 : index
    %c0_24 = arith.constant 0 : index
    %25 = vector.load %arg9[%c0_22, %c0_23, %c0_24] : memref<20x20x32xbf16, #tpu.memory_space<vmem>>, vector<9x9x32xbf16>
    %26 = vector.shape_cast %25 : vector<9x9x32xbf16> to vector<81x32xbf16>
    %c0_25 = arith.constant 0 : index
    %c0_26 = arith.constant 0 : index
    %27 = vector.load %arg11[%c0_25, %c0_26] : memref<81x512xbf16, #tpu.memory_space<vmem>>, vector<81x32xbf16>
    tpu.vector_store %arg11[%c0_25, %c0_26], %26 {strides = array<i32>} : memref<81x512xbf16, #tpu.memory_space<vmem>>, vector<81x32xbf16>,
    %c0_27 = arith.constant 0 : index
    %c10_28 = arith.constant 10 : index
    %c0_29 = arith.constant 0 : index
    %28 = vector.load %arg9[%c0_27, %c10_28, %c0_29] : memref<20x20x32xbf16, #tpu.memory_space<vmem>>, vector<9x9x32xbf16>
    %29 = vector.shape_cast %28 : vector<9x9x32xbf16> to vector<81x32xbf16>
    %c0_30 = arith.constant 0 : index
    %c32 = arith.constant 32 : index
    %30 = vector.load %arg11[%c0_30, %c32] : memref<81x512xbf16, #tpu.memory_space<vmem>>, vector<81x32xbf16>
    tpu.vector_store %arg11[%c0_30, %c32], %29 {strides = array<i32>} : memref<81x512xbf16, #tpu.memory_space<vmem>>, vector<81x32xbf16>,
    %c0_31 = arith.constant 0 : index
    %c1 = arith.constant 1 : index
    %c0_32 = arith.constant 0 : index
    %31 = vector.load %arg9[%c0_31, %c1, %c0_32] : memref<20x20x32xbf16, #tpu.memory_space<vmem>>, vector<9x9x32xbf16>
    %32 = vector.shape_cast %31 : vector<9x9x32xbf16> to vector<81x32xbf16>
    %c0_33 = arith.constant 0 : index
    %c64 = arith.constant 64 : index
    %33 = vector.load %arg11[%c0_33, %c64] : memref<81x512xbf16, #tpu.memory_space<vmem>>, vector<81x32xbf16>
    tpu.vector_store %arg11[%c0_33, %c64], %32 {strides = array<i32>} : memref<81x512xbf16, #tpu.memory_space<vmem>>, vector<81x32xbf16>,
    %c0_34 = arith.constant 0 : index
    %c11 = arith.constant 11 : index
    %c0_35 = arith.constant 0 : index
    %34 = vector.load %arg9[%c0_34, %c11, %c0_35] : memref<20x20x32xbf16, #tpu.memory_space<vmem>>, vector<9x9x32xbf16>
    %35 = vector.shape_cast %34 : vector<9x9x32xbf16> to vector<81x32xbf16>
    %c0_36 = arith.constant 0 : index
    %c96 = arith.constant 96 : index
    %36 = vector.load %arg11[%c0_36, %c96] : memref<81x512xbf16, #tpu.memory_space<vmem>>, vector<81x32xbf16>
    tpu.vector_store %arg11[%c0_36, %c96], %35 {strides = array<i32>} : memref<81x512xbf16, #tpu.memory_space<vmem>>, vector<81x32xbf16>,
    %c10_37 = arith.constant 10 : index
    %c0_38 = arith.constant 0 : index
    %c0_39 = arith.constant 0 : index
    %37 = vector.load %arg9[%c10_37, %c0_38, %c0_39] : memref<20x20x32xbf16, #tpu.memory_space<vmem>>, vector<9x9x32xbf16>
    %38 = vector.shape_cast %37 : vector<9x9x32xbf16> to vector<81x32xbf16>
    %c0_40 = arith.constant 0 : index
    %c128 = arith.constant 128 : index
    %39 = vector.load %arg11[%c0_40, %c128] : memref<81x512xbf16, #tpu.memory_space<vmem>>, vector<81x32xbf16>
    tpu.vector_store %arg11[%c0_40, %c128], %38 {strides = array<i32>} : memref<81x512xbf16, #tpu.memory_space<vmem>>, vector<81x32xbf16>,
    %c10_41 = arith.constant 10 : index
    %c10_42 = arith.constant 10 : index
    %c0_43 = arith.constant 0 : index
    %40 = vector.load %arg9[%c10_41, %c10_42, %c0_43] : memref<20x20x32xbf16, #tpu.memory_space<vmem>>, vector<9x9x32xbf16>
    %41 = vector.shape_cast %40 : vector<9x9x32xbf16> to vector<81x32xbf16>
    %c0_44 = arith.constant 0 : index
    %c160 = arith.constant 160 : index
    %42 = vector.load %arg11[%c0_44, %c160] : memref<81x512xbf16, #tpu.memory_space<vmem>>, vector<81x32xbf16>
    tpu.vector_store %arg11[%c0_44, %c160], %41 {strides = array<i32>} : memref<81x512xbf16, #tpu.memory_space<vmem>>, vector<81x32xbf16>,
    %c10_45 = arith.constant 10 : index
    %c1_46 = arith.constant 1 : index
    %c0_47 = arith.constant 0 : index
    %43 = vector.load %arg9[%c10_45, %c1_46, %c0_47] : memref<20x20x32xbf16, #tpu.memory_space<vmem>>, vector<9x9x32xbf16>
    %44 = vector.shape_cast %43 : vector<9x9x32xbf16> to vector<81x32xbf16>
    %c0_48 = arith.constant 0 : index
    %c192 = arith.constant 192 : index
    %45 = vector.load %arg11[%c0_48, %c192] : memref<81x512xbf16, #tpu.memory_space<vmem>>, vector<81x32xbf16>
    tpu.vector_store %arg11[%c0_48, %c192], %44 {strides = array<i32>} : memref<81x512xbf16, #tpu.memory_space<vmem>>, vector<81x32xbf16>,
    %c10_49 = arith.constant 10 : index
    %c11_50 = arith.constant 11 : index
    %c0_51 = arith.constant 0 : index
    %46 = vector.load %arg9[%c10_49, %c11_50, %c0_51] : memref<20x20x32xbf16, #tpu.memory_space<vmem>>, vector<9x9x32xbf16>
    %47 = vector.shape_cast %46 : vector<9x9x32xbf16> to vector<81x32xbf16>
    %c0_52 = arith.constant 0 : index
    %c224 = arith.constant 224 : index
    %48 = vector.load %arg11[%c0_52, %c224] : memref<81x512xbf16, #tpu.memory_space<vmem>>, vector<81x32xbf16>
    tpu.vector_store %arg11[%c0_52, %c224], %47 {strides = array<i32>} : memref<81x512xbf16, #tpu.memory_space<vmem>>, vector<81x32xbf16>,
    %c1_53 = arith.constant 1 : index
    %c0_54 = arith.constant 0 : index
    %c0_55 = arith.constant 0 : index
    %49 = vector.load %arg9[%c1_53, %c0_54, %c0_55] : memref<20x20x32xbf16, #tpu.memory_space<vmem>>, vector<9x9x32xbf16>
    %50 = vector.shape_cast %49 : vector<9x9x32xbf16> to vector<81x32xbf16>
    %c0_56 = arith.constant 0 : index
    %c256 = arith.constant 256 : index
    %51 = vector.load %arg11[%c0_56, %c256] : memref<81x512xbf16, #tpu.memory_space<vmem>>, vector<81x32xbf16>
    tpu.vector_store %arg11[%c0_56, %c256], %50 {strides = array<i32>} : memref<81x512xbf16, #tpu.memory_space<vmem>>, vector<81x32xbf16>,
    %c1_57 = arith.constant 1 : index
    %c10_58 = arith.constant 10 : index
    %c0_59 = arith.constant 0 : index
    %52 = vector.load %arg9[%c1_57, %c10_58, %c0_59] : memref<20x20x32xbf16, #tpu.memory_space<vmem>>, vector<9x9x32xbf16>
    %53 = vector.shape_cast %52 : vector<9x9x32xbf16> to vector<81x32xbf16>
    %c0_60 = arith.constant 0 : index
    %c288 = arith.constant 288 : index
    %54 = vector.load %arg11[%c0_60, %c288] : memref<81x512xbf16, #tpu.memory_space<vmem>>, vector<81x32xbf16>
    tpu.vector_store %arg11[%c0_60, %c288], %53 {strides = array<i32>} : memref<81x512xbf16, #tpu.memory_space<vmem>>, vector<81x32xbf16>,
    %c1_61 = arith.constant 1 : index
    %c1_62 = arith.constant 1 : index
    %c0_63 = arith.constant 0 : index
    %55 = vector.load %arg9[%c1_61, %c1_62, %c0_63] : memref<20x20x32xbf16, #tpu.memory_space<vmem>>, vector<9x9x32xbf16>
    %56 = vector.shape_cast %55 : vector<9x9x32xbf16> to vector<81x32xbf16>
    %c0_64 = arith.constant 0 : index
    %c320 = arith.constant 320 : index
    %57 = vector.load %arg11[%c0_64, %c320] : memref<81x512xbf16, #tpu.memory_space<vmem>>, vector<81x32xbf16>
    tpu.vector_store %arg11[%c0_64, %c320], %56 {strides = array<i32>} : memref<81x512xbf16, #tpu.memory_space<vmem>>, vector<81x32xbf16>,
    %c1_65 = arith.constant 1 : index
    %c11_66 = arith.constant 11 : index
    %c0_67 = arith.constant 0 : index
    %58 = vector.load %arg9[%c1_65, %c11_66, %c0_67] : memref<20x20x32xbf16, #tpu.memory_space<vmem>>, vector<9x9x32xbf16>
    %59 = vector.shape_cast %58 : vector<9x9x32xbf16> to vector<81x32xbf16>
    %c0_68 = arith.constant 0 : index
    %c352 = arith.constant 352 : index
    %60 = vector.load %arg11[%c0_68, %c352] : memref<81x512xbf16, #tpu.memory_space<vmem>>, vector<81x32xbf16>
    tpu.vector_store %arg11[%c0_68, %c352], %59 {strides = array<i32>} : memref<81x512xbf16, #tpu.memory_space<vmem>>, vector<81x32xbf16>,
    %c11_69 = arith.constant 11 : index
    %c0_70 = arith.constant 0 : index
    %c0_71 = arith.constant 0 : index
    %61 = vector.load %arg9[%c11_69, %c0_70, %c0_71] : memref<20x20x32xbf16, #tpu.memory_space<vmem>>, vector<9x9x32xbf16>
    %62 = vector.shape_cast %61 : vector<9x9x32xbf16> to vector<81x32xbf16>
    %c0_72 = arith.constant 0 : index
    %c384 = arith.constant 384 : index
    %63 = vector.load %arg11[%c0_72, %c384] : memref<81x512xbf16, #tpu.memory_space<vmem>>, vector<81x32xbf16>
    tpu.vector_store %arg11[%c0_72, %c384], %62 {strides = array<i32>} : memref<81x512xbf16, #tpu.memory_space<vmem>>, vector<81x32xbf16>,
    %c11_73 = arith.constant 11 : index
    %c10_74 = arith.constant 10 : index
    %c0_75 = arith.constant 0 : index
    %64 = vector.load %arg9[%c11_73, %c10_74, %c0_75] : memref<20x20x32xbf16, #tpu.memory_space<vmem>>, vector<9x9x32xbf16>
    %65 = vector.shape_cast %64 : vector<9x9x32xbf16> to vector<81x32xbf16>
    %c0_76 = arith.constant 0 : index
    %c416 = arith.constant 416 : index
    %66 = vector.load %arg11[%c0_76, %c416] : memref<81x512xbf16, #tpu.memory_space<vmem>>, vector<81x32xbf16>
    tpu.vector_store %arg11[%c0_76, %c416], %65 {strides = array<i32>} : memref<81x512xbf16, #tpu.memory_space<vmem>>, vector<81x32xbf16>,
    %c11_77 = arith.constant 11 : index
    %c1_78 = arith.constant 1 : index
    %c0_79 = arith.constant 0 : index
    %67 = vector.load %arg9[%c11_77, %c1_78, %c0_79] : memref<20x20x32xbf16, #tpu.memory_space<vmem>>, vector<9x9x32xbf16>
    %68 = vector.shape_cast %67 : vector<9x9x32xbf16> to vector<81x32xbf16>
    %c0_80 = arith.constant 0 : index
    %c448 = arith.constant 448 : index
    %69 = vector.load %arg11[%c0_80, %c448] : memref<81x512xbf16, #tpu.memory_space<vmem>>, vector<81x32xbf16>
    tpu.vector_store %arg11[%c0_80, %c448], %68 {strides = array<i32>} : memref<81x512xbf16, #tpu.memory_space<vmem>>, vector<81x32xbf16>,
    %c11_81 = arith.constant 11 : index
    %c11_82 = arith.constant 11 : index
    %c0_83 = arith.constant 0 : index
    %70 = vector.load %arg9[%c11_81, %c11_82, %c0_83] : memref<20x20x32xbf16, #tpu.memory_space<vmem>>, vector<9x9x32xbf16>
    %71 = vector.shape_cast %70 : vector<9x9x32xbf16> to vector<81x32xbf16>
    %c0_84 = arith.constant 0 : index
    %c480 = arith.constant 480 : index
    %72 = vector.load %arg11[%c0_84, %c480] : memref<81x512xbf16, #tpu.memory_space<vmem>>, vector<81x32xbf16>
    tpu.vector_store %arg11[%c0_84, %c480], %71 {strides = array<i32>} : memref<81x512xbf16, #tpu.memory_space<vmem>>, vector<81x32xbf16>,
    %c0_85 = arith.constant 0 : index
    %c0_86 = arith.constant 0 : index
    %73 = vector.load %arg11[%c0_85, %c0_86] : memref<81x512xbf16, #tpu.memory_space<vmem>>, vector<81x512xbf16>
    %c0_87 = arith.constant 0 : index
    %c0_88 = arith.constant 0 : index
    %74 = vector.load %arg4[%c0_87, %c0_88] : memref<512x64xbf16, #tpu.memory_space<vmem>>, vector<512x64xbf16>
    %cst_89 = arith.constant dense<0.000000e+00> : vector<81x64xf32>
    %75 = tpu.matmul %73, %74, %cst_89 {dimension_numbers = #tpu.dot_dimension_numbers<[1], [0], [0], [1], [0, 0, 1, 1], [], []>} : vector<81x512xbf16>, vector<512x64xbf16>, vector<81x64xf32> -> vector<81x64xf32>
    %76 = vector.broadcast %1 : vector<1x64xf32> to vector<81x64xf32>
    %77 = arith.addf %75, %76 : vector<81x64xf32>
    %cst_90 = arith.constant 0.000000e+00 : f32
    %78 = vector.broadcast %cst_90 : f32 to vector<81x64xf32>
    %79 = arith.maximumf %77, %78 : vector<81x64xf32>
    %80 = arith.truncf %79 : vector<81x64xf32> to vector<81x64xbf16>
    %81 = vector.shape_cast %80 : vector<81x64xbf16> to vector<9x9x64xbf16>
    %c0_91 = arith.constant 0 : index
    %c0_92 = arith.constant 0 : index
    %c0_93 = arith.constant 0 : index
    %82 = vector.load %arg10[%c0_91, %c0_92, %c0_93] : memref<9x9x64xbf16, #tpu.memory_space<vmem>>, vector<9x9x64xbf16>
    tpu.vector_store %arg10[%c0_91, %c0_92, %c0_93], %81 {strides = array<i32>} : memref<9x9x64xbf16, #tpu.memory_space<vmem>>, vector<9x9x64xbf16>,
    %c0_94 = arith.constant 0 : index
    %c0_95 = arith.constant 0 : index
    %c0_96 = arith.constant 0 : index
    %83 = vector.load %arg10[%c0_94, %c0_95, %c0_96] : memref<9x9x64xbf16, #tpu.memory_space<vmem>>, vector<7x7x64xbf16>
    %84 = vector.shape_cast %83 : vector<7x7x64xbf16> to vector<49x64xbf16>
    %c0_97 = arith.constant 0 : index
    %c0_98 = arith.constant 0 : index
    %85 = vector.load %arg12[%c0_97, %c0_98] : memref<49x576xbf16, #tpu.memory_space<vmem>>, vector<49x64xbf16>
    tpu.vector_store %arg12[%c0_97, %c0_98], %84 {strides = array<i32>} : memref<49x576xbf16, #tpu.memory_space<vmem>>, vector<49x64xbf16>,
    %c0_99 = arith.constant 0 : index
    %c1_100 = arith.constant 1 : index
    %c0_101 = arith.constant 0 : index
    %86 = vector.load %arg10[%c0_99, %c1_100, %c0_101] : memref<9x9x64xbf16, #tpu.memory_space<vmem>>, vector<7x7x64xbf16>
    %87 = vector.shape_cast %86 : vector<7x7x64xbf16> to vector<49x64xbf16>
    %c0_102 = arith.constant 0 : index
    %c64_103 = arith.constant 64 : index
    %88 = vector.load %arg12[%c0_102, %c64_103] : memref<49x576xbf16, #tpu.memory_space<vmem>>, vector<49x64xbf16>
    tpu.vector_store %arg12[%c0_102, %c64_103], %87 {strides = array<i32>} : memref<49x576xbf16, #tpu.memory_space<vmem>>, vector<49x64xbf16>,
    %c0_104 = arith.constant 0 : index
    %c2 = arith.constant 2 : index
    %c0_105 = arith.constant 0 : index
    %89 = vector.load %arg10[%c0_104, %c2, %c0_105] : memref<9x9x64xbf16, #tpu.memory_space<vmem>>, vector<7x7x64xbf16>
    %90 = vector.shape_cast %89 : vector<7x7x64xbf16> to vector<49x64xbf16>
    %c0_106 = arith.constant 0 : index
    %c128_107 = arith.constant 128 : index
    %91 = vector.load %arg12[%c0_106, %c128_107] : memref<49x576xbf16, #tpu.memory_space<vmem>>, vector<49x64xbf16>
    tpu.vector_store %arg12[%c0_106, %c128_107], %90 {strides = array<i32>} : memref<49x576xbf16, #tpu.memory_space<vmem>>, vector<49x64xbf16>,
    %c1_108 = arith.constant 1 : index
    %c0_109 = arith.constant 0 : index
    %c0_110 = arith.constant 0 : index
    %92 = vector.load %arg10[%c1_108, %c0_109, %c0_110] : memref<9x9x64xbf16, #tpu.memory_space<vmem>>, vector<7x7x64xbf16>
    %93 = vector.shape_cast %92 : vector<7x7x64xbf16> to vector<49x64xbf16>
    %c0_111 = arith.constant 0 : index
    %c192_112 = arith.constant 192 : index
    %94 = vector.load %arg12[%c0_111, %c192_112] : memref<49x576xbf16, #tpu.memory_space<vmem>>, vector<49x64xbf16>
    tpu.vector_store %arg12[%c0_111, %c192_112], %93 {strides = array<i32>} : memref<49x576xbf16, #tpu.memory_space<vmem>>, vector<49x64xbf16>,
    %c1_113 = arith.constant 1 : index
    %c1_114 = arith.constant 1 : index
    %c0_115 = arith.constant 0 : index
    %95 = vector.load %arg10[%c1_113, %c1_114, %c0_115] : memref<9x9x64xbf16, #tpu.memory_space<vmem>>, vector<7x7x64xbf16>
    %96 = vector.shape_cast %95 : vector<7x7x64xbf16> to vector<49x64xbf16>
    %c0_116 = arith.constant 0 : index
    %c256_117 = arith.constant 256 : index
    %97 = vector.load %arg12[%c0_116, %c256_117] : memref<49x576xbf16, #tpu.memory_space<vmem>>, vector<49x64xbf16>
    tpu.vector_store %arg12[%c0_116, %c256_117], %96 {strides = array<i32>} : memref<49x576xbf16, #tpu.memory_space<vmem>>, vector<49x64xbf16>,
    %c1_118 = arith.constant 1 : index
    %c2_119 = arith.constant 2 : index
    %c0_120 = arith.constant 0 : index
    %98 = vector.load %arg10[%c1_118, %c2_119, %c0_120] : memref<9x9x64xbf16, #tpu.memory_space<vmem>>, vector<7x7x64xbf16>
    %99 = vector.shape_cast %98 : vector<7x7x64xbf16> to vector<49x64xbf16>
    %c0_121 = arith.constant 0 : index
    %c320_122 = arith.constant 320 : index
    %100 = vector.load %arg12[%c0_121, %c320_122] : memref<49x576xbf16, #tpu.memory_space<vmem>>, vector<49x64xbf16>
    tpu.vector_store %arg12[%c0_121, %c320_122], %99 {strides = array<i32>} : memref<49x576xbf16, #tpu.memory_space<vmem>>, vector<49x64xbf16>,
    %c2_123 = arith.constant 2 : index
    %c0_124 = arith.constant 0 : index
    %c0_125 = arith.constant 0 : index
    %101 = vector.load %arg10[%c2_123, %c0_124, %c0_125] : memref<9x9x64xbf16, #tpu.memory_space<vmem>>, vector<7x7x64xbf16>
    %102 = vector.shape_cast %101 : vector<7x7x64xbf16> to vector<49x64xbf16>
    %c0_126 = arith.constant 0 : index
    %c384_127 = arith.constant 384 : index
    %103 = vector.load %arg12[%c0_126, %c384_127] : memref<49x576xbf16, #tpu.memory_space<vmem>>, vector<49x64xbf16>
    tpu.vector_store %arg12[%c0_126, %c384_127], %102 {strides = array<i32>} : memref<49x576xbf16, #tpu.memory_space<vmem>>, vector<49x64xbf16>,
    %c2_128 = arith.constant 2 : index
    %c1_129 = arith.constant 1 : index
    %c0_130 = arith.constant 0 : index
    %104 = vector.load %arg10[%c2_128, %c1_129, %c0_130] : memref<9x9x64xbf16, #tpu.memory_space<vmem>>, vector<7x7x64xbf16>
    %105 = vector.shape_cast %104 : vector<7x7x64xbf16> to vector<49x64xbf16>
    %c0_131 = arith.constant 0 : index
    %c448_132 = arith.constant 448 : index
    %106 = vector.load %arg12[%c0_131, %c448_132] : memref<49x576xbf16, #tpu.memory_space<vmem>>, vector<49x64xbf16>
    tpu.vector_store %arg12[%c0_131, %c448_132], %105 {strides = array<i32>} : memref<49x576xbf16, #tpu.memory_space<vmem>>, vector<49x64xbf16>,
    %c2_133 = arith.constant 2 : index
    %c2_134 = arith.constant 2 : index
    %c0_135 = arith.constant 0 : index
    %107 = vector.load %arg10[%c2_133, %c2_134, %c0_135] : memref<9x9x64xbf16, #tpu.memory_space<vmem>>, vector<7x7x64xbf16>
    %108 = vector.shape_cast %107 : vector<7x7x64xbf16> to vector<49x64xbf16>
    %c0_136 = arith.constant 0 : index
    %c512 = arith.constant 512 : index
    %109 = vector.load %arg12[%c0_136, %c512] : memref<49x576xbf16, #tpu.memory_space<vmem>>, vector<49x64xbf16>
    tpu.vector_store %arg12[%c0_136, %c512], %108 {strides = array<i32>} : memref<49x576xbf16, #tpu.memory_space<vmem>>, vector<49x64xbf16>,
    %c0_137 = arith.constant 0 : index
    %c0_138 = arith.constant 0 : index
    %110 = vector.load %arg12[%c0_137, %c0_138] : memref<49x576xbf16, #tpu.memory_space<vmem>>, vector<49x576xbf16>
    %c0_139 = arith.constant 0 : index
    %c0_140 = arith.constant 0 : index
    %111 = vector.load %arg6[%c0_139, %c0_140] : memref<576x64xbf16, #tpu.memory_space<vmem>>, vector<576x64xbf16>
    %cst_141 = arith.constant dense<0.000000e+00> : vector<49x64xf32>
    %112 = tpu.matmul %110, %111, %cst_141 {dimension_numbers = #tpu.dot_dimension_numbers<[1], [0], [0], [1], [0, 0, 1, 1], [], []>} : vector<49x576xbf16>, vector<576x64xbf16>, vector<49x64xf32> -> vector<49x64xf32>
    %113 = vector.broadcast %2 : vector<1x64xf32> to vector<49x64xf32>
    %114 = arith.addf %112, %113 : vector<49x64xf32>
    %cst_142 = arith.constant 0.000000e+00 : f32
    %115 = vector.broadcast %cst_142 : f32 to vector<49x64xf32>
    %116 = arith.maximumf %114, %115 : vector<49x64xf32>
    %c0_143 = arith.constant 0 : index
    %c0_144 = arith.constant 0 : index
    %c0_145 = arith.constant 0 : index
    %117 = vector.load %arg8[%c0_143, %c0_144, %c0_145] : memref<1x49x64xf32, #tpu.memory_space<vmem>>, vector<1x49x64xf32>
    %118 = vector.shape_cast %117 : vector<1x49x64xf32> to vector<49x64xf32>
    %119 = vector.shape_cast %116 : vector<49x64xf32> to vector<1x49x64xf32>
    tpu.vector_store %arg8[%c0_143, %c0_144, %c0_145], %119 {strides = array<i32>} : memref<1x49x64xf32, #tpu.memory_space<vmem>>, vector<1x49x64xf32>,
    return
  }
  func.func @transform_0(%arg0: i32) -> (i32, i32, i32) {
    %c0_i32 = arith.constant 0 : i32
    %c0_i32_0 = arith.constant 0 : i32
    %c0_i32_1 = arith.constant 0 : i32
    return %arg0, %c0_i32, %c0_i32_0 : i32, i32, i32
  }
  func.func @transform_1(%arg0: i32) -> (i32, i32) {
    %c0_i32 = arith.constant 0 : i32
    %c0_i32_0 = arith.constant 0 : i32
    %c0_i32_1 = arith.constant 0 : i32
    return %c0_i32, %c0_i32_0 : i32, i32
  }
  func.func @transform_2(%arg0: i32) -> (i32, i32) {
    %c0_i32 = arith.constant 0 : i32
    %c0_i32_0 = arith.constant 0 : i32
    %c0_i32_1 = arith.constant 0 : i32
    return %c0_i32, %c0_i32_0 : i32, i32
  }
  func.func @transform_3(%arg0: i32) -> (i32, i32) {
    %c0_i32 = arith.constant 0 : i32
    %c0_i32_0 = arith.constant 0 : i32
    %c0_i32_1 = arith.constant 0 : i32
    return %c0_i32, %c0_i32_0 : i32, i32
  }
  func.func @transform_4(%arg0: i32) -> (i32, i32) {
    %c0_i32 = arith.constant 0 : i32
    %c0_i32_0 = arith.constant 0 : i32
    %c0_i32_1 = arith.constant 0 : i32
    return %c0_i32, %c0_i32_0 : i32, i32
  }
  func.func @transform_5(%arg0: i32) -> (i32, i32) {
    %c0_i32 = arith.constant 0 : i32
    %c0_i32_0 = arith.constant 0 : i32
    %c0_i32_1 = arith.constant 0 : i32
    return %c0_i32, %c0_i32_0 : i32, i32
  }
  func.func @transform_6(%arg0: i32) -> (i32, i32) {
    %c0_i32 = arith.constant 0 : i32
    %c0_i32_0 = arith.constant 0 : i32
    %c0_i32_1 = arith.constant 0 : i32
    return %c0_i32, %c0_i32_0 : i32, i32
  }
  func.func @transform_7(%arg0: i32) -> (i32, i32, i32) {
    %c0_i32 = arith.constant 0 : i32
    %c0_i32_0 = arith.constant 0 : i32
    %c0_i32_1 = arith.constant 0 : i32
    return %arg0, %c0_i32, %c0_i32_0 : i32, i32, i32
  }
}

</mosaic_0001>

<llo_original>
// kernel: convnet_forward.1
$region0: #{convnet_forward.1}
  #allocation0 [shape = 'u32[]', space=smem, size = 0x4, offset = 0x4, fixed_abs, tag = 'smem constant byte address 0x4 - core index']
  #allocation1 [shape = 'u32[72,128]{1,0:T(1,128)}', space=vmem, size = 0x9000, scoped, tag = 'internal scratch']
  #allocation2 [shape = 'bf16[20,20,32]{2,1,0:T(8,128)(2,1)}', space=vmem, size = 0x1e000, scoped, tag = 'scratch operand']
  #allocation3 [shape = 'bf16[9,9,64]{2,1,0:T(8,128)(2,1)}', space=vmem, size = 0x9000, scoped, tag = 'scratch operand']
  #allocation4 [shape = 'bf16[81,512]{1,0:T(8,128)(2,1)}', space=vmem, size = 0x16000, scoped, tag = 'scratch operand']
  #allocation5 [shape = 'bf16[49,576]{1,0:T(8,128)(2,1)}', space=vmem, size = 0x11800, scoped, tag = 'scratch operand']
  %s0 = inlined_call_operand.vmem [shape: bf16[2,400,256], index: 0, kind: input, shape index: {}]
  %s1 = inlined_call_operand.vmem [shape: bf16[256,32], index: 1, kind: input, shape index: {}]
  %s2 = inlined_call_operand.vmem [shape: f32[1,32], index: 2, kind: input, shape index: {}]
  %s3 = inlined_call_operand.vmem [shape: bf16[512,64], index: 3, kind: input, shape index: {}]
  %s4 = inlined_call_operand.vmem [shape: f32[1,64], index: 4, kind: input, shape index: {}]
  %s5 = inlined_call_operand.vmem [shape: bf16[576,64], index: 5, kind: input, shape index: {}]
  %s6 = inlined_call_operand.vmem [shape: f32[1,64], index: 6, kind: input, shape index: {}]
  %s7 = inlined_call_operand.vmem [shape: f32[2,49,64], index: 7, kind: output, shape index: {}]
  %s8 = sld [smem:[#allocation0]]
  $region61: #{convnet_forward.1} parent=0
    _
  %s10 = ssub.s32 1, %s8
  %s11 = scalar_select 0, %s10, %s8
  loop: start=0, step=1, limit=4
  $region2: #{convnet_forward.1} parent=0 // loop_pre_header
    _
  $region3: #{convnet_forward.1} parent=0 // loop_header
    %s13 = sphi 0, %s17
    %p14 = scmp.ge.s32.totalorder %s13, 4
    %s23 = sphi 0, %s25
    %s26 = sphi 0, %s23
    %s27 = sphi 0, %s26
    %s43 = sphi 0, %s27
    %s47 = sphi 0, %s47
    %s49 = sphi 0, %s47
    %s50 = sphi 0, %s49
    %s64 = sphi 0, %s50
    %s68 = sphi 0, %s68
    %s70 = sphi 0, %s68
    %s71 = sphi 0, %s70
    %s85 = sphi 0, %s71
    %s89 = sphi 0, %s89
    %s91 = sphi 0, %s89
    %s92 = sphi 0, %s91
    %s106 = sphi 0, %s92
    %s110 = sphi 0, %s110
    %s112 = sphi 0, %s110
    %s113 = sphi 0, %s112
    %s127 = sphi 0, %s113
    %s131 = sphi 0, %s131
    %s133 = sphi 0, %s131
    %s134 = sphi 0, %s133
    %s148 = sphi 0, %s134
    %s152 = sphi 0, %s152
    %s154 = sphi 0, %s152
    %s155 = sphi 0, %s154
    %s169 = sphi 0, %s155
    %s175 = sphi 0, %s177
    %s178 = sphi 0, %s175
    %s179 = sphi 0, %s178
    %s195 = sphi 0, %s179
  $region4: #{convnet_forward.1} parent=0 // loop_header_branch
    %16 = sbr.rel (%p14) target = $region8
  $region5: #{convnet_forward.1} parent=0 // loop_body
    %s18 = ssub.s32 %s13, 1
    %s19 = ssub.s32 %s13, 2
    %s20 = sadd.s32 %s13, 1
    %s21 = ssub.s32 %s13, %s20
    %p22 = scmp.eq.s32.totalorder %s21, 0
    %s24 = sadd.s32 %s23, 1
    %s25 = scalar_select %p22, %s23, %s24
    %p28 = pneg %p22
    %p29 = scmp.eq.s32.totalorder %s13, 1
    %p30 = por %p28, %p29
    %p31 = scmp.ne.s32.totalorder %s23, %s26
    %p32 = scmp.eq.s32.totalorder %s13, 0
    %p33 = por %p31, %p32
    %p34 = scmp.ne.s32.totalorder %s23, %s26
    %p35 = scmp.eq.s32.totalorder %s18, 1
    %p36 = por %p34, %p35
    %p37 = scmp.ne.s32.totalorder %s26, %s27
    %p38 = scmp.eq.s32.totalorder %s18, 0
    %p39 = por %p37, %p38
    %p40 = scmp.ne.s32.totalorder %s26, %s27
    %p41 = scmp.eq.s32.totalorder %s19, 1
    %p42 = por %p40, %p41
    %p44 = scmp.ne.s32.totalorder %s27, %s43
    %p45 = scmp.eq.s32.totalorder %s19, 0
    %p46 = por %p44, %p45
    %s48 = sadd.s32 %s47, 1
    %p51 = scmp.eq.s32.totalorder %s13, 1
    %p52 = scmp.ne.s32.totalorder %s47, %s49
    %p53 = scmp.eq.s32.totalorder %s13, 0
    %p54 = por %p52, %p53
    %p55 = scmp.ne.s32.totalorder %s47, %s49
    %p56 = scmp.eq.s32.totalorder %s18, 1
    %p57 = por %p55, %p56
    %p58 = scmp.ne.s32.totalorder %s49, %s50
    %p59 = scmp.eq.s32.totalorder %s18, 0
    %p60 = por %p58, %p59
    %p61 = scmp.ne.s32.totalorder %s49, %s50
    %p62 = scmp.eq.s32.totalorder %s19, 1
    %p63 = por %p61, %p62
    %p65 = scmp.ne.s32.totalorder %s50, %s64
    %p66 = scmp.eq.s32.totalorder %s19, 0
    %p67 = por %p65, %p66
    %s69 = sadd.s32 %s68, 1
    %p72 = scmp.eq.s32.totalorder %s13, 1
    %p73 = scmp.ne.s32.totalorder %s68, %s70
    %p74 = scmp.eq.s32.totalorder %s13, 0
    %p75 = por %p73, %p74
    %p76 = scmp.ne.s32.totalorder %s68, %s70
    %p77 = scmp.eq.s32.totalorder %s18, 1
    %p78 = por %p76, %p77
    %p79 = scmp.ne.s32.totalorder %s70, %s71
    %p80 = scmp.eq.s32.totalorder %s18, 0
    %p81 = por %p79, %p80
    %p82 = scmp.ne.s32.totalorder %s70, %s71
    %p83 = scmp.eq.s32.totalorder %s19, 1
    %p84 = por %p82, %p83
    %p86 = scmp.ne.s32.totalorder %s71, %s85
    %p87 = scmp.eq.s32.totalorder %s19, 0
    %p88 = por %p86, %p87
    %s90 = sadd.s32 %s89, 1
    %p93 = scmp.eq.s32.totalorder %s13, 1
    %p94 = scmp.ne.s32.totalorder %s89, %s91
    %p95 = scmp.eq.s32.totalorder %s13, 0
    %p96 = por %p94, %p95
    %p97 = scmp.ne.s32.totalorder %s89, %s91
    %p98 = scmp.eq.s32.totalorder %s18, 1
    %p99 = por %p97, %p98
    %p100 = scmp.ne.s32.totalorder %s91, %s92
    %p101 = scmp.eq.s32.totalorder %s18, 0
    %p102 = por %p100, %p101
    %p103 = scmp.ne.s32.totalorder %s91, %s92
    %p104 = scmp.eq.s32.totalorder %s19, 1
    %p105 = por %p103, %p104
    %p107 = scmp.ne.s32.totalorder %s92, %s106
    %p108 = scmp.eq.s32.totalorder %s19, 0
    %p109 = por %p107, %p108
    %s111 = sadd.s32 %s110, 1
    %p114 = scmp.eq.s32.totalorder %s13, 1
    %p115 = scmp.ne.s32.totalorder %s110, %s112
    %p116 = scmp.eq.s32.totalorder %s13, 0
    %p117 = por %p115, %p116
    %p118 = scmp.ne.s32.totalorder %s110, %s112
    %p119 = scmp.eq.s32.totalorder %s18, 1
    %p120 = por %p118, %p119
    %p121 = scmp.ne.s32.totalorder %s112, %s113
    %p122 = scmp.eq.s32.totalorder %s18, 0
    %p123 = por %p121, %p122
    %p124 = scmp.ne.s32.totalorder %s112, %s113
    %p125 = scmp.eq.s32.totalorder %s19, 1
    %p126 = por %p124, %p125
    %p128 = scmp.ne.s32.totalorder %s113, %s127
    %p129 = scmp.eq.s32.totalorder %s19, 0
    %p130 = por %p128, %p129
    %s132 = sadd.s32 %s131, 1
    %p135 = scmp.eq.s32.totalorder %s13, 1
    %p136 = scmp.ne.s32.totalorder %s131, %s133
    %p137 = scmp.eq.s32.totalorder %s13, 0
    %p138 = por %p136, %p137
    %p139 = scmp.ne.s32.totalorder %s131, %s133
    %p140 = scmp.eq.s32.totalorder %s18, 1
    %p141 = por %p139, %p140
    %p142 = scmp.ne.s32.totalorder %s133, %s134
    %p143 = scmp.eq.s32.totalorder %s18, 0
    %p144 = por %p142, %p143
    %p145 = scmp.ne.s32.totalorder %s133, %s134
    %p146 = scmp.eq.s32.totalorder %s19, 1
    %p147 = por %p145, %p146
    %p149 = scmp.ne.s32.totalorder %s134, %s148
    %p150 = scmp.eq.s32.totalorder %s19, 0
    %p151 = por %p149, %p150
    %s153 = sadd.s32 %s152, 1
    %p156 = scmp.eq.s32.totalorder %s13, 1
    %p157 = scmp.ne.s32.totalorder %s152, %s154
    %p158 = scmp.eq.s32.totalorder %s13, 0
    %p159 = por %p157, %p158
    %p160 = scmp.ne.s32.totalorder %s152, %s154
    %p161 = scmp.eq.s32.totalorder %s18, 1
    %p162 = por %p160, %p161
    %p163 = scmp.ne.s32.totalorder %s154, %s155
    %p164 = scmp.eq.s32.totalorder %s18, 0
    %p165 = por %p163, %p164
    %p166 = scmp.ne.s32.totalorder %s154, %s155
    %p167 = scmp.eq.s32.totalorder %s19, 1
    %p168 = por %p166, %p167
    %p170 = scmp.ne.s32.totalorder %s155, %s169
    %p171 = scmp.eq.s32.totalorder %s19, 0
    %p172 = por %p170, %p171
    %s173 = ssub.s32 %s13, %s20
    %p174 = scmp.eq.s32.totalorder %s173, 0
    %s176 = sadd.s32 %s175, 1
    %s177 = scalar_select %p174, %s175, %s176
    %p180 = pneg %p174
    %p181 = scmp.eq.s32.totalorder %s13, 1
    %p182 = por %p180, %p181
    %p183 = scmp.ne.s32.totalorder %s175, %s178
    %p184 = scmp.eq.s32.totalorder %s13, 0
    %p185 = por %p183, %p184
    %p186 = scmp.ne.s32.totalorder %s175, %s178
    %p187 = scmp.eq.s32.totalorder %s18, 1
    %p188 = por %p186, %p187
    %p189 = scmp.ne.s32.totalorder %s178, %s179
    %p190 = scmp.eq.s32.totalorder %s18, 0
    %p191 = por %p189, %p190
    %p192 = scmp.ne.s32.totalorder %s178, %s179
    %p193 = scmp.eq.s32.totalorder %s19, 1
    %p194 = por %p192, %p193
    %p196 = scmp.ne.s32.totalorder %s179, %s195
    %p197 = scmp.eq.s32.totalorder %s19, 0
    %p198 = por %p196, %p197
    %p199 = scmp.le.s32.totalorder 1, %s13
    %p200 = scmp.lt.s32.totalorder %s13, 3
    %p201 = pnand %p199, %p200
    %p202 = pneg %p201
    // Predicated region
    $region9: #{convnet_forward.1} parent=5 // pred_check
      _
    $region10: #{convnet_forward.1} parent=5 // pred_check_branch
      %204 = sbr.rel (%p201) target = $region12
    $region11: #{convnet_forward.1} parent=5 // pred_region
      %s205 = ssub.s32 %s13, 1
      // Predicated region
      $region13: #{convnet_forward.1} parent=11 // pred_check
        %p206 = pneg %p60
      $region14: #{convnet_forward.1} parent=11 // pred_check_branch
        %208 = sbr.rel (%p206) target = $region16
      $region15: #{convnet_forward.1} parent=11 // pred_region
        _
      $region16: #{convnet_forward.1} parent=11 // pred_fallthru
        _
      // Predicated region
      $region17: #{convnet_forward.1} parent=11 // pred_check
        %p209 = pneg %p81
      $region18: #{convnet_forward.1} parent=11 // pred_check_branch
        %211 = sbr.rel (%p209) target = $region20
      $region19: #{convnet_forward.1} parent=11 // pred_region
        _
      $region20: #{convnet_forward.1} parent=11 // pred_fallthru
        _
      // Predicated region
      $region21: #{convnet_forward.1} parent=11 // pred_check
        %p212 = pneg %p102
      $region22: #{convnet_forward.1} parent=11 // pred_check_branch
        %214 = sbr.rel (%p212) target = $region24
      $region23: #{convnet_forward.1} parent=11 // pred_region
        _
      $region24: #{convnet_forward.1} parent=11 // pred_fallthru
        _
      // Predicated region
      $region25: #{convnet_forward.1} parent=11 // pred_check
        %p215 = pneg %p123
      $region26: #{convnet_forward.1} parent=11 // pred_check_branch
        %217 = sbr.rel (%p215) target = $region28
      $region27: #{convnet_forward.1} parent=11 // pred_region
        _
      $region28: #{convnet_forward.1} parent=11 // pred_fallthru
        _
      // Predicated region
      $region29: #{convnet_forward.1} parent=11 // pred_check
        %p218 = pneg %p144
      $region30: #{convnet_forward.1} parent=11 // pred_check_branch
        %220 = sbr.rel (%p218) target = $region32
      $region31: #{convnet_forward.1} parent=11 // pred_region
        _
      $region32: #{convnet_forward.1} parent=11 // pred_fallthru
        _
      // Predicated region
      $region33: #{convnet_forward.1} parent=11 // pred_check
        %p221 = pneg %p165
      $region34: #{convnet_forward.1} parent=11 // pred_check_branch
        %223 = sbr.rel (%p221) target = $region36
      $region35: #{convnet_forward.1} parent=11 // pred_region
        _
      $region36: #{convnet_forward.1} parent=11 // pred_fallthru
        _
    $region12: #{convnet_forward.1} parent=5 // pred_fallthru
      _
    %p224 = scmp.lt.s32.totalorder %s13, 2
    // Predicated region
    $region37: #{convnet_forward.1} parent=5 // pred_check
      %p225 = pneg %p224
    $region38: #{convnet_forward.1} parent=5 // pred_check_branch
      %227 = sbr.rel (%p225) target = $region40
    $region39: #{convnet_forward.1} parent=5 // pred_region
      // Predicated region
      $region41: #{convnet_forward.1} parent=39 // pred_check
        %p228 = pneg %p33
      $region42: #{convnet_forward.1} parent=39 // pred_check_branch
        %230 = sbr.rel (%p228) target = $region44
      $region43: #{convnet_forward.1} parent=39 // pred_region
        %p231 = scmp.lt.s32.totalorder %s13, 1
        %s232 = scalar_select %p231, %s13, 1
        %s233 = smul.addr %s232, 100
        %s234 = smul.addr %s233, 4
        %s235 = scalar_lea.vmem %s0, %s234
      $region44: #{convnet_forward.1} parent=39 // pred_fallthru
        _
    $region40: #{convnet_forward.1} parent=5 // pred_fallthru
      _
    %p236 = scmp.le.s32.totalorder 1, %s13
    %p237 = scmp.lt.s32.totalorder %s13, 3
    %p238 = pnand %p236, %p237
    %p239 = pneg %p238
    // Predicated region
    $region45: #{convnet_forward.1} parent=5 // pred_check
      _
    $region46: #{convnet_forward.1} parent=5 // pred_check_branch
      %241 = sbr.rel (%p238) target = $region48
    $region47: #{convnet_forward.1} parent=5 // pred_region
      %s242 = ssub.s32 %s13, 1
      %p243 = scmp.lt.s32.totalorder %s18, 1
      %s244 = scalar_select %p243, %s18, 1
      %s245 = smul.addr %s244, 100
      %s246 = smul.addr %s245, 4
      %s247 = scalar_lea.vmem %s0, %s246
      %p248 = pneg %p39
      %p249 = pneg %p36
      %p250 = pneg %p60
      %p251 = pneg %p57
      %p252 = pneg %p81
      %p253 = pneg %p78
      %p254 = pneg %p102
      %p255 = pneg %p99
      %p256 = pneg %p123
      %p257 = pneg %p120
      %p258 = pneg %p144
      %p259 = pneg %p141
      %p260 = pneg %p165
      %p261 = pneg %p162
      %p262 = pneg %p191
      %p263 = pneg %p188
      %p264 = scmp.lt.s32.totalorder %s18, 1
      %s265 = scalar_select %p264, %s18, 1
      %s266 = smul.addr %s265, 7
      %s267 = smul.addr %s266, 8
      %s268 = scalar_lea.vmem %s7, %s267
      %p269 = scmp.lt.s32.totalorder %s18, 1
      %s270 = scalar_select %p269, %s18, 1
      %s271 = smul.addr %s270, 100
      %s272 = smul.addr %s271, 4
      %s273 = scalar_lea.vmem %s0, %s272
      %p274 = scmp.lt.s32.totalorder %s18, 1
      %s275 = scalar_select %p274, %s18, 1
      %s276 = smul.addr %s275, 7
      %s277 = smul.addr %s276, 8
      %s278 = scalar_lea.vmem %s7, %s277
      %v280 = vld [vmem:[%s2] sm:$0x1]
      %v281 = vld [vmem:[%s4] sm:$0x1]
      %v282 = vld [vmem:[%s6] sm:$0x1]
      %v283 = vld [vmem:[%s273] sm:$0xff]
      %v284 = vld [vmem:[%s273 + $0x8] sm:$0xff]
      %v285 = vld [vmem:[%s273 + $0x10] sm:$0xff]
      %v286 = vld [vmem:[%s273 + $0x18] sm:$0xff]
      %v287 = vld [vmem:[%s273 + $0x20] sm:$0xff]
      %v288 = vld [vmem:[%s273 + $0x28] sm:$0xff]
      %v289 = vld [vmem:[%s273 + $0x30] sm:$0xff]
      %v290 = vld [vmem:[%s273 + $0x38] sm:$0xff]
      %v291 = vld [vmem:[%s273 + $0x40] sm:$0xff]
      %v292 = vld [vmem:[%s273 + $0x48] sm:$0xff]
      %v293 = vld [vmem:[%s273 + $0x50] sm:$0xff]
      %v294 = vld [vmem:[%s273 + $0x58] sm:$0xff]
      %v295 = vld [vmem:[%s273 + $0x60] sm:$0xff]
      %v296 = vld [vmem:[%s273 + $0x68] sm:$0xff]
      %v297 = vld [vmem:[%s273 + $0x70] sm:$0xff]
      %v298 = vld [vmem:[%s273 + $0x78] sm:$0xff]
      %v299 = vld [vmem:[%s273 + $0x80] sm:$0xff]
      %v300 = vld [vmem:[%s273 + $0x88] sm:$0xff]
      %v301 = vld [vmem:[%s273 + $0x90] sm:$0xff]
      %v302 = vld [vmem:[%s273 + $0x98] sm:$0xff]
      %v303 = vld [vmem:[%s273 + $0xa0] sm:$0xff]
      %v304 = vld [vmem:[%s273 + $0xa8] sm:$0xff]
      %v305 = vld [vmem:[%s273 + $0xb0] sm:$0xff]
      %v306 = vld [vmem:[%s273 + $0xb8] sm:$0xff]
      %v307 = vld [vmem:[%s273 + $0xc0] sm:$0xff]
      %v308 = vld [vmem:[%s1] sm:$0xf]
      %v309 = vld [vmem:[%s1 + $0x4] sm:$0xf]
      %v310 = vld [vmem:[%s1 + $0x8] sm:$0xf]
      %v311 = vld [vmem:[%s1 + $0xc] sm:$0xf]
      %v312 = vld [vmem:[%s1 + $0x10] sm:$0xf]
      %v313 = vld [vmem:[%s1 + $0x14] sm:$0xf]
      %v314 = vld [vmem:[%s1 + $0x18] sm:$0xf]
      %v315 = vld [vmem:[%s1 + $0x1c] sm:$0xf]
      %v316 = vld [vmem:[%s1 + $0x20] sm:$0xf]
      %v317 = vld [vmem:[%s1 + $0x24] sm:$0xf]
      %v318 = vld [vmem:[%s1 + $0x28] sm:$0xf]
      %v319 = vld [vmem:[%s1 + $0x2c] sm:$0xf]
      %v320 = vld [vmem:[%s1 + $0x30] sm:$0xf]
      %v321 = vld [vmem:[%s1 + $0x34] sm:$0xf]
      %v322 = vld [vmem:[%s1 + $0x38] sm:$0xf]
      %v323 = vld [vmem:[%s1 + $0x3c] sm:$0xf]
      %v324 = vld [vmem:[%s1 + $0x40] sm:$0xf]
      %v325 = vld [vmem:[%s1 + $0x44] sm:$0xf]
      %v326 = vld [vmem:[%s1 + $0x48] sm:$0xf]
      %v327 = vld [vmem:[%s1 + $0x4c] sm:$0xf]
      %v328 = vld [vmem:[%s1 + $0x50] sm:$0xf]
      %v329 = vld [vmem:[%s1 + $0x54] sm:$0xf]
      %v330 = vld [vmem:[%s1 + $0x58] sm:$0xf]
      %v331 = vld [vmem:[%s1 + $0x5c] sm:$0xf]
      %v332 = vld [vmem:[%s1 + $0x60] sm:$0xf]
      %v333 = vld [vmem:[%s1 + $0x64] sm:$0xf]
      %v334 = vld [vmem:[%s1 + $0x68] sm:$0xf]
      %v335 = vld [vmem:[%s1 + $0x6c] sm:$0xf]
      %v336 = vld [vmem:[%s1 + $0x70] sm:$0xf]
      %v337 = vld [vmem:[%s1 + $0x74] sm:$0xf]
      %v338 = vld [vmem:[%s1 + $0x78] sm:$0xf]
      %v339 = vld [vmem:[%s1 + $0x7c] sm:$0xf]
      %v341 = vperm.slane %v280, 0
      %v368 = vunpack.c.l.b16 %v283
      %v369 = vunpack.c.h.b16 %v283
      %v370 = vunpack.c.l.b16 %v284
      %v371 = vunpack.c.h.b16 %v284
      %v372 = vunpack.c.l.b16 %v285
      %v373 = vunpack.c.h.b16 %v285
      %v374 = vunpack.c.l.b16 %v286
      %v375 = vunpack.c.h.b16 %v286
      %v376 = vunpack.c.l.b16 %v287
      %v377 = vunpack.c.h.b16 %v287
      %v378 = vunpack.c.l.b16 %v288
      %v379 = vunpack.c.h.b16 %v288
      %v380 = vunpack.c.l.b16 %v289
      %v381 = vunpack.c.h.b16 %v289
      %v382 = vunpack.c.l.b16 %v290
      %v383 = vunpack.c.h.b16 %v290
      %v384 = vunpack.c.l.b16 %v291
      %v385 = vunpack.c.h.b16 %v291
      %v386 = vunpack.c.l.b16 %v292
      %v387 = vunpack.c.h.b16 %v292
      %v388 = vunpack.c.l.b16 %v293
      %v389 = vunpack.c.h.b16 %v293
      %v390 = vunpack.c.l.b16 %v294
      %v391 = vunpack.c.h.b16 %v294
      %v392 = vunpack.c.l.b16 %v295
      %v393 = vunpack.c.h.b16 %v295
      %v394 = vunpack.c.l.b16 %v296
      %v395 = vunpack.c.h.b16 %v296
      %v396 = vunpack.c.l.b16 %v297
      %v397 = vunpack.c.h.b16 %v297
      %v398 = vunpack.c.l.b16 %v298
      %v399 = vunpack.c.h.b16 %v298
      %v400 = vunpack.c.l.b16 %v299
      %v401 = vunpack.c.h.b16 %v299
      %v402 = vunpack.c.l.b16 %v300
      %v403 = vunpack.c.h.b16 %v300
      %v404 = vunpack.c.l.b16 %v301
      %v405 = vunpack.c.h.b16 %v301
      %v406 = vunpack.c.l.b16 %v302
      %v407 = vunpack.c.h.b16 %v302
      %v408 = vunpack.c.l.b16 %v303
      %v409 = vunpack.c.h.b16 %v303
      %v410 = vunpack.c.l.b16 %v304
      %v411 = vunpack.c.h.b16 %v304
      %v412 = vunpack.c.l.b16 %v305
      %v413 = vunpack.c.h.b16 %v305
      %v414 = vunpack.c.l.b16 %v306
      %v415 = vunpack.c.h.b16 %v306
      %v416 = vunpack.c.l.b16 %v307
      %v417 = vunpack.c.h.b16 %v307
      %v418 = vpack.c.b16 %v370, %v368
      %v419 = vpack.c.b16 %v371, %v369
      %v420 = vpack.c.b16 %v374, %v372
      %v421 = vpack.c.b16 %v375, %v373
      %v422 = vpack.c.b16 %v378, %v376
      %v423 = vpack.c.b16 %v379, %v377
      %v424 = vpack.c.b16 %v382, %v380
      %v425 = vpack.c.b16 %v383, %v381
      %v426 = vpack.c.b16 %v386, %v384
      %v427 = vpack.c.b16 %v387, %v385
      %v428 = vpack.c.b16 %v390, %v388
      %v429 = vpack.c.b16 %v391, %v389
      %v430 = vpack.c.b16 %v394, %v392
      %v431 = vpack.c.b16 %v395, %v393
      %v432 = vpack.c.b16 %v398, %v396
      %v433 = vpack.c.b16 %v399, %v397
      %v434 = vpack.c.b16 %v402, %v400
      %v435 = vpack.c.b16 %v403, %v401
      %v436 = vpack.c.b16 %v406, %v404
      %v437 = vpack.c.b16 %v407, %v405
      %v438 = vpack.c.b16 %v410, %v408
      %v439 = vpack.c.b16 %v411, %v409
      %v440 = vpack.c.b16 %v414, %v412
      %v441 = vpack.c.b16 %v415, %v413
      %v442 = vpack.c.b16 %v416, %v416
      %v443 = vpack.c.b16 %v417, %v417
      %v502 = vunpack.c.l.b16 %v308
      %v503 = vunpack.c.l.b16 %v309
      %v504 = vunpack.c.l.b16 %v310
      %v505 = vunpack.c.l.b16 %v311
      %v506 = vunpack.c.l.b16 %v312
      %v507 = vunpack.c.l.b16 %v313
      %v508 = vunpack.c.l.b16 %v314
      %v509 = vunpack.c.l.b16 %v315
      %v510 = vunpack.c.l.b16 %v316
      %v511 = vunpack.c.l.b16 %v317
      %v512 = vunpack.c.l.b16 %v318
      %v513 = vunpack.c.l.b16 %v319
      %v514 = vunpack.c.l.b16 %v320
      %v515 = vunpack.c.l.b16 %v321
      %v516 = vunpack.c.l.b16 %v322
      %v517 = vunpack.c.l.b16 %v323
      %v518 = vunpack.c.l.b16 %v324
      %v519 = vunpack.c.l.b16 %v325
      %v520 = vunpack.c.l.b16 %v326
      %v521 = vunpack.c.l.b16 %v327
      %v522 = vunpack.c.l.b16 %v328
      %v523 = vunpack.c.l.b16 %v329
      %v524 = vunpack.c.l.b16 %v330
      %v525 = vunpack.c.l.b16 %v331
      %v526 = vunpack.c.l.b16 %v332
      %v527 = vunpack.c.l.b16 %v333
      %v528 = vunpack.c.l.b16 %v334
      %v529 = vunpack.c.l.b16 %v335
      %v530 = vunpack.c.l.b16 %v336
      %v531 = vunpack.c.l.b16 %v337
      %v532 = vunpack.c.l.b16 %v338
      %v533 = vunpack.c.l.b16 %v339
      %v534 = vpack.c.b16 %v503, %v502
      %v535 = vpack.c.b16 %v505, %v504
      %v536 = vpack.c.b16 %v507, %v506
      %v537 = vpack.c.b16 %v509, %v508
      %v538 = vpack.c.b16 %v511, %v510
      %v539 = vpack.c.b16 %v513, %v512
      %v540 = vpack.c.b16 %v515, %v514
      %v541 = vpack.c.b16 %v517, %v516
      %v542 = vpack.c.b16 %v519, %v518
      %v543 = vpack.c.b16 %v521, %v520
      %v544 = vpack.c.b16 %v523, %v522
      %v545 = vpack.c.b16 %v525, %v524
      %v546 = vpack.c.b16 %v527, %v526
      %v547 = vpack.c.b16 %v529, %v528
      %v548 = vpack.c.b16 %v531, %v530
      %v549 = vpack.c.b16 %v533, %v532
      %566 = vmatpush.bf16.msra.mxu0 %v541
      %567 = vmatpush.bf16.msra.mxu0 %v540
      %568 = vmatpush.bf16.msra.mxu0 %v539
      %569 = vmatpush.bf16.msra.mxu0 %v538
      %570 = vmatpush.bf16.msra.mxu0 %v537
      %571 = vmatpush.bf16.msra.mxu0 %v536
      %572 = vmatpush.bf16.msra.mxu0 %v535
      %573 = vmatpush.bf16.msra.mxu0 %v534
      %574 = vmatmul.bf16.gmra.mxu0 %v418
      %v575 = vpop.f32.mrf.mxu0
      %v576 = vadd.f32 %v341, %v575
      %v577 = vpop.f32.mrf.mxu0
      %v578 = vadd.f32 %v341, %v577
      %579 = vmatmul.bf16.gmra.mxu0 %v420
      %v580 = vpop.f32.mrf.mxu0
      %v581 = vadd.f32 %v341, %v580
      %v582 = vpop.f32.mrf.mxu0
      %v583 = vadd.f32 %v341, %v582
      %584 = vmatmul.bf16.gmra.mxu0 %v422
      %v585 = vpop.f32.mrf.mxu0
      %v586 = vadd.f32 %v341, %v585
      %v587 = vpop.f32.mrf.mxu0
      %v588 = vadd.f32 %v341, %v587
      %589 = vmatmul.bf16.gmra.mxu0 %v424
      %v590 = vpop.f32.mrf.mxu0
      %v591 = vadd.f32 %v341, %v590
      %v592 = vpop.f32.mrf.mxu0
      %v593 = vadd.f32 %v341, %v592
      %594 = vmatmul.bf16.gmra.mxu0 %v426
      %v595 = vpop.f32.mrf.mxu0
      %v596 = vadd.f32 %v341, %v595
      %v597 = vpop.f32.mrf.mxu0
      %v598 = vadd.f32 %v341, %v597
      %599 = vmatmul.bf16.gmra.mxu0 %v428
      %v600 = vpop.f32.mrf.mxu0
      %v601 = vadd.f32 %v341, %v600
      %v602 = vpop.f32.mrf.mxu0
      %v603 = vadd.f32 %v341, %v602
      %604 = vmatmul.bf16.gmra.mxu0 %v430
      %v605 = vpop.f32.mrf.mxu0
      %v606 = vadd.f32 %v341, %v605
      %v607 = vpop.f32.mrf.mxu0
      %v608 = vadd.f32 %v341, %v607
      %609 = vmatmul.bf16.gmra.mxu0 %v432
      %v610 = vpop.f32.mrf.mxu0
      %v611 = vadd.f32 %v341, %v610
      %v612 = vpop.f32.mrf.mxu0
      %v613 = vadd.f32 %v341, %v612
      %614 = vmatmul.bf16.gmra.mxu0 %v434
      %v615 = vpop.f32.mrf.mxu0
      %v616 = vadd.f32 %v341, %v615
      %v617 = vpop.f32.mrf.mxu0
      %v618 = vadd.f32 %v341, %v617
      %619 = vmatmul.bf16.gmra.mxu0 %v436
      %v620 = vpop.f32.mrf.mxu0
      %v621 = vadd.f32 %v341, %v620
      %v622 = vpop.f32.mrf.mxu0
      %v623 = vadd.f32 %v341, %v622
      %624 = vmatmul.bf16.gmra.mxu0 %v438
      %v625 = vpop.f32.mrf.mxu0
      %v626 = vadd.f32 %v341, %v625
      %v627 = vpop.f32.mrf.mxu0
      %v628 = vadd.f32 %v341, %v627
      %629 = vmatmul.bf16.gmra.mxu0 %v440
      %v630 = vpop.f32.mrf.mxu0
      %v631 = vadd.f32 %v341, %v630
      %v632 = vpop.f32.mrf.mxu0
      %v633 = vadd.f32 %v341, %v632
      %634 = vmatmul.bf16.gmra.mxu0 %v442
      %v635 = vpop.f32.mrf.mxu0
      %v636 = vadd.f32 %v341, %v635
      %v637 = vpop.f32.mrf.mxu0
      %638 = vdwg.mxu0
      %639 = vmatpush.bf16.msra.mxu0 %v549
      %640 = vmatpush.bf16.msra.mxu0 %v548
      %641 = vmatpush.bf16.msra.mxu0 %v547
      %642 = vmatpush.bf16.msra.mxu0 %v546
      %643 = vmatpush.bf16.msra.mxu0 %v545
      %644 = vmatpush.bf16.msra.mxu0 %v544
      %645 = vmatpush.bf16.msra.mxu0 %v543
      %646 = vmatpush.bf16.msra.mxu0 %v542
      %647 = vmatmul.bf16.gmra.mxu0 %v419
      %v648 = vpop.f32.mrf.mxu0
      %v649 = vadd.f32 %v576, %v648
      %v650 = vpop.f32.mrf.mxu0
      %v651 = vadd.f32 %v578, %v650
      %652 = vmatmul.bf16.gmra.mxu0 %v421
      %v653 = vpop.f32.mrf.mxu0
      %v654 = vadd.f32 %v581, %v653
      %v655 = vpop.f32.mrf.mxu0
      %v656 = vadd.f32 %v583, %v655
      %657 = vmatmul.bf16.gmra.mxu0 %v423
      %v658 = vpop.f32.mrf.mxu0
      %v659 = vadd.f32 %v586, %v658
      %v660 = vpop.f32.mrf.mxu0
      %v661 = vadd.f32 %v588, %v660
      %662 = vmatmul.bf16.gmra.mxu0 %v425
      %v663 = vpop.f32.mrf.mxu0
      %v664 = vadd.f32 %v591, %v663
      %v665 = vpop.f32.mrf.mxu0
      %v666 = vadd.f32 %v593, %v665
      %667 = vmatmul.bf16.gmra.mxu0 %v427
      %v668 = vpop.f32.mrf.mxu0
      %v669 = vadd.f32 %v596, %v668
      %v670 = vpop.f32.mrf.mxu0
      %v671 = vadd.f32 %v598, %v670
      %672 = vmatmul.bf16.gmra.mxu0 %v429
      %v673 = vpop.f32.mrf.mxu0
      %v674 = vadd.f32 %v601, %v673
      %v675 = vpop.f32.mrf.mxu0
      %v676 = vadd.f32 %v603, %v675
      %677 = vmatmul.bf16.gmra.mxu0 %v431
      %v678 = vpop.f32.mrf.mxu0
      %v679 = vadd.f32 %v606, %v678
      %v680 = vpop.f32.mrf.mxu0
      %v681 = vadd.f32 %v608, %v680
      %682 = vmatmul.bf16.gmra.mxu0 %v433
      %v683 = vpop.f32.mrf.mxu0
      %v684 = vadd.f32 %v611, %v683
      %v685 = vpop.f32.mrf.mxu0
      %v686 = vadd.f32 %v613, %v685
      %687 = vmatmul.bf16.gmra.mxu0 %v435
      %v688 = vpop.f32.mrf.mxu0
      %v689 = vadd.f32 %v616, %v688
      %v690 = vpop.f32.mrf.mxu0
      %v691 = vadd.f32 %v618, %v690
      %692 = vmatmul.bf16.gmra.mxu0 %v437
      %v693 = vpop.f32.mrf.mxu0
      %v694 = vadd.f32 %v621, %v693
      %v695 = vpop.f32.mrf.mxu0
      %v696 = vadd.f32 %v623, %v695
      %697 = vmatmul.bf16.gmra.mxu0 %v439
      %v698 = vpop.f32.mrf.mxu0
      %v699 = vadd.f32 %v626, %v698
      %v700 = vpop.f32.mrf.mxu0
      %v701 = vadd.f32 %v628, %v700
      %702 = vmatmul.bf16.gmra.mxu0 %v441
      %v703 = vpop.f32.mrf.mxu0
      %v704 = vadd.f32 %v631, %v703
      %v705 = vpop.f32.mrf.mxu0
      %v706 = vadd.f32 %v633, %v705
      %707 = vmatmul.bf16.gmra.mxu0 %v443
      %v708 = vpop.f32.mrf.mxu0
      %v709 = vadd.f32 %v636, %v708
      %v710 = vpop.f32.mrf.mxu0
      %711 = vdwg.mxu0
      %v712 = vmax.f32 %v649, 0.0
      %v713 = vmax.f32 %v651, 0.0
      %v714 = vmax.f32 %v654, 0.0
      %v715 = vmax.f32 %v656, 0.0
      %v716 = vmax.f32 %v659, 0.0
      %v717 = vmax.f32 %v661, 0.0
      %v718 = vmax.f32 %v664, 0.0
      %v719 = vmax.f32 %v666, 0.0
      %v720 = vmax.f32 %v669, 0.0
      %v721 = vmax.f32 %v671, 0.0
      %v722 = vmax.f32 %v674, 0.0
      %v723 = vmax.f32 %v676, 0.0
      %v724 = vmax.f32 %v679, 0.0
      %v725 = vmax.f32 %v681, 0.0
      %v726 = vmax.f32 %v684, 0.0
      %v727 = vmax.f32 %v686, 0.0
      %v728 = vmax.f32 %v689, 0.0
      %v729 = vmax.f32 %v691, 0.0
      %v730 = vmax.f32 %v694, 0.0
      %v731 = vmax.f32 %v696, 0.0
      %v732 = vmax.f32 %v699, 0.0
      %v733 = vmax.f32 %v701, 0.0
      %v734 = vmax.f32 %v704, 0.0
      %v735 = vmax.f32 %v706, 0.0
      %v736 = vmax.f32 %v709, 0.0
      %v737 = vpack.c.bf16 %v712, %v712
      %v738 = vpack.c.bf16 %v713, %v713
      %v739 = vpack.c.bf16 %v714, %v714
      %v740 = vpack.c.bf16 %v715, %v715
      %v741 = vpack.c.bf16 %v716, %v716
      %v742 = vpack.c.bf16 %v717, %v717
      %v743 = vpack.c.bf16 %v718, %v718
      %v744 = vpack.c.bf16 %v719, %v719
      %v745 = vpack.c.bf16 %v720, %v720
      %v746 = vpack.c.bf16 %v721, %v721
      %v747 = vpack.c.bf16 %v722, %v722
      %v748 = vpack.c.bf16 %v723, %v723
      %v749 = vpack.c.bf16 %v724, %v724
      %v750 = vpack.c.bf16 %v725, %v725
      %v751 = vpack.c.bf16 %v726, %v726
      %v752 = vpack.c.bf16 %v727, %v727
      %v753 = vpack.c.bf16 %v728, %v728
      %v754 = vpack.c.bf16 %v729, %v729
      %v755 = vpack.c.bf16 %v730, %v730
      %v756 = vpack.c.bf16 %v731, %v731
      %v757 = vpack.c.bf16 %v732, %v732
      %v758 = vpack.c.bf16 %v733, %v733
      %v759 = vpack.c.bf16 %v734, %v734
      %v760 = vpack.c.bf16 %v735, %v735
      %v761 = vpack.c.bf16 %v736, %v736
      %v787 = vrot.slane %v737, 2
      %v788 = vrot.slane %v738, 2
      %v789 = vrot.slane %v739, 2
      %v790 = vrot.slane %v740, 2
      %v791 = vrot.slane %v741, 2
      %v792 = vrot.slane %v742, 2
      %v793 = vrot.slane %v743, 2
      %v794 = vrot.slane %v744, 2
      %v795 = vrot.slane %v745, 2
      %v796 = vrot.slane %v746, 2
      %v797 = vrot.slane %v747, 2
      %v798 = vrot.slane %v748, 2
      %v799 = vrot.slane %v749, 2
      %v800 = vrot.slane %v750, 2
      %v801 = vrot.slane %v751, 2
      %v802 = vrot.slane %v752, 2
      %v803 = vrot.slane %v753, 2
      %v804 = vrot.slane %v754, 2
      %v805 = vrot.slane %v755, 2
      %v806 = vrot.slane %v756, 2
      %v807 = vrot.slane %v757, 2
      %v808 = vrot.slane %v758, 2
      %v809 = vrot.slane %v759, 2
      %v810 = vrot.slane %v760, 2
      %v811 = vrot.slane %v761, 2
      %vm812 = vcmask 1041408
      %v815 = vsel %vm812, %v737, %v787
      %vm816 = vcmask 1043458
      %v817 = vsel %vm816, %v737, %v787
      %v819 = vrot.slane %v817, 2
      %v822 = vsel %vm812, %v738, %v788
      %v823 = vsel %vm816, %v738, %v788
      %v825 = vrot.slane %v823, 2
      %v828 = vsel %vm812, %v739, %v789
      %v829 = vsel %vm816, %v739, %v789
      %v831 = vrot.slane %v829, 2
      %v834 = vsel %vm812, %v740, %v790
      %v835 = vsel %vm816, %v740, %v790
      %v837 = vrot.slane %v835, 2
      %v840 = vsel %vm812, %v741, %v791
      %v841 = vsel %vm816, %v741, %v791
      %v843 = vrot.slane %v841, 2
      %v846 = vsel %vm812, %v742, %v792
      %v847 = vsel %vm816, %v742, %v792
      %v849 = vrot.slane %v847, 2
      %v852 = vsel %vm812, %v743, %v793
      %v853 = vsel %vm816, %v743, %v793
      %v855 = vrot.slane %v853, 2
      %v858 = vsel %vm812, %v744, %v794
      %v859 = vsel %vm816, %v744, %v794
      %v861 = vrot.slane %v859, 2
      %v864 = vsel %vm812, %v745, %v795
      %v865 = vsel %vm816, %v745, %v795
      %v867 = vrot.slane %v865, 2
      %v870 = vsel %vm812, %v746, %v796
      %v871 = vsel %vm816, %v746, %v796
      %v873 = vrot.slane %v871, 2
      %v876 = vsel %vm812, %v747, %v797
      %v877 = vsel %vm816, %v747, %v797
      %v879 = vrot.slane %v877, 2
      %v882 = vsel %vm812, %v748, %v798
      %v883 = vsel %vm816, %v748, %v798
      %v885 = vrot.slane %v883, 2
      %v888 = vsel %vm812, %v749, %v799
      %v889 = vsel %vm816, %v749, %v799
      %v891 = vrot.slane %v889, 2
      %v894 = vsel %vm812, %v750, %v800
      %v895 = vsel %vm816, %v750, %v800
      %v897 = vrot.slane %v895, 2
      %v900 = vsel %vm812, %v751, %v801
      %v901 = vsel %vm816, %v751, %v801
      %v903 = vrot.slane %v901, 2
      %v906 = vsel %vm812, %v752, %v802
      %v907 = vsel %vm816, %v752, %v802
      %v909 = vrot.slane %v907, 2
      %v912 = vsel %vm812, %v753, %v803
      %v913 = vsel %vm816, %v753, %v803
      %v915 = vrot.slane %v913, 2
      %v918 = vsel %vm812, %v754, %v804
      %v919 = vsel %vm816, %v754, %v804
      %v921 = vrot.slane %v919, 2
      %v924 = vsel %vm812, %v755, %v805
      %v925 = vsel %vm816, %v755, %v805
      %v927 = vrot.slane %v925, 2
      %v930 = vsel %vm812, %v756, %v806
      %v931 = vsel %vm816, %v756, %v806
      %v933 = vrot.slane %v931, 2
      %v936 = vsel %vm812, %v757, %v807
      %v937 = vsel %vm816, %v757, %v807
      %v939 = vrot.slane %v937, 2
      %v942 = vsel %vm812, %v758, %v808
      %v943 = vsel %vm816, %v758, %v808
      %v945 = vrot.slane %v943, 2
      %v948 = vsel %vm812, %v759, %v809
      %v949 = vsel %vm816, %v759, %v809
      %v951 = vrot.slane %v949, 2
      %v954 = vsel %vm812, %v760, %v810
      %v955 = vsel %vm816, %v760, %v810
      %v957 = vrot.slane %v955, 2
      %v960 = vsel %vm812, %v761, %v811
      %v961 = vsel %vm816, %v761, %v811
      %v963 = vrot.slane %v961, 2
      %964 = vst [vmem:[#allocation1] ss:$2 sm:$0xff] %v815
      %s966 = scalar_lea.vmem [#allocation1], 1
      %967 = vst [vmem:[%s966] ss:$2 sm:$0xff] %v819
      %s968 = scalar_lea.vmem [#allocation1], 16
      %969 = vst [vmem:[%s968] ss:$2 sm:$0xff] %v822
      %s971 = scalar_lea.vmem [#allocation1], 17
      %972 = vst [vmem:[%s971] ss:$2 sm:$0xff] %v825
      %s973 = scalar_lea.vmem [#allocation1], 32
      %974 = vst [vmem:[%s973] ss:$2 sm:$0xff] %v828
      %v975 = vld.sshfl [vmem:[#allocation1] sm:$0xff pattern:$0x75643120]
      %v976 = vld.sshfl [vmem:[#allocation1 + $0x10] sm:$0xff pattern:$0x75643120]
      %v977 = vld.sshfl [vmem:[#allocation1 + $0x20] sm:$0xff pattern:$0x75643120]
      %s979 = scalar_lea.vmem [#allocation1], 48
      %980 = vst [vmem:[%s979] ss:$2 sm:$0xff] %v831
      %s981 = scalar_lea.vmem [#allocation1], 49
      %982 = vst [vmem:[%s981] ss:$2 sm:$0xff] %v834
      %v983 = vld.sshfl [vmem:[#allocation1 + $0x30] sm:$0xff pattern:$0x75643120]
      %985 = vst [vmem:[#allocation1] ss:$2 sm:$0xff] %v837
      %986 = vst [vmem:[%s966] ss:$2 sm:$0xff] %v840
      %988 = vst [vmem:[%s968] ss:$2 sm:$0xff] %v843
      %v989 = vld.sshfl [vmem:[#allocation1] sm:$0xff pattern:$0x75643120]
      %v990 = vld.sshfl [vmem:[#allocation1 + $0x10] sm:$0xff pattern:$0x75643120]
      %991 = vst [vmem:[%s973] ss:$2 sm:$0xff] %v846
      %s993 = scalar_lea.vmem [#allocation1], 33
      %994 = vst [vmem:[%s993] ss:$2 sm:$0xff] %v849
      %995 = vst [vmem:[%s979] ss:$2 sm:$0xff] %v852
      %997 = vst [vmem:[%s981] ss:$2 sm:$0xff] %v855
      %v998 = vld.sshfl [vmem:[#allocation1 + $0x20] sm:$0xff pattern:$0x75643120]
      %v999 = vld.sshfl [vmem:[#allocation1 + $0x30] sm:$0xff pattern:$0x75643120]
      %1000 = vst [vmem:[#allocation1] ss:$2 sm:$0xff] %v858
      %v1001 = vld.sshfl [vmem:[#allocation1] sm:$0xff pattern:$0x75643120]
      %1003 = vst [vmem:[%s968] ss:$2 sm:$0xff] %v861
      %1004 = vst [vmem:[%s971] ss:$2 sm:$0xff] %v864
      %1006 = vst [vmem:[%s973] ss:$2 sm:$0xff] %v867
      %1007 = vst [vmem:[%s993] ss:$2 sm:$0xff] %v870
      %1009 = vst [vmem:[%s979] ss:$2 sm:$0xff] %v873
      %v1010 = vld.sshfl [vmem:[#allocation1 + $0x10] sm:$0xff pattern:$0x75643120]
      %v1011 = vld.sshfl [vmem:[#allocation1 + $0x20] sm:$0xff pattern:$0x75643120]
      %v1012 = vld.sshfl [vmem:[#allocation1 + $0x30] sm:$0xff pattern:$0x75643120]
      %1013 = vst [vmem:[#allocation1] ss:$2 sm:$0xff] %v876
      %1015 = vst [vmem:[%s966] ss:$2 sm:$0xff] %v879
      %1016 = vst [vmem:[%s968] ss:$2 sm:$0xff] %v882
      %1018 = vst [vmem:[%s971] ss:$2 sm:$0xff] %v885
      %1019 = vst [vmem:[%s973] ss:$2 sm:$0xff] %v888
      %v1020 = vld.sshfl [vmem:[#allocation1] sm:$0xff pattern:$0x75643120]
      %v1021 = vld.sshfl [vmem:[#allocation1 + $0x10] sm:$0xff pattern:$0x75643120]
      %v1022 = vld.sshfl [vmem:[#allocation1 + $0x20] sm:$0xff pattern:$0x75643120]
      %1024 = vst [vmem:[%s979] ss:$2 sm:$0xff] %v891
      %1025 = vst [vmem:[%s981] ss:$2 sm:$0xff] %v894
      %v1026 = vld.sshfl [vmem:[#allocation1 + $0x30] sm:$0xff pattern:$0x75643120]
      %1028 = vst [vmem:[#allocation1] ss:$2 sm:$0xff] %v897
      %1029 = vst [vmem:[%s966] ss:$2 sm:$0xff] %v900
      %1031 = vst [vmem:[%s968] ss:$2 sm:$0xff] %v903
      %v1032 = vld.sshfl [vmem:[#allocation1] sm:$0xff pattern:$0x75643120]
      %v1033 = vld.sshfl [vmem:[#allocation1 + $0x10] sm:$0xff pattern:$0x75643120]
      %1034 = vst [vmem:[%s973] ss:$2 sm:$0xff] %v906
      %1036 = vst [vmem:[%s993] ss:$2 sm:$0xff] %v909
      %1037 = vst [vmem:[%s979] ss:$2 sm:$0xff] %v912
      %1039 = vst [vmem:[%s981] ss:$2 sm:$0xff] %v915
      %v1040 = vld.sshfl [vmem:[#allocation1 + $0x20] sm:$0xff pattern:$0x75643120]
      %v1041 = vld.sshfl [vmem:[#allocation1 + $0x30] sm:$0xff pattern:$0x75643120]
      %1042 = vst [vmem:[#allocation1] ss:$2 sm:$0xff] %v918
      %v1043 = vld.sshfl [vmem:[#allocation1] sm:$0xff pattern:$0x75643120]
      %1045 = vst [vmem:[%s968] ss:$2 sm:$0xff] %v921
      %1046 = vst [vmem:[%s971] ss:$2 sm:$0xff] %v924
      %1048 = vst [vmem:[%s973] ss:$2 sm:$0xff] %v927
      %1049 = vst [vmem:[%s993] ss:$2 sm:$0xff] %v930
      %1051 = vst [vmem:[%s979] ss:$2 sm:$0xff] %v933
      %v1052 = vld.sshfl [vmem:[#allocation1 + $0x10] sm:$0xff pattern:$0x75643120]
      %v1053 = vld.sshfl [vmem:[#allocation1 + $0x20] sm:$0xff pattern:$0x75643120]
      %v1054 = vld.sshfl [vmem:[#allocation1 + $0x30] sm:$0xff pattern:$0x75643120]
      %1055 = vst [vmem:[#allocation1] ss:$2 sm:$0xff] %v936
      %1057 = vst [vmem:[%s966] ss:$2 sm:$0xff] %v939
      %1058 = vst [vmem:[%s968] ss:$2 sm:$0xff] %v942
      %1060 = vst [vmem:[%s971] ss:$2 sm:$0xff] %v945
      %1061 = vst [vmem:[%s973] ss:$2 sm:$0xff] %v948
      %v1062 = vld.sshfl [vmem:[#allocation1] sm:$0xff pattern:$0x75643120]
      %v1063 = vld.sshfl [vmem:[#allocation1 + $0x10] sm:$0xff pattern:$0x75643120]
      %v1064 = vld.sshfl [vmem:[#allocation1 + $0x20] sm:$0xff pattern:$0x75643120]
      %1066 = vst [vmem:[%s979] ss:$2 sm:$0xff] %v951
      %1067 = vst [vmem:[%s981] ss:$2 sm:$0xff] %v954
      %v1068 = vld.sshfl [vmem:[#allocation1 + $0x30] sm:$0xff pattern:$0x75643120]
      %1070 = vst [vmem:[#allocation1] ss:$2 sm:$0xff] %v957
      %1071 = vst [vmem:[%s966] ss:$2 sm:$0xff] %v960
      %1073 = vst [vmem:[%s968] ss:$2 sm:$0xff] %v963
      %v1074 = vld.sshfl [vmem:[#allocation1] sm:$0xff pattern:$0x75643120]
      %v1075 = vld.sshfl [vmem:[#allocation1 + $0x10] sm:$0xff pattern:$0x75643120]
      %vm1106 = vcmask 257024
      %1107 = vst.msk [vmem:[#allocation2] sm:$0xf] %vm1106, %v975
      %1108 = vst.msk [vmem:[#allocation2 + $0x4] sm:$0xf] %vm1106, %v976
      %vm1109 = vcmask 254976
      %1110 = vst.msk [vmem:[#allocation2 + $0x8] sm:$0x3] %vm1109, %v977
      %1111 = vst.msk [vmem:[#allocation2 + $0xc] sm:$0xf] %vm1106, %v983
      %1112 = vst.msk [vmem:[#allocation2 + $0x10] sm:$0xf] %vm1106, %v989
      %1113 = vst.msk [vmem:[#allocation2 + $0x14] sm:$0x3] %vm1109, %v990
      %1114 = vst.msk [vmem:[#allocation2 + $0x18] sm:$0xf] %vm1106, %v998
      %1115 = vst.msk [vmem:[#allocation2 + $0x1c] sm:$0xf] %vm1106, %v999
      %1116 = vst.msk [vmem:[#allocation2 + $0x20] sm:$0x3] %vm1109, %v1001
      %1117 = vst.msk [vmem:[#allocation2 + $0x24] sm:$0xf] %vm1106, %v1010
      %1118 = vst.msk [vmem:[#allocation2 + $0x28] sm:$0xf] %vm1106, %v1011
      %1119 = vst.msk [vmem:[#allocation2 + $0x2c] sm:$0x3] %vm1109, %v1012
      %1120 = vst.msk [vmem:[#allocation2 + $0x30] sm:$0xf] %vm1106, %v1020
      %1121 = vst.msk [vmem:[#allocation2 + $0x34] sm:$0xf] %vm1106, %v1021
      %1122 = vst.msk [vmem:[#allocation2 + $0x38] sm:$0x3] %vm1109, %v1022
      %1123 = vst.msk [vmem:[#allocation2 + $0x3c] sm:$0xf] %vm1106, %v1026
      %1124 = vst.msk [vmem:[#allocation2 + $0x40] sm:$0xf] %vm1106, %v1032
      %1125 = vst.msk [vmem:[#allocation2 + $0x44] sm:$0x3] %vm1109, %v1033
      %1126 = vst.msk [vmem:[#allocation2 + $0x48] sm:$0xf] %vm1106, %v1040
      %1127 = vst.msk [vmem:[#allocation2 + $0x4c] sm:$0xf] %vm1106, %v1041
      %1128 = vst.msk [vmem:[#allocation2 + $0x50] sm:$0x3] %vm1109, %v1043
      %1129 = vst.msk [vmem:[#allocation2 + $0x54] sm:$0xf] %vm1106, %v1052
      %1130 = vst.msk [vmem:[#allocation2 + $0x58] sm:$0xf] %vm1106, %v1053
      %1131 = vst.msk [vmem:[#allocation2 + $0x5c] sm:$0x3] %vm1109, %v1054
      %1132 = vst.msk [vmem:[#allocation2 + $0x60] sm:$0xf] %vm1106, %v1062
      %1133 = vst.msk [vmem:[#allocation2 + $0x64] sm:$0xf] %vm1106, %v1063
      %1134 = vst.msk [vmem:[#allocation2 + $0x68] sm:$0x3] %vm1109, %v1064
      %1135 = vst.msk [vmem:[#allocation2 + $0x6c] sm:$0xf] %vm1106, %v1068
      %1136 = vst.msk [vmem:[#allocation2 + $0x70] sm:$0xf] %vm1106, %v1074
      %1137 = vst.msk [vmem:[#allocation2 + $0x74] sm:$0x3] %vm1109, %v1075
      %v1138 = vld [vmem:[%s273 + $0xc8] sm:$0xff]
      %v1139 = vld [vmem:[%s273 + $0xd0] sm:$0xff]
      %v1140 = vld [vmem:[%s273 + $0xd8] sm:$0xff]
      %v1141 = vld [vmem:[%s273 + $0xe0] sm:$0xff]
      %v1142 = vld [vmem:[%s273 + $0xe8] sm:$0xff]
      %v1143 = vld [vmem:[%s273 + $0xf0] sm:$0xff]
      %v1144 = vld [vmem:[%s273 + $0xf8] sm:$0xff]
      %v1145 = vld [vmem:[%s273 + $0x100] sm:$0xff]
      %v1146 = vld [vmem:[%s273 + $0x108] sm:$0xff]
      %v1147 = vld [vmem:[%s273 + $0x110] sm:$0xff]
      %v1148 = vld [vmem:[%s273 + $0x118] sm:$0xff]
      %v1149 = vld [vmem:[%s273 + $0x120] sm:$0xff]
      %v1150 = vld [vmem:[%s273 + $0x128] sm:$0xff]
      %v1151 = vld [vmem:[%s273 + $0x130] sm:$0xff]
      %v1152 = vld [vmem:[%s273 + $0x138] sm:$0xff]
      %v1153 = vld [vmem:[%s273 + $0x140] sm:$0xff]
      %v1154 = vld [vmem:[%s273 + $0x148] sm:$0xff]
      %v1155 = vld [vmem:[%s273 + $0x150] sm:$0xff]
      %v1156 = vld [vmem:[%s273 + $0x158] sm:$0xff]
      %v1157 = vld [vmem:[%s273 + $0x160] sm:$0xff]
      %v1158 = vld [vmem:[%s273 + $0x168] sm:$0xff]
      %v1159 = vld [vmem:[%s273 + $0x170] sm:$0xff]
      %v1160 = vld [vmem:[%s273 + $0x178] sm:$0xff]
      %v1161 = vld [vmem:[%s273 + $0x180] sm:$0xff]
      %v1162 = vld [vmem:[%s273 + $0x188] sm:$0xff]
      %v1163 = vld [vmem:[%s1] sm:$0xf]
      %v1164 = vld [vmem:[%s1 + $0x4] sm:$0xf]
      %v1165 = vld [vmem:[%s1 + $0x8] sm:$0xf]
      %v1166 = vld [vmem:[%s1 + $0xc] sm:$0xf]
      %v1167 = vld [vmem:[%s1 + $0x10] sm:$0xf]
      %v1168 = vld [vmem:[%s1 + $0x14] sm:$0xf]
      %v1169 = vld [vmem:[%s1 + $0x18] sm:$0xf]
      %v1170 = vld [vmem:[%s1 + $0x1c] sm:$0xf]
      %v1171 = vld [vmem:[%s1 + $0x20] sm:$0xf]
      %v1172 = vld [vmem:[%s1 + $0x24] sm:$0xf]
      %v1173 = vld [vmem:[%s1 + $0x28] sm:$0xf]
      %v1174 = vld [vmem:[%s1 + $0x2c] sm:$0xf]
      %v1175 = vld [vmem:[%s1 + $0x30] sm:$0xf]
      %v1176 = vld [vmem:[%s1 + $0x34] sm:$0xf]
      %v1177 = vld [vmem:[%s1 + $0x38] sm:$0xf]
      %v1178 = vld [vmem:[%s1 + $0x3c] sm:$0xf]
      %v1179 = vld [vmem:[%s1 + $0x40] sm:$0xf]
      %v1180 = vld [vmem:[%s1 + $0x44] sm:$0xf]
      %v1181 = vld [vmem:[%s1 + $0x48] sm:$0xf]
      %v1182 = vld [vmem:[%s1 + $0x4c] sm:$0xf]
      %v1183 = vld [vmem:[%s1 + $0x50] sm:$0xf]
      %v1184 = vld [vmem:[%s1 + $0x54] sm:$0xf]
      %v1185 = vld [vmem:[%s1 + $0x58] sm:$0xf]
      %v1186 = vld [vmem:[%s1 + $0x5c] sm:$0xf]
      %v1187 = vld [vmem:[%s1 + $0x60] sm:$0xf]
      %v1188 = vld [vmem:[%s1 + $0x64] sm:$0xf]
      %v1189 = vld [vmem:[%s1 + $0x68] sm:$0xf]
      %v1190 = vld [vmem:[%s1 + $0x6c] sm:$0xf]
      %v1191 = vld [vmem:[%s1 + $0x70] sm:$0xf]
      %v1192 = vld [vmem:[%s1 + $0x74] sm:$0xf]
      %v1193 = vld [vmem:[%s1 + $0x78] sm:$0xf]
      %v1194 = vld [vmem:[%s1 + $0x7c] sm:$0xf]
      %v1220 = vunpack.c.l.b16 %v1138
      %v1221 = vunpack.c.h.b16 %v1138
      %v1222 = vunpack.c.l.b16 %v1139
      %v1223 = vunpack.c.h.b16 %v1139
      %v1224 = vunpack.c.l.b16 %v1140
      %v1225 = vunpack.c.h.b16 %v1140
      %v1226 = vunpack.c.l.b16 %v1141
      %v1227 = vunpack.c.h.b16 %v1141
      %v1228 = vunpack.c.l.b16 %v1142
      %v1229 = vunpack.c.h.b16 %v1142
      %v1230 = vunpack.c.l.b16 %v1143
      %v1231 = vunpack.c.h.b16 %v1143
      %v1232 = vunpack.c.l.b16 %v1144
      %v1233 = vunpack.c.h.b16 %v1144
      %v1234 = vunpack.c.l.b16 %v1145
      %v1235 = vunpack.c.h.b16 %v1145
      %v1236 = vunpack.c.l.b16 %v1146
      %v1237 = vunpack.c.h.b16 %v1146
      %v1238 = vunpack.c.l.b16 %v1147
      %v1239 = vunpack.c.h.b16 %v1147
      %v1240 = vunpack.c.l.b16 %v1148
      %v1241 = vunpack.c.h.b16 %v1148
      %v1242 = vunpack.c.l.b16 %v1149
      %v1243 = vunpack.c.h.b16 %v1149
      %v1244 = vunpack.c.l.b16 %v1150
      %v1245 = vunpack.c.h.b16 %v1150
      %v1246 = vunpack.c.l.b16 %v1151
      %v1247 = vunpack.c.h.b16 %v1151
      %v1248 = vunpack.c.l.b16 %v1152
      %v1249 = vunpack.c.h.b16 %v1152
      %v1250 = vunpack.c.l.b16 %v1153
      %v1251 = vunpack.c.h.b16 %v1153
      %v1252 = vunpack.c.l.b16 %v1154
      %v1253 = vunpack.c.h.b16 %v1154
      %v1254 = vunpack.c.l.b16 %v1155
      %v1255 = vunpack.c.h.b16 %v1155
      %v1256 = vunpack.c.l.b16 %v1156
      %v1257 = vunpack.c.h.b16 %v1156
      %v1258 = vunpack.c.l.b16 %v1157
      %v1259 = vunpack.c.h.b16 %v1157
      %v1260 = vunpack.c.l.b16 %v1158
      %v1261 = vunpack.c.h.b16 %v1158
      %v1262 = vunpack.c.l.b16 %v1159
      %v1263 = vunpack.c.h.b16 %v1159
      %v1264 = vunpack.c.l.b16 %v1160
      %v1265 = vunpack.c.h.b16 %v1160
      %v1266 = vunpack.c.l.b16 %v1161
      %v1267 = vunpack.c.h.b16 %v1161
      %v1268 = vunpack.c.l.b16 %v1162
      %v1269 = vunpack.c.h.b16 %v1162
      %v1270 = vpack.c.b16 %v1222, %v1220
      %v1271 = vpack.c.b16 %v1223, %v1221
      %v1272 = vpack.c.b16 %v1226, %v1224
      %v1273 = vpack.c.b16 %v1227, %v1225
      %v1274 = vpack.c.b16 %v1230, %v1228
      %v1275 = vpack.c.b16 %v1231, %v1229
      %v1276 = vpack.c.b16 %v1234, %v1232
      %v1277 = vpack.c.b16 %v1235, %v1233
      %v1278 = vpack.c.b16 %v1238, %v1236
      %v1279 = vpack.c.b16 %v1239, %v1237
      %v1280 = vpack.c.b16 %v1242, %v1240
      %v1281 = vpack.c.b16 %v1243, %v1241
      %v1282 = vpack.c.b16 %v1246, %v1244
      %v1283 = vpack.c.b16 %v1247, %v1245
      %v1284 = vpack.c.b16 %v1250, %v1248
      %v1285 = vpack.c.b16 %v1251, %v1249
      %v1286 = vpack.c.b16 %v1254, %v1252
      %v1287 = vpack.c.b16 %v1255, %v1253
      %v1288 = vpack.c.b16 %v1258, %v1256
      %v1289 = vpack.c.b16 %v1259, %v1257
      %v1290 = vpack.c.b16 %v1262, %v1260
      %v1291 = vpack.c.b16 %v1263, %v1261
      %v1292 = vpack.c.b16 %v1266, %v1264
      %v1293 = vpack.c.b16 %v1267, %v1265
      %v1294 = vpack.c.b16 %v1268, %v1268
      %v1295 = vpack.c.b16 %v1269, %v1269
      %v1354 = vunpack.c.l.b16 %v1163
      %v1355 = vunpack.c.l.b16 %v1164
      %v1356 = vunpack.c.l.b16 %v1165
      %v1357 = vunpack.c.l.b16 %v1166
      %v1358 = vunpack.c.l.b16 %v1167
      %v1359 = vunpack.c.l.b16 %v1168
      %v1360 = vunpack.c.l.b16 %v1169
      %v1361 = vunpack.c.l.b16 %v1170
      %v1362 = vunpack.c.l.b16 %v1171
      %v1363 = vunpack.c.l.b16 %v1172
      %v1364 = vunpack.c.l.b16 %v1173
      %v1365 = vunpack.c.l.b16 %v1174
      %v1366 = vunpack.c.l.b16 %v1175
      %v1367 = vunpack.c.l.b16 %v1176
      %v1368 = vunpack.c.l.b16 %v1177
      %v1369 = vunpack.c.l.b16 %v1178
      %v1370 = vunpack.c.l.b16 %v1179
      %v1371 = vunpack.c.l.b16 %v1180
      %v1372 = vunpack.c.l.b16 %v1181
      %v1373 = vunpack.c.l.b16 %v1182
      %v1374 = vunpack.c.l.b16 %v1183
      %v1375 = vunpack.c.l.b16 %v1184
      %v1376 = vunpack.c.l.b16 %v1185
      %v1377 = vunpack.c.l.b16 %v1186
      %v1378 = vunpack.c.l.b16 %v1187
      %v1379 = vunpack.c.l.b16 %v1188
      %v1380 = vunpack.c.l.b16 %v1189
      %v1381 = vunpack.c.l.b16 %v1190
      %v1382 = vunpack.c.l.b16 %v1191
      %v1383 = vunpack.c.l.b16 %v1192
      %v1384 = vunpack.c.l.b16 %v1193
      %v1385 = vunpack.c.l.b16 %v1194
      %v1386 = vpack.c.b16 %v1355, %v1354
      %v1387 = vpack.c.b16 %v1357, %v1356
      %v1388 = vpack.c.b16 %v1359, %v1358
      %v1389 = vpack.c.b16 %v1361, %v1360
      %v1390 = vpack.c.b16 %v1363, %v1362
      %v1391 = vpack.c.b16 %v1365, %v1364
      %v1392 = vpack.c.b16 %v1367, %v1366
      %v1393 = vpack.c.b16 %v1369, %v1368
      %v1394 = vpack.c.b16 %v1371, %v1370
      %v1395 = vpack.c.b16 %v1373, %v1372
      %v1396 = vpack.c.b16 %v1375, %v1374
      %v1397 = vpack.c.b16 %v1377, %v1376
      %v1398 = vpack.c.b16 %v1379, %v1378
      %v1399 = vpack.c.b16 %v1381, %v1380
      %v1400 = vpack.c.b16 %v1383, %v1382
      %v1401 = vpack.c.b16 %v1385, %v1384
      %1418 = vmatpush.bf16.msra.mxu0 %v1393
      %1419 = vmatpush.bf16.msra.mxu0 %v1392
      %1420 = vmatpush.bf16.msra.mxu0 %v1391
      %1421 = vmatpush.bf16.msra.mxu0 %v1390
      %1422 = vmatpush.bf16.msra.mxu0 %v1389
      %1423 = vmatpush.bf16.msra.mxu0 %v1388
      %1424 = vmatpush.bf16.msra.mxu0 %v1387
      %1425 = vmatpush.bf16.msra.mxu0 %v1386
      %1426 = vmatmul.bf16.gmra.mxu0 %v1270
      %v1427 = vpop.f32.mrf.mxu0
      %v1428 = vadd.f32 %v341, %v1427
      %v1429 = vpop.f32.mrf.mxu0
      %v1430 = vadd.f32 %v341, %v1429
      %1431 = vmatmul.bf16.gmra.mxu0 %v1272
      %v1432 = vpop.f32.mrf.mxu0
      %v1433 = vadd.f32 %v341, %v1432
      %v1434 = vpop.f32.mrf.mxu0
      %v1435 = vadd.f32 %v341, %v1434
      %1436 = vmatmul.bf16.gmra.mxu0 %v1274
      %v1437 = vpop.f32.mrf.mxu0
      %v1438 = vadd.f32 %v341, %v1437
      %v1439 = vpop.f32.mrf.mxu0
      %v1440 = vadd.f32 %v341, %v1439
      %1441 = vmatmul.bf16.gmra.mxu0 %v1276
      %v1442 = vpop.f32.mrf.mxu0
      %v1443 = vadd.f32 %v341, %v1442
      %v1444 = vpop.f32.mrf.mxu0
      %v1445 = vadd.f32 %v341, %v1444
      %1446 = vmatmul.bf16.gmra.mxu0 %v1278
      %v1447 = vpop.f32.mrf.mxu0
      %v1448 = vadd.f32 %v341, %v1447
      %v1449 = vpop.f32.mrf.mxu0
      %v1450 = vadd.f32 %v341, %v1449
      %1451 = vmatmul.bf16.gmra.mxu0 %v1280
      %v1452 = vpop.f32.mrf.mxu0
      %v1453 = vadd.f32 %v341, %v1452
      %v1454 = vpop.f32.mrf.mxu0
      %v1455 = vadd.f32 %v341, %v1454
      %1456 = vmatmul.bf16.gmra.mxu0 %v1282
      %v1457 = vpop.f32.mrf.mxu0
      %v1458 = vadd.f32 %v341, %v1457
      %v1459 = vpop.f32.mrf.mxu0
      %v1460 = vadd.f32 %v341, %v1459
      %1461 = vmatmul.bf16.gmra.mxu0 %v1284
      %v1462 = vpop.f32.mrf.mxu0
      %v1463 = vadd.f32 %v341, %v1462
      %v1464 = vpop.f32.mrf.mxu0
      %v1465 = vadd.f32 %v341, %v1464
      %1466 = vmatmul.bf16.gmra.mxu0 %v1286
      %v1467 = vpop.f32.mrf.mxu0
      %v1468 = vadd.f32 %v341, %v1467
      %v1469 = vpop.f32.mrf.mxu0
      %v1470 = vadd.f32 %v341, %v1469
      %1471 = vmatmul.bf16.gmra.mxu0 %v1288
      %v1472 = vpop.f32.mrf.mxu0
      %v1473 = vadd.f32 %v341, %v1472
      %v1474 = vpop.f32.mrf.mxu0
      %v1475 = vadd.f32 %v341, %v1474
      %1476 = vmatmul.bf16.gmra.mxu0 %v1290
      %v1477 = vpop.f32.mrf.mxu0
      %v1478 = vadd.f32 %v341, %v1477
      %v1479 = vpop.f32.mrf.mxu0
      %v1480 = vadd.f32 %v341, %v1479
      %1481 = vmatmul.bf16.gmra.mxu0 %v1292
      %v1482 = vpop.f32.mrf.mxu0
      %v1483 = vadd.f32 %v341, %v1482
      %v1484 = vpop.f32.mrf.mxu0
      %v1485 = vadd.f32 %v341, %v1484
      %1486 = vmatmul.bf16.gmra.mxu0 %v1294
      %v1487 = vpop.f32.mrf.mxu0
      %v1488 = vadd.f32 %v341, %v1487
      %v1489 = vpop.f32.mrf.mxu0
      %1490 = vdwg.mxu0
      %1491 = vmatpush.bf16.msra.mxu0 %v1401
      %1492 = vmatpush.bf16.msra.mxu0 %v1400
      %1493 = vmatpush.bf16.msra.mxu0 %v1399
      %1494 = vmatpush.bf16.msra.mxu0 %v1398
      %1495 = vmatpush.bf16.msra.mxu0 %v1397
      %1496 = vmatpush.bf16.msra.mxu0 %v1396
      %1497 = vmatpush.bf16.msra.mxu0 %v1395
      %1498 = vmatpush.bf16.msra.mxu0 %v1394
      %1499 = vmatmul.bf16.gmra.mxu0 %v1271
      %v1500 = vpop.f32.mrf.mxu0
      %v1501 = vadd.f32 %v1428, %v1500
      %v1502 = vpop.f32.mrf.mxu0
      %v1503 = vadd.f32 %v1430, %v1502
      %1504 = vmatmul.bf16.gmra.mxu0 %v1273
      %v1505 = vpop.f32.mrf.mxu0
      %v1506 = vadd.f32 %v1433, %v1505
      %v1507 = vpop.f32.mrf.mxu0
      %v1508 = vadd.f32 %v1435, %v1507
      %1509 = vmatmul.bf16.gmra.mxu0 %v1275
      %v1510 = vpop.f32.mrf.mxu0
      %v1511 = vadd.f32 %v1438, %v1510
      %v1512 = vpop.f32.mrf.mxu0
      %v1513 = vadd.f32 %v1440, %v1512
      %1514 = vmatmul.bf16.gmra.mxu0 %v1277
      %v1515 = vpop.f32.mrf.mxu0
      %v1516 = vadd.f32 %v1443, %v1515
      %v1517 = vpop.f32.mrf.mxu0
      %v1518 = vadd.f32 %v1445, %v1517
      %1519 = vmatmul.bf16.gmra.mxu0 %v1279
      %v1520 = vpop.f32.mrf.mxu0
      %v1521 = vadd.f32 %v1448, %v1520
      %v1522 = vpop.f32.mrf.mxu0
      %v1523 = vadd.f32 %v1450, %v1522
      %1524 = vmatmul.bf16.gmra.mxu0 %v1281
      %v1525 = vpop.f32.mrf.mxu0
      %v1526 = vadd.f32 %v1453, %v1525
      %v1527 = vpop.f32.mrf.mxu0
      %v1528 = vadd.f32 %v1455, %v1527
      %1529 = vmatmul.bf16.gmra.mxu0 %v1283
      %v1530 = vpop.f32.mrf.mxu0
      %v1531 = vadd.f32 %v1458, %v1530
      %v1532 = vpop.f32.mrf.mxu0
      %v1533 = vadd.f32 %v1460, %v1532
      %1534 = vmatmul.bf16.gmra.mxu0 %v1285
      %v1535 = vpop.f32.mrf.mxu0
      %v1536 = vadd.f32 %v1463, %v1535
      %v1537 = vpop.f32.mrf.mxu0
      %v1538 = vadd.f32 %v1465, %v1537
      %1539 = vmatmul.bf16.gmra.mxu0 %v1287
      %v1540 = vpop.f32.mrf.mxu0
      %v1541 = vadd.f32 %v1468, %v1540
      %v1542 = vpop.f32.mrf.mxu0
      %v1543 = vadd.f32 %v1470, %v1542
      %1544 = vmatmul.bf16.gmra.mxu0 %v1289
      %v1545 = vpop.f32.mrf.mxu0
      %v1546 = vadd.f32 %v1473, %v1545
      %v1547 = vpop.f32.mrf.mxu0
      %v1548 = vadd.f32 %v1475, %v1547
      %1549 = vmatmul.bf16.gmra.mxu0 %v1291
      %v1550 = vpop.f32.mrf.mxu0
      %v1551 = vadd.f32 %v1478, %v1550
      %v1552 = vpop.f32.mrf.mxu0
      %v1553 = vadd.f32 %v1480, %v1552
      %1554 = vmatmul.bf16.gmra.mxu0 %v1293
      %v1555 = vpop.f32.mrf.mxu0
      %v1556 = vadd.f32 %v1483, %v1555
      %v1557 = vpop.f32.mrf.mxu0
      %v1558 = vadd.f32 %v1485, %v1557
      %1559 = vmatmul.bf16.gmra.mxu0 %v1295
      %v1560 = vpop.f32.mrf.mxu0
      %v1561 = vadd.f32 %v1488, %v1560
      %v1562 = vpop.f32.mrf.mxu0
      %1563 = vdwg.mxu0
      %v1564 = vmax.f32 %v1501, 0.0
      %v1565 = vmax.f32 %v1503, 0.0
      %v1566 = vmax.f32 %v1506, 0.0
      %v1567 = vmax.f32 %v1508, 0.0
      %v1568 = vmax.f32 %v1511, 0.0
      %v1569 = vmax.f32 %v1513, 0.0
      %v1570 = vmax.f32 %v1516, 0.0
      %v1571 = vmax.f32 %v1518, 0.0
      %v1572 = vmax.f32 %v1521, 0.0
      %v1573 = vmax.f32 %v1523, 0.0
      %v1574 = vmax.f32 %v1526, 0.0
      %v1575 = vmax.f32 %v1528, 0.0
      %v1576 = vmax.f32 %v1531, 0.0
      %v1577 = vmax.f32 %v1533, 0.0
      %v1578 = vmax.f32 %v1536, 0.0
      %v1579 = vmax.f32 %v1538, 0.0
      %v1580 = vmax.f32 %v1541, 0.0
      %v1581 = vmax.f32 %v1543, 0.0
      %v1582 = vmax.f32 %v1546, 0.0
      %v1583 = vmax.f32 %v1548, 0.0
      %v1584 = vmax.f32 %v1551, 0.0
      %v1585 = vmax.f32 %v1553, 0.0
      %v1586 = vmax.f32 %v1556, 0.0
      %v1587 = vmax.f32 %v1558, 0.0
      %v1588 = vmax.f32 %v1561, 0.0
      %v1589 = vpack.c.bf16 %v1564, %v1564
      %v1590 = vpack.c.bf16 %v1565, %v1565
      %v1591 = vpack.c.bf16 %v1566, %v1566
      %v1592 = vpack.c.bf16 %v1567, %v1567
      %v1593 = vpack.c.bf16 %v1568, %v1568
      %v1594 = vpack.c.bf16 %v1569, %v1569
      %v1595 = vpack.c.bf16 %v1570, %v1570
      %v1596 = vpack.c.bf16 %v1571, %v1571
      %v1597 = vpack.c.bf16 %v1572, %v1572
      %v1598 = vpack.c.bf16 %v1573, %v1573
      %v1599 = vpack.c.bf16 %v1574, %v1574
      %v1600 = vpack.c.bf16 %v1575, %v1575
      %v1601 = vpack.c.bf16 %v1576, %v1576
      %v1602 = vpack.c.bf16 %v1577, %v1577
      %v1603 = vpack.c.bf16 %v1578, %v1578
      %v1604 = vpack.c.bf16 %v1579, %v1579
      %v1605 = vpack.c.bf16 %v1580, %v1580
      %v1606 = vpack.c.bf16 %v1581, %v1581
      %v1607 = vpack.c.bf16 %v1582, %v1582
      %v1608 = vpack.c.bf16 %v1583, %v1583
      %v1609 = vpack.c.bf16 %v1584, %v1584
      %v1610 = vpack.c.bf16 %v1585, %v1585
      %v1611 = vpack.c.bf16 %v1586, %v1586
      %v1612 = vpack.c.bf16 %v1587, %v1587
      %v1613 = vpack.c.bf16 %v1588, %v1588
      %v1639 = vrot.slane %v1589, 2
      %v1640 = vrot.slane %v1590, 2
      %v1641 = vrot.slane %v1591, 2
      %v1642 = vrot.slane %v1592, 2
      %v1643 = vrot.slane %v1593, 2
      %v1644 = vrot.slane %v1594, 2
      %v1645 = vrot.slane %v1595, 2
      %v1646 = vrot.slane %v1596, 2
      %v1647 = vrot.slane %v1597, 2
      %v1648 = vrot.slane %v1598, 2
      %v1649 = vrot.slane %v1599, 2
      %v1650 = vrot.slane %v1600, 2
      %v1651 = vrot.slane %v1601, 2
      %v1652 = vrot.slane %v1602, 2
      %v1653 = vrot.slane %v1603, 2
      %v1654 = vrot.slane %v1604, 2
      %v1655 = vrot.slane %v1605, 2
      %v1656 = vrot.slane %v1606, 2
      %v1657 = vrot.slane %v1607, 2
      %v1658 = vrot.slane %v1608, 2
      %v1659 = vrot.slane %v1609, 2
      %v1660 = vrot.slane %v1610, 2
      %v1661 = vrot.slane %v1611, 2
      %v1662 = vrot.slane %v1612, 2
      %v1663 = vrot.slane %v1613, 2
      %v1666 = vsel %vm812, %v1589, %v1639
      %v1667 = vsel %vm816, %v1589, %v1639
      %v1669 = vrot.slane %v1667, 2
      %v1672 = vsel %vm812, %v1590, %v1640
      %v1673 = vsel %vm816, %v1590, %v1640
      %v1675 = vrot.slane %v1673, 2
      %v1678 = vsel %vm812, %v1591, %v1641
      %v1679 = vsel %vm816, %v1591, %v1641
      %v1681 = vrot.slane %v1679, 2
      %v1684 = vsel %vm812, %v1592, %v1642
      %v1685 = vsel %vm816, %v1592, %v1642
      %v1687 = vrot.slane %v1685, 2
      %v1690 = vsel %vm812, %v1593, %v1643
      %v1691 = vsel %vm816, %v1593, %v1643
      %v1693 = vrot.slane %v1691, 2
      %v1696 = vsel %vm812, %v1594, %v1644
      %v1697 = vsel %vm816, %v1594, %v1644
      %v1699 = vrot.slane %v1697, 2
      %v1702 = vsel %vm812, %v1595, %v1645
      %v1703 = vsel %vm816, %v1595, %v1645
      %v1705 = vrot.slane %v1703, 2
      %v1708 = vsel %vm812, %v1596, %v1646
      %v1709 = vsel %vm816, %v1596, %v1646
      %v1711 = vrot.slane %v1709, 2
      %v1714 = vsel %vm812, %v1597, %v1647
      %v1715 = vsel %vm816, %v1597, %v1647
      %v1717 = vrot.slane %v1715, 2
      %v1720 = vsel %vm812, %v1598, %v1648
      %v1721 = vsel %vm816, %v1598, %v1648
      %v1723 = vrot.slane %v1721, 2
      %v1726 = vsel %vm812, %v1599, %v1649
      %v1727 = vsel %vm816, %v1599, %v1649
      %v1729 = vrot.slane %v1727, 2
      %v1732 = vsel %vm812, %v1600, %v1650
      %v1733 = vsel %vm816, %v1600, %v1650
      %v1735 = vrot.slane %v1733, 2
      %v1738 = vsel %vm812, %v1601, %v1651
      %v1739 = vsel %vm816, %v1601, %v1651
      %v1741 = vrot.slane %v1739, 2
      %v1744 = vsel %vm812, %v1602, %v1652
      %v1745 = vsel %vm816, %v1602, %v1652
      %v1747 = vrot.slane %v1745, 2
      %v1750 = vsel %vm812, %v1603, %v1653
      %v1751 = vsel %vm816, %v1603, %v1653
      %v1753 = vrot.slane %v1751, 2
      %v1756 = vsel %vm812, %v1604, %v1654
      %v1757 = vsel %vm816, %v1604, %v1654
      %v1759 = vrot.slane %v1757, 2
      %v1762 = vsel %vm812, %v1605, %v1655
      %v1763 = vsel %vm816, %v1605, %v1655
      %v1765 = vrot.slane %v1763, 2
      %v1768 = vsel %vm812, %v1606, %v1656
      %v1769 = vsel %vm816, %v1606, %v1656
      %v1771 = vrot.slane %v1769, 2
      %v1774 = vsel %vm812, %v1607, %v1657
      %v1775 = vsel %vm816, %v1607, %v1657
      %v1777 = vrot.slane %v1775, 2
      %v1780 = vsel %vm812, %v1608, %v1658
      %v1781 = vsel %vm816, %v1608, %v1658
      %v1783 = vrot.slane %v1781, 2
      %v1786 = vsel %vm812, %v1609, %v1659
      %v1787 = vsel %vm816, %v1609, %v1659
      %v1789 = vrot.slane %v1787, 2
      %v1792 = vsel %vm812, %v1610, %v1660
      %v1793 = vsel %vm816, %v1610, %v1660
      %v1795 = vrot.slane %v1793, 2
      %v1798 = vsel %vm812, %v1611, %v1661
      %v1799 = vsel %vm816, %v1611, %v1661
      %v1801 = vrot.slane %v1799, 2
      %v1804 = vsel %vm812, %v1612, %v1662
      %v1805 = vsel %vm816, %v1612, %v1662
      %v1807 = vrot.slane %v1805, 2
      %v1810 = vsel %vm812, %v1613, %v1663
      %v1811 = vsel %vm816, %v1613, %v1663
      %v1813 = vrot.slane %v1811, 2
      %1814 = vst [vmem:[#allocation1] ss:$2 sm:$0xff] %v1666
      %s1816 = scalar_lea.vmem [#allocation1], 1
      %1817 = vst [vmem:[%s1816] ss:$2 sm:$0xff] %v1669
      %s1818 = scalar_lea.vmem [#allocation1], 16
      %1819 = vst [vmem:[%s1818] ss:$2 sm:$0xff] %v1672
      %s1821 = scalar_lea.vmem [#allocation1], 17
      %1822 = vst [vmem:[%s1821] ss:$2 sm:$0xff] %v1675
      %s1823 = scalar_lea.vmem [#allocation1], 32
      %1824 = vst [vmem:[%s1823] ss:$2 sm:$0xff] %v1678
      %v1825 = vld.sshfl [vmem:[#allocation1] sm:$0xff pattern:$0x75643120]
      %v1826 = vld.sshfl [vmem:[#allocation1 + $0x10] sm:$0xff pattern:$0x75643120]
      %v1827 = vld.sshfl [vmem:[#allocation1 + $0x20] sm:$0xff pattern:$0x75643120]
      %s1829 = scalar_lea.vmem [#allocation1], 48
      %1830 = vst [vmem:[%s1829] ss:$2 sm:$0xff] %v1681
      %s1831 = scalar_lea.vmem [#allocation1], 49
      %1832 = vst [vmem:[%s1831] ss:$2 sm:$0xff] %v1684
      %v1833 = vld.sshfl [vmem:[#allocation1 + $0x30] sm:$0xff pattern:$0x75643120]
      %1835 = vst [vmem:[#allocation1] ss:$2 sm:$0xff] %v1687
      %1836 = vst [vmem:[%s1816] ss:$2 sm:$0xff] %v1690
      %1838 = vst [vmem:[%s1818] ss:$2 sm:$0xff] %v1693
      %v1839 = vld.sshfl [vmem:[#allocation1] sm:$0xff pattern:$0x75643120]
      %v1840 = vld.sshfl [vmem:[#allocation1 + $0x10] sm:$0xff pattern:$0x75643120]
      %1841 = vst [vmem:[%s1823] ss:$2 sm:$0xff] %v1696
      %s1843 = scalar_lea.vmem [#allocation1], 33
      %1844 = vst [vmem:[%s1843] ss:$2 sm:$0xff] %v1699
      %1845 = vst [vmem:[%s1829] ss:$2 sm:$0xff] %v1702
      %1847 = vst [vmem:[%s1831] ss:$2 sm:$0xff] %v1705
      %v1848 = vld.sshfl [vmem:[#allocation1 + $0x20] sm:$0xff pattern:$0x75643120]
      %v1849 = vld.sshfl [vmem:[#allocation1 + $0x30] sm:$0xff pattern:$0x75643120]
      %1850 = vst [vmem:[#allocation1] ss:$2 sm:$0xff] %v1708
      %v1851 = vld.sshfl [vmem:[#allocation1] sm:$0xff pattern:$0x75643120]
      %1853 = vst [vmem:[%s1818] ss:$2 sm:$0xff] %v1711
      %1854 = vst [vmem:[%s1821] ss:$2 sm:$0xff] %v1714
      %1856 = vst [vmem:[%s1823] ss:$2 sm:$0xff] %v1717
      %1857 = vst [vmem:[%s1843] ss:$2 sm:$0xff] %v1720
      %1859 = vst [vmem:[%s1829] ss:$2 sm:$0xff] %v1723
      %v1860 = vld.sshfl [vmem:[#allocation1 + $0x10] sm:$0xff pattern:$0x75643120]
      %v1861 = vld.sshfl [vmem:[#allocation1 + $0x20] sm:$0xff pattern:$0x75643120]
      %v1862 = vld.sshfl [vmem:[#allocation1 + $0x30] sm:$0xff pattern:$0x75643120]
      %1863 = vst [vmem:[#allocation1] ss:$2 sm:$0xff] %v1726
      %1865 = vst [vmem:[%s1816] ss:$2 sm:$0xff] %v1729
      %1866 = vst [vmem:[%s1818] ss:$2 sm:$0xff] %v1732
      %1868 = vst [vmem:[%s1821] ss:$2 sm:$0xff] %v1735
      %1869 = vst [vmem:[%s1823] ss:$2 sm:$0xff] %v1738
      %v1870 = vld.sshfl [vmem:[#allocation1] sm:$0xff pattern:$0x75643120]
      %v1871 = vld.sshfl [vmem:[#allocation1 + $0x10] sm:$0xff pattern:$0x75643120]
      %v1872 = vld.sshfl [vmem:[#allocation1 + $0x20] sm:$0xff pattern:$0x75643120]
      %1874 = vst [vmem:[%s1829] ss:$2 sm:$0xff] %v1741
      %1875 = vst [vmem:[%s1831] ss:$2 sm:$0xff] %v1744
      %v1876 = vld.sshfl [vmem:[#allocation1 + $0x30] sm:$0xff pattern:$0x75643120]
      %1878 = vst [vmem:[#allocation1] ss:$2 sm:$0xff] %v1747
      %1879 = vst [vmem:[%s1816] ss:$2 sm:$0xff] %v1750
      %1881 = vst [vmem:[%s1818] ss:$2 sm:$0xff] %v1753
      %v1882 = vld.sshfl [vmem:[#allocation1] sm:$0xff pattern:$0x75643120]
      %v1883 = vld.sshfl [vmem:[#allocation1 + $0x10] sm:$0xff pattern:$0x75643120]
      %1884 = vst [vmem:[%s1823] ss:$2 sm:$0xff] %v1756
      %1886 = vst [vmem:[%s1843] ss:$2 sm:$0xff] %v1759
      %1887 = vst [vmem:[%s1829] ss:$2 sm:$0xff] %v1762
      %1889 = vst [vmem:[%s1831] ss:$2 sm:$0xff] %v1765
      %v1890 = vld.sshfl [vmem:[#allocation1 + $0x20] sm:$0xff pattern:$0x75643120]
      %v1891 = vld.sshfl [vmem:[#allocation1 + $0x30] sm:$0xff pattern:$0x75643120]
      %1892 = vst [vmem:[#allocation1] ss:$2 sm:$0xff] %v1768
      %v1893 = vld.sshfl [vmem:[#allocation1] sm:$0xff pattern:$0x75643120]
      %1895 = vst [vmem:[%s1818] ss:$2 sm:$0xff] %v1771
      %1896 = vst [vmem:[%s1821] ss:$2 sm:$0xff] %v1774
      %1898 = vst [vmem:[%s1823] ss:$2 sm:$0xff] %v1777
      %1899 = vst [vmem:[%s1843] ss:$2 sm:$0xff] %v1780
      %1901 = vst [vmem:[%s1829] ss:$2 sm:$0xff] %v1783
      %v1902 = vld.sshfl [vmem:[#allocation1 + $0x10] sm:$0xff pattern:$0x75643120]
      %v1903 = vld.sshfl [vmem:[#allocation1 + $0x20] sm:$0xff pattern:$0x75643120]
      %v1904 = vld.sshfl [vmem:[#allocation1 + $0x30] sm:$0xff pattern:$0x75643120]
      %1905 = vst [vmem:[#allocation1] ss:$2 sm:$0xff] %v1786
      %1907 = vst [vmem:[%s1816] ss:$2 sm:$0xff] %v1789
      %1908 = vst [vmem:[%s1818] ss:$2 sm:$0xff] %v1792
      %1910 = vst [vmem:[%s1821] ss:$2 sm:$0xff] %v1795
      %1911 = vst [vmem:[%s1823] ss:$2 sm:$0xff] %v1798
      %v1912 = vld.sshfl [vmem:[#allocation1] sm:$0xff pattern:$0x75643120]
      %v1913 = vld.sshfl [vmem:[#allocation1 + $0x10] sm:$0xff pattern:$0x75643120]
      %v1914 = vld.sshfl [vmem:[#allocation1 + $0x20] sm:$0xff pattern:$0x75643120]
      %1916 = vst [vmem:[%s1829] ss:$2 sm:$0xff] %v1801
      %1917 = vst [vmem:[%s1831] ss:$2 sm:$0xff] %v1804
      %v1918 = vld.sshfl [vmem:[#allocation1 + $0x30] sm:$0xff pattern:$0x75643120]
      %1920 = vst [vmem:[#allocation1] ss:$2 sm:$0xff] %v1807
      %1921 = vst [vmem:[%s1816] ss:$2 sm:$0xff] %v1810
      %1923 = vst [vmem:[%s1818] ss:$2 sm:$0xff] %v1813
      %v1924 = vld.sshfl [vmem:[#allocation1] sm:$0xff pattern:$0x75643120]
      %v1925 = vld.sshfl [vmem:[#allocation1 + $0x10] sm:$0xff pattern:$0x75643120]
      %s1956 = scalar_lea.vmem [#allocation2], 120
      %1957 = vst.msk [vmem:[%s1956] sm:$0xf] %vm1106, %v1825
      %1958 = vst.msk [vmem:[%s1956 + $0x4] sm:$0xf] %vm1106, %v1826
      %1959 = vst.msk [vmem:[%s1956 + $0x8] sm:$0x3] %vm1109, %v1827
      %1960 = vst.msk [vmem:[%s1956 + $0xc] sm:$0xf] %vm1106, %v1833
      %1961 = vst.msk [vmem:[%s1956 + $0x10] sm:$0xf] %vm1106, %v1839
      %1962 = vst.msk [vmem:[%s1956 + $0x14] sm:$0x3] %vm1109, %v1840
      %1963 = vst.msk [vmem:[%s1956 + $0x18] sm:$0xf] %vm1106, %v1848
      %1964 = vst.msk [vmem:[%s1956 + $0x1c] sm:$0xf] %vm1106, %v1849
      %1965 = vst.msk [vmem:[%s1956 + $0x20] sm:$0x3] %vm1109, %v1851
      %1966 = vst.msk [vmem:[%s1956 + $0x24] sm:$0xf] %vm1106, %v1860
      %1967 = vst.msk [vmem:[%s1956 + $0x28] sm:$0xf] %vm1106, %v1861
      %1968 = vst.msk [vmem:[%s1956 + $0x2c] sm:$0x3] %vm1109, %v1862
      %1969 = vst.msk [vmem:[%s1956 + $0x30] sm:$0xf] %vm1106, %v1870
      %1970 = vst.msk [vmem:[%s1956 + $0x34] sm:$0xf] %vm1106, %v1871
      %1971 = vst.msk [vmem:[%s1956 + $0x38] sm:$0x3] %vm1109, %v1872
      %1972 = vst.msk [vmem:[%s1956 + $0x3c] sm:$0xf] %vm1106, %v1876
      %1973 = vst.msk [vmem:[%s1956 + $0x40] sm:$0xf] %vm1106, %v1882
      %1974 = vst.msk [vmem:[%s1956 + $0x44] sm:$0x3] %vm1109, %v1883
      %1975 = vst.msk [vmem:[%s1956 + $0x48] sm:$0xf] %vm1106, %v1890
      %1976 = vst.msk [vmem:[%s1956 + $0x4c] sm:$0xf] %vm1106, %v1891
      %1977 = vst.msk [vmem:[%s1956 + $0x50] sm:$0x3] %vm1109, %v1893
      %1978 = vst.msk [vmem:[%s1956 + $0x54] sm:$0xf] %vm1106, %v1902
      %1979 = vst.msk [vmem:[%s1956 + $0x58] sm:$0xf] %vm1106, %v1903
      %1980 = vst.msk [vmem:[%s1956 + $0x5c] sm:$0x3] %vm1109, %v1904
      %1981 = vst.msk [vmem:[%s1956 + $0x60] sm:$0xf] %vm1106, %v1912
      %1982 = vst.msk [vmem:[%s1956 + $0x64] sm:$0xf] %vm1106, %v1913
      %1983 = vst.msk [vmem:[%s1956 + $0x68] sm:$0x3] %vm1109, %v1914
      %1984 = vst.msk [vmem:[%s1956 + $0x6c] sm:$0xf] %vm1106, %v1918
      %1985 = vst.msk [vmem:[%s1956 + $0x70] sm:$0xf] %vm1106, %v1924
      %1986 = vst.msk [vmem:[%s1956 + $0x74] sm:$0x3] %vm1109, %v1925
      %v1987 = vld [vmem:[#allocation2] sm:$0xf]
      %v1988 = vld [vmem:[#allocation2 + $0x4] sm:$0x1]
      %v1989 = vld [vmem:[#allocation2 + $0xc] sm:$0xf]
      %v1990 = vld [vmem:[#allocation2 + $0x10] sm:$0x1]
      %v1991 = vld [vmem:[#allocation2 + $0x18] sm:$0xf]
      %v1992 = vld [vmem:[#allocation2 + $0x1c] sm:$0x1]
      %v1993 = vld [vmem:[#allocation2 + $0x24] sm:$0xf]
      %v1994 = vld [vmem:[#allocation2 + $0x28] sm:$0x1]
      %v1995 = vld [vmem:[#allocation2 + $0x30] sm:$0xf]
      %v1996 = vld [vmem:[#allocation2 + $0x34] sm:$0x1]
      %v1997 = vld [vmem:[#allocation2 + $0x3c] sm:$0xf]
      %v1998 = vld [vmem:[#allocation2 + $0x40] sm:$0x1]
      %v1999 = vld [vmem:[#allocation2 + $0x48] sm:$0xf]
      %v2000 = vld [vmem:[#allocation2 + $0x4c] sm:$0x1]
      %v2001 = vld [vmem:[#allocation2 + $0x54] sm:$0xf]
      %v2002 = vld [vmem:[#allocation2 + $0x58] sm:$0x1]
      %v2003 = vld [vmem:[#allocation2 + $0x60] sm:$0xf]
      %v2004 = vld [vmem:[#allocation2 + $0x64] sm:$0x1]
      %v2023 = vrot.slane %v1987, 3
      %v2024 = vrot.slane %v1988, 3
      %v2025 = vrot.slane %v1989, 3
      %v2026 = vrot.slane %v1990, 3
      %v2027 = vrot.slane %v1991, 3
      %v2028 = vrot.slane %v1992, 3
      %v2029 = vrot.slane %v1993, 3
      %v2030 = vrot.slane %v1994, 3
      %v2031 = vrot.slane %v1995, 3
      %v2032 = vrot.slane %v1996, 3
      %v2033 = vrot.slane %v1997, 3
      %v2034 = vrot.slane %v1998, 3
      %v2035 = vrot.slane %v1999, 3
      %v2036 = vrot.slane %v2000, 3
      %v2037 = vrot.slane %v2001, 3
      %v2038 = vrot.slane %v2002, 3
      %v2039 = vrot.slane %v2003, 3
      %v2040 = vrot.slane %v2004, 3
      %vm2041 = vcmask 1040384
      %v2044 = vsel %vm2041, %v1987, %v2023
      %vm2046 = vcmask 1041409
      %v2047 = vsel %vm2046, %v1987, %v2023
      %v2049 = vrot.slane %v2047, 1
      %vm2050 = vcmask 1042434
      %v2051 = vsel %vm2050, %v1987, %v2023
      %v2053 = vrot.slane %v2051, 2
      %vm2054 = vcmask 1043459
      %v2055 = vsel %vm2054, %v1987, %v2023
      %v2057 = vrot.slane %v2055, 3
      %v2060 = vsel %vm2041, %v1988, %v2024
      %v2064 = vsel %vm2041, %v1989, %v2025
      %v2066 = vsel %vm2046, %v1989, %v2025
      %v2068 = vrot.slane %v2066, 1
      %v2069 = vsel %vm2050, %v1989, %v2025
      %v2071 = vrot.slane %v2069, 2
      %v2072 = vsel %vm2054, %v1989, %v2025
      %v2074 = vrot.slane %v2072, 3
      %v2077 = vsel %vm2041, %v1990, %v2026
      %v2081 = vsel %vm2041, %v1991, %v2027
      %v2083 = vsel %vm2046, %v1991, %v2027
      %v2085 = vrot.slane %v2083, 1
      %v2086 = vsel %vm2050, %v1991, %v2027
      %v2088 = vrot.slane %v2086, 2
      %v2089 = vsel %vm2054, %v1991, %v2027
      %v2091 = vrot.slane %v2089, 3
      %v2094 = vsel %vm2041, %v1992, %v2028
      %v2098 = vsel %vm2041, %v1993, %v2029
      %v2100 = vsel %vm2046, %v1993, %v2029
      %v2102 = vrot.slane %v2100, 1
      %v2103 = vsel %vm2050, %v1993, %v2029
      %v2105 = vrot.slane %v2103, 2
      %v2106 = vsel %vm2054, %v1993, %v2029
      %v2108 = vrot.slane %v2106, 3
      %v2111 = vsel %vm2041, %v1994, %v2030
      %v2115 = vsel %vm2041, %v1995, %v2031
      %v2117 = vsel %vm2046, %v1995, %v2031
      %v2119 = vrot.slane %v2117, 1
      %v2120 = vsel %vm2050, %v1995, %v2031
      %v2122 = vrot.slane %v2120, 2
      %v2123 = vsel %vm2054, %v1995, %v2031
      %v2125 = vrot.slane %v2123, 3
      %v2128 = vsel %vm2041, %v1996, %v2032
      %v2132 = vsel %vm2041, %v1997, %v2033
      %v2134 = vsel %vm2046, %v1997, %v2033
      %v2136 = vrot.slane %v2134, 1
      %v2137 = vsel %vm2050, %v1997, %v2033
      %v2139 = vrot.slane %v2137, 2
      %v2140 = vsel %vm2054, %v1997, %v2033
      %v2142 = vrot.slane %v2140, 3
      %v2145 = vsel %vm2041, %v1998, %v2034
      %v2149 = vsel %vm2041, %v1999, %v2035
      %v2151 = vsel %vm2046, %v1999, %v2035
      %v2153 = vrot.slane %v2151, 1
      %v2154 = vsel %vm2050, %v1999, %v2035
      %v2156 = vrot.slane %v2154, 2
      %v2157 = vsel %vm2054, %v1999, %v2035
      %v2159 = vrot.slane %v2157, 3
      %v2162 = vsel %vm2041, %v2000, %v2036
      %v2166 = vsel %vm2041, %v2001, %v2037
      %v2168 = vsel %vm2046, %v2001, %v2037
      %v2170 = vrot.slane %v2168, 1
      %v2171 = vsel %vm2050, %v2001, %v2037
      %v2173 = vrot.slane %v2171, 2
      %v2174 = vsel %vm2054, %v2001, %v2037
      %v2176 = vrot.slane %v2174, 3
      %v2179 = vsel %vm2041, %v2002, %v2038
      %v2183 = vsel %vm2041, %v2003, %v2039
      %v2185 = vsel %vm2046, %v2003, %v2039
      %v2187 = vrot.slane %v2185, 1
      %v2188 = vsel %vm2050, %v2003, %v2039
      %v2190 = vrot.slane %v2188, 2
      %v2191 = vsel %vm2054, %v2003, %v2039
      %v2193 = vrot.slane %v2191, 3
      %v2196 = vsel %vm2041, %v2004, %v2040
      %v2198 = vunpack.i.l.s16 %v2044
      %v2199 = vunpack.i.h.s16 %v2044
      %v2200 = vunpack.i.l.s16 %v2049
      %v2201 = vunpack.i.h.s16 %v2049
      %v2202 = vunpack.i.l.s16 %v2053
      %v2203 = vunpack.i.h.s16 %v2053
      %v2204 = vunpack.i.l.s16 %v2057
      %v2205 = vunpack.i.h.s16 %v2057
      %v2206 = vunpack.i.l.s16 %v2060
      %v2207 = vunpack.i.l.s16 %v2064
      %v2208 = vunpack.i.h.s16 %v2064
      %v2209 = vunpack.i.l.s16 %v2068
      %v2210 = vunpack.i.h.s16 %v2068
      %v2211 = vunpack.i.l.s16 %v2071
      %v2212 = vunpack.i.h.s16 %v2071
      %v2213 = vunpack.i.l.s16 %v2074
      %v2214 = vunpack.i.h.s16 %v2074
      %v2215 = vunpack.i.l.s16 %v2077
      %v2216 = vunpack.i.l.s16 %v2081
      %v2217 = vunpack.i.h.s16 %v2081
      %v2218 = vunpack.i.l.s16 %v2085
      %v2219 = vunpack.i.h.s16 %v2085
      %v2220 = vunpack.i.l.s16 %v2088
      %v2221 = vunpack.i.h.s16 %v2088
      %v2222 = vunpack.i.l.s16 %v2091
      %v2223 = vunpack.i.h.s16 %v2091
      %v2224 = vunpack.i.l.s16 %v2094
      %v2225 = vunpack.i.l.s16 %v2098
      %v2226 = vunpack.i.h.s16 %v2098
      %v2227 = vunpack.i.l.s16 %v2102
      %v2228 = vunpack.i.h.s16 %v2102
      %v2229 = vunpack.i.l.s16 %v2105
      %v2230 = vunpack.i.h.s16 %v2105
      %v2231 = vunpack.i.l.s16 %v2108
      %v2232 = vunpack.i.h.s16 %v2108
      %v2233 = vunpack.i.l.s16 %v2111
      %v2234 = vunpack.i.l.s16 %v2115
      %v2235 = vunpack.i.h.s16 %v2115
      %v2236 = vunpack.i.l.s16 %v2119
      %v2237 = vunpack.i.h.s16 %v2119
      %v2238 = vunpack.i.l.s16 %v2122
      %v2239 = vunpack.i.h.s16 %v2122
      %v2240 = vunpack.i.l.s16 %v2125
      %v2241 = vunpack.i.h.s16 %v2125
      %v2242 = vunpack.i.l.s16 %v2128
      %v2243 = vunpack.i.l.s16 %v2132
      %v2244 = vunpack.i.h.s16 %v2132
      %v2245 = vunpack.i.l.s16 %v2136
      %v2246 = vunpack.i.h.s16 %v2136
      %v2247 = vunpack.i.l.s16 %v2139
      %v2248 = vunpack.i.h.s16 %v2139
      %v2249 = vunpack.i.l.s16 %v2142
      %v2250 = vunpack.i.h.s16 %v2142
      %v2251 = vunpack.i.l.s16 %v2145
      %v2252 = vunpack.i.l.s16 %v2149
      %v2253 = vunpack.i.h.s16 %v2149
      %v2254 = vunpack.i.l.s16 %v2153
      %v2255 = vunpack.i.h.s16 %v2153
      %v2256 = vunpack.i.l.s16 %v2156
      %v2257 = vunpack.i.h.s16 %v2156
      %v2258 = vunpack.i.l.s16 %v2159
      %v2259 = vunpack.i.h.s16 %v2159
      %v2260 = vunpack.i.l.s16 %v2162
      %v2261 = vunpack.i.l.s16 %v2166
      %v2262 = vunpack.i.h.s16 %v2166
      %v2263 = vunpack.i.l.s16 %v2170
      %v2264 = vunpack.i.h.s16 %v2170
      %v2265 = vunpack.i.l.s16 %v2173
      %v2266 = vunpack.i.h.s16 %v2173
      %v2267 = vunpack.i.l.s16 %v2176
      %v2268 = vunpack.i.h.s16 %v2176
      %v2269 = vunpack.i.l.s16 %v2179
      %v2270 = vunpack.i.l.s16 %v2183
      %v2271 = vunpack.i.h.s16 %v2183
      %v2272 = vunpack.i.l.s16 %v2187
      %v2273 = vunpack.i.h.s16 %v2187
      %v2274 = vunpack.i.l.s16 %v2190
      %v2275 = vunpack.i.h.s16 %v2190
      %v2276 = vunpack.i.l.s16 %v2193
      %v2277 = vunpack.i.h.s16 %v2193
      %v2278 = vunpack.i.l.s16 %v2196
      %v2279 = vpack.i.b16 %v2199, %v2198
      %v2280 = vpack.i.b16 %v2201, %v2200
      %v2281 = vpack.i.b16 %v2203, %v2202
      %v2282 = vpack.i.b16 %v2205, %v2204
      %v2283 = vpack.i.b16 %v2207, %v2206
      %v2284 = vpack.i.b16 %v2209, %v2208
      %v2285 = vpack.i.b16 %v2211, %v2210
      %v2286 = vpack.i.b16 %v2213, %v2212
      %v2287 = vpack.i.b16 %v2215, %v2214
      %v2288 = vpack.i.b16 %v2217, %v2216
      %v2289 = vpack.i.b16 %v2219, %v2218
      %v2290 = vpack.i.b16 %v2221, %v2220
      %v2291 = vpack.i.b16 %v2223, %v2222
      %v2292 = vpack.i.b16 %v2225, %v2224
      %v2293 = vpack.i.b16 %v2227, %v2226
      %v2294 = vpack.i.b16 %v2229, %v2228
      %v2295 = vpack.i.b16 %v2231, %v2230
      %v2296 = vpack.i.b16 %v2233, %v2232
      %v2297 = vpack.i.b16 %v2235, %v2234
      %v2298 = vpack.i.b16 %v2237, %v2236
      %v2299 = vpack.i.b16 %v2239, %v2238
      %v2300 = vpack.i.b16 %v2241, %v2240
      %v2301 = vpack.i.b16 %v2243, %v2242
      %v2302 = vpack.i.b16 %v2245, %v2244
      %v2303 = vpack.i.b16 %v2247, %v2246
      %v2304 = vpack.i.b16 %v2249, %v2248
      %v2305 = vpack.i.b16 %v2251, %v2250
      %v2306 = vpack.i.b16 %v2253, %v2252
      %v2307 = vpack.i.b16 %v2255, %v2254
      %v2308 = vpack.i.b16 %v2257, %v2256
      %v2309 = vpack.i.b16 %v2259, %v2258
      %v2310 = vpack.i.b16 %v2261, %v2260
      %v2311 = vpack.i.b16 %v2263, %v2262
      %v2312 = vpack.i.b16 %v2265, %v2264
      %v2313 = vpack.i.b16 %v2267, %v2266
      %v2314 = vpack.i.b16 %v2269, %v2268
      %v2315 = vpack.i.b16 %v2271, %v2270
      %v2316 = vpack.i.b16 %v2273, %v2272
      %v2317 = vpack.i.b16 %v2275, %v2274
      %v2318 = vpack.i.b16 %v2277, %v2276
      %2321 = vst [vmem:[#allocation1] ss:$4 sm:$0xff] %v2279
      %s2323 = scalar_lea.vmem [#allocation1], 1
      %2324 = vst [vmem:[%s2323] ss:$4 sm:$0xff] %v2280
      %s2326 = scalar_lea.vmem [#allocation1], 2
      %2327 = vst [vmem:[%s2326] ss:$4 sm:$0xff] %v2281
      %s2329 = scalar_lea.vmem [#allocation1], 3
      %2330 = vst [vmem:[%s2329] ss:$4 sm:$0xff] %v2282
      %s2332 = scalar_lea.vmem [#allocation1], 32
      %2333 = vst [vmem:[%s2332] ss:$4 sm:$0xff] %v2283
      %s2335 = scalar_lea.vmem [#allocation1], 33
      %2336 = vst [vmem:[%s2335] ss:$4 sm:$0xff] %v2284
      %s2338 = scalar_lea.vmem [#allocation1], 34
      %2339 = vst [vmem:[%s2338] ss:$4 sm:$0xff] %v2285
      %s2341 = scalar_lea.vmem [#allocation1], 35
      %2342 = vst [vmem:[%s2341] ss:$4 sm:$0xff] %v2286
      %v2343 = vld [vmem:[#allocation1] sm:$0xff]
      %v2344 = vld [vmem:[#allocation1 + $0x20] sm:$0xff]
      %2346 = vst [vmem:[#allocation1] ss:$4 sm:$0xff] %v2287
      %2348 = vst [vmem:[%s2323] ss:$4 sm:$0xff] %v2288
      %2350 = vst [vmem:[%s2326] ss:$4 sm:$0xff] %v2289
      %2352 = vst [vmem:[%s2329] ss:$4 sm:$0xff] %v2290
      %2354 = vst [vmem:[%s2332] ss:$4 sm:$0xff] %v2291
      %2356 = vst [vmem:[%s2335] ss:$4 sm:$0xff] %v2292
      %2358 = vst [vmem:[%s2338] ss:$4 sm:$0xff] %v2293
      %2360 = vst [vmem:[%s2341] ss:$4 sm:$0xff] %v2294
      %v2361 = vld [vmem:[#allocation1] sm:$0xff]
      %v2362 = vld [vmem:[#allocation1 + $0x20] sm:$0xff]
      %2364 = vst [vmem:[#allocation1] ss:$4 sm:$0xff] %v2295
      %2366 = vst [vmem:[%s2323] ss:$4 sm:$0xff] %v2296
      %2368 = vst [vmem:[%s2326] ss:$4 sm:$0xff] %v2297
      %2370 = vst [vmem:[%s2329] ss:$4 sm:$0xff] %v2298
      %2372 = vst [vmem:[%s2332] ss:$4 sm:$0xff] %v2299
      %2374 = vst [vmem:[%s2335] ss:$4 sm:$0xff] %v2300
      %2376 = vst [vmem:[%s2338] ss:$4 sm:$0xff] %v2301
      %2378 = vst [vmem:[%s2341] ss:$4 sm:$0xff] %v2302
      %v2379 = vld [vmem:[#allocation1] sm:$0xff]
      %v2380 = vld [vmem:[#allocation1 + $0x20] sm:$0xff]
      %2382 = vst [vmem:[#allocation1] ss:$4 sm:$0xff] %v2303
      %2384 = vst [vmem:[%s2323] ss:$4 sm:$0xff] %v2304
      %2386 = vst [vmem:[%s2326] ss:$4 sm:$0xff] %v2305
      %2388 = vst [vmem:[%s2329] ss:$4 sm:$0xff] %v2306
      %2390 = vst [vmem:[%s2332] ss:$4 sm:$0xff] %v2307
      %2392 = vst [vmem:[%s2335] ss:$4 sm:$0xff] %v2308
      %2394 = vst [vmem:[%s2338] ss:$4 sm:$0xff] %v2309
      %2396 = vst [vmem:[%s2341] ss:$4 sm:$0xff] %v2310
      %v2397 = vld [vmem:[#allocation1] sm:$0xff]
      %v2398 = vld [vmem:[#allocation1 + $0x20] sm:$0xff]
      %2400 = vst [vmem:[#allocation1] ss:$4 sm:$0xff] %v2311
      %2402 = vst [vmem:[%s2323] ss:$4 sm:$0xff] %v2312
      %2404 = vst [vmem:[%s2326] ss:$4 sm:$0xff] %v2313
      %2406 = vst [vmem:[%s2329] ss:$4 sm:$0xff] %v2314
      %2408 = vst [vmem:[%s2332] ss:$4 sm:$0xff] %v2315
      %2410 = vst [vmem:[%s2335] ss:$4 sm:$0xff] %v2316
      %2412 = vst [vmem:[%s2338] ss:$4 sm:$0xff] %v2317
      %2414 = vst [vmem:[%s2341] ss:$4 sm:$0xff] %v2318
      %v2415 = vld [vmem:[#allocation1] sm:$0xff]
      %v2416 = vld [vmem:[#allocation1 + $0x20] sm:$0xff]
      %2418 = vst [vmem:[#allocation1] ss:$4 sm:$0xff] %v2278
      %v2419 = vld [vmem:[#allocation1] sm:$0xff]
      %2431 = vst.msk [vmem:[#allocation4] sm:$0xf] %vm1106, %v2343
      %2432 = vst.msk [vmem:[#allocation4 + $0x10] sm:$0xf] %vm1106, %v2344
      %2433 = vst.msk [vmem:[#allocation4 + $0x20] sm:$0xf] %vm1106, %v2361
      %2434 = vst.msk [vmem:[#allocation4 + $0x30] sm:$0xf] %vm1106, %v2362
      %2435 = vst.msk [vmem:[#allocation4 + $0x40] sm:$0xf] %vm1106, %v2379
      %2436 = vst.msk [vmem:[#allocation4 + $0x50] sm:$0xf] %vm1106, %v2380
      %2437 = vst.msk [vmem:[#allocation4 + $0x60] sm:$0xf] %vm1106, %v2397
      %2438 = vst.msk [vmem:[#allocation4 + $0x70] sm:$0xf] %vm1106, %v2398
      %2439 = vst.msk [vmem:[#allocation4 + $0x80] sm:$0xf] %vm1106, %v2415
      %2440 = vst.msk [vmem:[#allocation4 + $0x90] sm:$0xf] %vm1106, %v2416
      %vm2441 = vcmask 253952
      %vm2442 = vsmask.f32 256
      %vm2443 = vmand %vm2441, %vm2442
      %v2444 = vld [vmem:[#allocation4 + $0xa0] sm:$0x1]
      %v2445 = vsel %vm2443, %v2419, %v2444
      %2446 = vst [vmem:[#allocation4 + $0xa0] sm:$0x1] %v2445
      %v2447 = vld [vmem:[#allocation2 + $0x4] sm:$0xe]
      %v2448 = vld [vmem:[#allocation2 + $0x8] sm:$0x3]
      %v2449 = vld [vmem:[#allocation2 + $0x10] sm:$0xe]
      %v2450 = vld [vmem:[#allocation2 + $0x14] sm:$0x3]
      %v2451 = vld [vmem:[#allocation2 + $0x1c] sm:$0xe]
      %v2452 = vld [vmem:[#allocation2 + $0x20] sm:$0x3]
      %v2453 = vld [vmem:[#allocation2 + $0x28] sm:$0xe]
      %v2454 = vld [vmem:[#allocation2 + $0x2c] sm:$0x3]
      %v2455 = vld [vmem:[#allocation2 + $0x34] sm:$0xe]
      %v2456 = vld [vmem:[#allocation2 + $0x38] sm:$0x3]
      %v2457 = vld [vmem:[#allocation2 + $0x40] sm:$0xe]
      %v2458 = vld [vmem:[#allocation2 + $0x44] sm:$0x3]
      %v2459 = vld [vmem:[#allocation2 + $0x4c] sm:$0xe]
      %v2460 = vld [vmem:[#allocation2 + $0x50] sm:$0x3]
      %v2461 = vld [vmem:[#allocation2 + $0x58] sm:$0xe]
      %v2462 = vld [vmem:[#allocation2 + $0x5c] sm:$0x3]
      %v2463 = vld [vmem:[#allocation2 + $0x64] sm:$0xe]
      %v2464 = vld [vmem:[#allocation2 + $0x68] sm:$0x3]
      %2466 = vst [vmem:[#allocation1] sm:$0xff] %v2447
      %2468 = vst [vmem:[#allocation1 + $0x20] sm:$0xff] %v2448
      %s2469 = scalar_lea.vmem [#allocation1], 1
      %v2470 = vld [vmem:[%s2469] ss:$4 sm:$0xff]
      %s2472 = scalar_lea.vmem [#allocation1], 2
      %v2473 = vld [vmem:[%s2472] ss:$4 sm:$0xff]
      %s2475 = scalar_lea.vmem [#allocation1], 3
      %v2476 = vld [vmem:[%s2475] ss:$4 sm:$0xff]
      %s2478 = scalar_lea.vmem [#allocation1], 32
      %v2479 = vld [vmem:[%s2478] ss:$4 sm:$0xff]
      %s2481 = scalar_lea.vmem [#allocation1], 33
      %v2482 = vld [vmem:[%s2481] ss:$4 sm:$0xff]
      %2485 = vst [vmem:[#allocation1] sm:$0xff] %v2449
      %2487 = vst [vmem:[#allocation1 + $0x20] sm:$0xff] %v2450
      %v2488 = vld [vmem:[%s2469] ss:$4 sm:$0xff]
      %v2490 = vld [vmem:[%s2472] ss:$4 sm:$0xff]
      %v2492 = vld [vmem:[%s2475] ss:$4 sm:$0xff]
      %v2494 = vld [vmem:[%s2478] ss:$4 sm:$0xff]
      %v2496 = vld [vmem:[%s2481] ss:$4 sm:$0xff]
      %2499 = vst [vmem:[#allocation1] sm:$0xff] %v2451
      %2501 = vst [vmem:[#allocation1 + $0x20] sm:$0xff] %v2452
      %v2502 = vld [vmem:[%s2469] ss:$4 sm:$0xff]
      %v2504 = vld [vmem:[%s2472] ss:$4 sm:$0xff]
      %v2506 = vld [vmem:[%s2475] ss:$4 sm:$0xff]
      %v2508 = vld [vmem:[%s2478] ss:$4 sm:$0xff]
      %v2510 = vld [vmem:[%s2481] ss:$4 sm:$0xff]
      %2513 = vst [vmem:[#allocation1] sm:$0xff] %v2453
      %2515 = vst [vmem:[#allocation1 + $0x20] sm:$0xff] %v2454
      %v2516 = vld [vmem:[%s2469] ss:$4 sm:$0xff]
      %v2518 = vld [vmem:[%s2472] ss:$4 sm:$0xff]
      %v2520 = vld [vmem:[%s2475] ss:$4 sm:$0xff]
      %v2522 = vld [vmem:[%s2478] ss:$4 sm:$0xff]
      %v2524 = vld [vmem:[%s2481] ss:$4 sm:$0xff]
      %2527 = vst [vmem:[#allocation1] sm:$0xff] %v2455
      %2529 = vst [vmem:[#allocation1 + $0x20] sm:$0xff] %v2456
      %v2530 = vld [vmem:[%s2469] ss:$4 sm:$0xff]
      %v2532 = vld [vmem:[%s2472] ss:$4 sm:$0xff]
      %v2534 = vld [vmem:[%s2475] ss:$4 sm:$0xff]
      %v2536 = vld [vmem:[%s2478] ss:$4 sm:$0xff]
      %v2538 = vld [vmem:[%s2481] ss:$4 sm:$0xff]
      %2541 = vst [vmem:[#allocation1] sm:$0xff] %v2457
      %2543 = vst [vmem:[#allocation1 + $0x20] sm:$0xff] %v2458
      %v2544 = vld [vmem:[%s2469] ss:$4 sm:$0xff]
      %v2546 = vld [vmem:[%s2472] ss:$4 sm:$0xff]
      %v2548 = vld [vmem:[%s2475] ss:$4 sm:$0xff]
      %v2550 = vld [vmem:[%s2478] ss:$4 sm:$0xff]
      %v2552 = vld [vmem:[%s2481] ss:$4 sm:$0xff]
      %2555 = vst [vmem:[#allocation1] sm:$0xff] %v2459
      %2557 = vst [vmem:[#allocation1 + $0x20] sm:$0xff] %v2460
      %v2558 = vld [vmem:[%s2469] ss:$4 sm:$0xff]
      %v2560 = vld [vmem:[%s2472] ss:$4 sm:$0xff]
      %v2562 = vld [vmem:[%s2475] ss:$4 sm:$0xff]
      %v2564 = vld [vmem:[%s2478] ss:$4 sm:$0xff]
      %v2566 = vld [vmem:[%s2481] ss:$4 sm:$0xff]
      %2569 = vst [vmem:[#allocation1] sm:$0xff] %v2461
      %2571 = vst [vmem:[#allocation1 + $0x20] sm:$0xff] %v2462
      %v2572 = vld [vmem:[%s2469] ss:$4 sm:$0xff]
      %v2574 = vld [vmem:[%s2472] ss:$4 sm:$0xff]
      %v2576 = vld [vmem:[%s2475] ss:$4 sm:$0xff]
      %v2578 = vld [vmem:[%s2478] ss:$4 sm:$0xff]
      %v2580 = vld [vmem:[%s2481] ss:$4 sm:$0xff]
      %2583 = vst [vmem:[#allocation1] sm:$0xff] %v2463
      %2585 = vst [vmem:[#allocation1 + $0x20] sm:$0xff] %v2464
      %v2586 = vld [vmem:[%s2469] ss:$4 sm:$0xff]
      %v2588 = vld [vmem:[%s2472] ss:$4 sm:$0xff]
      %v2590 = vld [vmem:[%s2475] ss:$4 sm:$0xff]
      %v2592 = vld [vmem:[%s2478] ss:$4 sm:$0xff]
      %v2594 = vld [vmem:[%s2481] ss:$4 sm:$0xff]
      %v2596 = vunpack.i.l.s16 %v2470
      %v2597 = vunpack.i.h.s16 %v2470
      %v2598 = vunpack.i.l.s16 %v2473
      %v2599 = vunpack.i.h.s16 %v2473
      %v2600 = vunpack.i.l.s16 %v2476
      %v2601 = vunpack.i.h.s16 %v2476
      %v2602 = vunpack.i.l.s16 %v2479
      %v2603 = vunpack.i.h.s16 %v2479
      %v2604 = vunpack.i.l.s16 %v2482
      %v2605 = vunpack.i.l.s16 %v2488
      %v2606 = vunpack.i.h.s16 %v2488
      %v2607 = vunpack.i.l.s16 %v2490
      %v2608 = vunpack.i.h.s16 %v2490
      %v2609 = vunpack.i.l.s16 %v2492
      %v2610 = vunpack.i.h.s16 %v2492
      %v2611 = vunpack.i.l.s16 %v2494
      %v2612 = vunpack.i.h.s16 %v2494
      %v2613 = vunpack.i.l.s16 %v2496
      %v2614 = vunpack.i.l.s16 %v2502
      %v2615 = vunpack.i.h.s16 %v2502
      %v2616 = vunpack.i.l.s16 %v2504
      %v2617 = vunpack.i.h.s16 %v2504
      %v2618 = vunpack.i.l.s16 %v2506
      %v2619 = vunpack.i.h.s16 %v2506
      %v2620 = vunpack.i.l.s16 %v2508
      %v2621 = vunpack.i.h.s16 %v2508
      %v2622 = vunpack.i.l.s16 %v2510
      %v2623 = vunpack.i.l.s16 %v2516
      %v2624 = vunpack.i.h.s16 %v2516
      %v2625 = vunpack.i.l.s16 %v2518
      %v2626 = vunpack.i.h.s16 %v2518
      %v2627 = vunpack.i.l.s16 %v2520
      %v2628 = vunpack.i.h.s16 %v2520
      %v2629 = vunpack.i.l.s16 %v2522
      %v2630 = vunpack.i.h.s16 %v2522
      %v2631 = vunpack.i.l.s16 %v2524
      %v2632 = vunpack.i.l.s16 %v2530
      %v2633 = vunpack.i.h.s16 %v2530
      %v2634 = vunpack.i.l.s16 %v2532
      %v2635 = vunpack.i.h.s16 %v2532
      %v2636 = vunpack.i.l.s16 %v2534
      %v2637 = vunpack.i.h.s16 %v2534
      %v2638 = vunpack.i.l.s16 %v2536
      %v2639 = vunpack.i.h.s16 %v2536
      %v2640 = vunpack.i.l.s16 %v2538
      %v2641 = vunpack.i.l.s16 %v2544
      %v2642 = vunpack.i.h.s16 %v2544
      %v2643 = vunpack.i.l.s16 %v2546
      %v2644 = vunpack.i.h.s16 %v2546
      %v2645 = vunpack.i.l.s16 %v2548
      %v2646 = vunpack.i.h.s16 %v2548
      %v2647 = vunpack.i.l.s16 %v2550
      %v2648 = vunpack.i.h.s16 %v2550
      %v2649 = vunpack.i.l.s16 %v2552
      %v2650 = vunpack.i.l.s16 %v2558
      %v2651 = vunpack.i.h.s16 %v2558
      %v2652 = vunpack.i.l.s16 %v2560
      %v2653 = vunpack.i.h.s16 %v2560
      %v2654 = vunpack.i.l.s16 %v2562
      %v2655 = vunpack.i.h.s16 %v2562
      %v2656 = vunpack.i.l.s16 %v2564
      %v2657 = vunpack.i.h.s16 %v2564
      %v2658 = vunpack.i.l.s16 %v2566
      %v2659 = vunpack.i.l.s16 %v2572
      %v2660 = vunpack.i.h.s16 %v2572
      %v2661 = vunpack.i.l.s16 %v2574
      %v2662 = vunpack.i.h.s16 %v2574
      %v2663 = vunpack.i.l.s16 %v2576
      %v2664 = vunpack.i.h.s16 %v2576
      %v2665 = vunpack.i.l.s16 %v2578
      %v2666 = vunpack.i.h.s16 %v2578
      %v2667 = vunpack.i.l.s16 %v2580
      %v2668 = vunpack.i.l.s16 %v2586
      %v2669 = vunpack.i.h.s16 %v2586
      %v2670 = vunpack.i.l.s16 %v2588
      %v2671 = vunpack.i.h.s16 %v2588
      %v2672 = vunpack.i.l.s16 %v2590
      %v2673 = vunpack.i.h.s16 %v2590
      %v2674 = vunpack.i.l.s16 %v2592
      %v2675 = vunpack.i.h.s16 %v2592
      %v2676 = vunpack.i.l.s16 %v2594
      %v2677 = vpack.i.b16 %v2597, %v2596
      %v2678 = vpack.i.b16 %v2599, %v2598
      %v2679 = vpack.i.b16 %v2601, %v2600
      %v2680 = vpack.i.b16 %v2603, %v2602
      %v2681 = vpack.i.b16 %v2605, %v2604
      %v2682 = vpack.i.b16 %v2607, %v2606
      %v2683 = vpack.i.b16 %v2609, %v2608
      %v2684 = vpack.i.b16 %v2611, %v2610
      %v2685 = vpack.i.b16 %v2613, %v2612
      %v2686 = vpack.i.b16 %v2615, %v2614
      %v2687 = vpack.i.b16 %v2617, %v2616
      %v2688 = vpack.i.b16 %v2619, %v2618
      %v2689 = vpack.i.b16 %v2621, %v2620
      %v2690 = vpack.i.b16 %v2623, %v2622
      %v2691 = vpack.i.b16 %v2625, %v2624
      %v2692 = vpack.i.b16 %v2627, %v2626
      %v2693 = vpack.i.b16 %v2629, %v2628
      %v2694 = vpack.i.b16 %v2631, %v2630
      %v2695 = vpack.i.b16 %v2633, %v2632
      %v2696 = vpack.i.b16 %v2635, %v2634
      %v2697 = vpack.i.b16 %v2637, %v2636
      %v2698 = vpack.i.b16 %v2639, %v2638
      %v2699 = vpack.i.b16 %v2641, %v2640
      %v2700 = vpack.i.b16 %v2643, %v2642
      %v2701 = vpack.i.b16 %v2645, %v2644
      %v2702 = vpack.i.b16 %v2647, %v2646
      %v2703 = vpack.i.b16 %v2649, %v2648
      %v2704 = vpack.i.b16 %v2651, %v2650
      %v2705 = vpack.i.b16 %v2653, %v2652
      %v2706 = vpack.i.b16 %v2655, %v2654
      %v2707 = vpack.i.b16 %v2657, %v2656
      %v2708 = vpack.i.b16 %v2659, %v2658
      %v2709 = vpack.i.b16 %v2661, %v2660
      %v2710 = vpack.i.b16 %v2663, %v2662
      %v2711 = vpack.i.b16 %v2665, %v2664
      %v2712 = vpack.i.b16 %v2667, %v2666
      %v2713 = vpack.i.b16 %v2669, %v2668
      %v2714 = vpack.i.b16 %v2671, %v2670
      %v2715 = vpack.i.b16 %v2673, %v2672
      %v2716 = vpack.i.b16 %v2675, %v2674
      %2719 = vst [vmem:[#allocation1] ss:$4 sm:$0xff] %v2677
      %s2721 = scalar_lea.vmem [#allocation1], 1
      %2722 = vst [vmem:[%s2721] ss:$4 sm:$0xff] %v2678
      %s2724 = scalar_lea.vmem [#allocation1], 2
      %2725 = vst [vmem:[%s2724] ss:$4 sm:$0xff] %v2679
      %s2727 = scalar_lea.vmem [#allocation1], 3
      %2728 = vst [vmem:[%s2727] ss:$4 sm:$0xff] %v2680
      %s2730 = scalar_lea.vmem [#allocation1], 32
      %2731 = vst [vmem:[%s2730] ss:$4 sm:$0xff] %v2681
      %s2733 = scalar_lea.vmem [#allocation1], 33
      %2734 = vst [vmem:[%s2733] ss:$4 sm:$0xff] %v2682
      %s2736 = scalar_lea.vmem [#allocation1], 34
      %2737 = vst [vmem:[%s2736] ss:$4 sm:$0xff] %v2683
      %s2739 = scalar_lea.vmem [#allocation1], 35
      %2740 = vst [vmem:[%s2739] ss:$4 sm:$0xff] %v2684
      %v2741 = vld [vmem:[#allocation1] sm:$0xff]
      %v2743 = vld [vmem:[#allocation1 + $0x20] sm:$0xff]
      %2746 = vst [vmem:[#allocation1] ss:$4 sm:$0xff] %v2685
      %2748 = vst [vmem:[%s2721] ss:$4 sm:$0xff] %v2686
      %2750 = vst [vmem:[%s2724] ss:$4 sm:$0xff] %v2687
      %2752 = vst [vmem:[%s2727] ss:$4 sm:$0xff] %v2688
      %2754 = vst [vmem:[%s2730] ss:$4 sm:$0xff] %v2689
      %2756 = vst [vmem:[%s2733] ss:$4 sm:$0xff] %v2690
      %2758 = vst [vmem:[%s2736] ss:$4 sm:$0xff] %v2691
      %2760 = vst [vmem:[%s2739] ss:$4 sm:$0xff] %v2692
      %v2761 = vld [vmem:[#allocation1] sm:$0xff]
      %v2763 = vld [vmem:[#allocation1 + $0x20] sm:$0xff]
      %2766 = vst [vmem:[#allocation1] ss:$4 sm:$0xff] %v2693
      %2768 = vst [vmem:[%s2721] ss:$4 sm:$0xff] %v2694
      %2770 = vst [vmem:[%s2724] ss:$4 sm:$0xff] %v2695
      %2772 = vst [vmem:[%s2727] ss:$4 sm:$0xff] %v2696
      %2774 = vst [vmem:[%s2730] ss:$4 sm:$0xff] %v2697
      %2776 = vst [vmem:[%s2733] ss:$4 sm:$0xff] %v2698
      %2778 = vst [vmem:[%s2736] ss:$4 sm:$0xff] %v2699
      %2780 = vst [vmem:[%s2739] ss:$4 sm:$0xff] %v2700
      %v2781 = vld [vmem:[#allocation1] sm:$0xff]
      %v2783 = vld [vmem:[#allocation1 + $0x20] sm:$0xff]
      %2786 = vst [vmem:[#allocation1] ss:$4 sm:$0xff] %v2701
      %2788 = vst [vmem:[%s2721] ss:$4 sm:$0xff] %v2702
      %2790 = vst [vmem:[%s2724] ss:$4 sm:$0xff] %v2703
      %2792 = vst [vmem:[%s2727] ss:$4 sm:$0xff] %v2704
      %2794 = vst [vmem:[%s2730] ss:$4 sm:$0xff] %v2705
      %2796 = vst [vmem:[%s2733] ss:$4 sm:$0xff] %v2706
      %2798 = vst [vmem:[%s2736] ss:$4 sm:$0xff] %v2707
      %2800 = vst [vmem:[%s2739] ss:$4 sm:$0xff] %v2708
      %v2801 = vld [vmem:[#allocation1] sm:$0xff]
      %v2803 = vld [vmem:[#allocation1 + $0x20] sm:$0xff]
      %2806 = vst [vmem:[#allocation1] ss:$4 sm:$0xff] %v2709
      %2808 = vst [vmem:[%s2721] ss:$4 sm:$0xff] %v2710
      %2810 = vst [vmem:[%s2724] ss:$4 sm:$0xff] %v2711
      %2812 = vst [vmem:[%s2727] ss:$4 sm:$0xff] %v2712
      %2814 = vst [vmem:[%s2730] ss:$4 sm:$0xff] %v2713
      %2816 = vst [vmem:[%s2733] ss:$4 sm:$0xff] %v2714
      %2818 = vst [vmem:[%s2736] ss:$4 sm:$0xff] %v2715
      %2820 = vst [vmem:[%s2739] ss:$4 sm:$0xff] %v2716
      %v2821 = vld [vmem:[#allocation1] sm:$0xff]
      %v2823 = vld [vmem:[#allocation1 + $0x20] sm:$0xff]
      %2826 = vst [vmem:[#allocation1] ss:$4 sm:$0xff] %v2676
      %v2827 = vld [vmem:[#allocation1] sm:$0xff]
      %2829 = vrot.lane.b32.xlu0 %v2741, 32
      %v2830 = vpop.permute.xlu0 %2829
      %2831 = vrot.lane.b32.xlu0 %v2743, 32
      %v2832 = vpop.permute.xlu0 %2831
      %2833 = vrot.lane.b32.xlu0 %v2761, 32
      %v2834 = vpop.permute.xlu0 %2833
      %2835 = vrot.lane.b32.xlu0 %v2763, 32
      %v2836 = vpop.permute.xlu0 %2835
      %2837 = vrot.lane.b32.xlu0 %v2781, 32
      %v2838 = vpop.permute.xlu0 %2837
      %2839 = vrot.lane.b32.xlu0 %v2783, 32
      %v2840 = vpop.permute.xlu0 %2839
      %2841 = vrot.lane.b32.xlu0 %v2801, 32
      %v2842 = vpop.permute.xlu0 %2841
      %2843 = vrot.lane.b32.xlu0 %v2803, 32
      %v2844 = vpop.permute.xlu0 %2843
      %2845 = vrot.lane.b32.xlu0 %v2821, 32
      %v2846 = vpop.permute.xlu0 %2845
      %2847 = vrot.lane.b32.xlu0 %v2823, 32
      %v2848 = vpop.permute.xlu0 %2847
      %2849 = vrot.lane.b32.xlu0 %v2827, 32
      %v2850 = vpop.permute.xlu0 %2849
      %vm2862 = vcmask 519424
      %2863 = vst.msk [vmem:[#allocation4] sm:$0xf] %vm2862, %v2830
      %2864 = vst.msk [vmem:[#allocation4 + $0x10] sm:$0xf] %vm2862, %v2832
      %2865 = vst.msk [vmem:[#allocation4 + $0x20] sm:$0xf] %vm2862, %v2834
      %2866 = vst.msk [vmem:[#allocation4 + $0x30] sm:$0xf] %vm2862, %v2836
      %2867 = vst.msk [vmem:[#allocation4 + $0x40] sm:$0xf] %vm2862, %v2838
      %2868 = vst.msk [vmem:[#allocation4 + $0x50] sm:$0xf] %vm2862, %v2840
      %2869 = vst.msk [vmem:[#allocation4 + $0x60] sm:$0xf] %vm2862, %v2842
      %2870 = vst.msk [vmem:[#allocation4 + $0x70] sm:$0xf] %vm2862, %v2844
      %2871 = vst.msk [vmem:[#allocation4 + $0x80] sm:$0xf] %vm2862, %v2846
      %2872 = vst.msk [vmem:[#allocation4 + $0x90] sm:$0xf] %vm2862, %v2848
      %vm2873 = vcmask 516352
      %vm2874 = vmand %vm2873, %vm2442
      %v2875 = vld [vmem:[#allocation4 + $0xa0] sm:$0x1]
      %v2876 = vsel %vm2874, %v2850, %v2875
      %2877 = vst [vmem:[#allocation4 + $0xa0] sm:$0x1] %v2876
      %v2878 = vld [vmem:[#allocation2] sm:$0xf]
      %v2879 = vld [vmem:[#allocation2 + $0x4] sm:$0x1]
      %v2880 = vld [vmem:[#allocation2 + $0xc] sm:$0xf]
      %v2881 = vld [vmem:[#allocation2 + $0x10] sm:$0x1]
      %v2882 = vld [vmem:[#allocation2 + $0x18] sm:$0xf]
      %v2883 = vld [vmem:[#allocation2 + $0x1c] sm:$0x1]
      %v2884 = vld [vmem:[#allocation2 + $0x24] sm:$0xf]
      %v2885 = vld [vmem:[#allocation2 + $0x28] sm:$0x1]
      %v2886 = vld [vmem:[#allocation2 + $0x30] sm:$0xf]
      %v2887 = vld [vmem:[#allocation2 + $0x34] sm:$0x1]
      %v2888 = vld [vmem:[#allocation2 + $0x3c] sm:$0xf]
      %v2889 = vld [vmem:[#allocation2 + $0x40] sm:$0x1]
      %v2890 = vld [vmem:[#allocation2 + $0x48] sm:$0xf]
      %v2891 = vld [vmem:[#allocation2 + $0x4c] sm:$0x1]
      %v2892 = vld [vmem:[#allocation2 + $0x54] sm:$0xf]
      %v2893 = vld [vmem:[#allocation2 + $0x58] sm:$0x1]
      %v2894 = vld [vmem:[#allocation2 + $0x60] sm:$0xf]
      %v2895 = vld [vmem:[#allocation2 + $0x64] sm:$0x1]
      %v2914 = vrot.slane %v2878, 3
      %v2915 = vrot.slane %v2879, 3
      %v2916 = vrot.slane %v2880, 3
      %v2917 = vrot.slane %v2881, 3
      %v2918 = vrot.slane %v2882, 3
      %v2919 = vrot.slane %v2883, 3
      %v2920 = vrot.slane %v2884, 3
      %v2921 = vrot.slane %v2885, 3
      %v2922 = vrot.slane %v2886, 3
      %v2923 = vrot.slane %v2887, 3
      %v2924 = vrot.slane %v2888, 3
      %v2925 = vrot.slane %v2889, 3
      %v2926 = vrot.slane %v2890, 3
      %v2927 = vrot.slane %v2891, 3
      %v2928 = vrot.slane %v2892, 3
      %v2929 = vrot.slane %v2893, 3
      %v2930 = vrot.slane %v2894, 3
      %v2931 = vrot.slane %v2895, 3
      %v2934 = vsel %vm2041, %v2878, %v2914
      %v2936 = vsel %vm2046, %v2878, %v2914
      %v2938 = vrot.slane %v2936, 1
      %v2939 = vsel %vm2050, %v2878, %v2914
      %v2941 = vrot.slane %v2939, 2
      %v2942 = vsel %vm2054, %v2878, %v2914
      %v2944 = vrot.slane %v2942, 3
      %v2947 = vsel %vm2041, %v2879, %v2915
      %v2951 = vsel %vm2041, %v2880, %v2916
      %v2953 = vsel %vm2046, %v2880, %v2916
      %v2955 = vrot.slane %v2953, 1
      %v2956 = vsel %vm2050, %v2880, %v2916
      %v2958 = vrot.slane %v2956, 2
      %v2959 = vsel %vm2054, %v2880, %v2916
      %v2961 = vrot.slane %v2959, 3
      %v2964 = vsel %vm2041, %v2881, %v2917
      %v2968 = vsel %vm2041, %v2882, %v2918
      %v2970 = vsel %vm2046, %v2882, %v2918
      %v2972 = vrot.slane %v2970, 1
      %v2973 = vsel %vm2050, %v2882, %v2918
      %v2975 = vrot.slane %v2973, 2
      %v2976 = vsel %vm2054, %v2882, %v2918
      %v2978 = vrot.slane %v2976, 3
      %v2981 = vsel %vm2041, %v2883, %v2919
      %v2985 = vsel %vm2041, %v2884, %v2920
      %v2987 = vsel %vm2046, %v2884, %v2920
      %v2989 = vrot.slane %v2987, 1
      %v2990 = vsel %vm2050, %v2884, %v2920
      %v2992 = vrot.slane %v2990, 2
      %v2993 = vsel %vm2054, %v2884, %v2920
      %v2995 = vrot.slane %v2993, 3
      %v2998 = vsel %vm2041, %v2885, %v2921
      %v3002 = vsel %vm2041, %v2886, %v2922
      %v3004 = vsel %vm2046, %v2886, %v2922
      %v3006 = vrot.slane %v3004, 1
      %v3007 = vsel %vm2050, %v2886, %v2922
      %v3009 = vrot.slane %v3007, 2
      %v3010 = vsel %vm2054, %v2886, %v2922
      %v3012 = vrot.slane %v3010, 3
      %v3015 = vsel %vm2041, %v2887, %v2923
      %v3019 = vsel %vm2041, %v2888, %v2924
      %v3021 = vsel %vm2046, %v2888, %v2924
      %v3023 = vrot.slane %v3021, 1
      %v3024 = vsel %vm2050, %v2888, %v2924
      %v3026 = vrot.slane %v3024, 2
      %v3027 = vsel %vm2054, %v2888, %v2924
      %v3029 = vrot.slane %v3027, 3
      %v3032 = vsel %vm2041, %v2889, %v2925
      %v3036 = vsel %vm2041, %v2890, %v2926
      %v3038 = vsel %vm2046, %v2890, %v2926
      %v3040 = vrot.slane %v3038, 1
      %v3041 = vsel %vm2050, %v2890, %v2926
      %v3043 = vrot.slane %v3041, 2
      %v3044 = vsel %vm2054, %v2890, %v2926
      %v3046 = vrot.slane %v3044, 3
      %v3049 = vsel %vm2041, %v2891, %v2927
      %v3053 = vsel %vm2041, %v2892, %v2928
      %v3055 = vsel %vm2046, %v2892, %v2928
      %v3057 = vrot.slane %v3055, 1
      %v3058 = vsel %vm2050, %v2892, %v2928
      %v3060 = vrot.slane %v3058, 2
      %v3061 = vsel %vm2054, %v2892, %v2928
      %v3063 = vrot.slane %v3061, 3
      %v3066 = vsel %vm2041, %v2893, %v2929
      %v3070 = vsel %vm2041, %v2894, %v2930
      %v3072 = vsel %vm2046, %v2894, %v2930
      %v3074 = vrot.slane %v3072, 1
      %v3075 = vsel %vm2050, %v2894, %v2930
      %v3077 = vrot.slane %v3075, 2
      %v3078 = vsel %vm2054, %v2894, %v2930
      %v3080 = vrot.slane %v3078, 3
      %v3083 = vsel %vm2041, %v2895, %v2931
      %v3085 = vunpack.i.h.s16 %v2934
      %v3086 = vunpack.i.l.s16 %v2938
      %v3087 = vunpack.i.h.s16 %v2938
      %v3088 = vunpack.i.l.s16 %v2941
      %v3089 = vunpack.i.h.s16 %v2941
      %v3090 = vunpack.i.l.s16 %v2944
      %v3091 = vunpack.i.h.s16 %v2944
      %v3092 = vunpack.i.l.s16 %v2947
      %v3093 = vunpack.i.h.s16 %v2947
      %v3094 = vunpack.i.h.s16 %v2951
      %v3095 = vunpack.i.l.s16 %v2955
      %v3096 = vunpack.i.h.s16 %v2955
      %v3097 = vunpack.i.l.s16 %v2958
      %v3098 = vunpack.i.h.s16 %v2958
      %v3099 = vunpack.i.l.s16 %v2961
      %v3100 = vunpack.i.h.s16 %v2961
      %v3101 = vunpack.i.l.s16 %v2964
      %v3102 = vunpack.i.h.s16 %v2964
      %v3103 = vunpack.i.h.s16 %v2968
      %v3104 = vunpack.i.l.s16 %v2972
      %v3105 = vunpack.i.h.s16 %v2972
      %v3106 = vunpack.i.l.s16 %v2975
      %v3107 = vunpack.i.h.s16 %v2975
      %v3108 = vunpack.i.l.s16 %v2978
      %v3109 = vunpack.i.h.s16 %v2978
      %v3110 = vunpack.i.l.s16 %v2981
      %v3111 = vunpack.i.h.s16 %v2981
      %v3112 = vunpack.i.h.s16 %v2985
      %v3113 = vunpack.i.l.s16 %v2989
      %v3114 = vunpack.i.h.s16 %v2989
      %v3115 = vunpack.i.l.s16 %v2992
      %v3116 = vunpack.i.h.s16 %v2992
      %v3117 = vunpack.i.l.s16 %v2995
      %v3118 = vunpack.i.h.s16 %v2995
      %v3119 = vunpack.i.l.s16 %v2998
      %v3120 = vunpack.i.h.s16 %v2998
      %v3121 = vunpack.i.h.s16 %v3002
      %v3122 = vunpack.i.l.s16 %v3006
      %v3123 = vunpack.i.h.s16 %v3006
      %v3124 = vunpack.i.l.s16 %v3009
      %v3125 = vunpack.i.h.s16 %v3009
      %v3126 = vunpack.i.l.s16 %v3012
      %v3127 = vunpack.i.h.s16 %v3012
      %v3128 = vunpack.i.l.s16 %v3015
      %v3129 = vunpack.i.h.s16 %v3015
      %v3130 = vunpack.i.h.s16 %v3019
      %v3131 = vunpack.i.l.s16 %v3023
      %v3132 = vunpack.i.h.s16 %v3023
      %v3133 = vunpack.i.l.s16 %v3026
      %v3134 = vunpack.i.h.s16 %v3026
      %v3135 = vunpack.i.l.s16 %v3029
      %v3136 = vunpack.i.h.s16 %v3029
      %v3137 = vunpack.i.l.s16 %v3032
      %v3138 = vunpack.i.h.s16 %v3032
      %v3139 = vunpack.i.h.s16 %v3036
      %v3140 = vunpack.i.l.s16 %v3040
      %v3141 = vunpack.i.h.s16 %v3040
      %v3142 = vunpack.i.l.s16 %v3043
      %v3143 = vunpack.i.h.s16 %v3043
      %v3144 = vunpack.i.l.s16 %v3046
      %v3145 = vunpack.i.h.s16 %v3046
      %v3146 = vunpack.i.l.s16 %v3049
      %v3147 = vunpack.i.h.s16 %v3049
      %v3148 = vunpack.i.h.s16 %v3053
      %v3149 = vunpack.i.l.s16 %v3057
      %v3150 = vunpack.i.h.s16 %v3057
      %v3151 = vunpack.i.l.s16 %v3060
      %v3152 = vunpack.i.h.s16 %v3060
      %v3153 = vunpack.i.l.s16 %v3063
      %v3154 = vunpack.i.h.s16 %v3063
      %v3155 = vunpack.i.l.s16 %v3066
      %v3156 = vunpack.i.h.s16 %v3066
      %v3157 = vunpack.i.h.s16 %v3070
      %v3158 = vunpack.i.l.s16 %v3074
      %v3159 = vunpack.i.h.s16 %v3074
      %v3160 = vunpack.i.l.s16 %v3077
      %v3161 = vunpack.i.h.s16 %v3077
      %v3162 = vunpack.i.l.s16 %v3080
      %v3163 = vunpack.i.h.s16 %v3080
      %v3164 = vunpack.i.l.s16 %v3083
      %v3165 = vunpack.i.h.s16 %v3083
      %v3166 = vpack.i.b16 %v3086, %v3085
      %v3167 = vpack.i.b16 %v3088, %v3087
      %v3168 = vpack.i.b16 %v3090, %v3089
      %v3169 = vpack.i.b16 %v3092, %v3091
      %v3170 = vpack.i.b16 %v3094, %v3093
      %v3171 = vpack.i.b16 %v3096, %v3095
      %v3172 = vpack.i.b16 %v3098, %v3097
      %v3173 = vpack.i.b16 %v3100, %v3099
      %v3174 = vpack.i.b16 %v3102, %v3101
      %v3175 = vpack.i.b16 %v3104, %v3103
      %v3176 = vpack.i.b16 %v3106, %v3105
      %v3177 = vpack.i.b16 %v3108, %v3107
      %v3178 = vpack.i.b16 %v3110, %v3109
      %v3179 = vpack.i.b16 %v3112, %v3111
      %v3180 = vpack.i.b16 %v3114, %v3113
      %v3181 = vpack.i.b16 %v3116, %v3115
      %v3182 = vpack.i.b16 %v3118, %v3117
      %v3183 = vpack.i.b16 %v3120, %v3119
      %v3184 = vpack.i.b16 %v3122, %v3121
      %v3185 = vpack.i.b16 %v3124, %v3123
      %v3186 = vpack.i.b16 %v3126, %v3125
      %v3187 = vpack.i.b16 %v3128, %v3127
      %v3188 = vpack.i.b16 %v3130, %v3129
      %v3189 = vpack.i.b16 %v3132, %v3131
      %v3190 = vpack.i.b16 %v3134, %v3133
      %v3191 = vpack.i.b16 %v3136, %v3135
      %v3192 = vpack.i.b16 %v3138, %v3137
      %v3193 = vpack.i.b16 %v3140, %v3139
      %v3194 = vpack.i.b16 %v3142, %v3141
      %v3195 = vpack.i.b16 %v3144, %v3143
      %v3196 = vpack.i.b16 %v3146, %v3145
      %v3197 = vpack.i.b16 %v3148, %v3147
      %v3198 = vpack.i.b16 %v3150, %v3149
      %v3199 = vpack.i.b16 %v3152, %v3151
      %v3200 = vpack.i.b16 %v3154, %v3153
      %v3201 = vpack.i.b16 %v3156, %v3155
      %v3202 = vpack.i.b16 %v3158, %v3157
      %v3203 = vpack.i.b16 %v3160, %v3159
      %v3204 = vpack.i.b16 %v3162, %v3161
      %v3205 = vpack.i.b16 %v3164, %v3163
      %3208 = vst [vmem:[#allocation1] ss:$4 sm:$0xff] %v3166
      %s3210 = scalar_lea.vmem [#allocation1], 1
      %3211 = vst [vmem:[%s3210] ss:$4 sm:$0xff] %v3167
      %s3213 = scalar_lea.vmem [#allocation1], 2
      %3214 = vst [vmem:[%s3213] ss:$4 sm:$0xff] %v3168
      %s3216 = scalar_lea.vmem [#allocation1], 3
      %3217 = vst [vmem:[%s3216] ss:$4 sm:$0xff] %v3169
      %s3219 = scalar_lea.vmem [#allocation1], 32
      %3220 = vst [vmem:[%s3219] ss:$4 sm:$0xff] %v3170
      %s3222 = scalar_lea.vmem [#allocation1], 33
      %3223 = vst [vmem:[%s3222] ss:$4 sm:$0xff] %v3171
      %s3225 = scalar_lea.vmem [#allocation1], 34
      %3226 = vst [vmem:[%s3225] ss:$4 sm:$0xff] %v3172
      %s3228 = scalar_lea.vmem [#allocation1], 35
      %3229 = vst [vmem:[%s3228] ss:$4 sm:$0xff] %v3173
      %v3230 = vld [vmem:[#allocation1] sm:$0xff]
      %v3232 = vld [vmem:[#allocation1 + $0x20] sm:$0xff]
      %3235 = vst [vmem:[#allocation1] ss:$4 sm:$0xff] %v3174
      %3237 = vst [vmem:[%s3210] ss:$4 sm:$0xff] %v3175
      %3239 = vst [vmem:[%s3213] ss:$4 sm:$0xff] %v3176
      %3241 = vst [vmem:[%s3216] ss:$4 sm:$0xff] %v3177
      %3243 = vst [vmem:[%s3219] ss:$4 sm:$0xff] %v3178
      %3245 = vst [vmem:[%s3222] ss:$4 sm:$0xff] %v3179
      %3247 = vst [vmem:[%s3225] ss:$4 sm:$0xff] %v3180
      %3249 = vst [vmem:[%s3228] ss:$4 sm:$0xff] %v3181
      %v3250 = vld [vmem:[#allocation1] sm:$0xff]
      %v3252 = vld [vmem:[#allocation1 + $0x20] sm:$0xff]
      %3255 = vst [vmem:[#allocation1] ss:$4 sm:$0xff] %v3182
      %3257 = vst [vmem:[%s3210] ss:$4 sm:$0xff] %v3183
      %3259 = vst [vmem:[%s3213] ss:$4 sm:$0xff] %v3184
      %3261 = vst [vmem:[%s3216] ss:$4 sm:$0xff] %v3185
      %3263 = vst [vmem:[%s3219] ss:$4 sm:$0xff] %v3186
      %3265 = vst [vmem:[%s3222] ss:$4 sm:$0xff] %v3187
      %3267 = vst [vmem:[%s3225] ss:$4 sm:$0xff] %v3188
      %3269 = vst [vmem:[%s3228] ss:$4 sm:$0xff] %v3189
      %v3270 = vld [vmem:[#allocation1] sm:$0xff]
      %v3272 = vld [vmem:[#allocation1 + $0x20] sm:$0xff]
      %3275 = vst [vmem:[#allocation1] ss:$4 sm:$0xff] %v3190
      %3277 = vst [vmem:[%s3210] ss:$4 sm:$0xff] %v3191
      %3279 = vst [vmem:[%s3213] ss:$4 sm:$0xff] %v3192
      %3281 = vst [vmem:[%s3216] ss:$4 sm:$0xff] %v3193
      %3283 = vst [vmem:[%s3219] ss:$4 sm:$0xff] %v3194
      %3285 = vst [vmem:[%s3222] ss:$4 sm:$0xff] %v3195
      %3287 = vst [vmem:[%s3225] ss:$4 sm:$0xff] %v3196
      %3289 = vst [vmem:[%s3228] ss:$4 sm:$0xff] %v3197
      %v3290 = vld [vmem:[#allocation1] sm:$0xff]
      %v3292 = vld [vmem:[#allocation1 + $0x20] sm:$0xff]
      %3295 = vst [vmem:[#allocation1] ss:$4 sm:$0xff] %v3198
      %3297 = vst [vmem:[%s3210] ss:$4 sm:$0xff] %v3199
      %3299 = vst [vmem:[%s3213] ss:$4 sm:$0xff] %v3200
      %3301 = vst [vmem:[%s3216] ss:$4 sm:$0xff] %v3201
      %3303 = vst [vmem:[%s3219] ss:$4 sm:$0xff] %v3202
      %3305 = vst [vmem:[%s3222] ss:$4 sm:$0xff] %v3203
      %3307 = vst [vmem:[%s3225] ss:$4 sm:$0xff] %v3204
      %3309 = vst [vmem:[%s3228] ss:$4 sm:$0xff] %v3205
      %v3310 = vld [vmem:[#allocation1] sm:$0xff]
      %v3312 = vld [vmem:[#allocation1 + $0x20] sm:$0xff]
      %3315 = vst [vmem:[#allocation1] ss:$4 sm:$0xff] %v3165
      %v3316 = vld [vmem:[#allocation1] sm:$0xff]
      %3318 = vrot.lane.b32.xlu0 %v3230, 64
      %v3319 = vpop.permute.xlu0 %3318
      %3320 = vrot.lane.b32.xlu0 %v3232, 64
      %v3321 = vpop.permute.xlu0 %3320
      %3322 = vrot.lane.b32.xlu0 %v3250, 64
      %v3323 = vpop.permute.xlu0 %3322
      %3324 = vrot.lane.b32.xlu0 %v3252, 64
      %v3325 = vpop.permute.xlu0 %3324
      %3326 = vrot.lane.b32.xlu0 %v3270, 64
      %v3327 = vpop.permute.xlu0 %3326
      %3328 = vrot.lane.b32.xlu0 %v3272, 64
      %v3329 = vpop.permute.xlu0 %3328
      %3330 = vrot.lane.b32.xlu0 %v3290, 64
      %v3331 = vpop.permute.xlu0 %3330
      %3332 = vrot.lane.b32.xlu0 %v3292, 64
      %v3333 = vpop.permute.xlu0 %3332
      %3334 = vrot.lane.b32.xlu0 %v3310, 64
      %v3335 = vpop.permute.xlu0 %3334
      %3336 = vrot.lane.b32.xlu0 %v3312, 64
      %v3337 = vpop.permute.xlu0 %3336
      %3338 = vrot.lane.b32.xlu0 %v3316, 64
      %v3339 = vpop.permute.xlu0 %3338
      %vm3351 = vcmask 781824
      %3352 = vst.msk [vmem:[#allocation4] sm:$0xf] %vm3351, %v3319
      %3353 = vst.msk [vmem:[#allocation4 + $0x10] sm:$0xf] %vm3351, %v3321
      %3354 = vst.msk [vmem:[#allocation4 + $0x20] sm:$0xf] %vm3351, %v3323
      %3355 = vst.msk [vmem:[#allocation4 + $0x30] sm:$0xf] %vm3351, %v3325
      %3356 = vst.msk [vmem:[#allocation4 + $0x40] sm:$0xf] %vm3351, %v3327
      %3357 = vst.msk [vmem:[#allocation4 + $0x50] sm:$0xf] %vm3351, %v3329
      %3358 = vst.msk [vmem:[#allocation4 + $0x60] sm:$0xf] %vm3351, %v3331
      %3359 = vst.msk [vmem:[#allocation4 + $0x70] sm:$0xf] %vm3351, %v3333
      %3360 = vst.msk [vmem:[#allocation4 + $0x80] sm:$0xf] %vm3351, %v3335
      %3361 = vst.msk [vmem:[#allocation4 + $0x90] sm:$0xf] %vm3351, %v3337
      %vm3362 = vcmask 778752
      %vm3363 = vmand %vm3362, %vm2442
      %v3364 = vld [vmem:[#allocation4 + $0xa0] sm:$0x1]
      %v3365 = vsel %vm3363, %v3339, %v3364
      %3366 = vst [vmem:[#allocation4 + $0xa0] sm:$0x1] %v3365
      %v3367 = vld [vmem:[#allocation2 + $0x4] sm:$0xe]
      %v3368 = vld [vmem:[#allocation2 + $0x8] sm:$0x3]
      %v3369 = vld [vmem:[#allocation2 + $0x10] sm:$0xe]
      %v3370 = vld [vmem:[#allocation2 + $0x14] sm:$0x3]
      %v3371 = vld [vmem:[#allocation2 + $0x1c] sm:$0xe]
      %v3372 = vld [vmem:[#allocation2 + $0x20] sm:$0x3]
      %v3373 = vld [vmem:[#allocation2 + $0x28] sm:$0xe]
      %v3374 = vld [vmem:[#allocation2 + $0x2c] sm:$0x3]
      %v3375 = vld [vmem:[#allocation2 + $0x34] sm:$0xe]
      %v3376 = vld [vmem:[#allocation2 + $0x38] sm:$0x3]
      %v3377 = vld [vmem:[#allocation2 + $0x40] sm:$0xe]
      %v3378 = vld [vmem:[#allocation2 + $0x44] sm:$0x3]
      %v3379 = vld [vmem:[#allocation2 + $0x4c] sm:$0xe]
      %v3380 = vld [vmem:[#allocation2 + $0x50] sm:$0x3]
      %v3381 = vld [vmem:[#allocation2 + $0x58] sm:$0xe]
      %v3382 = vld [vmem:[#allocation2 + $0x5c] sm:$0x3]
      %v3383 = vld [vmem:[#allocation2 + $0x64] sm:$0xe]
      %v3384 = vld [vmem:[#allocation2 + $0x68] sm:$0x3]
      %3386 = vst [vmem:[#allocation1] sm:$0xff] %v3367
      %3388 = vst [vmem:[#allocation1 + $0x20] sm:$0xff] %v3368
      %s3389 = scalar_lea.vmem [#allocation1], 1
      %v3390 = vld [vmem:[%s3389] ss:$4 sm:$0xff]
      %s3392 = scalar_lea.vmem [#allocation1], 2
      %v3393 = vld [vmem:[%s3392] ss:$4 sm:$0xff]
      %s3395 = scalar_lea.vmem [#allocation1], 3
      %v3396 = vld [vmem:[%s3395] ss:$4 sm:$0xff]
      %s3398 = scalar_lea.vmem [#allocation1], 32
      %v3399 = vld [vmem:[%s3398] ss:$4 sm:$0xff]
      %s3401 = scalar_lea.vmem [#allocation1], 33
      %v3402 = vld [vmem:[%s3401] ss:$4 sm:$0xff]
      %3405 = vst [vmem:[#allocation1] sm:$0xff] %v3369
      %3407 = vst [vmem:[#allocation1 + $0x20] sm:$0xff] %v3370
      %v3408 = vld [vmem:[%s3389] ss:$4 sm:$0xff]
      %v3410 = vld [vmem:[%s3392] ss:$4 sm:$0xff]
      %v3412 = vld [vmem:[%s3395] ss:$4 sm:$0xff]
      %v3414 = vld [vmem:[%s3398] ss:$4 sm:$0xff]
      %v3416 = vld [vmem:[%s3401] ss:$4 sm:$0xff]
      %3419 = vst [vmem:[#allocation1] sm:$0xff] %v3371
      %3421 = vst [vmem:[#allocation1 + $0x20] sm:$0xff] %v3372
      %v3422 = vld [vmem:[%s3389] ss:$4 sm:$0xff]
      %v3424 = vld [vmem:[%s3392] ss:$4 sm:$0xff]
      %v3426 = vld [vmem:[%s3395] ss:$4 sm:$0xff]
      %v3428 = vld [vmem:[%s3398] ss:$4 sm:$0xff]
      %v3430 = vld [vmem:[%s3401] ss:$4 sm:$0xff]
      %3433 = vst [vmem:[#allocation1] sm:$0xff] %v3373
      %3435 = vst [vmem:[#allocation1 + $0x20] sm:$0xff] %v3374
      %v3436 = vld [vmem:[%s3389] ss:$4 sm:$0xff]
      %v3438 = vld [vmem:[%s3392] ss:$4 sm:$0xff]
      %v3440 = vld [vmem:[%s3395] ss:$4 sm:$0xff]
      %v3442 = vld [vmem:[%s3398] ss:$4 sm:$0xff]
      %v3444 = vld [vmem:[%s3401] ss:$4 sm:$0xff]
      %3447 = vst [vmem:[#allocation1] sm:$0xff] %v3375
      %3449 = vst [vmem:[#allocation1 + $0x20] sm:$0xff] %v3376
      %v3450 = vld [vmem:[%s3389] ss:$4 sm:$0xff]
      %v3452 = vld [vmem:[%s3392] ss:$4 sm:$0xff]
      %v3454 = vld [vmem:[%s3395] ss:$4 sm:$0xff]
      %v3456 = vld [vmem:[%s3398] ss:$4 sm:$0xff]
      %v3458 = vld [vmem:[%s3401] ss:$4 sm:$0xff]
      %3461 = vst [vmem:[#allocation1] sm:$0xff] %v3377
      %3463 = vst [vmem:[#allocation1 + $0x20] sm:$0xff] %v3378
      %v3464 = vld [vmem:[%s3389] ss:$4 sm:$0xff]
      %v3466 = vld [vmem:[%s3392] ss:$4 sm:$0xff]
      %v3468 = vld [vmem:[%s3395] ss:$4 sm:$0xff]
      %v3470 = vld [vmem:[%s3398] ss:$4 sm:$0xff]
      %v3472 = vld [vmem:[%s3401] ss:$4 sm:$0xff]
      %3475 = vst [vmem:[#allocation1] sm:$0xff] %v3379
      %3477 = vst [vmem:[#allocation1 + $0x20] sm:$0xff] %v3380
      %v3478 = vld [vmem:[%s3389] ss:$4 sm:$0xff]
      %v3480 = vld [vmem:[%s3392] ss:$4 sm:$0xff]
      %v3482 = vld [vmem:[%s3395] ss:$4 sm:$0xff]
      %v3484 = vld [vmem:[%s3398] ss:$4 sm:$0xff]
      %v3486 = vld [vmem:[%s3401] ss:$4 sm:$0xff]
      %3489 = vst [vmem:[#allocation1] sm:$0xff] %v3381
      %3491 = vst [vmem:[#allocation1 + $0x20] sm:$0xff] %v3382
      %v3492 = vld [vmem:[%s3389] ss:$4 sm:$0xff]
      %v3494 = vld [vmem:[%s3392] ss:$4 sm:$0xff]
      %v3496 = vld [vmem:[%s3395] ss:$4 sm:$0xff]
      %v3498 = vld [vmem:[%s3398] ss:$4 sm:$0xff]
      %v3500 = vld [vmem:[%s3401] ss:$4 sm:$0xff]
      %3503 = vst [vmem:[#allocation1] sm:$0xff] %v3383
      %3505 = vst [vmem:[#allocation1 + $0x20] sm:$0xff] %v3384
      %v3506 = vld [vmem:[%s3389] ss:$4 sm:$0xff]
      %v3508 = vld [vmem:[%s3392] ss:$4 sm:$0xff]
      %v3510 = vld [vmem:[%s3395] ss:$4 sm:$0xff]
      %v3512 = vld [vmem:[%s3398] ss:$4 sm:$0xff]
      %v3514 = vld [vmem:[%s3401] ss:$4 sm:$0xff]
      %v3516 = vunpack.i.h.s16 %v3390
      %v3517 = vunpack.i.l.s16 %v3393
      %v3518 = vunpack.i.h.s16 %v3393
      %v3519 = vunpack.i.l.s16 %v3396
      %v3520 = vunpack.i.h.s16 %v3396
      %v3521 = vunpack.i.l.s16 %v3399
      %v3522 = vunpack.i.h.s16 %v3399
      %v3523 = vunpack.i.l.s16 %v3402
      %v3524 = vunpack.i.h.s16 %v3402
      %v3525 = vunpack.i.h.s16 %v3408
      %v3526 = vunpack.i.l.s16 %v3410
      %v3527 = vunpack.i.h.s16 %v3410
      %v3528 = vunpack.i.l.s16 %v3412
      %v3529 = vunpack.i.h.s16 %v3412
      %v3530 = vunpack.i.l.s16 %v3414
      %v3531 = vunpack.i.h.s16 %v3414
      %v3532 = vunpack.i.l.s16 %v3416
      %v3533 = vunpack.i.h.s16 %v3416
      %v3534 = vunpack.i.h.s16 %v3422
      %v3535 = vunpack.i.l.s16 %v3424
      %v3536 = vunpack.i.h.s16 %v3424
      %v3537 = vunpack.i.l.s16 %v3426
      %v3538 = vunpack.i.h.s16 %v3426
      %v3539 = vunpack.i.l.s16 %v3428
      %v3540 = vunpack.i.h.s16 %v3428
      %v3541 = vunpack.i.l.s16 %v3430
      %v3542 = vunpack.i.h.s16 %v3430
      %v3543 = vunpack.i.h.s16 %v3436
      %v3544 = vunpack.i.l.s16 %v3438
      %v3545 = vunpack.i.h.s16 %v3438
      %v3546 = vunpack.i.l.s16 %v3440
      %v3547 = vunpack.i.h.s16 %v3440
      %v3548 = vunpack.i.l.s16 %v3442
      %v3549 = vunpack.i.h.s16 %v3442
      %v3550 = vunpack.i.l.s16 %v3444
      %v3551 = vunpack.i.h.s16 %v3444
      %v3552 = vunpack.i.h.s16 %v3450
      %v3553 = vunpack.i.l.s16 %v3452
      %v3554 = vunpack.i.h.s16 %v3452
      %v3555 = vunpack.i.l.s16 %v3454
      %v3556 = vunpack.i.h.s16 %v3454
      %v3557 = vunpack.i.l.s16 %v3456
      %v3558 = vunpack.i.h.s16 %v3456
      %v3559 = vunpack.i.l.s16 %v3458
      %v3560 = vunpack.i.h.s16 %v3458
      %v3561 = vunpack.i.h.s16 %v3464
      %v3562 = vunpack.i.l.s16 %v3466
      %v3563 = vunpack.i.h.s16 %v3466
      %v3564 = vunpack.i.l.s16 %v3468
      %v3565 = vunpack.i.h.s16 %v3468
      %v3566 = vunpack.i.l.s16 %v3470
      %v3567 = vunpack.i.h.s16 %v3470
      %v3568 = vunpack.i.l.s16 %v3472
      %v3569 = vunpack.i.h.s16 %v3472
      %v3570 = vunpack.i.h.s16 %v3478
      %v3571 = vunpack.i.l.s16 %v3480
      %v3572 = vunpack.i.h.s16 %v3480
      %v3573 = vunpack.i.l.s16 %v3482
      %v3574 = vunpack.i.h.s16 %v3482
      %v3575 = vunpack.i.l.s16 %v3484
      %v3576 = vunpack.i.h.s16 %v3484
      %v3577 = vunpack.i.l.s16 %v3486
      %v3578 = vunpack.i.h.s16 %v3486
      %v3579 = vunpack.i.h.s16 %v3492
      %v3580 = vunpack.i.l.s16 %v3494
      %v3581 = vunpack.i.h.s16 %v3494
      %v3582 = vunpack.i.l.s16 %v3496
      %v3583 = vunpack.i.h.s16 %v3496
      %v3584 = vunpack.i.l.s16 %v3498
      %v3585 = vunpack.i.h.s16 %v3498
      %v3586 = vunpack.i.l.s16 %v3500
      %v3587 = vunpack.i.h.s16 %v3500
      %v3588 = vunpack.i.h.s16 %v3506
      %v3589 = vunpack.i.l.s16 %v3508
      %v3590 = vunpack.i.h.s16 %v3508
      %v3591 = vunpack.i.l.s16 %v3510
      %v3592 = vunpack.i.h.s16 %v3510
      %v3593 = vunpack.i.l.s16 %v3512
      %v3594 = vunpack.i.h.s16 %v3512
      %v3595 = vunpack.i.l.s16 %v3514
      %v3596 = vunpack.i.h.s16 %v3514
      %v3597 = vpack.i.b16 %v3517, %v3516
      %v3598 = vpack.i.b16 %v3519, %v3518
      %v3599 = vpack.i.b16 %v3521, %v3520
      %v3600 = vpack.i.b16 %v3523, %v3522
      %v3601 = vpack.i.b16 %v3525, %v3524
      %v3602 = vpack.i.b16 %v3527, %v3526
      %v3603 = vpack.i.b16 %v3529, %v3528
      %v3604 = vpack.i.b16 %v3531, %v3530
      %v3605 = vpack.i.b16 %v3533, %v3532
      %v3606 = vpack.i.b16 %v3535, %v3534
      %v3607 = vpack.i.b16 %v3537, %v3536
      %v3608 = vpack.i.b16 %v3539, %v3538
      %v3609 = vpack.i.b16 %v3541, %v3540
      %v3610 = vpack.i.b16 %v3543, %v3542
      %v3611 = vpack.i.b16 %v3545, %v3544
      %v3612 = vpack.i.b16 %v3547, %v3546
      %v3613 = vpack.i.b16 %v3549, %v3548
      %v3614 = vpack.i.b16 %v3551, %v3550
      %v3615 = vpack.i.b16 %v3553, %v3552
      %v3616 = vpack.i.b16 %v3555, %v3554
      %v3617 = vpack.i.b16 %v3557, %v3556
      %v3618 = vpack.i.b16 %v3559, %v3558
      %v3619 = vpack.i.b16 %v3561, %v3560
      %v3620 = vpack.i.b16 %v3563, %v3562
      %v3621 = vpack.i.b16 %v3565, %v3564
      %v3622 = vpack.i.b16 %v3567, %v3566
      %v3623 = vpack.i.b16 %v3569, %v3568
      %v3624 = vpack.i.b16 %v3571, %v3570
      %v3625 = vpack.i.b16 %v3573, %v3572
      %v3626 = vpack.i.b16 %v3575, %v3574
      %v3627 = vpack.i.b16 %v3577, %v3576
      %v3628 = vpack.i.b16 %v3579, %v3578
      %v3629 = vpack.i.b16 %v3581, %v3580
      %v3630 = vpack.i.b16 %v3583, %v3582
      %v3631 = vpack.i.b16 %v3585, %v3584
      %v3632 = vpack.i.b16 %v3587, %v3586
      %v3633 = vpack.i.b16 %v3589, %v3588
      %v3634 = vpack.i.b16 %v3591, %v3590
      %v3635 = vpack.i.b16 %v3593, %v3592
      %v3636 = vpack.i.b16 %v3595, %v3594
      %3639 = vst [vmem:[#allocation1] ss:$4 sm:$0xff] %v3597
      %s3641 = scalar_lea.vmem [#allocation1], 1
      %3642 = vst [vmem:[%s3641] ss:$4 sm:$0xff] %v3598
      %s3644 = scalar_lea.vmem [#allocation1], 2
      %3645 = vst [vmem:[%s3644] ss:$4 sm:$0xff] %v3599
      %s3647 = scalar_lea.vmem [#allocation1], 3
      %3648 = vst [vmem:[%s3647] ss:$4 sm:$0xff] %v3600
      %s3650 = scalar_lea.vmem [#allocation1], 32
      %3651 = vst [vmem:[%s3650] ss:$4 sm:$0xff] %v3601
      %s3653 = scalar_lea.vmem [#allocation1], 33
      %3654 = vst [vmem:[%s3653] ss:$4 sm:$0xff] %v3602
      %s3656 = scalar_lea.vmem [#allocation1], 34
      %3657 = vst [vmem:[%s3656] ss:$4 sm:$0xff] %v3603
      %s3659 = scalar_lea.vmem [#allocation1], 35
      %3660 = vst [vmem:[%s3659] ss:$4 sm:$0xff] %v3604
      %v3661 = vld [vmem:[#allocation1] sm:$0xff]
      %v3663 = vld [vmem:[#allocation1 + $0x20] sm:$0xff]
      %3666 = vst [vmem:[#allocation1] ss:$4 sm:$0xff] %v3605
      %3668 = vst [vmem:[%s3641] ss:$4 sm:$0xff] %v3606
      %3670 = vst [vmem:[%s3644] ss:$4 sm:$0xff] %v3607
      %3672 = vst [vmem:[%s3647] ss:$4 sm:$0xff] %v3608
      %3674 = vst [vmem:[%s3650] ss:$4 sm:$0xff] %v3609
      %3676 = vst [vmem:[%s3653] ss:$4 sm:$0xff] %v3610
      %3678 = vst [vmem:[%s3656] ss:$4 sm:$0xff] %v3611
      %3680 = vst [vmem:[%s3659] ss:$4 sm:$0xff] %v3612
      %v3681 = vld [vmem:[#allocation1] sm:$0xff]
      %v3683 = vld [vmem:[#allocation1 + $0x20] sm:$0xff]
      %3686 = vst [vmem:[#allocation1] ss:$4 sm:$0xff] %v3613
      %3688 = vst [vmem:[%s3641] ss:$4 sm:$0xff] %v3614
      %3690 = vst [vmem:[%s3644] ss:$4 sm:$0xff] %v3615
      %3692 = vst [vmem:[%s3647] ss:$4 sm:$0xff] %v3616
      %3694 = vst [vmem:[%s3650] ss:$4 sm:$0xff] %v3617
      %3696 = vst [vmem:[%s3653] ss:$4 sm:$0xff] %v3618
      %3698 = vst [vmem:[%s3656] ss:$4 sm:$0xff] %v3619
      %3700 = vst [vmem:[%s3659] ss:$4 sm:$0xff] %v3620
      %v3701 = vld [vmem:[#allocation1] sm:$0xff]
      %v3703 = vld [vmem:[#allocation1 + $0x20] sm:$0xff]
      %3706 = vst [vmem:[#allocation1] ss:$4 sm:$0xff] %v3621
      %3708 = vst [vmem:[%s3641] ss:$4 sm:$0xff] %v3622
      %3710 = vst [vmem:[%s3644] ss:$4 sm:$0xff] %v3623
      %3712 = vst [vmem:[%s3647] ss:$4 sm:$0xff] %v3624
      %3714 = vst [vmem:[%s3650] ss:$4 sm:$0xff] %v3625
      %3716 = vst [vmem:[%s3653] ss:$4 sm:$0xff] %v3626
      %3718 = vst [vmem:[%s3656] ss:$4 sm:$0xff] %v3627
      %3720 = vst [vmem:[%s3659] ss:$4 sm:$0xff] %v3628
      %v3721 = vld [vmem:[#allocation1] sm:$0xff]
      %v3723 = vld [vmem:[#allocation1 + $0x20] sm:$0xff]
      %3726 = vst [vmem:[#allocation1] ss:$4 sm:$0xff] %v3629
      %3728 = vst [vmem:[%s3641] ss:$4 sm:$0xff] %v3630
      %3730 = vst [vmem:[%s3644] ss:$4 sm:$0xff] %v3631
      %3732 = vst [vmem:[%s3647] ss:$4 sm:$0xff] %v3632
      %3734 = vst [vmem:[%s3650] ss:$4 sm:$0xff] %v3633
      %3736 = vst [vmem:[%s3653] ss:$4 sm:$0xff] %v3634
      %3738 = vst [vmem:[%s3656] ss:$4 sm:$0xff] %v3635
      %3740 = vst [vmem:[%s3659] ss:$4 sm:$0xff] %v3636
      %v3741 = vld [vmem:[#allocation1] sm:$0xff]
      %v3743 = vld [vmem:[#allocation1 + $0x20] sm:$0xff]
      %3746 = vst [vmem:[#allocation1] ss:$4 sm:$0xff] %v3596
      %v3747 = vld [vmem:[#allocation1] sm:$0xff]
      %3749 = vrot.lane.b32.xlu0 %v3661, 96
      %v3750 = vpop.permute.xlu0 %3749
      %3751 = vrot.lane.b32.xlu0 %v3663, 96
      %v3752 = vpop.permute.xlu0 %3751
      %3753 = vrot.lane.b32.xlu0 %v3681, 96
      %v3754 = vpop.permute.xlu0 %3753
      %3755 = vrot.lane.b32.xlu0 %v3683, 96
      %v3756 = vpop.permute.xlu0 %3755
      %3757 = vrot.lane.b32.xlu0 %v3701, 96
      %v3758 = vpop.permute.xlu0 %3757
      %3759 = vrot.lane.b32.xlu0 %v3703, 96
      %v3760 = vpop.permute.xlu0 %3759
      %3761 = vrot.lane.b32.xlu0 %v3721, 96
      %v3762 = vpop.permute.xlu0 %3761
      %3763 = vrot.lane.b32.xlu0 %v3723, 96
      %v3764 = vpop.permute.xlu0 %3763
      %3765 = vrot.lane.b32.xlu0 %v3741, 96
      %v3766 = vpop.permute.xlu0 %3765
      %3767 = vrot.lane.b32.xlu0 %v3743, 96
      %v3768 = vpop.permute.xlu0 %3767
      %3769 = vrot.lane.b32.xlu0 %v3747, 96
      %v3770 = vpop.permute.xlu0 %3769
      %vm3782 = vcmask 1044224
      %3783 = vst.msk [vmem:[#allocation4] sm:$0xf] %vm3782, %v3750
      %3784 = vst.msk [vmem:[#allocation4 + $0x10] sm:$0xf] %vm3782, %v3752
      %3785 = vst.msk [vmem:[#allocation4 + $0x20] sm:$0xf] %vm3782, %v3754
      %3786 = vst.msk [vmem:[#allocation4 + $0x30] sm:$0xf] %vm3782, %v3756
      %3787 = vst.msk [vmem:[#allocation4 + $0x40] sm:$0xf] %vm3782, %v3758
      %3788 = vst.msk [vmem:[#allocation4 + $0x50] sm:$0xf] %vm3782, %v3760
      %3789 = vst.msk [vmem:[#allocation4 + $0x60] sm:$0xf] %vm3782, %v3762
      %3790 = vst.msk [vmem:[#allocation4 + $0x70] sm:$0xf] %vm3782, %v3764
      %3791 = vst.msk [vmem:[#allocation4 + $0x80] sm:$0xf] %vm3782, %v3766
      %3792 = vst.msk [vmem:[#allocation4 + $0x90] sm:$0xf] %vm3782, %v3768
      %vm3793 = vcmask 1041152
      %vm3794 = vmand %vm3793, %vm2442
      %v3795 = vld [vmem:[#allocation4 + $0xa0] sm:$0x1]
      %v3796 = vsel %vm3794, %v3770, %v3795
      %3797 = vst [vmem:[#allocation4 + $0xa0] sm:$0x1] %v3796
      %v3798 = vld [vmem:[%s1956] sm:$0xf]
      %v3799 = vld [vmem:[%s1956 + $0x4] sm:$0x1]
      %v3800 = vld [vmem:[%s1956 + $0xc] sm:$0xf]
      %v3801 = vld [vmem:[%s1956 + $0x10] sm:$0x1]
      %v3802 = vld [vmem:[%s1956 + $0x18] sm:$0xf]
      %v3803 = vld [vmem:[%s1956 + $0x1c] sm:$0x1]
      %v3804 = vld [vmem:[%s1956 + $0x24] sm:$0xf]
      %v3805 = vld [vmem:[%s1956 + $0x28] sm:$0x1]
      %v3806 = vld [vmem:[%s1956 + $0x30] sm:$0xf]
      %v3807 = vld [vmem:[%s1956 + $0x34] sm:$0x1]
      %v3808 = vld [vmem:[%s1956 + $0x3c] sm:$0xf]
      %v3809 = vld [vmem:[%s1956 + $0x40] sm:$0x1]
      %v3810 = vld [vmem:[%s1956 + $0x48] sm:$0xf]
      %v3811 = vld [vmem:[%s1956 + $0x4c] sm:$0x1]
      %v3812 = vld [vmem:[%s1956 + $0x54] sm:$0xf]
      %v3813 = vld [vmem:[%s1956 + $0x58] sm:$0x1]
      %v3814 = vld [vmem:[%s1956 + $0x60] sm:$0xf]
      %v3815 = vld [vmem:[%s1956 + $0x64] sm:$0x1]
      %v3834 = vrot.slane %v3798, 3
      %v3835 = vrot.slane %v3799, 3
      %v3836 = vrot.slane %v3800, 3
      %v3837 = vrot.slane %v3801, 3
      %v3838 = vrot.slane %v3802, 3
      %v3839 = vrot.slane %v3803, 3
      %v3840 = vrot.slane %v3804, 3
      %v3841 = vrot.slane %v3805, 3
      %v3842 = vrot.slane %v3806, 3
      %v3843 = vrot.slane %v3807, 3
      %v3844 = vrot.slane %v3808, 3
      %v3845 = vrot.slane %v3809, 3
      %v3846 = vrot.slane %v3810, 3
      %v3847 = vrot.slane %v3811, 3
      %v3848 = vrot.slane %v3812, 3
      %v3849 = vrot.slane %v3813, 3
      %v3850 = vrot.slane %v3814, 3
      %v3851 = vrot.slane %v3815, 3
      %v3854 = vsel %vm2041, %v3798, %v3834
      %v3856 = vsel %vm2046, %v3798, %v3834
      %v3858 = vrot.slane %v3856, 1
      %v3859 = vsel %vm2050, %v3798, %v3834
      %v3861 = vrot.slane %v3859, 2
      %v3862 = vsel %vm2054, %v3798, %v3834
      %v3864 = vrot.slane %v3862, 3
      %v3867 = vsel %vm2041, %v3799, %v3835
      %v3871 = vsel %vm2041, %v3800, %v3836
      %v3873 = vsel %vm2046, %v3800, %v3836
      %v3875 = vrot.slane %v3873, 1
      %v3876 = vsel %vm2050, %v3800, %v3836
      %v3878 = vrot.slane %v3876, 2
      %v3879 = vsel %vm2054, %v3800, %v3836
      %v3881 = vrot.slane %v3879, 3
      %v3884 = vsel %vm2041, %v3801, %v3837
      %v3888 = vsel %vm2041, %v3802, %v3838
      %v3890 = vsel %vm2046, %v3802, %v3838
      %v3892 = vrot.slane %v3890, 1
      %v3893 = vsel %vm2050, %v3802, %v3838
      %v3895 = vrot.slane %v3893, 2
      %v3896 = vsel %vm2054, %v3802, %v3838
      %v3898 = vrot.slane %v3896, 3
      %v3901 = vsel %vm2041, %v3803, %v3839
      %v3905 = vsel %vm2041, %v3804, %v3840
      %v3907 = vsel %vm2046, %v3804, %v3840
      %v3909 = vrot.slane %v3907, 1
      %v3910 = vsel %vm2050, %v3804, %v3840
      %v3912 = vrot.slane %v3910, 2
      %v3913 = vsel %vm2054, %v3804, %v3840
      %v3915 = vrot.slane %v3913, 3
      %v3918 = vsel %vm2041, %v3805, %v3841
      %v3922 = vsel %vm2041, %v3806, %v3842
      %v3924 = vsel %vm2046, %v3806, %v3842
      %v3926 = vrot.slane %v3924, 1
      %v3927 = vsel %vm2050, %v3806, %v3842
      %v3929 = vrot.slane %v3927, 2
      %v3930 = vsel %vm2054, %v3806, %v3842
      %v3932 = vrot.slane %v3930, 3
      %v3935 = vsel %vm2041, %v3807, %v3843
      %v3939 = vsel %vm2041, %v3808, %v3844
      %v3941 = vsel %vm2046, %v3808, %v3844
      %v3943 = vrot.slane %v3941, 1
      %v3944 = vsel %vm2050, %v3808, %v3844
      %v3946 = vrot.slane %v3944, 2
      %v3947 = vsel %vm2054, %v3808, %v3844
      %v3949 = vrot.slane %v3947, 3
      %v3952 = vsel %vm2041, %v3809, %v3845
      %v3956 = vsel %vm2041, %v3810, %v3846
      %v3958 = vsel %vm2046, %v3810, %v3846
      %v3960 = vrot.slane %v3958, 1
      %v3961 = vsel %vm2050, %v3810, %v3846
      %v3963 = vrot.slane %v3961, 2
      %v3964 = vsel %vm2054, %v3810, %v3846
      %v3966 = vrot.slane %v3964, 3
      %v3969 = vsel %vm2041, %v3811, %v3847
      %v3973 = vsel %vm2041, %v3812, %v3848
      %v3975 = vsel %vm2046, %v3812, %v3848
      %v3977 = vrot.slane %v3975, 1
      %v3978 = vsel %vm2050, %v3812, %v3848
      %v3980 = vrot.slane %v3978, 2
      %v3981 = vsel %vm2054, %v3812, %v3848
      %v3983 = vrot.slane %v3981, 3
      %v3986 = vsel %vm2041, %v3813, %v3849
      %v3990 = vsel %vm2041, %v3814, %v3850
      %v3992 = vsel %vm2046, %v3814, %v3850
      %v3994 = vrot.slane %v3992, 1
      %v3995 = vsel %vm2050, %v3814, %v3850
      %v3997 = vrot.slane %v3995, 2
      %v3998 = vsel %vm2054, %v3814, %v3850
      %v4000 = vrot.slane %v3998, 3
      %v4003 = vsel %vm2041, %v3815, %v3851
      %v4005 = vunpack.i.l.s16 %v3854
      %v4006 = vunpack.i.h.s16 %v3854
      %v4007 = vunpack.i.l.s16 %v3858
      %v4008 = vunpack.i.h.s16 %v3858
      %v4009 = vunpack.i.l.s16 %v3861
      %v4010 = vunpack.i.h.s16 %v3861
      %v4011 = vunpack.i.l.s16 %v3864
      %v4012 = vunpack.i.h.s16 %v3864
      %v4013 = vunpack.i.l.s16 %v3867
      %v4014 = vunpack.i.l.s16 %v3871
      %v4015 = vunpack.i.h.s16 %v3871
      %v4016 = vunpack.i.l.s16 %v3875
      %v4017 = vunpack.i.h.s16 %v3875
      %v4018 = vunpack.i.l.s16 %v3878
      %v4019 = vunpack.i.h.s16 %v3878
      %v4020 = vunpack.i.l.s16 %v3881
      %v4021 = vunpack.i.h.s16 %v3881
      %v4022 = vunpack.i.l.s16 %v3884
      %v4023 = vunpack.i.l.s16 %v3888
      %v4024 = vunpack.i.h.s16 %v3888
      %v4025 = vunpack.i.l.s16 %v3892
      %v4026 = vunpack.i.h.s16 %v3892
      %v4027 = vunpack.i.l.s16 %v3895
      %v4028 = vunpack.i.h.s16 %v3895
      %v4029 = vunpack.i.l.s16 %v3898
      %v4030 = vunpack.i.h.s16 %v3898
      %v4031 = vunpack.i.l.s16 %v3901
      %v4032 = vunpack.i.l.s16 %v3905
      %v4033 = vunpack.i.h.s16 %v3905
      %v4034 = vunpack.i.l.s16 %v3909
      %v4035 = vunpack.i.h.s16 %v3909
      %v4036 = vunpack.i.l.s16 %v3912
      %v4037 = vunpack.i.h.s16 %v3912
      %v4038 = vunpack.i.l.s16 %v3915
      %v4039 = vunpack.i.h.s16 %v3915
      %v4040 = vunpack.i.l.s16 %v3918
      %v4041 = vunpack.i.l.s16 %v3922
      %v4042 = vunpack.i.h.s16 %v3922
      %v4043 = vunpack.i.l.s16 %v3926
      %v4044 = vunpack.i.h.s16 %v3926
      %v4045 = vunpack.i.l.s16 %v3929
      %v4046 = vunpack.i.h.s16 %v3929
      %v4047 = vunpack.i.l.s16 %v3932
      %v4048 = vunpack.i.h.s16 %v3932
      %v4049 = vunpack.i.l.s16 %v3935
      %v4050 = vunpack.i.l.s16 %v3939
      %v4051 = vunpack.i.h.s16 %v3939
      %v4052 = vunpack.i.l.s16 %v3943
      %v4053 = vunpack.i.h.s16 %v3943
      %v4054 = vunpack.i.l.s16 %v3946
      %v4055 = vunpack.i.h.s16 %v3946
      %v4056 = vunpack.i.l.s16 %v3949
      %v4057 = vunpack.i.h.s16 %v3949
      %v4058 = vunpack.i.l.s16 %v3952
      %v4059 = vunpack.i.l.s16 %v3956
      %v4060 = vunpack.i.h.s16 %v3956
      %v4061 = vunpack.i.l.s16 %v3960
      %v4062 = vunpack.i.h.s16 %v3960
      %v4063 = vunpack.i.l.s16 %v3963
      %v4064 = vunpack.i.h.s16 %v3963
      %v4065 = vunpack.i.l.s16 %v3966
      %v4066 = vunpack.i.h.s16 %v3966
      %v4067 = vunpack.i.l.s16 %v3969
      %v4068 = vunpack.i.l.s16 %v3973
      %v4069 = vunpack.i.h.s16 %v3973
      %v4070 = vunpack.i.l.s16 %v3977
      %v4071 = vunpack.i.h.s16 %v3977
      %v4072 = vunpack.i.l.s16 %v3980
      %v4073 = vunpack.i.h.s16 %v3980
      %v4074 = vunpack.i.l.s16 %v3983
      %v4075 = vunpack.i.h.s16 %v3983
      %v4076 = vunpack.i.l.s16 %v3986
      %v4077 = vunpack.i.l.s16 %v3990
      %v4078 = vunpack.i.h.s16 %v3990
      %v4079 = vunpack.i.l.s16 %v3994
      %v4080 = vunpack.i.h.s16 %v3994
      %v4081 = vunpack.i.l.s16 %v3997
      %v4082 = vunpack.i.h.s16 %v3997
      %v4083 = vunpack.i.l.s16 %v4000
      %v4084 = vunpack.i.h.s16 %v4000
      %v4085 = vunpack.i.l.s16 %v4003
      %v4086 = vpack.i.b16 %v4006, %v4005
      %v4087 = vpack.i.b16 %v4008, %v4007
      %v4088 = vpack.i.b16 %v4010, %v4009
      %v4089 = vpack.i.b16 %v4012, %v4011
      %v4090 = vpack.i.b16 %v4014, %v4013
      %v4091 = vpack.i.b16 %v4016, %v4015
      %v4092 = vpack.i.b16 %v4018, %v4017
      %v4093 = vpack.i.b16 %v4020, %v4019
      %v4094 = vpack.i.b16 %v4022, %v4021
      %v4095 = vpack.i.b16 %v4024, %v4023
      %v4096 = vpack.i.b16 %v4026, %v4025
      %v4097 = vpack.i.b16 %v4028, %v4027
      %v4098 = vpack.i.b16 %v4030, %v4029
      %v4099 = vpack.i.b16 %v4032, %v4031
      %v4100 = vpack.i.b16 %v4034, %v4033
      %v4101 = vpack.i.b16 %v4036, %v4035
      %v4102 = vpack.i.b16 %v4038, %v4037
      %v4103 = vpack.i.b16 %v4040, %v4039
      %v4104 = vpack.i.b16 %v4042, %v4041
      %v4105 = vpack.i.b16 %v4044, %v4043
      %v4106 = vpack.i.b16 %v4046, %v4045
      %v4107 = vpack.i.b16 %v4048, %v4047
      %v4108 = vpack.i.b16 %v4050, %v4049
      %v4109 = vpack.i.b16 %v4052, %v4051
      %v4110 = vpack.i.b16 %v4054, %v4053
      %v4111 = vpack.i.b16 %v4056, %v4055
      %v4112 = vpack.i.b16 %v4058, %v4057
      %v4113 = vpack.i.b16 %v4060, %v4059
      %v4114 = vpack.i.b16 %v4062, %v4061
      %v4115 = vpack.i.b16 %v4064, %v4063
      %v4116 = vpack.i.b16 %v4066, %v4065
      %v4117 = vpack.i.b16 %v4068, %v4067
      %v4118 = vpack.i.b16 %v4070, %v4069
      %v4119 = vpack.i.b16 %v4072, %v4071
      %v4120 = vpack.i.b16 %v4074, %v4073
      %v4121 = vpack.i.b16 %v4076, %v4075
      %v4122 = vpack.i.b16 %v4078, %v4077
      %v4123 = vpack.i.b16 %v4080, %v4079
      %v4124 = vpack.i.b16 %v4082, %v4081
      %v4125 = vpack.i.b16 %v4084, %v4083
      %4128 = vst [vmem:[#allocation1] ss:$4 sm:$0xff] %v4086
      %s4130 = scalar_lea.vmem [#allocation1], 1
      %4131 = vst [vmem:[%s4130] ss:$4 sm:$0xff] %v4087
      %s4133 = scalar_lea.vmem [#allocation1], 2
      %4134 = vst [vmem:[%s4133] ss:$4 sm:$0xff] %v4088
      %s4136 = scalar_lea.vmem [#allocation1], 3
      %4137 = vst [vmem:[%s4136] ss:$4 sm:$0xff] %v4089
      %s4139 = scalar_lea.vmem [#allocation1], 32
      %4140 = vst [vmem:[%s4139] ss:$4 sm:$0xff] %v4090
      %s4142 = scalar_lea.vmem [#allocation1], 33
      %4143 = vst [vmem:[%s4142] ss:$4 sm:$0xff] %v4091
      %s4145 = scalar_lea.vmem [#allocation1], 34
      %4146 = vst [vmem:[%s4145] ss:$4 sm:$0xff] %v4092
      %s4148 = scalar_lea.vmem [#allocation1], 35
      %4149 = vst [vmem:[%s4148] ss:$4 sm:$0xff] %v4093
      %v4150 = vld [vmem:[#allocation1] sm:$0xff]
      %v4151 = vld [vmem:[#allocation1 + $0x20] sm:$0xff]
      %4153 = vst [vmem:[#allocation1] ss:$4 sm:$0xff] %v4094
      %4155 = vst [vmem:[%s4130] ss:$4 sm:$0xff] %v4095
      %4157 = vst [vmem:[%s4133] ss:$4 sm:$0xff] %v4096
      %4159 = vst [vmem:[%s4136] ss:$4 sm:$0xff] %v4097
      %4161 = vst [vmem:[%s4139] ss:$4 sm:$0xff] %v4098
      %4163 = vst [vmem:[%s4142] ss:$4 sm:$0xff] %v4099
      %4165 = vst [vmem:[%s4145] ss:$4 sm:$0xff] %v4100
      %4167 = vst [vmem:[%s4148] ss:$4 sm:$0xff] %v4101
      %v4168 = vld [vmem:[#allocation1] sm:$0xff]
      %v4169 = vld [vmem:[#allocation1 + $0x20] sm:$0xff]
      %4171 = vst [vmem:[#allocation1] ss:$4 sm:$0xff] %v4102
      %4173 = vst [vmem:[%s4130] ss:$4 sm:$0xff] %v4103
      %4175 = vst [vmem:[%s4133] ss:$4 sm:$0xff] %v4104
      %4177 = vst [vmem:[%s4136] ss:$4 sm:$0xff] %v4105
      %4179 = vst [vmem:[%s4139] ss:$4 sm:$0xff] %v4106
      %4181 = vst [vmem:[%s4142] ss:$4 sm:$0xff] %v4107
      %4183 = vst [vmem:[%s4145] ss:$4 sm:$0xff] %v4108
      %4185 = vst [vmem:[%s4148] ss:$4 sm:$0xff] %v4109
      %v4186 = vld [vmem:[#allocation1] sm:$0xff]
      %v4187 = vld [vmem:[#allocation1 + $0x20] sm:$0xff]
      %4189 = vst [vmem:[#allocation1] ss:$4 sm:$0xff] %v4110
      %4191 = vst [vmem:[%s4130] ss:$4 sm:$0xff] %v4111
      %4193 = vst [vmem:[%s4133] ss:$4 sm:$0xff] %v4112
      %4195 = vst [vmem:[%s4136] ss:$4 sm:$0xff] %v4113
      %4197 = vst [vmem:[%s4139] ss:$4 sm:$0xff] %v4114
      %4199 = vst [vmem:[%s4142] ss:$4 sm:$0xff] %v4115
      %4201 = vst [vmem:[%s4145] ss:$4 sm:$0xff] %v4116
      %4203 = vst [vmem:[%s4148] ss:$4 sm:$0xff] %v4117
      %v4204 = vld [vmem:[#allocation1] sm:$0xff]
      %v4205 = vld [vmem:[#allocation1 + $0x20] sm:$0xff]
      %4207 = vst [vmem:[#allocation1] ss:$4 sm:$0xff] %v4118
      %4209 = vst [vmem:[%s4130] ss:$4 sm:$0xff] %v4119
      %4211 = vst [vmem:[%s4133] ss:$4 sm:$0xff] %v4120
      %4213 = vst [vmem:[%s4136] ss:$4 sm:$0xff] %v4121
      %4215 = vst [vmem:[%s4139] ss:$4 sm:$0xff] %v4122
      %4217 = vst [vmem:[%s4142] ss:$4 sm:$0xff] %v4123
      %4219 = vst [vmem:[%s4145] ss:$4 sm:$0xff] %v4124
      %4221 = vst [vmem:[%s4148] ss:$4 sm:$0xff] %v4125
      %v4222 = vld [vmem:[#allocation1] sm:$0xff]
      %v4223 = vld [vmem:[#allocation1 + $0x20] sm:$0xff]
      %4225 = vst [vmem:[#allocation1] ss:$4 sm:$0xff] %v4085
      %v4226 = vld [vmem:[#allocation1] sm:$0xff]
      %4238 = vst.msk [vmem:[#allocation4 + $0x4] sm:$0xf] %vm1106, %v4150
      %4239 = vst.msk [vmem:[#allocation4 + $0x14] sm:$0xf] %vm1106, %v4151
      %4240 = vst.msk [vmem:[#allocation4 + $0x24] sm:$0xf] %vm1106, %v4168
      %4241 = vst.msk [vmem:[#allocation4 + $0x34] sm:$0xf] %vm1106, %v4169
      %4242 = vst.msk [vmem:[#allocation4 + $0x44] sm:$0xf] %vm1106, %v4186
      %4243 = vst.msk [vmem:[#allocation4 + $0x54] sm:$0xf] %vm1106, %v4187
      %4244 = vst.msk [vmem:[#allocation4 + $0x64] sm:$0xf] %vm1106, %v4204
      %4245 = vst.msk [vmem:[#allocation4 + $0x74] sm:$0xf] %vm1106, %v4205
      %4246 = vst.msk [vmem:[#allocation4 + $0x84] sm:$0xf] %vm1106, %v4222
      %4247 = vst.msk [vmem:[#allocation4 + $0x94] sm:$0xf] %vm1106, %v4223
      %v4248 = vld [vmem:[#allocation4 + $0xa4] sm:$0x1]
      %v4249 = vsel %vm2443, %v4226, %v4248
      %4250 = vst [vmem:[#allocation4 + $0xa4] sm:$0x1] %v4249
      %v4251 = vld [vmem:[%s1956 + $0x4] sm:$0xe]
      %v4252 = vld [vmem:[%s1956 + $0x8] sm:$0x3]
      %v4253 = vld [vmem:[%s1956 + $0x10] sm:$0xe]
      %v4254 = vld [vmem:[%s1956 + $0x14] sm:$0x3]
      %v4255 = vld [vmem:[%s1956 + $0x1c] sm:$0xe]
      %v4256 = vld [vmem:[%s1956 + $0x20] sm:$0x3]
      %v4257 = vld [vmem:[%s1956 + $0x28] sm:$0xe]
      %v4258 = vld [vmem:[%s1956 + $0x2c] sm:$0x3]
      %v4259 = vld [vmem:[%s1956 + $0x34] sm:$0xe]
      %v4260 = vld [vmem:[%s1956 + $0x38] sm:$0x3]
      %v4261 = vld [vmem:[%s1956 + $0x40] sm:$0xe]
      %v4262 = vld [vmem:[%s1956 + $0x44] sm:$0x3]
      %v4263 = vld [vmem:[%s1956 + $0x4c] sm:$0xe]
      %v4264 = vld [vmem:[%s1956 + $0x50] sm:$0x3]
      %v4265 = vld [vmem:[%s1956 + $0x58] sm:$0xe]
      %v4266 = vld [vmem:[%s1956 + $0x5c] sm:$0x3]
      %v4267 = vld [vmem:[%s1956 + $0x64] sm:$0xe]
      %v4268 = vld [vmem:[%s1956 + $0x68] sm:$0x3]
      %4270 = vst [vmem:[#allocation1] sm:$0xff] %v4251
      %4272 = vst [vmem:[#allocation1 + $0x20] sm:$0xff] %v4252
      %s4273 = scalar_lea.vmem [#allocation1], 1
      %v4274 = vld [vmem:[%s4273] ss:$4 sm:$0xff]
      %s4276 = scalar_lea.vmem [#allocation1], 2
      %v4277 = vld [vmem:[%s4276] ss:$4 sm:$0xff]
      %s4279 = scalar_lea.vmem [#allocation1], 3
      %v4280 = vld [vmem:[%s4279] ss:$4 sm:$0xff]
      %s4282 = scalar_lea.vmem [#allocation1], 32
      %v4283 = vld [vmem:[%s4282] ss:$4 sm:$0xff]
      %s4285 = scalar_lea.vmem [#allocation1], 33
      %v4286 = vld [vmem:[%s4285] ss:$4 sm:$0xff]
      %4289 = vst [vmem:[#allocation1] sm:$0xff] %v4253
      %4291 = vst [vmem:[#allocation1 + $0x20] sm:$0xff] %v4254
      %v4292 = vld [vmem:[%s4273] ss:$4 sm:$0xff]
      %v4294 = vld [vmem:[%s4276] ss:$4 sm:$0xff]
      %v4296 = vld [vmem:[%s4279] ss:$4 sm:$0xff]
      %v4298 = vld [vmem:[%s4282] ss:$4 sm:$0xff]
      %v4300 = vld [vmem:[%s4285] ss:$4 sm:$0xff]
      %4303 = vst [vmem:[#allocation1] sm:$0xff] %v4255
      %4305 = vst [vmem:[#allocation1 + $0x20] sm:$0xff] %v4256
      %v4306 = vld [vmem:[%s4273] ss:$4 sm:$0xff]
      %v4308 = vld [vmem:[%s4276] ss:$4 sm:$0xff]
      %v4310 = vld [vmem:[%s4279] ss:$4 sm:$0xff]
      %v4312 = vld [vmem:[%s4282] ss:$4 sm:$0xff]
      %v4314 = vld [vmem:[%s4285] ss:$4 sm:$0xff]
      %4317 = vst [vmem:[#allocation1] sm:$0xff] %v4257
      %4319 = vst [vmem:[#allocation1 + $0x20] sm:$0xff] %v4258
      %v4320 = vld [vmem:[%s4273] ss:$4 sm:$0xff]
      %v4322 = vld [vmem:[%s4276] ss:$4 sm:$0xff]
      %v4324 = vld [vmem:[%s4279] ss:$4 sm:$0xff]
      %v4326 = vld [vmem:[%s4282] ss:$4 sm:$0xff]
      %v4328 = vld [vmem:[%s4285] ss:$4 sm:$0xff]
      %4331 = vst [vmem:[#allocation1] sm:$0xff] %v4259
      %4333 = vst [vmem:[#allocation1 + $0x20] sm:$0xff] %v4260
      %v4334 = vld [vmem:[%s4273] ss:$4 sm:$0xff]
      %v4336 = vld [vmem:[%s4276] ss:$4 sm:$0xff]
      %v4338 = vld [vmem:[%s4279] ss:$4 sm:$0xff]
      %v4340 = vld [vmem:[%s4282] ss:$4 sm:$0xff]
      %v4342 = vld [vmem:[%s4285] ss:$4 sm:$0xff]
      %4345 = vst [vmem:[#allocation1] sm:$0xff] %v4261
      %4347 = vst [vmem:[#allocation1 + $0x20] sm:$0xff] %v4262
      %v4348 = vld [vmem:[%s4273] ss:$4 sm:$0xff]
      %v4350 = vld [vmem:[%s4276] ss:$4 sm:$0xff]
      %v4352 = vld [vmem:[%s4279] ss:$4 sm:$0xff]
      %v4354 = vld [vmem:[%s4282] ss:$4 sm:$0xff]
      %v4356 = vld [vmem:[%s4285] ss:$4 sm:$0xff]
      %4359 = vst [vmem:[#allocation1] sm:$0xff] %v4263
      %4361 = vst [vmem:[#allocation1 + $0x20] sm:$0xff] %v4264
      %v4362 = vld [vmem:[%s4273] ss:$4 sm:$0xff]
      %v4364 = vld [vmem:[%s4276] ss:$4 sm:$0xff]
      %v4366 = vld [vmem:[%s4279] ss:$4 sm:$0xff]
      %v4368 = vld [vmem:[%s4282] ss:$4 sm:$0xff]
      %v4370 = vld [vmem:[%s4285] ss:$4 sm:$0xff]
      %4373 = vst [vmem:[#allocation1] sm:$0xff] %v4265
      %4375 = vst [vmem:[#allocation1 + $0x20] sm:$0xff] %v4266
      %v4376 = vld [vmem:[%s4273] ss:$4 sm:$0xff]
      %v4378 = vld [vmem:[%s4276] ss:$4 sm:$0xff]
      %v4380 = vld [vmem:[%s4279] ss:$4 sm:$0xff]
      %v4382 = vld [vmem:[%s4282] ss:$4 sm:$0xff]
      %v4384 = vld [vmem:[%s4285] ss:$4 sm:$0xff]
      %4387 = vst [vmem:[#allocation1] sm:$0xff] %v4267
      %4389 = vst [vmem:[#allocation1 + $0x20] sm:$0xff] %v4268
      %v4390 = vld [vmem:[%s4273] ss:$4 sm:$0xff]
      %v4392 = vld [vmem:[%s4276] ss:$4 sm:$0xff]
      %v4394 = vld [vmem:[%s4279] ss:$4 sm:$0xff]
      %v4396 = vld [vmem:[%s4282] ss:$4 sm:$0xff]
      %v4398 = vld [vmem:[%s4285] ss:$4 sm:$0xff]
      %v4400 = vunpack.i.l.s16 %v4274
      %v4401 = vunpack.i.h.s16 %v4274
      %v4402 = vunpack.i.l.s16 %v4277
      %v4403 = vunpack.i.h.s16 %v4277
      %v4404 = vunpack.i.l.s16 %v4280
      %v4405 = vunpack.i.h.s16 %v4280
      %v4406 = vunpack.i.l.s16 %v4283
      %v4407 = vunpack.i.h.s16 %v4283
      %v4408 = vunpack.i.l.s16 %v4286
      %v4409 = vunpack.i.l.s16 %v4292
      %v4410 = vunpack.i.h.s16 %v4292
      %v4411 = vunpack.i.l.s16 %v4294
      %v4412 = vunpack.i.h.s16 %v4294
      %v4413 = vunpack.i.l.s16 %v4296
      %v4414 = vunpack.i.h.s16 %v4296
      %v4415 = vunpack.i.l.s16 %v4298
      %v4416 = vunpack.i.h.s16 %v4298
      %v4417 = vunpack.i.l.s16 %v4300
      %v4418 = vunpack.i.l.s16 %v4306
      %v4419 = vunpack.i.h.s16 %v4306
      %v4420 = vunpack.i.l.s16 %v4308
      %v4421 = vunpack.i.h.s16 %v4308
      %v4422 = vunpack.i.l.s16 %v4310
      %v4423 = vunpack.i.h.s16 %v4310
      %v4424 = vunpack.i.l.s16 %v4312
      %v4425 = vunpack.i.h.s16 %v4312
      %v4426 = vunpack.i.l.s16 %v4314
      %v4427 = vunpack.i.l.s16 %v4320
      %v4428 = vunpack.i.h.s16 %v4320
      %v4429 = vunpack.i.l.s16 %v4322
      %v4430 = vunpack.i.h.s16 %v4322
      %v4431 = vunpack.i.l.s16 %v4324
      %v4432 = vunpack.i.h.s16 %v4324
      %v4433 = vunpack.i.l.s16 %v4326
      %v4434 = vunpack.i.h.s16 %v4326
      %v4435 = vunpack.i.l.s16 %v4328
      %v4436 = vunpack.i.l.s16 %v4334
      %v4437 = vunpack.i.h.s16 %v4334
      %v4438 = vunpack.i.l.s16 %v4336
      %v4439 = vunpack.i.h.s16 %v4336
      %v4440 = vunpack.i.l.s16 %v4338
      %v4441 = vunpack.i.h.s16 %v4338
      %v4442 = vunpack.i.l.s16 %v4340
      %v4443 = vunpack.i.h.s16 %v4340
      %v4444 = vunpack.i.l.s16 %v4342
      %v4445 = vunpack.i.l.s16 %v4348
      %v4446 = vunpack.i.h.s16 %v4348
      %v4447 = vunpack.i.l.s16 %v4350
      %v4448 = vunpack.i.h.s16 %v4350
      %v4449 = vunpack.i.l.s16 %v4352
      %v4450 = vunpack.i.h.s16 %v4352
      %v4451 = vunpack.i.l.s16 %v4354
      %v4452 = vunpack.i.h.s16 %v4354
      %v4453 = vunpack.i.l.s16 %v4356
      %v4454 = vunpack.i.l.s16 %v4362
      %v4455 = vunpack.i.h.s16 %v4362
      %v4456 = vunpack.i.l.s16 %v4364
      %v4457 = vunpack.i.h.s16 %v4364
      %v4458 = vunpack.i.l.s16 %v4366
      %v4459 = vunpack.i.h.s16 %v4366
      %v4460 = vunpack.i.l.s16 %v4368
      %v4461 = vunpack.i.h.s16 %v4368
      %v4462 = vunpack.i.l.s16 %v4370
      %v4463 = vunpack.i.l.s16 %v4376
      %v4464 = vunpack.i.h.s16 %v4376
      %v4465 = vunpack.i.l.s16 %v4378
      %v4466 = vunpack.i.h.s16 %v4378
      %v4467 = vunpack.i.l.s16 %v4380
      %v4468 = vunpack.i.h.s16 %v4380
      %v4469 = vunpack.i.l.s16 %v4382
      %v4470 = vunpack.i.h.s16 %v4382
      %v4471 = vunpack.i.l.s16 %v4384
      %v4472 = vunpack.i.l.s16 %v4390
      %v4473 = vunpack.i.h.s16 %v4390
      %v4474 = vunpack.i.l.s16 %v4392
      %v4475 = vunpack.i.h.s16 %v4392
      %v4476 = vunpack.i.l.s16 %v4394
      %v4477 = vunpack.i.h.s16 %v4394
      %v4478 = vunpack.i.l.s16 %v4396
      %v4479 = vunpack.i.h.s16 %v4396
      %v4480 = vunpack.i.l.s16 %v4398
      %v4481 = vpack.i.b16 %v4401, %v4400
      %v4482 = vpack.i.b16 %v4403, %v4402
      %v4483 = vpack.i.b16 %v4405, %v4404
      %v4484 = vpack.i.b16 %v4407, %v4406
      %v4485 = vpack.i.b16 %v4409, %v4408
      %v4486 = vpack.i.b16 %v4411, %v4410
      %v4487 = vpack.i.b16 %v4413, %v4412
      %v4488 = vpack.i.b16 %v4415, %v4414
      %v4489 = vpack.i.b16 %v4417, %v4416
      %v4490 = vpack.i.b16 %v4419, %v4418
      %v4491 = vpack.i.b16 %v4421, %v4420
      %v4492 = vpack.i.b16 %v4423, %v4422
      %v4493 = vpack.i.b16 %v4425, %v4424
      %v4494 = vpack.i.b16 %v4427, %v4426
      %v4495 = vpack.i.b16 %v4429, %v4428
      %v4496 = vpack.i.b16 %v4431, %v4430
      %v4497 = vpack.i.b16 %v4433, %v4432
      %v4498 = vpack.i.b16 %v4435, %v4434
      %v4499 = vpack.i.b16 %v4437, %v4436
      %v4500 = vpack.i.b16 %v4439, %v4438
      %v4501 = vpack.i.b16 %v4441, %v4440
      %v4502 = vpack.i.b16 %v4443, %v4442
      %v4503 = vpack.i.b16 %v4445, %v4444
      %v4504 = vpack.i.b16 %v4447, %v4446
      %v4505 = vpack.i.b16 %v4449, %v4448
      %v4506 = vpack.i.b16 %v4451, %v4450
      %v4507 = vpack.i.b16 %v4453, %v4452
      %v4508 = vpack.i.b16 %v4455, %v4454
      %v4509 = vpack.i.b16 %v4457, %v4456
      %v4510 = vpack.i.b16 %v4459, %v4458
      %v4511 = vpack.i.b16 %v4461, %v4460
      %v4512 = vpack.i.b16 %v4463, %v4462
      %v4513 = vpack.i.b16 %v4465, %v4464
      %v4514 = vpack.i.b16 %v4467, %v4466
      %v4515 = vpack.i.b16 %v4469, %v4468
      %v4516 = vpack.i.b16 %v4471, %v4470
      %v4517 = vpack.i.b16 %v4473, %v4472
      %v4518 = vpack.i.b16 %v4475, %v4474
      %v4519 = vpack.i.b16 %v4477, %v4476
      %v4520 = vpack.i.b16 %v4479, %v4478
      %4523 = vst [vmem:[#allocation1] ss:$4 sm:$0xff] %v4481
      %s4525 = scalar_lea.vmem [#allocation1], 1
      %4526 = vst [vmem:[%s4525] ss:$4 sm:$0xff] %v4482
      %s4528 = scalar_lea.vmem [#allocation1], 2
      %4529 = vst [vmem:[%s4528] ss:$4 sm:$0xff] %v4483
      %s4531 = scalar_lea.vmem [#allocation1], 3
      %4532 = vst [vmem:[%s4531] ss:$4 sm:$0xff] %v4484
      %s4534 = scalar_lea.vmem [#allocation1], 32
      %4535 = vst [vmem:[%s4534] ss:$4 sm:$0xff] %v4485
      %s4537 = scalar_lea.vmem [#allocation1], 33
      %4538 = vst [vmem:[%s4537] ss:$4 sm:$0xff] %v4486
      %s4540 = scalar_lea.vmem [#allocation1], 34
      %4541 = vst [vmem:[%s4540] ss:$4 sm:$0xff] %v4487
      %s4543 = scalar_lea.vmem [#allocation1], 35
      %4544 = vst [vmem:[%s4543] ss:$4 sm:$0xff] %v4488
      %v4545 = vld [vmem:[#allocation1] sm:$0xff]
      %v4547 = vld [vmem:[#allocation1 + $0x20] sm:$0xff]
      %4550 = vst [vmem:[#allocation1] ss:$4 sm:$0xff] %v4489
      %4552 = vst [vmem:[%s4525] ss:$4 sm:$0xff] %v4490
      %4554 = vst [vmem:[%s4528] ss:$4 sm:$0xff] %v4491
      %4556 = vst [vmem:[%s4531] ss:$4 sm:$0xff] %v4492
      %4558 = vst [vmem:[%s4534] ss:$4 sm:$0xff] %v4493
      %4560 = vst [vmem:[%s4537] ss:$4 sm:$0xff] %v4494
      %4562 = vst [vmem:[%s4540] ss:$4 sm:$0xff] %v4495
      %4564 = vst [vmem:[%s4543] ss:$4 sm:$0xff] %v4496
      %v4565 = vld [vmem:[#allocation1] sm:$0xff]
      %v4567 = vld [vmem:[#allocation1 + $0x20] sm:$0xff]
      %4570 = vst [vmem:[#allocation1] ss:$4 sm:$0xff] %v4497
      %4572 = vst [vmem:[%s4525] ss:$4 sm:$0xff] %v4498
      %4574 = vst [vmem:[%s4528] ss:$4 sm:$0xff] %v4499
      %4576 = vst [vmem:[%s4531] ss:$4 sm:$0xff] %v4500
      %4578 = vst [vmem:[%s4534] ss:$4 sm:$0xff] %v4501
      %4580 = vst [vmem:[%s4537] ss:$4 sm:$0xff] %v4502
      %4582 = vst [vmem:[%s4540] ss:$4 sm:$0xff] %v4503
      %4584 = vst [vmem:[%s4543] ss:$4 sm:$0xff] %v4504
      %v4585 = vld [vmem:[#allocation1] sm:$0xff]
      %v4587 = vld [vmem:[#allocation1 + $0x20] sm:$0xff]
      %4590 = vst [vmem:[#allocation1] ss:$4 sm:$0xff] %v4505
      %4592 = vst [vmem:[%s4525] ss:$4 sm:$0xff] %v4506
      %4594 = vst [vmem:[%s4528] ss:$4 sm:$0xff] %v4507
      %4596 = vst [vmem:[%s4531] ss:$4 sm:$0xff] %v4508
      %4598 = vst [vmem:[%s4534] ss:$4 sm:$0xff] %v4509
      %4600 = vst [vmem:[%s4537] ss:$4 sm:$0xff] %v4510
      %4602 = vst [vmem:[%s4540] ss:$4 sm:$0xff] %v4511
      %4604 = vst [vmem:[%s4543] ss:$4 sm:$0xff] %v4512
      %v4605 = vld [vmem:[#allocation1] sm:$0xff]
      %v4607 = vld [vmem:[#allocation1 + $0x20] sm:$0xff]
      %4610 = vst [vmem:[#allocation1] ss:$4 sm:$0xff] %v4513
      %4612 = vst [vmem:[%s4525] ss:$4 sm:$0xff] %v4514
      %4614 = vst [vmem:[%s4528] ss:$4 sm:$0xff] %v4515
      %4616 = vst [vmem:[%s4531] ss:$4 sm:$0xff] %v4516
      %4618 = vst [vmem:[%s4534] ss:$4 sm:$0xff] %v4517
      %4620 = vst [vmem:[%s4537] ss:$4 sm:$0xff] %v4518
      %4622 = vst [vmem:[%s4540] ss:$4 sm:$0xff] %v4519
      %4624 = vst [vmem:[%s4543] ss:$4 sm:$0xff] %v4520
      %v4625 = vld [vmem:[#allocation1] sm:$0xff]
      %v4627 = vld [vmem:[#allocation1 + $0x20] sm:$0xff]
      %4630 = vst [vmem:[#allocation1] ss:$4 sm:$0xff] %v4480
      %v4631 = vld [vmem:[#allocation1] sm:$0xff]
      %4633 = vrot.lane.b32.xlu0 %v4545, 32
      %v4634 = vpop.permute.xlu0 %4633
      %4635 = vrot.lane.b32.xlu0 %v4547, 32
      %v4636 = vpop.permute.xlu0 %4635
      %4637 = vrot.lane.b32.xlu0 %v4565, 32
      %v4638 = vpop.permute.xlu0 %4637
      %4639 = vrot.lane.b32.xlu0 %v4567, 32
      %v4640 = vpop.permute.xlu0 %4639
      %4641 = vrot.lane.b32.xlu0 %v4585, 32
      %v4642 = vpop.permute.xlu0 %4641
      %4643 = vrot.lane.b32.xlu0 %v4587, 32
      %v4644 = vpop.permute.xlu0 %4643
      %4645 = vrot.lane.b32.xlu0 %v4605, 32
      %v4646 = vpop.permute.xlu0 %4645
      %4647 = vrot.lane.b32.xlu0 %v4607, 32
      %v4648 = vpop.permute.xlu0 %4647
      %4649 = vrot.lane.b32.xlu0 %v4625, 32
      %v4650 = vpop.permute.xlu0 %4649
      %4651 = vrot.lane.b32.xlu0 %v4627, 32
      %v4652 = vpop.permute.xlu0 %4651
      %4653 = vrot.lane.b32.xlu0 %v4631, 32
      %v4654 = vpop.permute.xlu0 %4653
      %4666 = vst.msk [vmem:[#allocation4 + $0x4] sm:$0xf] %vm2862, %v4634
      %4667 = vst.msk [vmem:[#allocation4 + $0x14] sm:$0xf] %vm2862, %v4636
      %4668 = vst.msk [vmem:[#allocation4 + $0x24] sm:$0xf] %vm2862, %v4638
      %4669 = vst.msk [vmem:[#allocation4 + $0x34] sm:$0xf] %vm2862, %v4640
      %4670 = vst.msk [vmem:[#allocation4 + $0x44] sm:$0xf] %vm2862, %v4642
      %4671 = vst.msk [vmem:[#allocation4 + $0x54] sm:$0xf] %vm2862, %v4644
      %4672 = vst.msk [vmem:[#allocation4 + $0x64] sm:$0xf] %vm2862, %v4646
      %4673 = vst.msk [vmem:[#allocation4 + $0x74] sm:$0xf] %vm2862, %v4648
      %4674 = vst.msk [vmem:[#allocation4 + $0x84] sm:$0xf] %vm2862, %v4650
      %4675 = vst.msk [vmem:[#allocation4 + $0x94] sm:$0xf] %vm2862, %v4652
      %v4676 = vld [vmem:[#allocation4 + $0xa4] sm:$0x1]
      %v4677 = vsel %vm2874, %v4654, %v4676
      %4678 = vst [vmem:[#allocation4 + $0xa4] sm:$0x1] %v4677
      %v4679 = vld [vmem:[%s1956] sm:$0xf]
      %v4680 = vld [vmem:[%s1956 + $0x4] sm:$0x1]
      %v4681 = vld [vmem:[%s1956 + $0xc] sm:$0xf]
      %v4682 = vld [vmem:[%s1956 + $0x10] sm:$0x1]
      %v4683 = vld [vmem:[%s1956 + $0x18] sm:$0xf]
      %v4684 = vld [vmem:[%s1956 + $0x1c] sm:$0x1]
      %v4685 = vld [vmem:[%s1956 + $0x24] sm:$0xf]
      %v4686 = vld [vmem:[%s1956 + $0x28] sm:$0x1]
      %v4687 = vld [vmem:[%s1956 + $0x30] sm:$0xf]
      %v4688 = vld [vmem:[%s1956 + $0x34] sm:$0x1]
      %v4689 = vld [vmem:[%s1956 + $0x3c] sm:$0xf]
      %v4690 = vld [vmem:[%s1956 + $0x40] sm:$0x1]
      %v4691 = vld [vmem:[%s1956 + $0x48] sm:$0xf]
      %v4692 = vld [vmem:[%s1956 + $0x4c] sm:$0x1]
      %v4693 = vld [vmem:[%s1956 + $0x54] sm:$0xf]
      %v4694 = vld [vmem:[%s1956 + $0x58] sm:$0x1]
      %v4695 = vld [vmem:[%s1956 + $0x60] sm:$0xf]
      %v4696 = vld [vmem:[%s1956 + $0x64] sm:$0x1]
      %v4715 = vrot.slane %v4679, 3
      %v4716 = vrot.slane %v4680, 3
      %v4717 = vrot.slane %v4681, 3
      %v4718 = vrot.slane %v4682, 3
      %v4719 = vrot.slane %v4683, 3
      %v4720 = vrot.slane %v4684, 3
      %v4721 = vrot.slane %v4685, 3
      %v4722 = vrot.slane %v4686, 3
      %v4723 = vrot.slane %v4687, 3
      %v4724 = vrot.slane %v4688, 3
      %v4725 = vrot.slane %v4689, 3
      %v4726 = vrot.slane %v4690, 3
      %v4727 = vrot.slane %v4691, 3
      %v4728 = vrot.slane %v4692, 3
      %v4729 = vrot.slane %v4693, 3
      %v4730 = vrot.slane %v4694, 3
      %v4731 = vrot.slane %v4695, 3
      %v4732 = vrot.slane %v4696, 3
      %v4735 = vsel %vm2041, %v4679, %v4715
      %v4737 = vsel %vm2046, %v4679, %v4715
      %v4739 = vrot.slane %v4737, 1
      %v4740 = vsel %vm2050, %v4679, %v4715
      %v4742 = vrot.slane %v4740, 2
      %v4743 = vsel %vm2054, %v4679, %v4715
      %v4745 = vrot.slane %v4743, 3
      %v4748 = vsel %vm2041, %v4680, %v4716
      %v4752 = vsel %vm2041, %v4681, %v4717
      %v4754 = vsel %vm2046, %v4681, %v4717
      %v4756 = vrot.slane %v4754, 1
      %v4757 = vsel %vm2050, %v4681, %v4717
      %v4759 = vrot.slane %v4757, 2
      %v4760 = vsel %vm2054, %v4681, %v4717
      %v4762 = vrot.slane %v4760, 3
      %v4765 = vsel %vm2041, %v4682, %v4718
      %v4769 = vsel %vm2041, %v4683, %v4719
      %v4771 = vsel %vm2046, %v4683, %v4719
      %v4773 = vrot.slane %v4771, 1
      %v4774 = vsel %vm2050, %v4683, %v4719
      %v4776 = vrot.slane %v4774, 2
      %v4777 = vsel %vm2054, %v4683, %v4719
      %v4779 = vrot.slane %v4777, 3
      %v4782 = vsel %vm2041, %v4684, %v4720
      %v4786 = vsel %vm2041, %v4685, %v4721
      %v4788 = vsel %vm2046, %v4685, %v4721
      %v4790 = vrot.slane %v4788, 1
      %v4791 = vsel %vm2050, %v4685, %v4721
      %v4793 = vrot.slane %v4791, 2
      %v4794 = vsel %vm2054, %v4685, %v4721
      %v4796 = vrot.slane %v4794, 3
      %v4799 = vsel %vm2041, %v4686, %v4722
      %v4803 = vsel %vm2041, %v4687, %v4723
      %v4805 = vsel %vm2046, %v4687, %v4723
      %v4807 = vrot.slane %v4805, 1
      %v4808 = vsel %vm2050, %v4687, %v4723
      %v4810 = vrot.slane %v4808, 2
      %v4811 = vsel %vm2054, %v4687, %v4723
      %v4813 = vrot.slane %v4811, 3
      %v4816 = vsel %vm2041, %v4688, %v4724
      %v4820 = vsel %vm2041, %v4689, %v4725
      %v4822 = vsel %vm2046, %v4689, %v4725
      %v4824 = vrot.slane %v4822, 1
      %v4825 = vsel %vm2050, %v4689, %v4725
      %v4827 = vrot.slane %v4825, 2
      %v4828 = vsel %vm2054, %v4689, %v4725
      %v4830 = vrot.slane %v4828, 3
      %v4833 = vsel %vm2041, %v4690, %v4726
      %v4837 = vsel %vm2041, %v4691, %v4727
      %v4839 = vsel %vm2046, %v4691, %v4727
      %v4841 = vrot.slane %v4839, 1
      %v4842 = vsel %vm2050, %v4691, %v4727
      %v4844 = vrot.slane %v4842, 2
      %v4845 = vsel %vm2054, %v4691, %v4727
      %v4847 = vrot.slane %v4845, 3
      %v4850 = vsel %vm2041, %v4692, %v4728
      %v4854 = vsel %vm2041, %v4693, %v4729
      %v4856 = vsel %vm2046, %v4693, %v4729
      %v4858 = vrot.slane %v4856, 1
      %v4859 = vsel %vm2050, %v4693, %v4729
      %v4861 = vrot.slane %v4859, 2
      %v4862 = vsel %vm2054, %v4693, %v4729
      %v4864 = vrot.slane %v4862, 3
      %v4867 = vsel %vm2041, %v4694, %v4730
      %v4871 = vsel %vm2041, %v4695, %v4731
      %v4873 = vsel %vm2046, %v4695, %v4731
      %v4875 = vrot.slane %v4873, 1
      %v4876 = vsel %vm2050, %v4695, %v4731
      %v4878 = vrot.slane %v4876, 2
      %v4879 = vsel %vm2054, %v4695, %v4731
      %v4881 = vrot.slane %v4879, 3
      %v4884 = vsel %vm2041, %v4696, %v4732
      %v4886 = vunpack.i.h.s16 %v4735
      %v4887 = vunpack.i.l.s16 %v4739
      %v4888 = vunpack.i.h.s16 %v4739
      %v4889 = vunpack.i.l.s16 %v4742
      %v4890 = vunpack.i.h.s16 %v4742
      %v4891 = vunpack.i.l.s16 %v4745
      %v4892 = vunpack.i.h.s16 %v4745
      %v4893 = vunpack.i.l.s16 %v4748
      %v4894 = vunpack.i.h.s16 %v4748
      %v4895 = vunpack.i.h.s16 %v4752
      %v4896 = vunpack.i.l.s16 %v4756
      %v4897 = vunpack.i.h.s16 %v4756
      %v4898 = vunpack.i.l.s16 %v4759
      %v4899 = vunpack.i.h.s16 %v4759
      %v4900 = vunpack.i.l.s16 %v4762
      %v4901 = vunpack.i.h.s16 %v4762
      %v4902 = vunpack.i.l.s16 %v4765
      %v4903 = vunpack.i.h.s16 %v4765
      %v4904 = vunpack.i.h.s16 %v4769
      %v4905 = vunpack.i.l.s16 %v4773
      %v4906 = vunpack.i.h.s16 %v4773
      %v4907 = vunpack.i.l.s16 %v4776
      %v4908 = vunpack.i.h.s16 %v4776
      %v4909 = vunpack.i.l.s16 %v4779
      %v4910 = vunpack.i.h.s16 %v4779
      %v4911 = vunpack.i.l.s16 %v4782
      %v4912 = vunpack.i.h.s16 %v4782
      %v4913 = vunpack.i.h.s16 %v4786
      %v4914 = vunpack.i.l.s16 %v4790
      %v4915 = vunpack.i.h.s16 %v4790
      %v4916 = vunpack.i.l.s16 %v4793
      %v4917 = vunpack.i.h.s16 %v4793
      %v4918 = vunpack.i.l.s16 %v4796
      %v4919 = vunpack.i.h.s16 %v4796
      %v4920 = vunpack.i.l.s16 %v4799
      %v4921 = vunpack.i.h.s16 %v4799
      %v4922 = vunpack.i.h.s16 %v4803
      %v4923 = vunpack.i.l.s16 %v4807
      %v4924 = vunpack.i.h.s16 %v4807
      %v4925 = vunpack.i.l.s16 %v4810
      %v4926 = vunpack.i.h.s16 %v4810
      %v4927 = vunpack.i.l.s16 %v4813
      %v4928 = vunpack.i.h.s16 %v4813
      %v4929 = vunpack.i.l.s16 %v4816
      %v4930 = vunpack.i.h.s16 %v4816
      %v4931 = vunpack.i.h.s16 %v4820
      %v4932 = vunpack.i.l.s16 %v4824
      %v4933 = vunpack.i.h.s16 %v4824
      %v4934 = vunpack.i.l.s16 %v4827
      %v4935 = vunpack.i.h.s16 %v4827
      %v4936 = vunpack.i.l.s16 %v4830
      %v4937 = vunpack.i.h.s16 %v4830
      %v4938 = vunpack.i.l.s16 %v4833
      %v4939 = vunpack.i.h.s16 %v4833
      %v4940 = vunpack.i.h.s16 %v4837
      %v4941 = vunpack.i.l.s16 %v4841
      %v4942 = vunpack.i.h.s16 %v4841
      %v4943 = vunpack.i.l.s16 %v4844
      %v4944 = vunpack.i.h.s16 %v4844
      %v4945 = vunpack.i.l.s16 %v4847
      %v4946 = vunpack.i.h.s16 %v4847
      %v4947 = vunpack.i.l.s16 %v4850
      %v4948 = vunpack.i.h.s16 %v4850
      %v4949 = vunpack.i.h.s16 %v4854
      %v4950 = vunpack.i.l.s16 %v4858
      %v4951 = vunpack.i.h.s16 %v4858
      %v4952 = vunpack.i.l.s16 %v4861
      %v4953 = vunpack.i.h.s16 %v4861
      %v4954 = vunpack.i.l.s16 %v4864
      %v4955 = vunpack.i.h.s16 %v4864
      %v4956 = vunpack.i.l.s16 %v4867
      %v4957 = vunpack.i.h.s16 %v4867
      %v4958 = vunpack.i.h.s16 %v4871
      %v4959 = vunpack.i.l.s16 %v4875
      %v4960 = vunpack.i.h.s16 %v4875
      %v4961 = vunpack.i.l.s16 %v4878
      %v4962 = vunpack.i.h.s16 %v4878
      %v4963 = vunpack.i.l.s16 %v4881
      %v4964 = vunpack.i.h.s16 %v4881
      %v4965 = vunpack.i.l.s16 %v4884
      %v4966 = vunpack.i.h.s16 %v4884
      %v4967 = vpack.i.b16 %v4887, %v4886
      %v4968 = vpack.i.b16 %v4889, %v4888
      %v4969 = vpack.i.b16 %v4891, %v4890
      %v4970 = vpack.i.b16 %v4893, %v4892
      %v4971 = vpack.i.b16 %v4895, %v4894
      %v4972 = vpack.i.b16 %v4897, %v4896
      %v4973 = vpack.i.b16 %v4899, %v4898
      %v4974 = vpack.i.b16 %v4901, %v4900
      %v4975 = vpack.i.b16 %v4903, %v4902
      %v4976 = vpack.i.b16 %v4905, %v4904
      %v4977 = vpack.i.b16 %v4907, %v4906
      %v4978 = vpack.i.b16 %v4909, %v4908
      %v4979 = vpack.i.b16 %v4911, %v4910
      %v4980 = vpack.i.b16 %v4913, %v4912
      %v4981 = vpack.i.b16 %v4915, %v4914
      %v4982 = vpack.i.b16 %v4917, %v4916
      %v4983 = vpack.i.b16 %v4919, %v4918
      %v4984 = vpack.i.b16 %v4921, %v4920
      %v4985 = vpack.i.b16 %v4923, %v4922
      %v4986 = vpack.i.b16 %v4925, %v4924
      %v4987 = vpack.i.b16 %v4927, %v4926
      %v4988 = vpack.i.b16 %v4929, %v4928
      %v4989 = vpack.i.b16 %v4931, %v4930
      %v4990 = vpack.i.b16 %v4933, %v4932
      %v4991 = vpack.i.b16 %v4935, %v4934
      %v4992 = vpack.i.b16 %v4937, %v4936
      %v4993 = vpack.i.b16 %v4939, %v4938
      %v4994 = vpack.i.b16 %v4941, %v4940
      %v4995 = vpack.i.b16 %v4943, %v4942
      %v4996 = vpack.i.b16 %v4945, %v4944
      %v4997 = vpack.i.b16 %v4947, %v4946
      %v4998 = vpack.i.b16 %v4949, %v4948
      %v4999 = vpack.i.b16 %v4951, %v4950
      %v5000 = vpack.i.b16 %v4953, %v4952
      %v5001 = vpack.i.b16 %v4955, %v4954
      %v5002 = vpack.i.b16 %v4957, %v4956
      %v5003 = vpack.i.b16 %v4959, %v4958
      %v5004 = vpack.i.b16 %v4961, %v4960
      %v5005 = vpack.i.b16 %v4963, %v4962
      %v5006 = vpack.i.b16 %v4965, %v4964
      %5009 = vst [vmem:[#allocation1] ss:$4 sm:$0xff] %v4967
      %s5011 = scalar_lea.vmem [#allocation1], 1
      %5012 = vst [vmem:[%s5011] ss:$4 sm:$0xff] %v4968
      %s5014 = scalar_lea.vmem [#allocation1], 2
      %5015 = vst [vmem:[%s5014] ss:$4 sm:$0xff] %v4969
      %s5017 = scalar_lea.vmem [#allocation1], 3
      %5018 = vst [vmem:[%s5017] ss:$4 sm:$0xff] %v4970
      %s5020 = scalar_lea.vmem [#allocation1], 32
      %5021 = vst [vmem:[%s5020] ss:$4 sm:$0xff] %v4971
      %s5023 = scalar_lea.vmem [#allocation1], 33
      %5024 = vst [vmem:[%s5023] ss:$4 sm:$0xff] %v4972
      %s5026 = scalar_lea.vmem [#allocation1], 34
      %5027 = vst [vmem:[%s5026] ss:$4 sm:$0xff] %v4973
      %s5029 = scalar_lea.vmem [#allocation1], 35
      %5030 = vst [vmem:[%s5029] ss:$4 sm:$0xff] %v4974
      %v5031 = vld [vmem:[#allocation1] sm:$0xff]
      %v5033 = vld [vmem:[#allocation1 + $0x20] sm:$0xff]
      %5036 = vst [vmem:[#allocation1] ss:$4 sm:$0xff] %v4975
      %5038 = vst [vmem:[%s5011] ss:$4 sm:$0xff] %v4976
      %5040 = vst [vmem:[%s5014] ss:$4 sm:$0xff] %v4977
      %5042 = vst [vmem:[%s5017] ss:$4 sm:$0xff] %v4978
      %5044 = vst [vmem:[%s5020] ss:$4 sm:$0xff] %v4979
      %5046 = vst [vmem:[%s5023] ss:$4 sm:$0xff] %v4980
      %5048 = vst [vmem:[%s5026] ss:$4 sm:$0xff] %v4981
      %5050 = vst [vmem:[%s5029] ss:$4 sm:$0xff] %v4982
      %v5051 = vld [vmem:[#allocation1] sm:$0xff]
      %v5053 = vld [vmem:[#allocation1 + $0x20] sm:$0xff]
      %5056 = vst [vmem:[#allocation1] ss:$4 sm:$0xff] %v4983
      %5058 = vst [vmem:[%s5011] ss:$4 sm:$0xff] %v4984
      %5060 = vst [vmem:[%s5014] ss:$4 sm:$0xff] %v4985
      %5062 = vst [vmem:[%s5017] ss:$4 sm:$0xff] %v4986
      %5064 = vst [vmem:[%s5020] ss:$4 sm:$0xff] %v4987
      %5066 = vst [vmem:[%s5023] ss:$4 sm:$0xff] %v4988
      %5068 = vst [vmem:[%s5026] ss:$4 sm:$0xff] %v4989
      %5070 = vst [vmem:[%s5029] ss:$4 sm:$0xff] %v4990
      %v5071 = vld [vmem:[#allocation1] sm:$0xff]
      %v5073 = vld [vmem:[#allocation1 + $0x20] sm:$0xff]
      %5076 = vst [vmem:[#allocation1] ss:$4 sm:$0xff] %v4991
      %5078 = vst [vmem:[%s5011] ss:$4 sm:$0xff] %v4992
      %5080 = vst [vmem:[%s5014] ss:$4 sm:$0xff] %v4993
      %5082 = vst [vmem:[%s5017] ss:$4 sm:$0xff] %v4994
      %5084 = vst [vmem:[%s5020] ss:$4 sm:$0xff] %v4995
      %5086 = vst [vmem:[%s5023] ss:$4 sm:$0xff] %v4996
      %5088 = vst [vmem:[%s5026] ss:$4 sm:$0xff] %v4997
      %5090 = vst [vmem:[%s5029] ss:$4 sm:$0xff] %v4998
      %v5091 = vld [vmem:[#allocation1] sm:$0xff]
      %v5093 = vld [vmem:[#allocation1 + $0x20] sm:$0xff]
      %5096 = vst [vmem:[#allocation1] ss:$4 sm:$0xff] %v4999
      %5098 = vst [vmem:[%s5011] ss:$4 sm:$0xff] %v5000
      %5100 = vst [vmem:[%s5014] ss:$4 sm:$0xff] %v5001
      %5102 = vst [vmem:[%s5017] ss:$4 sm:$0xff] %v5002
      %5104 = vst [vmem:[%s5020] ss:$4 sm:$0xff] %v5003
      %5106 = vst [vmem:[%s5023] ss:$4 sm:$0xff] %v5004
      %5108 = vst [vmem:[%s5026] ss:$4 sm:$0xff] %v5005
      %5110 = vst [vmem:[%s5029] ss:$4 sm:$0xff] %v5006
      %v5111 = vld [vmem:[#allocation1] sm:$0xff]
      %v5113 = vld [vmem:[#allocation1 + $0x20] sm:$0xff]
      %5116 = vst [vmem:[#allocation1] ss:$4 sm:$0xff] %v4966
      %v5117 = vld [vmem:[#allocation1] sm:$0xff]
      %5119 = vrot.lane.b32.xlu0 %v5031, 64
      %v5120 = vpop.permute.xlu0 %5119
      %5121 = vrot.lane.b32.xlu0 %v5033, 64
      %v5122 = vpop.permute.xlu0 %5121
      %5123 = vrot.lane.b32.xlu0 %v5051, 64
      %v5124 = vpop.permute.xlu0 %5123
      %5125 = vrot.lane.b32.xlu0 %v5053, 64
      %v5126 = vpop.permute.xlu0 %5125
      %5127 = vrot.lane.b32.xlu0 %v5071, 64
      %v5128 = vpop.permute.xlu0 %5127
      %5129 = vrot.lane.b32.xlu0 %v5073, 64
      %v5130 = vpop.permute.xlu0 %5129
      %5131 = vrot.lane.b32.xlu0 %v5091, 64
      %v5132 = vpop.permute.xlu0 %5131
      %5133 = vrot.lane.b32.xlu0 %v5093, 64
      %v5134 = vpop.permute.xlu0 %5133
      %5135 = vrot.lane.b32.xlu0 %v5111, 64
      %v5136 = vpop.permute.xlu0 %5135
      %5137 = vrot.lane.b32.xlu0 %v5113, 64
      %v5138 = vpop.permute.xlu0 %5137
      %5139 = vrot.lane.b32.xlu0 %v5117, 64
      %v5140 = vpop.permute.xlu0 %5139
      %5152 = vst.msk [vmem:[#allocation4 + $0x4] sm:$0xf] %vm3351, %v5120
      %5153 = vst.msk [vmem:[#allocation4 + $0x14] sm:$0xf] %vm3351, %v5122
      %5154 = vst.msk [vmem:[#allocation4 + $0x24] sm:$0xf] %vm3351, %v5124
      %5155 = vst.msk [vmem:[#allocation4 + $0x34] sm:$0xf] %vm3351, %v5126
      %5156 = vst.msk [vmem:[#allocation4 + $0x44] sm:$0xf] %vm3351, %v5128
      %5157 = vst.msk [vmem:[#allocation4 + $0x54] sm:$0xf] %vm3351, %v5130
      %5158 = vst.msk [vmem:[#allocation4 + $0x64] sm:$0xf] %vm3351, %v5132
      %5159 = vst.msk [vmem:[#allocation4 + $0x74] sm:$0xf] %vm3351, %v5134
      %5160 = vst.msk [vmem:[#allocation4 + $0x84] sm:$0xf] %vm3351, %v5136
      %5161 = vst.msk [vmem:[#allocation4 + $0x94] sm:$0xf] %vm3351, %v5138
      %v5162 = vld [vmem:[#allocation4 + $0xa4] sm:$0x1]
      %v5163 = vsel %vm3363, %v5140, %v5162
      %5164 = vst [vmem:[#allocation4 + $0xa4] sm:$0x1] %v5163
      %v5165 = vld [vmem:[%s1956 + $0x4] sm:$0xe]
      %v5166 = vld [vmem:[%s1956 + $0x8] sm:$0x3]
      %v5167 = vld [vmem:[%s1956 + $0x10] sm:$0xe]
      %v5168 = vld [vmem:[%s1956 + $0x14] sm:$0x3]
      %v5169 = vld [vmem:[%s1956 + $0x1c] sm:$0xe]
      %v5170 = vld [vmem:[%s1956 + $0x20] sm:$0x3]
      %v5171 = vld [vmem:[%s1956 + $0x28] sm:$0xe]
      %v5172 = vld [vmem:[%s1956 + $0x2c] sm:$0x3]
      %v5173 = vld [vmem:[%s1956 + $0x34] sm:$0xe]
      %v5174 = vld [vmem:[%s1956 + $0x38] sm:$0x3]
      %v5175 = vld [vmem:[%s1956 + $0x40] sm:$0xe]
      %v5176 = vld [vmem:[%s1956 + $0x44] sm:$0x3]
      %v5177 = vld [vmem:[%s1956 + $0x4c] sm:$0xe]
      %v5178 = vld [vmem:[%s1956 + $0x50] sm:$0x3]
      %v5179 = vld [vmem:[%s1956 + $0x58] sm:$0xe]
      %v5180 = vld [vmem:[%s1956 + $0x5c] sm:$0x3]
      %v5181 = vld [vmem:[%s1956 + $0x64] sm:$0xe]
      %v5182 = vld [vmem:[%s1956 + $0x68] sm:$0x3]
      %5184 = vst [vmem:[#allocation1] sm:$0xff] %v5165
      %5186 = vst [vmem:[#allocation1 + $0x20] sm:$0xff] %v5166
      %s5187 = scalar_lea.vmem [#allocation1], 1
      %v5188 = vld [vmem:[%s5187] ss:$4 sm:$0xff]
      %s5190 = scalar_lea.vmem [#allocation1], 2
      %v5191 = vld [vmem:[%s5190] ss:$4 sm:$0xff]
      %s5193 = scalar_lea.vmem [#allocation1], 3
      %v5194 = vld [vmem:[%s5193] ss:$4 sm:$0xff]
      %s5196 = scalar_lea.vmem [#allocation1], 32
      %v5197 = vld [vmem:[%s5196] ss:$4 sm:$0xff]
      %s5199 = scalar_lea.vmem [#allocation1], 33
      %v5200 = vld [vmem:[%s5199] ss:$4 sm:$0xff]
      %5203 = vst [vmem:[#allocation1] sm:$0xff] %v5167
      %5205 = vst [vmem:[#allocation1 + $0x20] sm:$0xff] %v5168
      %v5206 = vld [vmem:[%s5187] ss:$4 sm:$0xff]
      %v5208 = vld [vmem:[%s5190] ss:$4 sm:$0xff]
      %v5210 = vld [vmem:[%s5193] ss:$4 sm:$0xff]
      %v5212 = vld [vmem:[%s5196] ss:$4 sm:$0xff]
      %v5214 = vld [vmem:[%s5199] ss:$4 sm:$0xff]
      %5217 = vst [vmem:[#allocation1] sm:$0xff] %v5169
      %5219 = vst [vmem:[#allocation1 + $0x20] sm:$0xff] %v5170
      %v5220 = vld [vmem:[%s5187] ss:$4 sm:$0xff]
      %v5222 = vld [vmem:[%s5190] ss:$4 sm:$0xff]
      %v5224 = vld [vmem:[%s5193] ss:$4 sm:$0xff]
      %v5226 = vld [vmem:[%s5196] ss:$4 sm:$0xff]
      %v5228 = vld [vmem:[%s5199] ss:$4 sm:$0xff]
      %5231 = vst [vmem:[#allocation1] sm:$0xff] %v5171
      %5233 = vst [vmem:[#allocation1 + $0x20] sm:$0xff] %v5172
      %v5234 = vld [vmem:[%s5187] ss:$4 sm:$0xff]
      %v5236 = vld [vmem:[%s5190] ss:$4 sm:$0xff]
      %v5238 = vld [vmem:[%s5193] ss:$4 sm:$0xff]
      %v5240 = vld [vmem:[%s5196] ss:$4 sm:$0xff]
      %v5242 = vld [vmem:[%s5199] ss:$4 sm:$0xff]
      %5245 = vst [vmem:[#allocation1] sm:$0xff] %v5173
      %5247 = vst [vmem:[#allocation1 + $0x20] sm:$0xff] %v5174
      %v5248 = vld [vmem:[%s5187] ss:$4 sm:$0xff]
      %v5250 = vld [vmem:[%s5190] ss:$4 sm:$0xff]
      %v5252 = vld [vmem:[%s5193] ss:$4 sm:$0xff]
      %v5254 = vld [vmem:[%s5196] ss:$4 sm:$0xff]
      %v5256 = vld [vmem:[%s5199] ss:$4 sm:$0xff]
      %5259 = vst [vmem:[#allocation1] sm:$0xff] %v5175
      %5261 = vst [vmem:[#allocation1 + $0x20] sm:$0xff] %v5176
      %v5262 = vld [vmem:[%s5187] ss:$4 sm:$0xff]
      %v5264 = vld [vmem:[%s5190] ss:$4 sm:$0xff]
      %v5266 = vld [vmem:[%s5193] ss:$4 sm:$0xff]
      %v5268 = vld [vmem:[%s5196] ss:$4 sm:$0xff]
      %v5270 = vld [vmem:[%s5199] ss:$4 sm:$0xff]
      %5273 = vst [vmem:[#allocation1] sm:$0xff] %v5177
      %5275 = vst [vmem:[#allocation1 + $0x20] sm:$0xff] %v5178
      %v5276 = vld [vmem:[%s5187] ss:$4 sm:$0xff]
      %v5278 = vld [vmem:[%s5190] ss:$4 sm:$0xff]
      %v5280 = vld [vmem:[%s5193] ss:$4 sm:$0xff]
      %v5282 = vld [vmem:[%s5196] ss:$4 sm:$0xff]
      %v5284 = vld [vmem:[%s5199] ss:$4 sm:$0xff]
      %5287 = vst [vmem:[#allocation1] sm:$0xff] %v5179
      %5289 = vst [vmem:[#allocation1 + $0x20] sm:$0xff] %v5180
      %v5290 = vld [vmem:[%s5187] ss:$4 sm:$0xff]
      %v5292 = vld [vmem:[%s5190] ss:$4 sm:$0xff]
      %v5294 = vld [vmem:[%s5193] ss:$4 sm:$0xff]
      %v5296 = vld [vmem:[%s5196] ss:$4 sm:$0xff]
      %v5298 = vld [vmem:[%s5199] ss:$4 sm:$0xff]
      %5301 = vst [vmem:[#allocation1] sm:$0xff] %v5181
      %5303 = vst [vmem:[#allocation1 + $0x20] sm:$0xff] %v5182
      %v5304 = vld [vmem:[%s5187] ss:$4 sm:$0xff]
      %v5306 = vld [vmem:[%s5190] ss:$4 sm:$0xff]
      %v5308 = vld [vmem:[%s5193] ss:$4 sm:$0xff]
      %v5310 = vld [vmem:[%s5196] ss:$4 sm:$0xff]
      %v5312 = vld [vmem:[%s5199] ss:$4 sm:$0xff]
      %v5314 = vunpack.i.h.s16 %v5188
      %v5315 = vunpack.i.l.s16 %v5191
      %v5316 = vunpack.i.h.s16 %v5191
      %v5317 = vunpack.i.l.s16 %v5194
      %v5318 = vunpack.i.h.s16 %v5194
      %v5319 = vunpack.i.l.s16 %v5197
      %v5320 = vunpack.i.h.s16 %v5197
      %v5321 = vunpack.i.l.s16 %v5200
      %v5322 = vunpack.i.h.s16 %v5200
      %v5323 = vunpack.i.h.s16 %v5206
      %v5324 = vunpack.i.l.s16 %v5208
      %v5325 = vunpack.i.h.s16 %v5208
      %v5326 = vunpack.i.l.s16 %v5210
      %v5327 = vunpack.i.h.s16 %v5210
      %v5328 = vunpack.i.l.s16 %v5212
      %v5329 = vunpack.i.h.s16 %v5212
      %v5330 = vunpack.i.l.s16 %v5214
      %v5331 = vunpack.i.h.s16 %v5214
      %v5332 = vunpack.i.h.s16 %v5220
      %v5333 = vunpack.i.l.s16 %v5222
      %v5334 = vunpack.i.h.s16 %v5222
      %v5335 = vunpack.i.l.s16 %v5224
      %v5336 = vunpack.i.h.s16 %v5224
      %v5337 = vunpack.i.l.s16 %v5226
      %v5338 = vunpack.i.h.s16 %v5226
      %v5339 = vunpack.i.l.s16 %v5228
      %v5340 = vunpack.i.h.s16 %v5228
      %v5341 = vunpack.i.h.s16 %v5234
      %v5342 = vunpack.i.l.s16 %v5236
      %v5343 = vunpack.i.h.s16 %v5236
      %v5344 = vunpack.i.l.s16 %v5238
      %v5345 = vunpack.i.h.s16 %v5238
      %v5346 = vunpack.i.l.s16 %v5240
      %v5347 = vunpack.i.h.s16 %v5240
      %v5348 = vunpack.i.l.s16 %v5242
      %v5349 = vunpack.i.h.s16 %v5242
      %v5350 = vunpack.i.h.s16 %v5248
      %v5351 = vunpack.i.l.s16 %v5250
      %v5352 = vunpack.i.h.s16 %v5250
      %v5353 = vunpack.i.l.s16 %v5252
      %v5354 = vunpack.i.h.s16 %v5252
      %v5355 = vunpack.i.l.s16 %v5254
      %v5356 = vunpack.i.h.s16 %v5254
      %v5357 = vunpack.i.l.s16 %v5256
      %v5358 = vunpack.i.h.s16 %v5256
      %v5359 = vunpack.i.h.s16 %v5262
      %v5360 = vunpack.i.l.s16 %v5264
      %v5361 = vunpack.i.h.s16 %v5264
      %v5362 = vunpack.i.l.s16 %v5266
      %v5363 = vunpack.i.h.s16 %v5266
      %v5364 = vunpack.i.l.s16 %v5268
      %v5365 = vunpack.i.h.s16 %v5268
      %v5366 = vunpack.i.l.s16 %v5270
      %v5367 = vunpack.i.h.s16 %v5270
      %v5368 = vunpack.i.h.s16 %v5276
      %v5369 = vunpack.i.l.s16 %v5278
      %v5370 = vunpack.i.h.s16 %v5278
      %v5371 = vunpack.i.l.s16 %v5280
      %v5372 = vunpack.i.h.s16 %v5280
      %v5373 = vunpack.i.l.s16 %v5282
      %v5374 = vunpack.i.h.s16 %v5282
      %v5375 = vunpack.i.l.s16 %v5284
      %v5376 = vunpack.i.h.s16 %v5284
      %v5377 = vunpack.i.h.s16 %v5290
      %v5378 = vunpack.i.l.s16 %v5292
      %v5379 = vunpack.i.h.s16 %v5292
      %v5380 = vunpack.i.l.s16 %v5294
      %v5381 = vunpack.i.h.s16 %v5294
      %v5382 = vunpack.i.l.s16 %v5296
      %v5383 = vunpack.i.h.s16 %v5296
      %v5384 = vunpack.i.l.s16 %v5298
      %v5385 = vunpack.i.h.s16 %v5298
      %v5386 = vunpack.i.h.s16 %v5304
      %v5387 = vunpack.i.l.s16 %v5306
      %v5388 = vunpack.i.h.s16 %v5306
      %v5389 = vunpack.i.l.s16 %v5308
      %v5390 = vunpack.i.h.s16 %v5308
      %v5391 = vunpack.i.l.s16 %v5310
      %v5392 = vunpack.i.h.s16 %v5310
      %v5393 = vunpack.i.l.s16 %v5312
      %v5394 = vunpack.i.h.s16 %v5312
      %v5395 = vpack.i.b16 %v5315, %v5314
      %v5396 = vpack.i.b16 %v5317, %v5316
      %v5397 = vpack.i.b16 %v5319, %v5318
      %v5398 = vpack.i.b16 %v5321, %v5320
      %v5399 = vpack.i.b16 %v5323, %v5322
      %v5400 = vpack.i.b16 %v5325, %v5324
      %v5401 = vpack.i.b16 %v5327, %v5326
      %v5402 = vpack.i.b16 %v5329, %v5328
      %v5403 = vpack.i.b16 %v5331, %v5330
      %v5404 = vpack.i.b16 %v5333, %v5332
      %v5405 = vpack.i.b16 %v5335, %v5334
      %v5406 = vpack.i.b16 %v5337, %v5336
      %v5407 = vpack.i.b16 %v5339, %v5338
      %v5408 = vpack.i.b16 %v5341, %v5340
      %v5409 = vpack.i.b16 %v5343, %v5342
      %v5410 = vpack.i.b16 %v5345, %v5344
      %v5411 = vpack.i.b16 %v5347, %v5346
      %v5412 = vpack.i.b16 %v5349, %v5348
      %v5413 = vpack.i.b16 %v5351, %v5350
      %v5414 = vpack.i.b16 %v5353, %v5352
      %v5415 = vpack.i.b16 %v5355, %v5354
      %v5416 = vpack.i.b16 %v5357, %v5356
      %v5417 = vpack.i.b16 %v5359, %v5358
      %v5418 = vpack.i.b16 %v5361, %v5360
      %v5419 = vpack.i.b16 %v5363, %v5362
      %v5420 = vpack.i.b16 %v5365, %v5364
      %v5421 = vpack.i.b16 %v5367, %v5366
      %v5422 = vpack.i.b16 %v5369, %v5368
      %v5423 = vpack.i.b16 %v5371, %v5370
      %v5424 = vpack.i.b16 %v5373, %v5372
      %v5425 = vpack.i.b16 %v5375, %v5374
      %v5426 = vpack.i.b16 %v5377, %v5376
      %v5427 = vpack.i.b16 %v5379, %v5378
      %v5428 = vpack.i.b16 %v5381, %v5380
      %v5429 = vpack.i.b16 %v5383, %v5382
      %v5430 = vpack.i.b16 %v5385, %v5384
      %v5431 = vpack.i.b16 %v5387, %v5386
      %v5432 = vpack.i.b16 %v5389, %v5388
      %v5433 = vpack.i.b16 %v5391, %v5390
      %v5434 = vpack.i.b16 %v5393, %v5392
      %5437 = vst [vmem:[#allocation1] ss:$4 sm:$0xff] %v5395
      %s5439 = scalar_lea.vmem [#allocation1], 1
      %5440 = vst [vmem:[%s5439] ss:$4 sm:$0xff] %v5396
      %s5442 = scalar_lea.vmem [#allocation1], 2
      %5443 = vst [vmem:[%s5442] ss:$4 sm:$0xff] %v5397
      %s5445 = scalar_lea.vmem [#allocation1], 3
      %5446 = vst [vmem:[%s5445] ss:$4 sm:$0xff] %v5398
      %s5448 = scalar_lea.vmem [#allocation1], 32
      %5449 = vst [vmem:[%s5448] ss:$4 sm:$0xff] %v5399
      %s5451 = scalar_lea.vmem [#allocation1], 33
      %5452 = vst [vmem:[%s5451] ss:$4 sm:$0xff] %v5400
      %s5454 = scalar_lea.vmem [#allocation1], 34
      %5455 = vst [vmem:[%s5454] ss:$4 sm:$0xff] %v5401
      %s5457 = scalar_lea.vmem [#allocation1], 35
      %5458 = vst [vmem:[%s5457] ss:$4 sm:$0xff] %v5402
      %v5459 = vld [vmem:[#allocation1] sm:$0xff]
      %v5461 = vld [vmem:[#allocation1 + $0x20] sm:$0xff]
      %5464 = vst [vmem:[#allocation1] ss:$4 sm:$0xff] %v5403
      %5466 = vst [vmem:[%s5439] ss:$4 sm:$0xff] %v5404
      %5468 = vst [vmem:[%s5442] ss:$4 sm:$0xff] %v5405
      %5470 = vst [vmem:[%s5445] ss:$4 sm:$0xff] %v5406
      %5472 = vst [vmem:[%s5448] ss:$4 sm:$0xff] %v5407
      %5474 = vst [vmem:[%s5451] ss:$4 sm:$0xff] %v5408
      %5476 = vst [vmem:[%s5454] ss:$4 sm:$0xff] %v5409
      %5478 = vst [vmem:[%s5457] ss:$4 sm:$0xff] %v5410
      %v5479 = vld [vmem:[#allocation1] sm:$0xff]
      %v5481 = vld [vmem:[#allocation1 + $0x20] sm:$0xff]
      %5484 = vst [vmem:[#allocation1] ss:$4 sm:$0xff] %v5411
      %5486 = vst [vmem:[%s5439] ss:$4 sm:$0xff] %v5412
      %5488 = vst [vmem:[%s5442] ss:$4 sm:$0xff] %v5413
      %5490 = vst [vmem:[%s5445] ss:$4 sm:$0xff] %v5414
      %5492 = vst [vmem:[%s5448] ss:$4 sm:$0xff] %v5415
      %5494 = vst [vmem:[%s5451] ss:$4 sm:$0xff] %v5416
      %5496 = vst [vmem:[%s5454] ss:$4 sm:$0xff] %v5417
      %5498 = vst [vmem:[%s5457] ss:$4 sm:$0xff] %v5418
      %v5499 = vld [vmem:[#allocation1] sm:$0xff]
      %v5501 = vld [vmem:[#allocation1 + $0x20] sm:$0xff]
      %5504 = vst [vmem:[#allocation1] ss:$4 sm:$0xff] %v5419
      %5506 = vst [vmem:[%s5439] ss:$4 sm:$0xff] %v5420
      %5508 = vst [vmem:[%s5442] ss:$4 sm:$0xff] %v5421
      %5510 = vst [vmem:[%s5445] ss:$4 sm:$0xff] %v5422
      %5512 = vst [vmem:[%s5448] ss:$4 sm:$0xff] %v5423
      %5514 = vst [vmem:[%s5451] ss:$4 sm:$0xff] %v5424
      %5516 = vst [vmem:[%s5454] ss:$4 sm:$0xff] %v5425
      %5518 = vst [vmem:[%s5457] ss:$4 sm:$0xff] %v5426
      %v5519 = vld [vmem:[#allocation1] sm:$0xff]
      %v5521 = vld [vmem:[#allocation1 + $0x20] sm:$0xff]
      %5524 = vst [vmem:[#allocation1] ss:$4 sm:$0xff] %v5427
      %5526 = vst [vmem:[%s5439] ss:$4 sm:$0xff] %v5428
      %5528 = vst [vmem:[%s5442] ss:$4 sm:$0xff] %v5429
      %5530 = vst [vmem:[%s5445] ss:$4 sm:$0xff] %v5430
      %5532 = vst [vmem:[%s5448] ss:$4 sm:$0xff] %v5431
      %5534 = vst [vmem:[%s5451] ss:$4 sm:$0xff] %v5432
      %5536 = vst [vmem:[%s5454] ss:$4 sm:$0xff] %v5433
      %5538 = vst [vmem:[%s5457] ss:$4 sm:$0xff] %v5434
      %v5539 = vld [vmem:[#allocation1] sm:$0xff]
      %v5541 = vld [vmem:[#allocation1 + $0x20] sm:$0xff]
      %5544 = vst [vmem:[#allocation1] ss:$4 sm:$0xff] %v5394
      %v5545 = vld [vmem:[#allocation1] sm:$0xff]
      %5547 = vrot.lane.b32.xlu0 %v5459, 96
      %v5548 = vpop.permute.xlu0 %5547
      %5549 = vrot.lane.b32.xlu0 %v5461, 96
      %v5550 = vpop.permute.xlu0 %5549
      %5551 = vrot.lane.b32.xlu0 %v5479, 96
      %v5552 = vpop.permute.xlu0 %5551
      %5553 = vrot.lane.b32.xlu0 %v5481, 96
      %v5554 = vpop.permute.xlu0 %5553
      %5555 = vrot.lane.b32.xlu0 %v5499, 96
      %v5556 = vpop.permute.xlu0 %5555
      %5557 = vrot.lane.b32.xlu0 %v5501, 96
      %v5558 = vpop.permute.xlu0 %5557
      %5559 = vrot.lane.b32.xlu0 %v5519, 96
      %v5560 = vpop.permute.xlu0 %5559
      %5561 = vrot.lane.b32.xlu0 %v5521, 96
      %v5562 = vpop.permute.xlu0 %5561
      %5563 = vrot.lane.b32.xlu0 %v5539, 96
      %v5564 = vpop.permute.xlu0 %5563
      %5565 = vrot.lane.b32.xlu0 %v5541, 96
      %v5566 = vpop.permute.xlu0 %5565
      %5567 = vrot.lane.b32.xlu0 %v5545, 96
      %v5568 = vpop.permute.xlu0 %5567
      %5580 = vst.msk [vmem:[#allocation4 + $0x4] sm:$0xf] %vm3782, %v5548
      %5581 = vst.msk [vmem:[#allocation4 + $0x14] sm:$0xf] %vm3782, %v5550
      %5582 = vst.msk [vmem:[#allocation4 + $0x24] sm:$0xf] %vm3782, %v5552
      %5583 = vst.msk [vmem:[#allocation4 + $0x34] sm:$0xf] %vm3782, %v5554
      %5584 = vst.msk [vmem:[#allocation4 + $0x44] sm:$0xf] %vm3782, %v5556
      %5585 = vst.msk [vmem:[#allocation4 + $0x54] sm:$0xf] %vm3782, %v5558
      %5586 = vst.msk [vmem:[#allocation4 + $0x64] sm:$0xf] %vm3782, %v5560
      %5587 = vst.msk [vmem:[#allocation4 + $0x74] sm:$0xf] %vm3782, %v5562
      %5588 = vst.msk [vmem:[#allocation4 + $0x84] sm:$0xf] %vm3782, %v5564
      %5589 = vst.msk [vmem:[#allocation4 + $0x94] sm:$0xf] %vm3782, %v5566
      %v5590 = vld [vmem:[#allocation4 + $0xa4] sm:$0x1]
      %v5591 = vsel %vm3794, %v5568, %v5590
      %5592 = vst [vmem:[#allocation4 + $0xa4] sm:$0x1] %v5591
      %s5593 = scalar_lea.vmem [#allocation2], 12
      %v5594 = vld [vmem:[%s5593] sm:$0xf]
      %v5595 = vld [vmem:[%s5593 + $0x4] sm:$0x1]
      %v5596 = vld [vmem:[%s5593 + $0xc] sm:$0xf]
      %v5597 = vld [vmem:[%s5593 + $0x10] sm:$0x1]
      %v5598 = vld [vmem:[%s5593 + $0x18] sm:$0xf]
      %v5599 = vld [vmem:[%s5593 + $0x1c] sm:$0x1]
      %v5600 = vld [vmem:[%s5593 + $0x24] sm:$0xf]
      %v5601 = vld [vmem:[%s5593 + $0x28] sm:$0x1]
      %v5602 = vld [vmem:[%s5593 + $0x30] sm:$0xf]
      %v5603 = vld [vmem:[%s5593 + $0x34] sm:$0x1]
      %v5604 = vld [vmem:[%s5593 + $0x3c] sm:$0xf]
      %v5605 = vld [vmem:[%s5593 + $0x40] sm:$0x1]
      %v5606 = vld [vmem:[%s5593 + $0x48] sm:$0xf]
      %v5607 = vld [vmem:[%s5593 + $0x4c] sm:$0x1]
      %v5608 = vld [vmem:[%s5593 + $0x54] sm:$0xf]
      %v5609 = vld [vmem:[%s5593 + $0x58] sm:$0x1]
      %v5610 = vld [vmem:[%s5593 + $0x60] sm:$0xf]
      %v5611 = vld [vmem:[%s5593 + $0x64] sm:$0x1]
      %v5630 = vrot.slane %v5594, 3
      %v5631 = vrot.slane %v5595, 3
      %v5632 = vrot.slane %v5596, 3
      %v5633 = vrot.slane %v5597, 3
      %v5634 = vrot.slane %v5598, 3
      %v5635 = vrot.slane %v5599, 3
      %v5636 = vrot.slane %v5600, 3
      %v5637 = vrot.slane %v5601, 3
      %v5638 = vrot.slane %v5602, 3
      %v5639 = vrot.slane %v5603, 3
      %v5640 = vrot.slane %v5604, 3
      %v5641 = vrot.slane %v5605, 3
      %v5642 = vrot.slane %v5606, 3
      %v5643 = vrot.slane %v5607, 3
      %v5644 = vrot.slane %v5608, 3
      %v5645 = vrot.slane %v5609, 3
      %v5646 = vrot.slane %v5610, 3
      %v5647 = vrot.slane %v5611, 3
      %v5650 = vsel %vm2041, %v5594, %v5630
      %v5652 = vsel %vm2046, %v5594, %v5630
      %v5654 = vrot.slane %v5652, 1
      %v5655 = vsel %vm2050, %v5594, %v5630
      %v5657 = vrot.slane %v5655, 2
      %v5658 = vsel %vm2054, %v5594, %v5630
      %v5660 = vrot.slane %v5658, 3
      %v5663 = vsel %vm2041, %v5595, %v5631
      %v5667 = vsel %vm2041, %v5596, %v5632
      %v5669 = vsel %vm2046, %v5596, %v5632
      %v5671 = vrot.slane %v5669, 1
      %v5672 = vsel %vm2050, %v5596, %v5632
      %v5674 = vrot.slane %v5672, 2
      %v5675 = vsel %vm2054, %v5596, %v5632
      %v5677 = vrot.slane %v5675, 3
      %v5680 = vsel %vm2041, %v5597, %v5633
      %v5684 = vsel %vm2041, %v5598, %v5634
      %v5686 = vsel %vm2046, %v5598, %v5634
      %v5688 = vrot.slane %v5686, 1
      %v5689 = vsel %vm2050, %v5598, %v5634
      %v5691 = vrot.slane %v5689, 2
      %v5692 = vsel %vm2054, %v5598, %v5634
      %v5694 = vrot.slane %v5692, 3
      %v5697 = vsel %vm2041, %v5599, %v5635
      %v5701 = vsel %vm2041, %v5600, %v5636
      %v5703 = vsel %vm2046, %v5600, %v5636
      %v5705 = vrot.slane %v5703, 1
      %v5706 = vsel %vm2050, %v5600, %v5636
      %v5708 = vrot.slane %v5706, 2
      %v5709 = vsel %vm2054, %v5600, %v5636
      %v5711 = vrot.slane %v5709, 3
      %v5714 = vsel %vm2041, %v5601, %v5637
      %v5718 = vsel %vm2041, %v5602, %v5638
      %v5720 = vsel %vm2046, %v5602, %v5638
      %v5722 = vrot.slane %v5720, 1
      %v5723 = vsel %vm2050, %v5602, %v5638
      %v5725 = vrot.slane %v5723, 2
      %v5726 = vsel %vm2054, %v5602, %v5638
      %v5728 = vrot.slane %v5726, 3
      %v5731 = vsel %vm2041, %v5603, %v5639
      %v5735 = vsel %vm2041, %v5604, %v5640
      %v5737 = vsel %vm2046, %v5604, %v5640
      %v5739 = vrot.slane %v5737, 1
      %v5740 = vsel %vm2050, %v5604, %v5640
      %v5742 = vrot.slane %v5740, 2
      %v5743 = vsel %vm2054, %v5604, %v5640
      %v5745 = vrot.slane %v5743, 3
      %v5748 = vsel %vm2041, %v5605, %v5641
      %v5752 = vsel %vm2041, %v5606, %v5642
      %v5754 = vsel %vm2046, %v5606, %v5642
      %v5756 = vrot.slane %v5754, 1
      %v5757 = vsel %vm2050, %v5606, %v5642
      %v5759 = vrot.slane %v5757, 2
      %v5760 = vsel %vm2054, %v5606, %v5642
      %v5762 = vrot.slane %v5760, 3
      %v5765 = vsel %vm2041, %v5607, %v5643
      %v5769 = vsel %vm2041, %v5608, %v5644
      %v5771 = vsel %vm2046, %v5608, %v5644
      %v5773 = vrot.slane %v5771, 1
      %v5774 = vsel %vm2050, %v5608, %v5644
      %v5776 = vrot.slane %v5774, 2
      %v5777 = vsel %vm2054, %v5608, %v5644
      %v5779 = vrot.slane %v5777, 3
      %v5782 = vsel %vm2041, %v5609, %v5645
      %v5786 = vsel %vm2041, %v5610, %v5646
      %v5788 = vsel %vm2046, %v5610, %v5646
      %v5790 = vrot.slane %v5788, 1
      %v5791 = vsel %vm2050, %v5610, %v5646
      %v5793 = vrot.slane %v5791, 2
      %v5794 = vsel %vm2054, %v5610, %v5646
      %v5796 = vrot.slane %v5794, 3
      %v5799 = vsel %vm2041, %v5611, %v5647
      %v5801 = vunpack.i.l.s16 %v5650
      %v5802 = vunpack.i.h.s16 %v5650
      %v5803 = vunpack.i.l.s16 %v5654
      %v5804 = vunpack.i.h.s16 %v5654
      %v5805 = vunpack.i.l.s16 %v5657
      %v5806 = vunpack.i.h.s16 %v5657
      %v5807 = vunpack.i.l.s16 %v5660
      %v5808 = vunpack.i.h.s16 %v5660
      %v5809 = vunpack.i.l.s16 %v5663
      %v5810 = vunpack.i.l.s16 %v5667
      %v5811 = vunpack.i.h.s16 %v5667
      %v5812 = vunpack.i.l.s16 %v5671
      %v5813 = vunpack.i.h.s16 %v5671
      %v5814 = vunpack.i.l.s16 %v5674
      %v5815 = vunpack.i.h.s16 %v5674
      %v5816 = vunpack.i.l.s16 %v5677
      %v5817 = vunpack.i.h.s16 %v5677
      %v5818 = vunpack.i.l.s16 %v5680
      %v5819 = vunpack.i.l.s16 %v5684
      %v5820 = vunpack.i.h.s16 %v5684
      %v5821 = vunpack.i.l.s16 %v5688
      %v5822 = vunpack.i.h.s16 %v5688
      %v5823 = vunpack.i.l.s16 %v5691
      %v5824 = vunpack.i.h.s16 %v5691
      %v5825 = vunpack.i.l.s16 %v5694
      %v5826 = vunpack.i.h.s16 %v5694
      %v5827 = vunpack.i.l.s16 %v5697
      %v5828 = vunpack.i.l.s16 %v5701
      %v5829 = vunpack.i.h.s16 %v5701
      %v5830 = vunpack.i.l.s16 %v5705
      %v5831 = vunpack.i.h.s16 %v5705
      %v5832 = vunpack.i.l.s16 %v5708
      %v5833 = vunpack.i.h.s16 %v5708
      %v5834 = vunpack.i.l.s16 %v5711
      %v5835 = vunpack.i.h.s16 %v5711
      %v5836 = vunpack.i.l.s16 %v5714
      %v5837 = vunpack.i.l.s16 %v5718
      %v5838 = vunpack.i.h.s16 %v5718
      %v5839 = vunpack.i.l.s16 %v5722
      %v5840 = vunpack.i.h.s16 %v5722
      %v5841 = vunpack.i.l.s16 %v5725
      %v5842 = vunpack.i.h.s16 %v5725
      %v5843 = vunpack.i.l.s16 %v5728
      %v5844 = vunpack.i.h.s16 %v5728
      %v5845 = vunpack.i.l.s16 %v5731
      %v5846 = vunpack.i.l.s16 %v5735
      %v5847 = vunpack.i.h.s16 %v5735
      %v5848 = vunpack.i.l.s16 %v5739
      %v5849 = vunpack.i.h.s16 %v5739
      %v5850 = vunpack.i.l.s16 %v5742
      %v5851 = vunpack.i.h.s16 %v5742
      %v5852 = vunpack.i.l.s16 %v5745
      %v5853 = vunpack.i.h.s16 %v5745
      %v5854 = vunpack.i.l.s16 %v5748
      %v5855 = vunpack.i.l.s16 %v5752
      %v5856 = vunpack.i.h.s16 %v5752
      %v5857 = vunpack.i.l.s16 %v5756
      %v5858 = vunpack.i.h.s16 %v5756
      %v5859 = vunpack.i.l.s16 %v5759
      %v5860 = vunpack.i.h.s16 %v5759
      %v5861 = vunpack.i.l.s16 %v5762
      %v5862 = vunpack.i.h.s16 %v5762
      %v5863 = vunpack.i.l.s16 %v5765
      %v5864 = vunpack.i.l.s16 %v5769
      %v5865 = vunpack.i.h.s16 %v5769
      %v5866 = vunpack.i.l.s16 %v5773
      %v5867 = vunpack.i.h.s16 %v5773
      %v5868 = vunpack.i.l.s16 %v5776
      %v5869 = vunpack.i.h.s16 %v5776
      %v5870 = vunpack.i.l.s16 %v5779
      %v5871 = vunpack.i.h.s16 %v5779
      %v5872 = vunpack.i.l.s16 %v5782
      %v5873 = vunpack.i.l.s16 %v5786
      %v5874 = vunpack.i.h.s16 %v5786
      %v5875 = vunpack.i.l.s16 %v5790
      %v5876 = vunpack.i.h.s16 %v5790
      %v5877 = vunpack.i.l.s16 %v5793
      %v5878 = vunpack.i.h.s16 %v5793
      %v5879 = vunpack.i.l.s16 %v5796
      %v5880 = vunpack.i.h.s16 %v5796
      %v5881 = vunpack.i.l.s16 %v5799
      %v5882 = vpack.i.b16 %v5802, %v5801
      %v5883 = vpack.i.b16 %v5804, %v5803
      %v5884 = vpack.i.b16 %v5806, %v5805
      %v5885 = vpack.i.b16 %v5808, %v5807
      %v5886 = vpack.i.b16 %v5810, %v5809
      %v5887 = vpack.i.b16 %v5812, %v5811
      %v5888 = vpack.i.b16 %v5814, %v5813
      %v5889 = vpack.i.b16 %v5816, %v5815
      %v5890 = vpack.i.b16 %v5818, %v5817
      %v5891 = vpack.i.b16 %v5820, %v5819
      %v5892 = vpack.i.b16 %v5822, %v5821
      %v5893 = vpack.i.b16 %v5824, %v5823
      %v5894 = vpack.i.b16 %v5826, %v5825
      %v5895 = vpack.i.b16 %v5828, %v5827
      %v5896 = vpack.i.b16 %v5830, %v5829
      %v5897 = vpack.i.b16 %v5832, %v5831
      %v5898 = vpack.i.b16 %v5834, %v5833
      %v5899 = vpack.i.b16 %v5836, %v5835
      %v5900 = vpack.i.b16 %v5838, %v5837
      %v5901 = vpack.i.b16 %v5840, %v5839
      %v5902 = vpack.i.b16 %v5842, %v5841
      %v5903 = vpack.i.b16 %v5844, %v5843
      %v5904 = vpack.i.b16 %v5846, %v5845
      %v5905 = vpack.i.b16 %v5848, %v5847
      %v5906 = vpack.i.b16 %v5850, %v5849
      %v5907 = vpack.i.b16 %v5852, %v5851
      %v5908 = vpack.i.b16 %v5854, %v5853
      %v5909 = vpack.i.b16 %v5856, %v5855
      %v5910 = vpack.i.b16 %v5858, %v5857
      %v5911 = vpack.i.b16 %v5860, %v5859
      %v5912 = vpack.i.b16 %v5862, %v5861
      %v5913 = vpack.i.b16 %v5864, %v5863
      %v5914 = vpack.i.b16 %v5866, %v5865
      %v5915 = vpack.i.b16 %v5868, %v5867
      %v5916 = vpack.i.b16 %v5870, %v5869
      %v5917 = vpack.i.b16 %v5872, %v5871
      %v5918 = vpack.i.b16 %v5874, %v5873
      %v5919 = vpack.i.b16 %v5876, %v5875
      %v5920 = vpack.i.b16 %v5878, %v5877
      %v5921 = vpack.i.b16 %v5880, %v5879
      %5924 = vst [vmem:[#allocation1] ss:$4 sm:$0xff] %v5882
      %s5926 = scalar_lea.vmem [#allocation1], 1
      %5927 = vst [vmem:[%s5926] ss:$4 sm:$0xff] %v5883
      %s5929 = scalar_lea.vmem [#allocation1], 2
      %5930 = vst [vmem:[%s5929] ss:$4 sm:$0xff] %v5884
      %s5932 = scalar_lea.vmem [#allocation1], 3
      %5933 = vst [vmem:[%s5932] ss:$4 sm:$0xff] %v5885
      %s5935 = scalar_lea.vmem [#allocation1], 32
      %5936 = vst [vmem:[%s5935] ss:$4 sm:$0xff] %v5886
      %s5938 = scalar_lea.vmem [#allocation1], 33
      %5939 = vst [vmem:[%s5938] ss:$4 sm:$0xff] %v5887
      %s5941 = scalar_lea.vmem [#allocation1], 34
      %5942 = vst [vmem:[%s5941] ss:$4 sm:$0xff] %v5888
      %s5944 = scalar_lea.vmem [#allocation1], 35
      %5945 = vst [vmem:[%s5944] ss:$4 sm:$0xff] %v5889
      %v5946 = vld [vmem:[#allocation1] sm:$0xff]
      %v5947 = vld [vmem:[#allocation1 + $0x20] sm:$0xff]
      %5949 = vst [vmem:[#allocation1] ss:$4 sm:$0xff] %v5890
      %5951 = vst [vmem:[%s5926] ss:$4 sm:$0xff] %v5891
      %5953 = vst [vmem:[%s5929] ss:$4 sm:$0xff] %v5892
      %5955 = vst [vmem:[%s5932] ss:$4 sm:$0xff] %v5893
      %5957 = vst [vmem:[%s5935] ss:$4 sm:$0xff] %v5894
      %5959 = vst [vmem:[%s5938] ss:$4 sm:$0xff] %v5895
      %5961 = vst [vmem:[%s5941] ss:$4 sm:$0xff] %v5896
      %5963 = vst [vmem:[%s5944] ss:$4 sm:$0xff] %v5897
      %v5964 = vld [vmem:[#allocation1] sm:$0xff]
      %v5965 = vld [vmem:[#allocation1 + $0x20] sm:$0xff]
      %5967 = vst [vmem:[#allocation1] ss:$4 sm:$0xff] %v5898
      %5969 = vst [vmem:[%s5926] ss:$4 sm:$0xff] %v5899
      %5971 = vst [vmem:[%s5929] ss:$4 sm:$0xff] %v5900
      %5973 = vst [vmem:[%s5932] ss:$4 sm:$0xff] %v5901
      %5975 = vst [vmem:[%s5935] ss:$4 sm:$0xff] %v5902
      %5977 = vst [vmem:[%s5938] ss:$4 sm:$0xff] %v5903
      %5979 = vst [vmem:[%s5941] ss:$4 sm:$0xff] %v5904
      %5981 = vst [vmem:[%s5944] ss:$4 sm:$0xff] %v5905
      %v5982 = vld [vmem:[#allocation1] sm:$0xff]
      %v5983 = vld [vmem:[#allocation1 + $0x20] sm:$0xff]
      %5985 = vst [vmem:[#allocation1] ss:$4 sm:$0xff] %v5906
      %5987 = vst [vmem:[%s5926] ss:$4 sm:$0xff] %v5907
      %5989 = vst [vmem:[%s5929] ss:$4 sm:$0xff] %v5908
      %5991 = vst [vmem:[%s5932] ss:$4 sm:$0xff] %v5909
      %5993 = vst [vmem:[%s5935] ss:$4 sm:$0xff] %v5910
      %5995 = vst [vmem:[%s5938] ss:$4 sm:$0xff] %v5911
      %5997 = vst [vmem:[%s5941] ss:$4 sm:$0xff] %v5912
      %5999 = vst [vmem:[%s5944] ss:$4 sm:$0xff] %v5913
      %v6000 = vld [vmem:[#allocation1] sm:$0xff]
      %v6001 = vld [vmem:[#allocation1 + $0x20] sm:$0xff]
      %6003 = vst [vmem:[#allocation1] ss:$4 sm:$0xff] %v5914
      %6005 = vst [vmem:[%s5926] ss:$4 sm:$0xff] %v5915
      %6007 = vst [vmem:[%s5929] ss:$4 sm:$0xff] %v5916
      %6009 = vst [vmem:[%s5932] ss:$4 sm:$0xff] %v5917
      %6011 = vst [vmem:[%s5935] ss:$4 sm:$0xff] %v5918
      %6013 = vst [vmem:[%s5938] ss:$4 sm:$0xff] %v5919
      %6015 = vst [vmem:[%s5941] ss:$4 sm:$0xff] %v5920
      %6017 = vst [vmem:[%s5944] ss:$4 sm:$0xff] %v5921
      %v6018 = vld [vmem:[#allocation1] sm:$0xff]
      %v6019 = vld [vmem:[#allocation1 + $0x20] sm:$0xff]
      %6021 = vst [vmem:[#allocation1] ss:$4 sm:$0xff] %v5881
      %v6022 = vld [vmem:[#allocation1] sm:$0xff]
      %6034 = vst.msk [vmem:[#allocation4 + $0x8] sm:$0xf] %vm1106, %v5946
      %6035 = vst.msk [vmem:[#allocation4 + $0x18] sm:$0xf] %vm1106, %v5947
      %6036 = vst.msk [vmem:[#allocation4 + $0x28] sm:$0xf] %vm1106, %v5964
      %6037 = vst.msk [vmem:[#allocation4 + $0x38] sm:$0xf] %vm1106, %v5965
      %6038 = vst.msk [vmem:[#allocation4 + $0x48] sm:$0xf] %vm1106, %v5982
      %6039 = vst.msk [vmem:[#allocation4 + $0x58] sm:$0xf] %vm1106, %v5983
      %6040 = vst.msk [vmem:[#allocation4 + $0x68] sm:$0xf] %vm1106, %v6000
      %6041 = vst.msk [vmem:[#allocation4 + $0x78] sm:$0xf] %vm1106, %v6001
      %6042 = vst.msk [vmem:[#allocation4 + $0x88] sm:$0xf] %vm1106, %v6018
      %6043 = vst.msk [vmem:[#allocation4 + $0x98] sm:$0xf] %vm1106, %v6019
      %v6044 = vld [vmem:[#allocation4 + $0xa8] sm:$0x1]
      %v6045 = vsel %vm2443, %v6022, %v6044
      %6046 = vst [vmem:[#allocation4 + $0xa8] sm:$0x1] %v6045
      %v6047 = vld [vmem:[%s5593 + $0x4] sm:$0xe]
      %v6048 = vld [vmem:[%s5593 + $0x8] sm:$0x3]
      %v6049 = vld [vmem:[%s5593 + $0x10] sm:$0xe]
      %v6050 = vld [vmem:[%s5593 + $0x14] sm:$0x3]
      %v6051 = vld [vmem:[%s5593 + $0x1c] sm:$0xe]
      %v6052 = vld [vmem:[%s5593 + $0x20] sm:$0x3]
      %v6053 = vld [vmem:[%s5593 + $0x28] sm:$0xe]
      %v6054 = vld [vmem:[%s5593 + $0x2c] sm:$0x3]
      %v6055 = vld [vmem:[%s5593 + $0x34] sm:$0xe]
      %v6056 = vld [vmem:[%s5593 + $0x38] sm:$0x3]
      %v6057 = vld [vmem:[%s5593 + $0x40] sm:$0xe]
      %v6058 = vld [vmem:[%s5593 + $0x44] sm:$0x3]
      %v6059 = vld [vmem:[%s5593 + $0x4c] sm:$0xe]
      %v6060 = vld [vmem:[%s5593 + $0x50] sm:$0x3]
      %v6061 = vld [vmem:[%s5593 + $0x58] sm:$0xe]
      %v6062 = vld [vmem:[%s5593 + $0x5c] sm:$0x3]
      %v6063 = vld [vmem:[%s5593 + $0x64] sm:$0xe]
      %v6064 = vld [vmem:[%s5593 + $0x68] sm:$0x3]
      %6066 = vst [vmem:[#allocation1] sm:$0xff] %v6047
      %6068 = vst [vmem:[#allocation1 + $0x20] sm:$0xff] %v6048
      %s6069 = scalar_lea.vmem [#allocation1], 1
      %v6070 = vld [vmem:[%s6069] ss:$4 sm:$0xff]
      %s6072 = scalar_lea.vmem [#allocation1], 2
      %v6073 = vld [vmem:[%s6072] ss:$4 sm:$0xff]
      %s6075 = scalar_lea.vmem [#allocation1], 3
      %v6076 = vld [vmem:[%s6075] ss:$4 sm:$0xff]
      %s6078 = scalar_lea.vmem [#allocation1], 32
      %v6079 = vld [vmem:[%s6078] ss:$4 sm:$0xff]
      %s6081 = scalar_lea.vmem [#allocation1], 33
      %v6082 = vld [vmem:[%s6081] ss:$4 sm:$0xff]
      %6085 = vst [vmem:[#allocation1] sm:$0xff] %v6049
      %6087 = vst [vmem:[#allocation1 + $0x20] sm:$0xff] %v6050
      %v6088 = vld [vmem:[%s6069] ss:$4 sm:$0xff]
      %v6090 = vld [vmem:[%s6072] ss:$4 sm:$0xff]
      %v6092 = vld [vmem:[%s6075] ss:$4 sm:$0xff]
      %v6094 = vld [vmem:[%s6078] ss:$4 sm:$0xff]
      %v6096 = vld [vmem:[%s6081] ss:$4 sm:$0xff]
      %6099 = vst [vmem:[#allocation1] sm:$0xff] %v6051
      %6101 = vst [vmem:[#allocation1 + $0x20] sm:$0xff] %v6052
      %v6102 = vld [vmem:[%s6069] ss:$4 sm:$0xff]
      %v6104 = vld [vmem:[%s6072] ss:$4 sm:$0xff]
      %v6106 = vld [vmem:[%s6075] ss:$4 sm:$0xff]
      %v6108 = vld [vmem:[%s6078] ss:$4 sm:$0xff]
      %v6110 = vld [vmem:[%s6081] ss:$4 sm:$0xff]
      %6113 = vst [vmem:[#allocation1] sm:$0xff] %v6053
      %6115 = vst [vmem:[#allocation1 + $0x20] sm:$0xff] %v6054
      %v6116 = vld [vmem:[%s6069] ss:$4 sm:$0xff]
      %v6118 = vld [vmem:[%s6072] ss:$4 sm:$0xff]
      %v6120 = vld [vmem:[%s6075] ss:$4 sm:$0xff]
      %v6122 = vld [vmem:[%s6078] ss:$4 sm:$0xff]
      %v6124 = vld [vmem:[%s6081] ss:$4 sm:$0xff]
      %6127 = vst [vmem:[#allocation1] sm:$0xff] %v6055
      %6129 = vst [vmem:[#allocation1 + $0x20] sm:$0xff] %v6056
      %v6130 = vld [vmem:[%s6069] ss:$4 sm:$0xff]
      %v6132 = vld [vmem:[%s6072] ss:$4 sm:$0xff]
      %v6134 = vld [vmem:[%s6075] ss:$4 sm:$0xff]
      %v6136 = vld [vmem:[%s6078] ss:$4 sm:$0xff]
      %v6138 = vld [vmem:[%s6081] ss:$4 sm:$0xff]
      %6141 = vst [vmem:[#allocation1] sm:$0xff] %v6057
      %6143 = vst [vmem:[#allocation1 + $0x20] sm:$0xff] %v6058
      %v6144 = vld [vmem:[%s6069] ss:$4 sm:$0xff]
      %v6146 = vld [vmem:[%s6072] ss:$4 sm:$0xff]
      %v6148 = vld [vmem:[%s6075] ss:$4 sm:$0xff]
      %v6150 = vld [vmem:[%s6078] ss:$4 sm:$0xff]
      %v6152 = vld [vmem:[%s6081] ss:$4 sm:$0xff]
      %6155 = vst [vmem:[#allocation1] sm:$0xff] %v6059
      %6157 = vst [vmem:[#allocation1 + $0x20] sm:$0xff] %v6060
      %v6158 = vld [vmem:[%s6069] ss:$4 sm:$0xff]
      %v6160 = vld [vmem:[%s6072] ss:$4 sm:$0xff]
      %v6162 = vld [vmem:[%s6075] ss:$4 sm:$0xff]
      %v6164 = vld [vmem:[%s6078] ss:$4 sm:$0xff]
      %v6166 = vld [vmem:[%s6081] ss:$4 sm:$0xff]
      %6169 = vst [vmem:[#allocation1] sm:$0xff] %v6061
      %6171 = vst [vmem:[#allocation1 + $0x20] sm:$0xff] %v6062
      %v6172 = vld [vmem:[%s6069] ss:$4 sm:$0xff]
      %v6174 = vld [vmem:[%s6072] ss:$4 sm:$0xff]
      %v6176 = vld [vmem:[%s6075] ss:$4 sm:$0xff]
      %v6178 = vld [vmem:[%s6078] ss:$4 sm:$0xff]
      %v6180 = vld [vmem:[%s6081] ss:$4 sm:$0xff]
      %6183 = vst [vmem:[#allocation1] sm:$0xff] %v6063
      %6185 = vst [vmem:[#allocation1 + $0x20] sm:$0xff] %v6064
      %v6186 = vld [vmem:[%s6069] ss:$4 sm:$0xff]
      %v6188 = vld [vmem:[%s6072] ss:$4 sm:$0xff]
      %v6190 = vld [vmem:[%s6075] ss:$4 sm:$0xff]
      %v6192 = vld [vmem:[%s6078] ss:$4 sm:$0xff]
      %v6194 = vld [vmem:[%s6081] ss:$4 sm:$0xff]
      %v6196 = vunpack.i.l.s16 %v6070
      %v6197 = vunpack.i.h.s16 %v6070
      %v6198 = vunpack.i.l.s16 %v6073
      %v6199 = vunpack.i.h.s16 %v6073
      %v6200 = vunpack.i.l.s16 %v6076
      %v6201 = vunpack.i.h.s16 %v6076
      %v6202 = vunpack.i.l.s16 %v6079
      %v6203 = vunpack.i.h.s16 %v6079
      %v6204 = vunpack.i.l.s16 %v6082
      %v6205 = vunpack.i.l.s16 %v6088
      %v6206 = vunpack.i.h.s16 %v6088
      %v6207 = vunpack.i.l.s16 %v6090
      %v6208 = vunpack.i.h.s16 %v6090
      %v6209 = vunpack.i.l.s16 %v6092
      %v6210 = vunpack.i.h.s16 %v6092
      %v6211 = vunpack.i.l.s16 %v6094
      %v6212 = vunpack.i.h.s16 %v6094
      %v6213 = vunpack.i.l.s16 %v6096
      %v6214 = vunpack.i.l.s16 %v6102
      %v6215 = vunpack.i.h.s16 %v6102
      %v6216 = vunpack.i.l.s16 %v6104
      %v6217 = vunpack.i.h.s16 %v6104
      %v6218 = vunpack.i.l.s16 %v6106
      %v6219 = vunpack.i.h.s16 %v6106
      %v6220 = vunpack.i.l.s16 %v6108
      %v6221 = vunpack.i.h.s16 %v6108
      %v6222 = vunpack.i.l.s16 %v6110
      %v6223 = vunpack.i.l.s16 %v6116
      %v6224 = vunpack.i.h.s16 %v6116
      %v6225 = vunpack.i.l.s16 %v6118
      %v6226 = vunpack.i.h.s16 %v6118
      %v6227 = vunpack.i.l.s16 %v6120
      %v6228 = vunpack.i.h.s16 %v6120
      %v6229 = vunpack.i.l.s16 %v6122
      %v6230 = vunpack.i.h.s16 %v6122
      %v6231 = vunpack.i.l.s16 %v6124
      %v6232 = vunpack.i.l.s16 %v6130
      %v6233 = vunpack.i.h.s16 %v6130
      %v6234 = vunpack.i.l.s16 %v6132
      %v6235 = vunpack.i.h.s16 %v6132
      %v6236 = vunpack.i.l.s16 %v6134
      %v6237 = vunpack.i.h.s16 %v6134
      %v6238 = vunpack.i.l.s16 %v6136
      %v6239 = vunpack.i.h.s16 %v6136
      %v6240 = vunpack.i.l.s16 %v6138
      %v6241 = vunpack.i.l.s16 %v6144
      %v6242 = vunpack.i.h.s16 %v6144
      %v6243 = vunpack.i.l.s16 %v6146
      %v6244 = vunpack.i.h.s16 %v6146
      %v6245 = vunpack.i.l.s16 %v6148
      %v6246 = vunpack.i.h.s16 %v6148
      %v6247 = vunpack.i.l.s16 %v6150
      %v6248 = vunpack.i.h.s16 %v6150
      %v6249 = vunpack.i.l.s16 %v6152
      %v6250 = vunpack.i.l.s16 %v6158
      %v6251 = vunpack.i.h.s16 %v6158
      %v6252 = vunpack.i.l.s16 %v6160
      %v6253 = vunpack.i.h.s16 %v6160
      %v6254 = vunpack.i.l.s16 %v6162
      %v6255 = vunpack.i.h.s16 %v6162
      %v6256 = vunpack.i.l.s16 %v6164
      %v6257 = vunpack.i.h.s16 %v6164
      %v6258 = vunpack.i.l.s16 %v6166
      %v6259 = vunpack.i.l.s16 %v6172
      %v6260 = vunpack.i.h.s16 %v6172
      %v6261 = vunpack.i.l.s16 %v6174
      %v6262 = vunpack.i.h.s16 %v6174
      %v6263 = vunpack.i.l.s16 %v6176
      %v6264 = vunpack.i.h.s16 %v6176
      %v6265 = vunpack.i.l.s16 %v6178
      %v6266 = vunpack.i.h.s16 %v6178
      %v6267 = vunpack.i.l.s16 %v6180
      %v6268 = vunpack.i.l.s16 %v6186
      %v6269 = vunpack.i.h.s16 %v6186
      %v6270 = vunpack.i.l.s16 %v6188
      %v6271 = vunpack.i.h.s16 %v6188
      %v6272 = vunpack.i.l.s16 %v6190
      %v6273 = vunpack.i.h.s16 %v6190
      %v6274 = vunpack.i.l.s16 %v6192
      %v6275 = vunpack.i.h.s16 %v6192
      %v6276 = vunpack.i.l.s16 %v6194
      %v6277 = vpack.i.b16 %v6197, %v6196
      %v6278 = vpack.i.b16 %v6199, %v6198
      %v6279 = vpack.i.b16 %v6201, %v6200
      %v6280 = vpack.i.b16 %v6203, %v6202
      %v6281 = vpack.i.b16 %v6205, %v6204
      %v6282 = vpack.i.b16 %v6207, %v6206
      %v6283 = vpack.i.b16 %v6209, %v6208
      %v6284 = vpack.i.b16 %v6211, %v6210
      %v6285 = vpack.i.b16 %v6213, %v6212
      %v6286 = vpack.i.b16 %v6215, %v6214
      %v6287 = vpack.i.b16 %v6217, %v6216
      %v6288 = vpack.i.b16 %v6219, %v6218
      %v6289 = vpack.i.b16 %v6221, %v6220
      %v6290 = vpack.i.b16 %v6223, %v6222
      %v6291 = vpack.i.b16 %v6225, %v6224
      %v6292 = vpack.i.b16 %v6227, %v6226
      %v6293 = vpack.i.b16 %v6229, %v6228
      %v6294 = vpack.i.b16 %v6231, %v6230
      %v6295 = vpack.i.b16 %v6233, %v6232
      %v6296 = vpack.i.b16 %v6235, %v6234
      %v6297 = vpack.i.b16 %v6237, %v6236
      %v6298 = vpack.i.b16 %v6239, %v6238
      %v6299 = vpack.i.b16 %v6241, %v6240
      %v6300 = vpack.i.b16 %v6243, %v6242
      %v6301 = vpack.i.b16 %v6245, %v6244
      %v6302 = vpack.i.b16 %v6247, %v6246
      %v6303 = vpack.i.b16 %v6249, %v6248
      %v6304 = vpack.i.b16 %v6251, %v6250
      %v6305 = vpack.i.b16 %v6253, %v6252
      %v6306 = vpack.i.b16 %v6255, %v6254
      %v6307 = vpack.i.b16 %v6257, %v6256
      %v6308 = vpack.i.b16 %v6259, %v6258
      %v6309 = vpack.i.b16 %v6261, %v6260
      %v6310 = vpack.i.b16 %v6263, %v6262
      %v6311 = vpack.i.b16 %v6265, %v6264
      %v6312 = vpack.i.b16 %v6267, %v6266
      %v6313 = vpack.i.b16 %v6269, %v6268
      %v6314 = vpack.i.b16 %v6271, %v6270
      %v6315 = vpack.i.b16 %v6273, %v6272
      %v6316 = vpack.i.b16 %v6275, %v6274
      %6319 = vst [vmem:[#allocation1] ss:$4 sm:$0xff] %v6277
      %s6321 = scalar_lea.vmem [#allocation1], 1
      %6322 = vst [vmem:[%s6321] ss:$4 sm:$0xff] %v6278
      %s6324 = scalar_lea.vmem [#allocation1], 2
      %6325 = vst [vmem:[%s6324] ss:$4 sm:$0xff] %v6279
      %s6327 = scalar_lea.vmem [#allocation1], 3
      %6328 = vst [vmem:[%s6327] ss:$4 sm:$0xff] %v6280
      %s6330 = scalar_lea.vmem [#allocation1], 32
      %6331 = vst [vmem:[%s6330] ss:$4 sm:$0xff] %v6281
      %s6333 = scalar_lea.vmem [#allocation1], 33
      %6334 = vst [vmem:[%s6333] ss:$4 sm:$0xff] %v6282
      %s6336 = scalar_lea.vmem [#allocation1], 34
      %6337 = vst [vmem:[%s6336] ss:$4 sm:$0xff] %v6283
      %s6339 = scalar_lea.vmem [#allocation1], 35
      %6340 = vst [vmem:[%s6339] ss:$4 sm:$0xff] %v6284
      %v6341 = vld [vmem:[#allocation1] sm:$0xff]
      %v6343 = vld [vmem:[#allocation1 + $0x20] sm:$0xff]
      %6346 = vst [vmem:[#allocation1] ss:$4 sm:$0xff] %v6285
      %6348 = vst [vmem:[%s6321] ss:$4 sm:$0xff] %v6286
      %6350 = vst [vmem:[%s6324] ss:$4 sm:$0xff] %v6287
      %6352 = vst [vmem:[%s6327] ss:$4 sm:$0xff] %v6288
      %6354 = vst [vmem:[%s6330] ss:$4 sm:$0xff] %v6289
      %6356 = vst [vmem:[%s6333] ss:$4 sm:$0xff] %v6290
      %6358 = vst [vmem:[%s6336] ss:$4 sm:$0xff] %v6291
      %6360 = vst [vmem:[%s6339] ss:$4 sm:$0xff] %v6292
      %v6361 = vld [vmem:[#allocation1] sm:$0xff]
      %v6363 = vld [vmem:[#allocation1 + $0x20] sm:$0xff]
      %6366 = vst [vmem:[#allocation1] ss:$4 sm:$0xff] %v6293
      %6368 = vst [vmem:[%s6321] ss:$4 sm:$0xff] %v6294
      %6370 = vst [vmem:[%s6324] ss:$4 sm:$0xff] %v6295
      %6372 = vst [vmem:[%s6327] ss:$4 sm:$0xff] %v6296
      %6374 = vst [vmem:[%s6330] ss:$4 sm:$0xff] %v6297
      %6376 = vst [vmem:[%s6333] ss:$4 sm:$0xff] %v6298
      %6378 = vst [vmem:[%s6336] ss:$4 sm:$0xff] %v6299
      %6380 = vst [vmem:[%s6339] ss:$4 sm:$0xff] %v6300
      %v6381 = vld [vmem:[#allocation1] sm:$0xff]
      %v6383 = vld [vmem:[#allocation1 + $0x20] sm:$0xff]
      %6386 = vst [vmem:[#allocation1] ss:$4 sm:$0xff] %v6301
      %6388 = vst [vmem:[%s6321] ss:$4 sm:$0xff] %v6302
      %6390 = vst [vmem:[%s6324] ss:$4 sm:$0xff] %v6303
      %6392 = vst [vmem:[%s6327] ss:$4 sm:$0xff] %v6304
      %6394 = vst [vmem:[%s6330] ss:$4 sm:$0xff] %v6305
      %6396 = vst [vmem:[%s6333] ss:$4 sm:$0xff] %v6306
      %6398 = vst [vmem:[%s6336] ss:$4 sm:$0xff] %v6307
      %6400 = vst [vmem:[%s6339] ss:$4 sm:$0xff] %v6308
      %v6401 = vld [vmem:[#allocation1] sm:$0xff]
      %v6403 = vld [vmem:[#allocation1 + $0x20] sm:$0xff]
      %6406 = vst [vmem:[#allocation1] ss:$4 sm:$0xff] %v6309
      %6408 = vst [vmem:[%s6321] ss:$4 sm:$0xff] %v6310
      %6410 = vst [vmem:[%s6324] ss:$4 sm:$0xff] %v6311
      %6412 = vst [vmem:[%s6327] ss:$4 sm:$0xff] %v6312
      %6414 = vst [vmem:[%s6330] ss:$4 sm:$0xff] %v6313
      %6416 = vst [vmem:[%s6333] ss:$4 sm:$0xff] %v6314
      %6418 = vst [vmem:[%s6336] ss:$4 sm:$0xff] %v6315
      %6420 = vst [vmem:[%s6339] ss:$4 sm:$0xff] %v6316
      %v6421 = vld [vmem:[#allocation1] sm:$0xff]
      %v6423 = vld [vmem:[#allocation1 + $0x20] sm:$0xff]
      %6426 = vst [vmem:[#allocation1] ss:$4 sm:$0xff] %v6276
      %v6427 = vld [vmem:[#allocation1] sm:$0xff]
      %6429 = vrot.lane.b32.xlu0 %v6341, 32
      %v6430 = vpop.permute.xlu0 %6429
      %6431 = vrot.lane.b32.xlu0 %v6343, 32
      %v6432 = vpop.permute.xlu0 %6431
      %6433 = vrot.lane.b32.xlu0 %v6361, 32
      %v6434 = vpop.permute.xlu0 %6433
      %6435 = vrot.lane.b32.xlu0 %v6363, 32
      %v6436 = vpop.permute.xlu0 %6435
      %6437 = vrot.lane.b32.xlu0 %v6381, 32
      %v6438 = vpop.permute.xlu0 %6437
      %6439 = vrot.lane.b32.xlu0 %v6383, 32
      %v6440 = vpop.permute.xlu0 %6439
      %6441 = vrot.lane.b32.xlu0 %v6401, 32
      %v6442 = vpop.permute.xlu0 %6441
      %6443 = vrot.lane.b32.xlu0 %v6403, 32
      %v6444 = vpop.permute.xlu0 %6443
      %6445 = vrot.lane.b32.xlu0 %v6421, 32
      %v6446 = vpop.permute.xlu0 %6445
      %6447 = vrot.lane.b32.xlu0 %v6423, 32
      %v6448 = vpop.permute.xlu0 %6447
      %6449 = vrot.lane.b32.xlu0 %v6427, 32
      %v6450 = vpop.permute.xlu0 %6449
      %6462 = vst.msk [vmem:[#allocation4 + $0x8] sm:$0xf] %vm2862, %v6430
      %6463 = vst.msk [vmem:[#allocation4 + $0x18] sm:$0xf] %vm2862, %v6432
      %6464 = vst.msk [vmem:[#allocation4 + $0x28] sm:$0xf] %vm2862, %v6434
      %6465 = vst.msk [vmem:[#allocation4 + $0x38] sm:$0xf] %vm2862, %v6436
      %6466 = vst.msk [vmem:[#allocation4 + $0x48] sm:$0xf] %vm2862, %v6438
      %6467 = vst.msk [vmem:[#allocation4 + $0x58] sm:$0xf] %vm2862, %v6440
      %6468 = vst.msk [vmem:[#allocation4 + $0x68] sm:$0xf] %vm2862, %v6442
      %6469 = vst.msk [vmem:[#allocation4 + $0x78] sm:$0xf] %vm2862, %v6444
      %6470 = vst.msk [vmem:[#allocation4 + $0x88] sm:$0xf] %vm2862, %v6446
      %6471 = vst.msk [vmem:[#allocation4 + $0x98] sm:$0xf] %vm2862, %v6448
      %v6472 = vld [vmem:[#allocation4 + $0xa8] sm:$0x1]
      %v6473 = vsel %vm2874, %v6450, %v6472
      %6474 = vst [vmem:[#allocation4 + $0xa8] sm:$0x1] %v6473
      %v6475 = vld [vmem:[%s5593] sm:$0xf]
      %v6476 = vld [vmem:[%s5593 + $0x4] sm:$0x1]
      %v6477 = vld [vmem:[%s5593 + $0xc] sm:$0xf]
      %v6478 = vld [vmem:[%s5593 + $0x10] sm:$0x1]
      %v6479 = vld [vmem:[%s5593 + $0x18] sm:$0xf]
      %v6480 = vld [vmem:[%s5593 + $0x1c] sm:$0x1]
      %v6481 = vld [vmem:[%s5593 + $0x24] sm:$0xf]
      %v6482 = vld [vmem:[%s5593 + $0x28] sm:$0x1]
      %v6483 = vld [vmem:[%s5593 + $0x30] sm:$0xf]
      %v6484 = vld [vmem:[%s5593 + $0x34] sm:$0x1]
      %v6485 = vld [vmem:[%s5593 + $0x3c] sm:$0xf]
      %v6486 = vld [vmem:[%s5593 + $0x40] sm:$0x1]
      %v6487 = vld [vmem:[%s5593 + $0x48] sm:$0xf]
      %v6488 = vld [vmem:[%s5593 + $0x4c] sm:$0x1]
      %v6489 = vld [vmem:[%s5593 + $0x54] sm:$0xf]
      %v6490 = vld [vmem:[%s5593 + $0x58] sm:$0x1]
      %v6491 = vld [vmem:[%s5593 + $0x60] sm:$0xf]
      %v6492 = vld [vmem:[%s5593 + $0x64] sm:$0x1]
      %v6511 = vrot.slane %v6475, 3
      %v6512 = vrot.slane %v6476, 3
      %v6513 = vrot.slane %v6477, 3
      %v6514 = vrot.slane %v6478, 3
      %v6515 = vrot.slane %v6479, 3
      %v6516 = vrot.slane %v6480, 3
      %v6517 = vrot.slane %v6481, 3
      %v6518 = vrot.slane %v6482, 3
      %v6519 = vrot.slane %v6483, 3
      %v6520 = vrot.slane %v6484, 3
      %v6521 = vrot.slane %v6485, 3
      %v6522 = vrot.slane %v6486, 3
      %v6523 = vrot.slane %v6487, 3
      %v6524 = vrot.slane %v6488, 3
      %v6525 = vrot.slane %v6489, 3
      %v6526 = vrot.slane %v6490, 3
      %v6527 = vrot.slane %v6491, 3
      %v6528 = vrot.slane %v6492, 3
      %v6531 = vsel %vm2041, %v6475, %v6511
      %v6533 = vsel %vm2046, %v6475, %v6511
      %v6535 = vrot.slane %v6533, 1
      %v6536 = vsel %vm2050, %v6475, %v6511
      %v6538 = vrot.slane %v6536, 2
      %v6539 = vsel %vm2054, %v6475, %v6511
      %v6541 = vrot.slane %v6539, 3
      %v6544 = vsel %vm2041, %v6476, %v6512
      %v6548 = vsel %vm2041, %v6477, %v6513
      %v6550 = vsel %vm2046, %v6477, %v6513
      %v6552 = vrot.slane %v6550, 1
      %v6553 = vsel %vm2050, %v6477, %v6513
      %v6555 = vrot.slane %v6553, 2
      %v6556 = vsel %vm2054, %v6477, %v6513
      %v6558 = vrot.slane %v6556, 3
      %v6561 = vsel %vm2041, %v6478, %v6514
      %v6565 = vsel %vm2041, %v6479, %v6515
      %v6567 = vsel %vm2046, %v6479, %v6515
      %v6569 = vrot.slane %v6567, 1
      %v6570 = vsel %vm2050, %v6479, %v6515
      %v6572 = vrot.slane %v6570, 2
      %v6573 = vsel %vm2054, %v6479, %v6515
      %v6575 = vrot.slane %v6573, 3
      %v6578 = vsel %vm2041, %v6480, %v6516
      %v6582 = vsel %vm2041, %v6481, %v6517
      %v6584 = vsel %vm2046, %v6481, %v6517
      %v6586 = vrot.slane %v6584, 1
      %v6587 = vsel %vm2050, %v6481, %v6517
      %v6589 = vrot.slane %v6587, 2
      %v6590 = vsel %vm2054, %v6481, %v6517
      %v6592 = vrot.slane %v6590, 3
      %v6595 = vsel %vm2041, %v6482, %v6518
      %v6599 = vsel %vm2041, %v6483, %v6519
      %v6601 = vsel %vm2046, %v6483, %v6519
      %v6603 = vrot.slane %v6601, 1
      %v6604 = vsel %vm2050, %v6483, %v6519
      %v6606 = vrot.slane %v6604, 2
      %v6607 = vsel %vm2054, %v6483, %v6519
      %v6609 = vrot.slane %v6607, 3
      %v6612 = vsel %vm2041, %v6484, %v6520
      %v6616 = vsel %vm2041, %v6485, %v6521
      %v6618 = vsel %vm2046, %v6485, %v6521
      %v6620 = vrot.slane %v6618, 1
      %v6621 = vsel %vm2050, %v6485, %v6521
      %v6623 = vrot.slane %v6621, 2
      %v6624 = vsel %vm2054, %v6485, %v6521
      %v6626 = vrot.slane %v6624, 3
      %v6629 = vsel %vm2041, %v6486, %v6522
      %v6633 = vsel %vm2041, %v6487, %v6523
      %v6635 = vsel %vm2046, %v6487, %v6523
      %v6637 = vrot.slane %v6635, 1
      %v6638 = vsel %vm2050, %v6487, %v6523
      %v6640 = vrot.slane %v6638, 2
      %v6641 = vsel %vm2054, %v6487, %v6523
      %v6643 = vrot.slane %v6641, 3
      %v6646 = vsel %vm2041, %v6488, %v6524
      %v6650 = vsel %vm2041, %v6489, %v6525
      %v6652 = vsel %vm2046, %v6489, %v6525
      %v6654 = vrot.slane %v6652, 1
      %v6655 = vsel %vm2050, %v6489, %v6525
      %v6657 = vrot.slane %v6655, 2
      %v6658 = vsel %vm2054, %v6489, %v6525
      %v6660 = vrot.slane %v6658, 3
      %v6663 = vsel %vm2041, %v6490, %v6526
      %v6667 = vsel %vm2041, %v6491, %v6527
      %v6669 = vsel %vm2046, %v6491, %v6527
      %v6671 = vrot.slane %v6669, 1
      %v6672 = vsel %vm2050, %v6491, %v6527
      %v6674 = vrot.slane %v6672, 2
      %v6675 = vsel %vm2054, %v6491, %v6527
      %v6677 = vrot.slane %v6675, 3
      %v6680 = vsel %vm2041, %v6492, %v6528
      %v6682 = vunpack.i.h.s16 %v6531
      %v6683 = vunpack.i.l.s16 %v6535
      %v6684 = vunpack.i.h.s16 %v6535
      %v6685 = vunpack.i.l.s16 %v6538
      %v6686 = vunpack.i.h.s16 %v6538
      %v6687 = vunpack.i.l.s16 %v6541
      %v6688 = vunpack.i.h.s16 %v6541
      %v6689 = vunpack.i.l.s16 %v6544
      %v6690 = vunpack.i.h.s16 %v6544
      %v6691 = vunpack.i.h.s16 %v6548
      %v6692 = vunpack.i.l.s16 %v6552
      %v6693 = vunpack.i.h.s16 %v6552
      %v6694 = vunpack.i.l.s16 %v6555
      %v6695 = vunpack.i.h.s16 %v6555
      %v6696 = vunpack.i.l.s16 %v6558
      %v6697 = vunpack.i.h.s16 %v6558
      %v6698 = vunpack.i.l.s16 %v6561
      %v6699 = vunpack.i.h.s16 %v6561
      %v6700 = vunpack.i.h.s16 %v6565
      %v6701 = vunpack.i.l.s16 %v6569
      %v6702 = vunpack.i.h.s16 %v6569
      %v6703 = vunpack.i.l.s16 %v6572
      %v6704 = vunpack.i.h.s16 %v6572
      %v6705 = vunpack.i.l.s16 %v6575
      %v6706 = vunpack.i.h.s16 %v6575
      %v6707 = vunpack.i.l.s16 %v6578
      %v6708 = vunpack.i.h.s16 %v6578
      %v6709 = vunpack.i.h.s16 %v6582
      %v6710 = vunpack.i.l.s16 %v6586
      %v6711 = vunpack.i.h.s16 %v6586
      %v6712 = vunpack.i.l.s16 %v6589
      %v6713 = vunpack.i.h.s16 %v6589
      %v6714 = vunpack.i.l.s16 %v6592
      %v6715 = vunpack.i.h.s16 %v6592
      %v6716 = vunpack.i.l.s16 %v6595
      %v6717 = vunpack.i.h.s16 %v6595
      %v6718 = vunpack.i.h.s16 %v6599
      %v6719 = vunpack.i.l.s16 %v6603
      %v6720 = vunpack.i.h.s16 %v6603
      %v6721 = vunpack.i.l.s16 %v6606
      %v6722 = vunpack.i.h.s16 %v6606
      %v6723 = vunpack.i.l.s16 %v6609
      %v6724 = vunpack.i.h.s16 %v6609
      %v6725 = vunpack.i.l.s16 %v6612
      %v6726 = vunpack.i.h.s16 %v6612
      %v6727 = vunpack.i.h.s16 %v6616
      %v6728 = vunpack.i.l.s16 %v6620
      %v6729 = vunpack.i.h.s16 %v6620
      %v6730 = vunpack.i.l.s16 %v6623
      %v6731 = vunpack.i.h.s16 %v6623
      %v6732 = vunpack.i.l.s16 %v6626
      %v6733 = vunpack.i.h.s16 %v6626
      %v6734 = vunpack.i.l.s16 %v6629
      %v6735 = vunpack.i.h.s16 %v6629
      %v6736 = vunpack.i.h.s16 %v6633
      %v6737 = vunpack.i.l.s16 %v6637
      %v6738 = vunpack.i.h.s16 %v6637
      %v6739 = vunpack.i.l.s16 %v6640
      %v6740 = vunpack.i.h.s16 %v6640
      %v6741 = vunpack.i.l.s16 %v6643
      %v6742 = vunpack.i.h.s16 %v6643
      %v6743 = vunpack.i.l.s16 %v6646
      %v6744 = vunpack.i.h.s16 %v6646
      %v6745 = vunpack.i.h.s16 %v6650
      %v6746 = vunpack.i.l.s16 %v6654
      %v6747 = vunpack.i.h.s16 %v6654
      %v6748 = vunpack.i.l.s16 %v6657
      %v6749 = vunpack.i.h.s16 %v6657
      %v6750 = vunpack.i.l.s16 %v6660
      %v6751 = vunpack.i.h.s16 %v6660
      %v6752 = vunpack.i.l.s16 %v6663
      %v6753 = vunpack.i.h.s16 %v6663
      %v6754 = vunpack.i.h.s16 %v6667
      %v6755 = vunpack.i.l.s16 %v6671
      %v6756 = vunpack.i.h.s16 %v6671
      %v6757 = vunpack.i.l.s16 %v6674
      %v6758 = vunpack.i.h.s16 %v6674
      %v6759 = vunpack.i.l.s16 %v6677
      %v6760 = vunpack.i.h.s16 %v6677
      %v6761 = vunpack.i.l.s16 %v6680
      %v6762 = vunpack.i.h.s16 %v6680
      %v6763 = vpack.i.b16 %v6683, %v6682
      %v6764 = vpack.i.b16 %v6685, %v6684
      %v6765 = vpack.i.b16 %v6687, %v6686
      %v6766 = vpack.i.b16 %v6689, %v6688
      %v6767 = vpack.i.b16 %v6691, %v6690
      %v6768 = vpack.i.b16 %v6693, %v6692
      %v6769 = vpack.i.b16 %v6695, %v6694
      %v6770 = vpack.i.b16 %v6697, %v6696
      %v6771 = vpack.i.b16 %v6699, %v6698
      %v6772 = vpack.i.b16 %v6701, %v6700
      %v6773 = vpack.i.b16 %v6703, %v6702
      %v6774 = vpack.i.b16 %v6705, %v6704
      %v6775 = vpack.i.b16 %v6707, %v6706
      %v6776 = vpack.i.b16 %v6709, %v6708
      %v6777 = vpack.i.b16 %v6711, %v6710
      %v6778 = vpack.i.b16 %v6713, %v6712
      %v6779 = vpack.i.b16 %v6715, %v6714
      %v6780 = vpack.i.b16 %v6717, %v6716
      %v6781 = vpack.i.b16 %v6719, %v6718
      %v6782 = vpack.i.b16 %v6721, %v6720
      %v6783 = vpack.i.b16 %v6723, %v6722
      %v6784 = vpack.i.b16 %v6725, %v6724
      %v6785 = vpack.i.b16 %v6727, %v6726
      %v6786 = vpack.i.b16 %v6729, %v6728
      %v6787 = vpack.i.b16 %v6731, %v6730
      %v6788 = vpack.i.b16 %v6733, %v6732
      %v6789 = vpack.i.b16 %v6735, %v6734
      %v6790 = vpack.i.b16 %v6737, %v6736
      %v6791 = vpack.i.b16 %v6739, %v6738
      %v6792 = vpack.i.b16 %v6741, %v6740
      %v6793 = vpack.i.b16 %v6743, %v6742
      %v6794 = vpack.i.b16 %v6745, %v6744
      %v6795 = vpack.i.b16 %v6747, %v6746
      %v6796 = vpack.i.b16 %v6749, %v6748
      %v6797 = vpack.i.b16 %v6751, %v6750
      %v6798 = vpack.i.b16 %v6753, %v6752
      %v6799 = vpack.i.b16 %v6755, %v6754
      %v6800 = vpack.i.b16 %v6757, %v6756
      %v6801 = vpack.i.b16 %v6759, %v6758
      %v6802 = vpack.i.b16 %v6761, %v6760
      %6805 = vst [vmem:[#allocation1] ss:$4 sm:$0xff] %v6763
      %s6807 = scalar_lea.vmem [#allocation1], 1
      %6808 = vst [vmem:[%s6807] ss:$4 sm:$0xff] %v6764
      %s6810 = scalar_lea.vmem [#allocation1], 2
      %6811 = vst [vmem:[%s6810] ss:$4 sm:$0xff] %v6765
      %s6813 = scalar_lea.vmem [#allocation1], 3
      %6814 = vst [vmem:[%s6813] ss:$4 sm:$0xff] %v6766
      %s6816 = scalar_lea.vmem [#allocation1], 32
      %6817 = vst [vmem:[%s6816] ss:$4 sm:$0xff] %v6767
      %s6819 = scalar_lea.vmem [#allocation1], 33
      %6820 = vst [vmem:[%s6819] ss:$4 sm:$0xff] %v6768
      %s6822 = scalar_lea.vmem [#allocation1], 34
      %6823 = vst [vmem:[%s6822] ss:$4 sm:$0xff] %v6769
      %s6825 = scalar_lea.vmem [#allocation1], 35
      %6826 = vst [vmem:[%s6825] ss:$4 sm:$0xff] %v6770
      %v6827 = vld [vmem:[#allocation1] sm:$0xff]
      %v6829 = vld [vmem:[#allocation1 + $0x20] sm:$0xff]
      %6832 = vst [vmem:[#allocation1] ss:$4 sm:$0xff] %v6771
      %6834 = vst [vmem:[%s6807] ss:$4 sm:$0xff] %v6772
      %6836 = vst [vmem:[%s6810] ss:$4 sm:$0xff] %v6773
      %6838 = vst [vmem:[%s6813] ss:$4 sm:$0xff] %v6774
      %6840 = vst [vmem:[%s6816] ss:$4 sm:$0xff] %v6775
      %6842 = vst [vmem:[%s6819] ss:$4 sm:$0xff] %v6776
      %6844 = vst [vmem:[%s6822] ss:$4 sm:$0xff] %v6777
      %6846 = vst [vmem:[%s6825] ss:$4 sm:$0xff] %v6778
      %v6847 = vld [vmem:[#allocation1] sm:$0xff]
      %v6849 = vld [vmem:[#allocation1 + $0x20] sm:$0xff]
      %6852 = vst [vmem:[#allocation1] ss:$4 sm:$0xff] %v6779
      %6854 = vst [vmem:[%s6807] ss:$4 sm:$0xff] %v6780
      %6856 = vst [vmem:[%s6810] ss:$4 sm:$0xff] %v6781
      %6858 = vst [vmem:[%s6813] ss:$4 sm:$0xff] %v6782
      %6860 = vst [vmem:[%s6816] ss:$4 sm:$0xff] %v6783
      %6862 = vst [vmem:[%s6819] ss:$4 sm:$0xff] %v6784
      %6864 = vst [vmem:[%s6822] ss:$4 sm:$0xff] %v6785
      %6866 = vst [vmem:[%s6825] ss:$4 sm:$0xff] %v6786
      %v6867 = vld [vmem:[#allocation1] sm:$0xff]
      %v6869 = vld [vmem:[#allocation1 + $0x20] sm:$0xff]
      %6872 = vst [vmem:[#allocation1] ss:$4 sm:$0xff] %v6787
      %6874 = vst [vmem:[%s6807] ss:$4 sm:$0xff] %v6788
      %6876 = vst [vmem:[%s6810] ss:$4 sm:$0xff] %v6789
      %6878 = vst [vmem:[%s6813] ss:$4 sm:$0xff] %v6790
      %6880 = vst [vmem:[%s6816] ss:$4 sm:$0xff] %v6791
      %6882 = vst [vmem:[%s6819] ss:$4 sm:$0xff] %v6792
      %6884 = vst [vmem:[%s6822] ss:$4 sm:$0xff] %v6793
      %6886 = vst [vmem:[%s6825] ss:$4 sm:$0xff] %v6794
      %v6887 = vld [vmem:[#allocation1] sm:$0xff]
      %v6889 = vld [vmem:[#allocation1 + $0x20] sm:$0xff]
      %6892 = vst [vmem:[#allocation1] ss:$4 sm:$0xff] %v6795
      %6894 = vst [vmem:[%s6807] ss:$4 sm:$0xff] %v6796
      %6896 = vst [vmem:[%s6810] ss:$4 sm:$0xff] %v6797
      %6898 = vst [vmem:[%s6813] ss:$4 sm:$0xff] %v6798
      %6900 = vst [vmem:[%s6816] ss:$4 sm:$0xff] %v6799
      %6902 = vst [vmem:[%s6819] ss:$4 sm:$0xff] %v6800
      %6904 = vst [vmem:[%s6822] ss:$4 sm:$0xff] %v6801
      %6906 = vst [vmem:[%s6825] ss:$4 sm:$0xff] %v6802
      %v6907 = vld [vmem:[#allocation1] sm:$0xff]
      %v6909 = vld [vmem:[#allocation1 + $0x20] sm:$0xff]
      %6912 = vst [vmem:[#allocation1] ss:$4 sm:$0xff] %v6762
      %v6913 = vld [vmem:[#allocation1] sm:$0xff]
      %6915 = vrot.lane.b32.xlu0 %v6827, 64
      %v6916 = vpop.permute.xlu0 %6915
      %6917 = vrot.lane.b32.xlu0 %v6829, 64
      %v6918 = vpop.permute.xlu0 %6917
      %6919 = vrot.lane.b32.xlu0 %v6847, 64
      %v6920 = vpop.permute.xlu0 %6919
      %6921 = vrot.lane.b32.xlu0 %v6849, 64
      %v6922 = vpop.permute.xlu0 %6921
      %6923 = vrot.lane.b32.xlu0 %v6867, 64
      %v6924 = vpop.permute.xlu0 %6923
      %6925 = vrot.lane.b32.xlu0 %v6869, 64
      %v6926 = vpop.permute.xlu0 %6925
      %6927 = vrot.lane.b32.xlu0 %v6887, 64
      %v6928 = vpop.permute.xlu0 %6927
      %6929 = vrot.lane.b32.xlu0 %v6889, 64
      %v6930 = vpop.permute.xlu0 %6929
      %6931 = vrot.lane.b32.xlu0 %v6907, 64
      %v6932 = vpop.permute.xlu0 %6931
      %6933 = vrot.lane.b32.xlu0 %v6909, 64
      %v6934 = vpop.permute.xlu0 %6933
      %6935 = vrot.lane.b32.xlu0 %v6913, 64
      %v6936 = vpop.permute.xlu0 %6935
      %6948 = vst.msk [vmem:[#allocation4 + $0x8] sm:$0xf] %vm3351, %v6916
      %6949 = vst.msk [vmem:[#allocation4 + $0x18] sm:$0xf] %vm3351, %v6918
      %6950 = vst.msk [vmem:[#allocation4 + $0x28] sm:$0xf] %vm3351, %v6920
      %6951 = vst.msk [vmem:[#allocation4 + $0x38] sm:$0xf] %vm3351, %v6922
      %6952 = vst.msk [vmem:[#allocation4 + $0x48] sm:$0xf] %vm3351, %v6924
      %6953 = vst.msk [vmem:[#allocation4 + $0x58] sm:$0xf] %vm3351, %v6926
      %6954 = vst.msk [vmem:[#allocation4 + $0x68] sm:$0xf] %vm3351, %v6928
      %6955 = vst.msk [vmem:[#allocation4 + $0x78] sm:$0xf] %vm3351, %v6930
      %6956 = vst.msk [vmem:[#allocation4 + $0x88] sm:$0xf] %vm3351, %v6932
      %6957 = vst.msk [vmem:[#allocation4 + $0x98] sm:$0xf] %vm3351, %v6934
      %v6958 = vld [vmem:[#allocation4 + $0xa8] sm:$0x1]
      %v6959 = vsel %vm3363, %v6936, %v6958
      %6960 = vst [vmem:[#allocation4 + $0xa8] sm:$0x1] %v6959
      %v6961 = vld [vmem:[%s5593 + $0x4] sm:$0xe]
      %v6962 = vld [vmem:[%s5593 + $0x8] sm:$0x3]
      %v6963 = vld [vmem:[%s5593 + $0x10] sm:$0xe]
      %v6964 = vld [vmem:[%s5593 + $0x14] sm:$0x3]
      %v6965 = vld [vmem:[%s5593 + $0x1c] sm:$0xe]
      %v6966 = vld [vmem:[%s5593 + $0x20] sm:$0x3]
      %v6967 = vld [vmem:[%s5593 + $0x28] sm:$0xe]
      %v6968 = vld [vmem:[%s5593 + $0x2c] sm:$0x3]
      %v6969 = vld [vmem:[%s5593 + $0x34] sm:$0xe]
      %v6970 = vld [vmem:[%s5593 + $0x38] sm:$0x3]
      %v6971 = vld [vmem:[%s5593 + $0x40] sm:$0xe]
      %v6972 = vld [vmem:[%s5593 + $0x44] sm:$0x3]
      %v6973 = vld [vmem:[%s5593 + $0x4c] sm:$0xe]
      %v6974 = vld [vmem:[%s5593 + $0x50] sm:$0x3]
      %v6975 = vld [vmem:[%s5593 + $0x58] sm:$0xe]
      %v6976 = vld [vmem:[%s5593 + $0x5c] sm:$0x3]
      %v6977 = vld [vmem:[%s5593 + $0x64] sm:$0xe]
      %v6978 = vld [vmem:[%s5593 + $0x68] sm:$0x3]
      %6980 = vst [vmem:[#allocation1] sm:$0xff] %v6961
      %6982 = vst [vmem:[#allocation1 + $0x20] sm:$0xff] %v6962
      %s6983 = scalar_lea.vmem [#allocation1], 1
      %v6984 = vld [vmem:[%s6983] ss:$4 sm:$0xff]
      %s6986 = scalar_lea.vmem [#allocation1], 2
      %v6987 = vld [vmem:[%s6986] ss:$4 sm:$0xff]
      %s6989 = scalar_lea.vmem [#allocation1], 3
      %v6990 = vld [vmem:[%s6989] ss:$4 sm:$0xff]
      %s6992 = scalar_lea.vmem [#allocation1], 32
      %v6993 = vld [vmem:[%s6992] ss:$4 sm:$0xff]
      %s6995 = scalar_lea.vmem [#allocation1], 33
      %v6996 = vld [vmem:[%s6995] ss:$4 sm:$0xff]
      %6999 = vst [vmem:[#allocation1] sm:$0xff] %v6963
      %7001 = vst [vmem:[#allocation1 + $0x20] sm:$0xff] %v6964
      %v7002 = vld [vmem:[%s6983] ss:$4 sm:$0xff]
      %v7004 = vld [vmem:[%s6986] ss:$4 sm:$0xff]
      %v7006 = vld [vmem:[%s6989] ss:$4 sm:$0xff]
      %v7008 = vld [vmem:[%s6992] ss:$4 sm:$0xff]
      %v7010 = vld [vmem:[%s6995] ss:$4 sm:$0xff]
      %7013 = vst [vmem:[#allocation1] sm:$0xff] %v6965
      %7015 = vst [vmem:[#allocation1 + $0x20] sm:$0xff] %v6966
      %v7016 = vld [vmem:[%s6983] ss:$4 sm:$0xff]
      %v7018 = vld [vmem:[%s6986] ss:$4 sm:$0xff]
      %v7020 = vld [vmem:[%s6989] ss:$4 sm:$0xff]
      %v7022 = vld [vmem:[%s6992] ss:$4 sm:$0xff]
      %v7024 = vld [vmem:[%s6995] ss:$4 sm:$0xff]
      %7027 = vst [vmem:[#allocation1] sm:$0xff] %v6967
      %7029 = vst [vmem:[#allocation1 + $0x20] sm:$0xff] %v6968
      %v7030 = vld [vmem:[%s6983] ss:$4 sm:$0xff]
      %v7032 = vld [vmem:[%s6986] ss:$4 sm:$0xff]
      %v7034 = vld [vmem:[%s6989] ss:$4 sm:$0xff]
      %v7036 = vld [vmem:[%s6992] ss:$4 sm:$0xff]
      %v7038 = vld [vmem:[%s6995] ss:$4 sm:$0xff]
      %7041 = vst [vmem:[#allocation1] sm:$0xff] %v6969
      %7043 = vst [vmem:[#allocation1 + $0x20] sm:$0xff] %v6970
      %v7044 = vld [vmem:[%s6983] ss:$4 sm:$0xff]
      %v7046 = vld [vmem:[%s6986] ss:$4 sm:$0xff]
      %v7048 = vld [vmem:[%s6989] ss:$4 sm:$0xff]
      %v7050 = vld [vmem:[%s6992] ss:$4 sm:$0xff]
      %v7052 = vld [vmem:[%s6995] ss:$4 sm:$0xff]
      %7055 = vst [vmem:[#allocation1] sm:$0xff] %v6971
      %7057 = vst [vmem:[#allocation1 + $0x20] sm:$0xff] %v6972
      %v7058 = vld [vmem:[%s6983] ss:$4 sm:$0xff]
      %v7060 = vld [vmem:[%s6986] ss:$4 sm:$0xff]
      %v7062 = vld [vmem:[%s6989] ss:$4 sm:$0xff]
      %v7064 = vld [vmem:[%s6992] ss:$4 sm:$0xff]
      %v7066 = vld [vmem:[%s6995] ss:$4 sm:$0xff]
      %7069 = vst [vmem:[#allocation1] sm:$0xff] %v6973
      %7071 = vst [vmem:[#allocation1 + $0x20] sm:$0xff] %v6974
      %v7072 = vld [vmem:[%s6983] ss:$4 sm:$0xff]
      %v7074 = vld [vmem:[%s6986] ss:$4 sm:$0xff]
      %v7076 = vld [vmem:[%s6989] ss:$4 sm:$0xff]
      %v7078 = vld [vmem:[%s6992] ss:$4 sm:$0xff]
      %v7080 = vld [vmem:[%s6995] ss:$4 sm:$0xff]
      %7083 = vst [vmem:[#allocation1] sm:$0xff] %v6975
      %7085 = vst [vmem:[#allocation1 + $0x20] sm:$0xff] %v6976
      %v7086 = vld [vmem:[%s6983] ss:$4 sm:$0xff]
      %v7088 = vld [vmem:[%s6986] ss:$4 sm:$0xff]
      %v7090 = vld [vmem:[%s6989] ss:$4 sm:$0xff]
      %v7092 = vld [vmem:[%s6992] ss:$4 sm:$0xff]
      %v7094 = vld [vmem:[%s6995] ss:$4 sm:$0xff]
      %7097 = vst [vmem:[#allocation1] sm:$0xff] %v6977
      %7099 = vst [vmem:[#allocation1 + $0x20] sm:$0xff] %v6978
      %v7100 = vld [vmem:[%s6983] ss:$4 sm:$0xff]
      %v7102 = vld [vmem:[%s6986] ss:$4 sm:$0xff]
      %v7104 = vld [vmem:[%s6989] ss:$4 sm:$0xff]
      %v7106 = vld [vmem:[%s6992] ss:$4 sm:$0xff]
      %v7108 = vld [vmem:[%s6995] ss:$4 sm:$0xff]
      %v7110 = vunpack.i.h.s16 %v6984
      %v7111 = vunpack.i.l.s16 %v6987
      %v7112 = vunpack.i.h.s16 %v6987
      %v7113 = vunpack.i.l.s16 %v6990
      %v7114 = vunpack.i.h.s16 %v6990
      %v7115 = vunpack.i.l.s16 %v6993
      %v7116 = vunpack.i.h.s16 %v6993
      %v7117 = vunpack.i.l.s16 %v6996
      %v7118 = vunpack.i.h.s16 %v6996
      %v7119 = vunpack.i.h.s16 %v7002
      %v7120 = vunpack.i.l.s16 %v7004
      %v7121 = vunpack.i.h.s16 %v7004
      %v7122 = vunpack.i.l.s16 %v7006
      %v7123 = vunpack.i.h.s16 %v7006
      %v7124 = vunpack.i.l.s16 %v7008
      %v7125 = vunpack.i.h.s16 %v7008
      %v7126 = vunpack.i.l.s16 %v7010
      %v7127 = vunpack.i.h.s16 %v7010
      %v7128 = vunpack.i.h.s16 %v7016
      %v7129 = vunpack.i.l.s16 %v7018
      %v7130 = vunpack.i.h.s16 %v7018
      %v7131 = vunpack.i.l.s16 %v7020
      %v7132 = vunpack.i.h.s16 %v7020
      %v7133 = vunpack.i.l.s16 %v7022
      %v7134 = vunpack.i.h.s16 %v7022
      %v7135 = vunpack.i.l.s16 %v7024
      %v7136 = vunpack.i.h.s16 %v7024
      %v7137 = vunpack.i.h.s16 %v7030
      %v7138 = vunpack.i.l.s16 %v7032
      %v7139 = vunpack.i.h.s16 %v7032
      %v7140 = vunpack.i.l.s16 %v7034
      %v7141 = vunpack.i.h.s16 %v7034
      %v7142 = vunpack.i.l.s16 %v7036
      %v7143 = vunpack.i.h.s16 %v7036
      %v7144 = vunpack.i.l.s16 %v7038
      %v7145 = vunpack.i.h.s16 %v7038
      %v7146 = vunpack.i.h.s16 %v7044
      %v7147 = vunpack.i.l.s16 %v7046
      %v7148 = vunpack.i.h.s16 %v7046
      %v7149 = vunpack.i.l.s16 %v7048
      %v7150 = vunpack.i.h.s16 %v7048
      %v7151 = vunpack.i.l.s16 %v7050
      %v7152 = vunpack.i.h.s16 %v7050
      %v7153 = vunpack.i.l.s16 %v7052
      %v7154 = vunpack.i.h.s16 %v7052
      %v7155 = vunpack.i.h.s16 %v7058
      %v7156 = vunpack.i.l.s16 %v7060
      %v7157 = vunpack.i.h.s16 %v7060
      %v7158 = vunpack.i.l.s16 %v7062
      %v7159 = vunpack.i.h.s16 %v7062
      %v7160 = vunpack.i.l.s16 %v7064
      %v7161 = vunpack.i.h.s16 %v7064
      %v7162 = vunpack.i.l.s16 %v7066
      %v7163 = vunpack.i.h.s16 %v7066
      %v7164 = vunpack.i.h.s16 %v7072
      %v7165 = vunpack.i.l.s16 %v7074
      %v7166 = vunpack.i.h.s16 %v7074
      %v7167 = vunpack.i.l.s16 %v7076
      %v7168 = vunpack.i.h.s16 %v7076
      %v7169 = vunpack.i.l.s16 %v7078
      %v7170 = vunpack.i.h.s16 %v7078
      %v7171 = vunpack.i.l.s16 %v7080
      %v7172 = vunpack.i.h.s16 %v7080
      %v7173 = vunpack.i.h.s16 %v7086
      %v7174 = vunpack.i.l.s16 %v7088
      %v7175 = vunpack.i.h.s16 %v7088
      %v7176 = vunpack.i.l.s16 %v7090
      %v7177 = vunpack.i.h.s16 %v7090
      %v7178 = vunpack.i.l.s16 %v7092
      %v7179 = vunpack.i.h.s16 %v7092
      %v7180 = vunpack.i.l.s16 %v7094
      %v7181 = vunpack.i.h.s16 %v7094
      %v7182 = vunpack.i.h.s16 %v7100
      %v7183 = vunpack.i.l.s16 %v7102
      %v7184 = vunpack.i.h.s16 %v7102
      %v7185 = vunpack.i.l.s16 %v7104
      %v7186 = vunpack.i.h.s16 %v7104
      %v7187 = vunpack.i.l.s16 %v7106
      %v7188 = vunpack.i.h.s16 %v7106
      %v7189 = vunpack.i.l.s16 %v7108
      %v7190 = vunpack.i.h.s16 %v7108
      %v7191 = vpack.i.b16 %v7111, %v7110
      %v7192 = vpack.i.b16 %v7113, %v7112
      %v7193 = vpack.i.b16 %v7115, %v7114
      %v7194 = vpack.i.b16 %v7117, %v7116
      %v7195 = vpack.i.b16 %v7119, %v7118
      %v7196 = vpack.i.b16 %v7121, %v7120
      %v7197 = vpack.i.b16 %v7123, %v7122
      %v7198 = vpack.i.b16 %v7125, %v7124
      %v7199 = vpack.i.b16 %v7127, %v7126
      %v7200 = vpack.i.b16 %v7129, %v7128
      %v7201 = vpack.i.b16 %v7131, %v7130
      %v7202 = vpack.i.b16 %v7133, %v7132
      %v7203 = vpack.i.b16 %v7135, %v7134
      %v7204 = vpack.i.b16 %v7137, %v7136
      %v7205 = vpack.i.b16 %v7139, %v7138
      %v7206 = vpack.i.b16 %v7141, %v7140
      %v7207 = vpack.i.b16 %v7143, %v7142
      %v7208 = vpack.i.b16 %v7145, %v7144
      %v7209 = vpack.i.b16 %v7147, %v7146
      %v7210 = vpack.i.b16 %v7149, %v7148
      %v7211 = vpack.i.b16 %v7151, %v7150
      %v7212 = vpack.i.b16 %v7153, %v7152
      %v7213 = vpack.i.b16 %v7155, %v7154
      %v7214 = vpack.i.b16 %v7157, %v7156
      %v7215 = vpack.i.b16 %v7159, %v7158
      %v7216 = vpack.i.b16 %v7161, %v7160
      %v7217 = vpack.i.b16 %v7163, %v7162
      %v7218 = vpack.i.b16 %v7165, %v7164
      %v7219 = vpack.i.b16 %v7167, %v7166
      %v7220 = vpack.i.b16 %v7169, %v7168
      %v7221 = vpack.i.b16 %v7171, %v7170
      %v7222 = vpack.i.b16 %v7173, %v7172
      %v7223 = vpack.i.b16 %v7175, %v7174
      %v7224 = vpack.i.b16 %v7177, %v7176
      %v7225 = vpack.i.b16 %v7179, %v7178
      %v7226 = vpack.i.b16 %v7181, %v7180
      %v7227 = vpack.i.b16 %v7183, %v7182
      %v7228 = vpack.i.b16 %v7185, %v7184
      %v7229 = vpack.i.b16 %v7187, %v7186
      %v7230 = vpack.i.b16 %v7189, %v7188
      %7233 = vst [vmem:[#allocation1] ss:$4 sm:$0xff] %v7191
      %s7235 = scalar_lea.vmem [#allocation1], 1
      %7236 = vst [vmem:[%s7235] ss:$4 sm:$0xff] %v7192
      %s7238 = scalar_lea.vmem [#allocation1], 2
      %7239 = vst [vmem:[%s7238] ss:$4 sm:$0xff] %v7193
      %s7241 = scalar_lea.vmem [#allocation1], 3
      %7242 = vst [vmem:[%s7241] ss:$4 sm:$0xff] %v7194
      %s7244 = scalar_lea.vmem [#allocation1], 32
      %7245 = vst [vmem:[%s7244] ss:$4 sm:$0xff] %v7195
      %s7247 = scalar_lea.vmem [#allocation1], 33
      %7248 = vst [vmem:[%s7247] ss:$4 sm:$0xff] %v7196
      %s7250 = scalar_lea.vmem [#allocation1], 34
      %7251 = vst [vmem:[%s7250] ss:$4 sm:$0xff] %v7197
      %s7253 = scalar_lea.vmem [#allocation1], 35
      %7254 = vst [vmem:[%s7253] ss:$4 sm:$0xff] %v7198
      %v7255 = vld [vmem:[#allocation1] sm:$0xff]
      %v7257 = vld [vmem:[#allocation1 + $0x20] sm:$0xff]
      %7260 = vst [vmem:[#allocation1] ss:$4 sm:$0xff] %v7199
      %7262 = vst [vmem:[%s7235] ss:$4 sm:$0xff] %v7200
      %7264 = vst [vmem:[%s7238] ss:$4 sm:$0xff] %v7201
      %7266 = vst [vmem:[%s7241] ss:$4 sm:$0xff] %v7202
      %7268 = vst [vmem:[%s7244] ss:$4 sm:$0xff] %v7203
      %7270 = vst [vmem:[%s7247] ss:$4 sm:$0xff] %v7204
      %7272 = vst [vmem:[%s7250] ss:$4 sm:$0xff] %v7205
      %7274 = vst [vmem:[%s7253] ss:$4 sm:$0xff] %v7206
      %v7275 = vld [vmem:[#allocation1] sm:$0xff]
      %v7277 = vld [vmem:[#allocation1 + $0x20] sm:$0xff]
      %7280 = vst [vmem:[#allocation1] ss:$4 sm:$0xff] %v7207
      %7282 = vst [vmem:[%s7235] ss:$4 sm:$0xff] %v7208
      %7284 = vst [vmem:[%s7238] ss:$4 sm:$0xff] %v7209
      %7286 = vst [vmem:[%s7241] ss:$4 sm:$0xff] %v7210
      %7288 = vst [vmem:[%s7244] ss:$4 sm:$0xff] %v7211
      %7290 = vst [vmem:[%s7247] ss:$4 sm:$0xff] %v7212
      %7292 = vst [vmem:[%s7250] ss:$4 sm:$0xff] %v7213
      %7294 = vst [vmem:[%s7253] ss:$4 sm:$0xff] %v7214
      %v7295 = vld [vmem:[#allocation1] sm:$0xff]
      %v7297 = vld [vmem:[#allocation1 + $0x20] sm:$0xff]
      %7300 = vst [vmem:[#allocation1] ss:$4 sm:$0xff] %v7215
      %7302 = vst [vmem:[%s7235] ss:$4 sm:$0xff] %v7216
      %7304 = vst [vmem:[%s7238] ss:$4 sm:$0xff] %v7217
      %7306 = vst [vmem:[%s7241] ss:$4 sm:$0xff] %v7218
      %7308 = vst [vmem:[%s7244] ss:$4 sm:$0xff] %v7219
      %7310 = vst [vmem:[%s7247] ss:$4 sm:$0xff] %v7220
      %7312 = vst [vmem:[%s7250] ss:$4 sm:$0xff] %v7221
      %7314 = vst [vmem:[%s7253] ss:$4 sm:$0xff] %v7222
      %v7315 = vld [vmem:[#allocation1] sm:$0xff]
      %v7317 = vld [vmem:[#allocation1 + $0x20] sm:$0xff]
      %7320 = vst [vmem:[#allocation1] ss:$4 sm:$0xff] %v7223
      %7322 = vst [vmem:[%s7235] ss:$4 sm:$0xff] %v7224
      %7324 = vst [vmem:[%s7238] ss:$4 sm:$0xff] %v7225
      %7326 = vst [vmem:[%s7241] ss:$4 sm:$0xff] %v7226
      %7328 = vst [vmem:[%s7244] ss:$4 sm:$0xff] %v7227
      %7330 = vst [vmem:[%s7247] ss:$4 sm:$0xff] %v7228
      %7332 = vst [vmem:[%s7250] ss:$4 sm:$0xff] %v7229
      %7334 = vst [vmem:[%s7253] ss:$4 sm:$0xff] %v7230
      %v7335 = vld [vmem:[#allocation1] sm:$0xff]
      %v7337 = vld [vmem:[#allocation1 + $0x20] sm:$0xff]
      %7340 = vst [vmem:[#allocation1] ss:$4 sm:$0xff] %v7190
      %v7341 = vld [vmem:[#allocation1] sm:$0xff]
      %7343 = vrot.lane.b32.xlu0 %v7255, 96
      %v7344 = vpop.permute.xlu0 %7343
      %7345 = vrot.lane.b32.xlu0 %v7257, 96
      %v7346 = vpop.permute.xlu0 %7345
      %7347 = vrot.lane.b32.xlu0 %v7275, 96
      %v7348 = vpop.permute.xlu0 %7347
      %7349 = vrot.lane.b32.xlu0 %v7277, 96
      %v7350 = vpop.permute.xlu0 %7349
      %7351 = vrot.lane.b32.xlu0 %v7295, 96
      %v7352 = vpop.permute.xlu0 %7351
      %7353 = vrot.lane.b32.xlu0 %v7297, 96
      %v7354 = vpop.permute.xlu0 %7353
      %7355 = vrot.lane.b32.xlu0 %v7315, 96
      %v7356 = vpop.permute.xlu0 %7355
      %7357 = vrot.lane.b32.xlu0 %v7317, 96
      %v7358 = vpop.permute.xlu0 %7357
      %7359 = vrot.lane.b32.xlu0 %v7335, 96
      %v7360 = vpop.permute.xlu0 %7359
      %7361 = vrot.lane.b32.xlu0 %v7337, 96
      %v7362 = vpop.permute.xlu0 %7361
      %7363 = vrot.lane.b32.xlu0 %v7341, 96
      %v7364 = vpop.permute.xlu0 %7363
      %7376 = vst.msk [vmem:[#allocation4 + $0x8] sm:$0xf] %vm3782, %v7344
      %7377 = vst.msk [vmem:[#allocation4 + $0x18] sm:$0xf] %vm3782, %v7346
      %7378 = vst.msk [vmem:[#allocation4 + $0x28] sm:$0xf] %vm3782, %v7348
      %7379 = vst.msk [vmem:[#allocation4 + $0x38] sm:$0xf] %vm3782, %v7350
      %7380 = vst.msk [vmem:[#allocation4 + $0x48] sm:$0xf] %vm3782, %v7352
      %7381 = vst.msk [vmem:[#allocation4 + $0x58] sm:$0xf] %vm3782, %v7354
      %7382 = vst.msk [vmem:[#allocation4 + $0x68] sm:$0xf] %vm3782, %v7356
      %7383 = vst.msk [vmem:[#allocation4 + $0x78] sm:$0xf] %vm3782, %v7358
      %7384 = vst.msk [vmem:[#allocation4 + $0x88] sm:$0xf] %vm3782, %v7360
      %7385 = vst.msk [vmem:[#allocation4 + $0x98] sm:$0xf] %vm3782, %v7362
      %v7386 = vld [vmem:[#allocation4 + $0xa8] sm:$0x1]
      %v7387 = vsel %vm3794, %v7364, %v7386
      %7388 = vst [vmem:[#allocation4 + $0xa8] sm:$0x1] %v7387
      %s7389 = scalar_lea.vmem [#allocation2], 132
      %v7390 = vld [vmem:[%s7389] sm:$0xf]
      %v7391 = vld [vmem:[%s7389 + $0x4] sm:$0x1]
      %v7392 = vld [vmem:[%s7389 + $0xc] sm:$0xf]
      %v7393 = vld [vmem:[%s7389 + $0x10] sm:$0x1]
      %v7394 = vld [vmem:[%s7389 + $0x18] sm:$0xf]
      %v7395 = vld [vmem:[%s7389 + $0x1c] sm:$0x1]
      %v7396 = vld [vmem:[%s7389 + $0x24] sm:$0xf]
      %v7397 = vld [vmem:[%s7389 + $0x28] sm:$0x1]
      %v7398 = vld [vmem:[%s7389 + $0x30] sm:$0xf]
      %v7399 = vld [vmem:[%s7389 + $0x34] sm:$0x1]
      %v7400 = vld [vmem:[%s7389 + $0x3c] sm:$0xf]
      %v7401 = vld [vmem:[%s7389 + $0x40] sm:$0x1]
      %v7402 = vld [vmem:[%s7389 + $0x48] sm:$0xf]
      %v7403 = vld [vmem:[%s7389 + $0x4c] sm:$0x1]
      %v7404 = vld [vmem:[%s7389 + $0x54] sm:$0xf]
      %v7405 = vld [vmem:[%s7389 + $0x58] sm:$0x1]
      %v7406 = vld [vmem:[%s7389 + $0x60] sm:$0xf]
      %v7407 = vld [vmem:[%s7389 + $0x64] sm:$0x1]
      %v7426 = vrot.slane %v7390, 3
      %v7427 = vrot.slane %v7391, 3
      %v7428 = vrot.slane %v7392, 3
      %v7429 = vrot.slane %v7393, 3
      %v7430 = vrot.slane %v7394, 3
      %v7431 = vrot.slane %v7395, 3
      %v7432 = vrot.slane %v7396, 3
      %v7433 = vrot.slane %v7397, 3
      %v7434 = vrot.slane %v7398, 3
      %v7435 = vrot.slane %v7399, 3
      %v7436 = vrot.slane %v7400, 3
      %v7437 = vrot.slane %v7401, 3
      %v7438 = vrot.slane %v7402, 3
      %v7439 = vrot.slane %v7403, 3
      %v7440 = vrot.slane %v7404, 3
      %v7441 = vrot.slane %v7405, 3
      %v7442 = vrot.slane %v7406, 3
      %v7443 = vrot.slane %v7407, 3
      %v7446 = vsel %vm2041, %v7390, %v7426
      %v7448 = vsel %vm2046, %v7390, %v7426
      %v7450 = vrot.slane %v7448, 1
      %v7451 = vsel %vm2050, %v7390, %v7426
      %v7453 = vrot.slane %v7451, 2
      %v7454 = vsel %vm2054, %v7390, %v7426
      %v7456 = vrot.slane %v7454, 3
      %v7459 = vsel %vm2041, %v7391, %v7427
      %v7463 = vsel %vm2041, %v7392, %v7428
      %v7465 = vsel %vm2046, %v7392, %v7428
      %v7467 = vrot.slane %v7465, 1
      %v7468 = vsel %vm2050, %v7392, %v7428
      %v7470 = vrot.slane %v7468, 2
      %v7471 = vsel %vm2054, %v7392, %v7428
      %v7473 = vrot.slane %v7471, 3
      %v7476 = vsel %vm2041, %v7393, %v7429
      %v7480 = vsel %vm2041, %v7394, %v7430
      %v7482 = vsel %vm2046, %v7394, %v7430
      %v7484 = vrot.slane %v7482, 1
      %v7485 = vsel %vm2050, %v7394, %v7430
      %v7487 = vrot.slane %v7485, 2
      %v7488 = vsel %vm2054, %v7394, %v7430
      %v7490 = vrot.slane %v7488, 3
      %v7493 = vsel %vm2041, %v7395, %v7431
      %v7497 = vsel %vm2041, %v7396, %v7432
      %v7499 = vsel %vm2046, %v7396, %v7432
      %v7501 = vrot.slane %v7499, 1
      %v7502 = vsel %vm2050, %v7396, %v7432
      %v7504 = vrot.slane %v7502, 2
      %v7505 = vsel %vm2054, %v7396, %v7432
      %v7507 = vrot.slane %v7505, 3
      %v7510 = vsel %vm2041, %v7397, %v7433
      %v7514 = vsel %vm2041, %v7398, %v7434
      %v7516 = vsel %vm2046, %v7398, %v7434
      %v7518 = vrot.slane %v7516, 1
      %v7519 = vsel %vm2050, %v7398, %v7434
      %v7521 = vrot.slane %v7519, 2
      %v7522 = vsel %vm2054, %v7398, %v7434
      %v7524 = vrot.slane %v7522, 3
      %v7527 = vsel %vm2041, %v7399, %v7435
      %v7531 = vsel %vm2041, %v7400, %v7436
      %v7533 = vsel %vm2046, %v7400, %v7436
      %v7535 = vrot.slane %v7533, 1
      %v7536 = vsel %vm2050, %v7400, %v7436
      %v7538 = vrot.slane %v7536, 2
      %v7539 = vsel %vm2054, %v7400, %v7436
      %v7541 = vrot.slane %v7539, 3
      %v7544 = vsel %vm2041, %v7401, %v7437
      %v7548 = vsel %vm2041, %v7402, %v7438
      %v7550 = vsel %vm2046, %v7402, %v7438
      %v7552 = vrot.slane %v7550, 1
      %v7553 = vsel %vm2050, %v7402, %v7438
      %v7555 = vrot.slane %v7553, 2
      %v7556 = vsel %vm2054, %v7402, %v7438
      %v7558 = vrot.slane %v7556, 3
      %v7561 = vsel %vm2041, %v7403, %v7439
      %v7565 = vsel %vm2041, %v7404, %v7440
      %v7567 = vsel %vm2046, %v7404, %v7440
      %v7569 = vrot.slane %v7567, 1
      %v7570 = vsel %vm2050, %v7404, %v7440
      %v7572 = vrot.slane %v7570, 2
      %v7573 = vsel %vm2054, %v7404, %v7440
      %v7575 = vrot.slane %v7573, 3
      %v7578 = vsel %vm2041, %v7405, %v7441
      %v7582 = vsel %vm2041, %v7406, %v7442
      %v7584 = vsel %vm2046, %v7406, %v7442
      %v7586 = vrot.slane %v7584, 1
      %v7587 = vsel %vm2050, %v7406, %v7442
      %v7589 = vrot.slane %v7587, 2
      %v7590 = vsel %vm2054, %v7406, %v7442
      %v7592 = vrot.slane %v7590, 3
      %v7595 = vsel %vm2041, %v7407, %v7443
      %v7597 = vunpack.i.l.s16 %v7446
      %v7598 = vunpack.i.h.s16 %v7446
      %v7599 = vunpack.i.l.s16 %v7450
      %v7600 = vunpack.i.h.s16 %v7450
      %v7601 = vunpack.i.l.s16 %v7453
      %v7602 = vunpack.i.h.s16 %v7453
      %v7603 = vunpack.i.l.s16 %v7456
      %v7604 = vunpack.i.h.s16 %v7456
      %v7605 = vunpack.i.l.s16 %v7459
      %v7606 = vunpack.i.l.s16 %v7463
      %v7607 = vunpack.i.h.s16 %v7463
      %v7608 = vunpack.i.l.s16 %v7467
      %v7609 = vunpack.i.h.s16 %v7467
      %v7610 = vunpack.i.l.s16 %v7470
      %v7611 = vunpack.i.h.s16 %v7470
      %v7612 = vunpack.i.l.s16 %v7473
      %v7613 = vunpack.i.h.s16 %v7473
      %v7614 = vunpack.i.l.s16 %v7476
      %v7615 = vunpack.i.l.s16 %v7480
      %v7616 = vunpack.i.h.s16 %v7480
      %v7617 = vunpack.i.l.s16 %v7484
      %v7618 = vunpack.i.h.s16 %v7484
      %v7619 = vunpack.i.l.s16 %v7487
      %v7620 = vunpack.i.h.s16 %v7487
      %v7621 = vunpack.i.l.s16 %v7490
      %v7622 = vunpack.i.h.s16 %v7490
      %v7623 = vunpack.i.l.s16 %v7493
      %v7624 = vunpack.i.l.s16 %v7497
      %v7625 = vunpack.i.h.s16 %v7497
      %v7626 = vunpack.i.l.s16 %v7501
      %v7627 = vunpack.i.h.s16 %v7501
      %v7628 = vunpack.i.l.s16 %v7504
      %v7629 = vunpack.i.h.s16 %v7504
      %v7630 = vunpack.i.l.s16 %v7507
      %v7631 = vunpack.i.h.s16 %v7507
      %v7632 = vunpack.i.l.s16 %v7510
      %v7633 = vunpack.i.l.s16 %v7514
      %v7634 = vunpack.i.h.s16 %v7514
      %v7635 = vunpack.i.l.s16 %v7518
      %v7636 = vunpack.i.h.s16 %v7518
      %v7637 = vunpack.i.l.s16 %v7521
      %v7638 = vunpack.i.h.s16 %v7521
      %v7639 = vunpack.i.l.s16 %v7524
      %v7640 = vunpack.i.h.s16 %v7524
      %v7641 = vunpack.i.l.s16 %v7527
      %v7642 = vunpack.i.l.s16 %v7531
      %v7643 = vunpack.i.h.s16 %v7531
      %v7644 = vunpack.i.l.s16 %v7535
      %v7645 = vunpack.i.h.s16 %v7535
      %v7646 = vunpack.i.l.s16 %v7538
      %v7647 = vunpack.i.h.s16 %v7538
      %v7648 = vunpack.i.l.s16 %v7541
      %v7649 = vunpack.i.h.s16 %v7541
      %v7650 = vunpack.i.l.s16 %v7544
      %v7651 = vunpack.i.l.s16 %v7548
      %v7652 = vunpack.i.h.s16 %v7548
      %v7653 = vunpack.i.l.s16 %v7552
      %v7654 = vunpack.i.h.s16 %v7552
      %v7655 = vunpack.i.l.s16 %v7555
      %v7656 = vunpack.i.h.s16 %v7555
      %v7657 = vunpack.i.l.s16 %v7558
      %v7658 = vunpack.i.h.s16 %v7558
      %v7659 = vunpack.i.l.s16 %v7561
      %v7660 = vunpack.i.l.s16 %v7565
      %v7661 = vunpack.i.h.s16 %v7565
      %v7662 = vunpack.i.l.s16 %v7569
      %v7663 = vunpack.i.h.s16 %v7569
      %v7664 = vunpack.i.l.s16 %v7572
      %v7665 = vunpack.i.h.s16 %v7572
      %v7666 = vunpack.i.l.s16 %v7575
      %v7667 = vunpack.i.h.s16 %v7575
      %v7668 = vunpack.i.l.s16 %v7578
      %v7669 = vunpack.i.l.s16 %v7582
      %v7670 = vunpack.i.h.s16 %v7582
      %v7671 = vunpack.i.l.s16 %v7586
      %v7672 = vunpack.i.h.s16 %v7586
      %v7673 = vunpack.i.l.s16 %v7589
      %v7674 = vunpack.i.h.s16 %v7589
      %v7675 = vunpack.i.l.s16 %v7592
      %v7676 = vunpack.i.h.s16 %v7592
      %v7677 = vunpack.i.l.s16 %v7595
      %v7678 = vpack.i.b16 %v7598, %v7597
      %v7679 = vpack.i.b16 %v7600, %v7599
      %v7680 = vpack.i.b16 %v7602, %v7601
      %v7681 = vpack.i.b16 %v7604, %v7603
      %v7682 = vpack.i.b16 %v7606, %v7605
      %v7683 = vpack.i.b16 %v7608, %v7607
      %v7684 = vpack.i.b16 %v7610, %v7609
      %v7685 = vpack.i.b16 %v7612, %v7611
      %v7686 = vpack.i.b16 %v7614, %v7613
      %v7687 = vpack.i.b16 %v7616, %v7615
      %v7688 = vpack.i.b16 %v7618, %v7617
      %v7689 = vpack.i.b16 %v7620, %v7619
      %v7690 = vpack.i.b16 %v7622, %v7621
      %v7691 = vpack.i.b16 %v7624, %v7623
      %v7692 = vpack.i.b16 %v7626, %v7625
      %v7693 = vpack.i.b16 %v7628, %v7627
      %v7694 = vpack.i.b16 %v7630, %v7629
      %v7695 = vpack.i.b16 %v7632, %v7631
      %v7696 = vpack.i.b16 %v7634, %v7633
      %v7697 = vpack.i.b16 %v7636, %v7635
      %v7698 = vpack.i.b16 %v7638, %v7637
      %v7699 = vpack.i.b16 %v7640, %v7639
      %v7700 = vpack.i.b16 %v7642, %v7641
      %v7701 = vpack.i.b16 %v7644, %v7643
      %v7702 = vpack.i.b16 %v7646, %v7645
      %v7703 = vpack.i.b16 %v7648, %v7647
      %v7704 = vpack.i.b16 %v7650, %v7649
      %v7705 = vpack.i.b16 %v7652, %v7651
      %v7706 = vpack.i.b16 %v7654, %v7653
      %v7707 = vpack.i.b16 %v7656, %v7655
      %v7708 = vpack.i.b16 %v7658, %v7657
      %v7709 = vpack.i.b16 %v7660, %v7659
      %v7710 = vpack.i.b16 %v7662, %v7661
      %v7711 = vpack.i.b16 %v7664, %v7663
      %v7712 = vpack.i.b16 %v7666, %v7665
      %v7713 = vpack.i.b16 %v7668, %v7667
      %v7714 = vpack.i.b16 %v7670, %v7669
      %v7715 = vpack.i.b16 %v7672, %v7671
      %v7716 = vpack.i.b16 %v7674, %v7673
      %v7717 = vpack.i.b16 %v7676, %v7675
      %7720 = vst [vmem:[#allocation1] ss:$4 sm:$0xff] %v7678
      %s7722 = scalar_lea.vmem [#allocation1], 1
      %7723 = vst [vmem:[%s7722] ss:$4 sm:$0xff] %v7679
      %s7725 = scalar_lea.vmem [#allocation1], 2
      %7726 = vst [vmem:[%s7725] ss:$4 sm:$0xff] %v7680
      %s7728 = scalar_lea.vmem [#allocation1], 3
      %7729 = vst [vmem:[%s7728] ss:$4 sm:$0xff] %v7681
      %s7731 = scalar_lea.vmem [#allocation1], 32
      %7732 = vst [vmem:[%s7731] ss:$4 sm:$0xff] %v7682
      %s7734 = scalar_lea.vmem [#allocation1], 33
      %7735 = vst [vmem:[%s7734] ss:$4 sm:$0xff] %v7683
      %s7737 = scalar_lea.vmem [#allocation1], 34
      %7738 = vst [vmem:[%s7737] ss:$4 sm:$0xff] %v7684
      %s7740 = scalar_lea.vmem [#allocation1], 35
      %7741 = vst [vmem:[%s7740] ss:$4 sm:$0xff] %v7685
      %v7742 = vld [vmem:[#allocation1] sm:$0xff]
      %v7743 = vld [vmem:[#allocation1 + $0x20] sm:$0xff]
      %7745 = vst [vmem:[#allocation1] ss:$4 sm:$0xff] %v7686
      %7747 = vst [vmem:[%s7722] ss:$4 sm:$0xff] %v7687
      %7749 = vst [vmem:[%s7725] ss:$4 sm:$0xff] %v7688
      %7751 = vst [vmem:[%s7728] ss:$4 sm:$0xff] %v7689
      %7753 = vst [vmem:[%s7731] ss:$4 sm:$0xff] %v7690
      %7755 = vst [vmem:[%s7734] ss:$4 sm:$0xff] %v7691
      %7757 = vst [vmem:[%s7737] ss:$4 sm:$0xff] %v7692
      %7759 = vst [vmem:[%s7740] ss:$4 sm:$0xff] %v7693
      %v7760 = vld [vmem:[#allocation1] sm:$0xff]
      %v7761 = vld [vmem:[#allocation1 + $0x20] sm:$0xff]
      %7763 = vst [vmem:[#allocation1] ss:$4 sm:$0xff] %v7694
      %7765 = vst [vmem:[%s7722] ss:$4 sm:$0xff] %v7695
      %7767 = vst [vmem:[%s7725] ss:$4 sm:$0xff] %v7696
      %7769 = vst [vmem:[%s7728] ss:$4 sm:$0xff] %v7697
      %7771 = vst [vmem:[%s7731] ss:$4 sm:$0xff] %v7698
      %7773 = vst [vmem:[%s7734] ss:$4 sm:$0xff] %v7699
      %7775 = vst [vmem:[%s7737] ss:$4 sm:$0xff] %v7700
      %7777 = vst [vmem:[%s7740] ss:$4 sm:$0xff] %v7701
      %v7778 = vld [vmem:[#allocation1] sm:$0xff]
      %v7779 = vld [vmem:[#allocation1 + $0x20] sm:$0xff]
      %7781 = vst [vmem:[#allocation1] ss:$4 sm:$0xff] %v7702
      %7783 = vst [vmem:[%s7722] ss:$4 sm:$0xff] %v7703
      %7785 = vst [vmem:[%s7725] ss:$4 sm:$0xff] %v7704
      %7787 = vst [vmem:[%s7728] ss:$4 sm:$0xff] %v7705
      %7789 = vst [vmem:[%s7731] ss:$4 sm:$0xff] %v7706
      %7791 = vst [vmem:[%s7734] ss:$4 sm:$0xff] %v7707
      %7793 = vst [vmem:[%s7737] ss:$4 sm:$0xff] %v7708
      %7795 = vst [vmem:[%s7740] ss:$4 sm:$0xff] %v7709
      %v7796 = vld [vmem:[#allocation1] sm:$0xff]
      %v7797 = vld [vmem:[#allocation1 + $0x20] sm:$0xff]
      %7799 = vst [vmem:[#allocation1] ss:$4 sm:$0xff] %v7710
      %7801 = vst [vmem:[%s7722] ss:$4 sm:$0xff] %v7711
      %7803 = vst [vmem:[%s7725] ss:$4 sm:$0xff] %v7712
      %7805 = vst [vmem:[%s7728] ss:$4 sm:$0xff] %v7713
      %7807 = vst [vmem:[%s7731] ss:$4 sm:$0xff] %v7714
      %7809 = vst [vmem:[%s7734] ss:$4 sm:$0xff] %v7715
      %7811 = vst [vmem:[%s7737] ss:$4 sm:$0xff] %v7716
      %7813 = vst [vmem:[%s7740] ss:$4 sm:$0xff] %v7717
      %v7814 = vld [vmem:[#allocation1] sm:$0xff]
      %v7815 = vld [vmem:[#allocation1 + $0x20] sm:$0xff]
      %7817 = vst [vmem:[#allocation1] ss:$4 sm:$0xff] %v7677
      %v7818 = vld [vmem:[#allocation1] sm:$0xff]
      %7830 = vst.msk [vmem:[#allocation4 + $0xc] sm:$0xf] %vm1106, %v7742
      %7831 = vst.msk [vmem:[#allocation4 + $0x1c] sm:$0xf] %vm1106, %v7743
      %7832 = vst.msk [vmem:[#allocation4 + $0x2c] sm:$0xf] %vm1106, %v7760
      %7833 = vst.msk [vmem:[#allocation4 + $0x3c] sm:$0xf] %vm1106, %v7761
      %7834 = vst.msk [vmem:[#allocation4 + $0x4c] sm:$0xf] %vm1106, %v7778
      %7835 = vst.msk [vmem:[#allocation4 + $0x5c] sm:$0xf] %vm1106, %v7779
      %7836 = vst.msk [vmem:[#allocation4 + $0x6c] sm:$0xf] %vm1106, %v7796
      %7837 = vst.msk [vmem:[#allocation4 + $0x7c] sm:$0xf] %vm1106, %v7797
      %7838 = vst.msk [vmem:[#allocation4 + $0x8c] sm:$0xf] %vm1106, %v7814
      %7839 = vst.msk [vmem:[#allocation4 + $0x9c] sm:$0xf] %vm1106, %v7815
      %v7840 = vld [vmem:[#allocation4 + $0xac] sm:$0x1]
      %v7841 = vsel %vm2443, %v7818, %v7840
      %7842 = vst [vmem:[#allocation4 + $0xac] sm:$0x1] %v7841
      %v7843 = vld [vmem:[%s7389 + $0x4] sm:$0xe]
      %v7844 = vld [vmem:[%s7389 + $0x8] sm:$0x3]
      %v7845 = vld [vmem:[%s7389 + $0x10] sm:$0xe]
      %v7846 = vld [vmem:[%s7389 + $0x14] sm:$0x3]
      %v7847 = vld [vmem:[%s7389 + $0x1c] sm:$0xe]
      %v7848 = vld [vmem:[%s7389 + $0x20] sm:$0x3]
      %v7849 = vld [vmem:[%s7389 + $0x28] sm:$0xe]
      %v7850 = vld [vmem:[%s7389 + $0x2c] sm:$0x3]
      %v7851 = vld [vmem:[%s7389 + $0x34] sm:$0xe]
      %v7852 = vld [vmem:[%s7389 + $0x38] sm:$0x3]
      %v7853 = vld [vmem:[%s7389 + $0x40] sm:$0xe]
      %v7854 = vld [vmem:[%s7389 + $0x44] sm:$0x3]
      %v7855 = vld [vmem:[%s7389 + $0x4c] sm:$0xe]
      %v7856 = vld [vmem:[%s7389 + $0x50] sm:$0x3]
      %v7857 = vld [vmem:[%s7389 + $0x58] sm:$0xe]
      %v7858 = vld [vmem:[%s7389 + $0x5c] sm:$0x3]
      %v7859 = vld [vmem:[%s7389 + $0x64] sm:$0xe]
      %v7860 = vld [vmem:[%s7389 + $0x68] sm:$0x3]
      %7862 = vst [vmem:[#allocation1] sm:$0xff] %v7843
      %7864 = vst [vmem:[#allocation1 + $0x20] sm:$0xff] %v7844
      %s7865 = scalar_lea.vmem [#allocation1], 1
      %v7866 = vld [vmem:[%s7865] ss:$4 sm:$0xff]
      %s7868 = scalar_lea.vmem [#allocation1], 2
      %v7869 = vld [vmem:[%s7868] ss:$4 sm:$0xff]
      %s7871 = scalar_lea.vmem [#allocation1], 3
      %v7872 = vld [vmem:[%s7871] ss:$4 sm:$0xff]
      %s7874 = scalar_lea.vmem [#allocation1], 32
      %v7875 = vld [vmem:[%s7874] ss:$4 sm:$0xff]
      %s7877 = scalar_lea.vmem [#allocation1], 33
      %v7878 = vld [vmem:[%s7877] ss:$4 sm:$0xff]
      %7881 = vst [vmem:[#allocation1] sm:$0xff] %v7845
      %7883 = vst [vmem:[#allocation1 + $0x20] sm:$0xff] %v7846
      %v7884 = vld [vmem:[%s7865] ss:$4 sm:$0xff]
      %v7886 = vld [vmem:[%s7868] ss:$4 sm:$0xff]
      %v7888 = vld [vmem:[%s7871] ss:$4 sm:$0xff]
      %v7890 = vld [vmem:[%s7874] ss:$4 sm:$0xff]
      %v7892 = vld [vmem:[%s7877] ss:$4 sm:$0xff]
      %7895 = vst [vmem:[#allocation1] sm:$0xff] %v7847
      %7897 = vst [vmem:[#allocation1 + $0x20] sm:$0xff] %v7848
      %v7898 = vld [vmem:[%s7865] ss:$4 sm:$0xff]
      %v7900 = vld [vmem:[%s7868] ss:$4 sm:$0xff]
      %v7902 = vld [vmem:[%s7871] ss:$4 sm:$0xff]
      %v7904 = vld [vmem:[%s7874] ss:$4 sm:$0xff]
      %v7906 = vld [vmem:[%s7877] ss:$4 sm:$0xff]
      %7909 = vst [vmem:[#allocation1] sm:$0xff] %v7849
      %7911 = vst [vmem:[#allocation1 + $0x20] sm:$0xff] %v7850
      %v7912 = vld [vmem:[%s7865] ss:$4 sm:$0xff]
      %v7914 = vld [vmem:[%s7868] ss:$4 sm:$0xff]
      %v7916 = vld [vmem:[%s7871] ss:$4 sm:$0xff]
      %v7918 = vld [vmem:[%s7874] ss:$4 sm:$0xff]
      %v7920 = vld [vmem:[%s7877] ss:$4 sm:$0xff]
      %7923 = vst [vmem:[#allocation1] sm:$0xff] %v7851
      %7925 = vst [vmem:[#allocation1 + $0x20] sm:$0xff] %v7852
      %v7926 = vld [vmem:[%s7865] ss:$4 sm:$0xff]
      %v7928 = vld [vmem:[%s7868] ss:$4 sm:$0xff]
      %v7930 = vld [vmem:[%s7871] ss:$4 sm:$0xff]
      %v7932 = vld [vmem:[%s7874] ss:$4 sm:$0xff]
      %v7934 = vld [vmem:[%s7877] ss:$4 sm:$0xff]
      %7937 = vst [vmem:[#allocation1] sm:$0xff] %v7853
      %7939 = vst [vmem:[#allocation1 + $0x20] sm:$0xff] %v7854
      %v7940 = vld [vmem:[%s7865] ss:$4 sm:$0xff]
      %v7942 = vld [vmem:[%s7868] ss:$4 sm:$0xff]
      %v7944 = vld [vmem:[%s7871] ss:$4 sm:$0xff]
      %v7946 = vld [vmem:[%s7874] ss:$4 sm:$0xff]
      %v7948 = vld [vmem:[%s7877] ss:$4 sm:$0xff]
      %7951 = vst [vmem:[#allocation1] sm:$0xff] %v7855
      %7953 = vst [vmem:[#allocation1 + $0x20] sm:$0xff] %v7856
      %v7954 = vld [vmem:[%s7865] ss:$4 sm:$0xff]
      %v7956 = vld [vmem:[%s7868] ss:$4 sm:$0xff]
      %v7958 = vld [vmem:[%s7871] ss:$4 sm:$0xff]
      %v7960 = vld [vmem:[%s7874] ss:$4 sm:$0xff]
      %v7962 = vld [vmem:[%s7877] ss:$4 sm:$0xff]
      %7965 = vst [vmem:[#allocation1] sm:$0xff] %v7857
      %7967 = vst [vmem:[#allocation1 + $0x20] sm:$0xff] %v7858
      %v7968 = vld [vmem:[%s7865] ss:$4 sm:$0xff]
      %v7970 = vld [vmem:[%s7868] ss:$4 sm:$0xff]
      %v7972 = vld [vmem:[%s7871] ss:$4 sm:$0xff]
      %v7974 = vld [vmem:[%s7874] ss:$4 sm:$0xff]
      %v7976 = vld [vmem:[%s7877] ss:$4 sm:$0xff]
      %7979 = vst [vmem:[#allocation1] sm:$0xff] %v7859
      %7981 = vst [vmem:[#allocation1 + $0x20] sm:$0xff] %v7860
      %v7982 = vld [vmem:[%s7865] ss:$4 sm:$0xff]
      %v7984 = vld [vmem:[%s7868] ss:$4 sm:$0xff]
      %v7986 = vld [vmem:[%s7871] ss:$4 sm:$0xff]
      %v7988 = vld [vmem:[%s7874] ss:$4 sm:$0xff]
      %v7990 = vld [vmem:[%s7877] ss:$4 sm:$0xff]
      %v7992 = vunpack.i.l.s16 %v7866
      %v7993 = vunpack.i.h.s16 %v7866
      %v7994 = vunpack.i.l.s16 %v7869
      %v7995 = vunpack.i.h.s16 %v7869
      %v7996 = vunpack.i.l.s16 %v7872
      %v7997 = vunpack.i.h.s16 %v7872
      %v7998 = vunpack.i.l.s16 %v7875
      %v7999 = vunpack.i.h.s16 %v7875
      %v8000 = vunpack.i.l.s16 %v7878
      %v8001 = vunpack.i.l.s16 %v7884
      %v8002 = vunpack.i.h.s16 %v7884
      %v8003 = vunpack.i.l.s16 %v7886
      %v8004 = vunpack.i.h.s16 %v7886
      %v8005 = vunpack.i.l.s16 %v7888
      %v8006 = vunpack.i.h.s16 %v7888
      %v8007 = vunpack.i.l.s16 %v7890
      %v8008 = vunpack.i.h.s16 %v7890
      %v8009 = vunpack.i.l.s16 %v7892
      %v8010 = vunpack.i.l.s16 %v7898
      %v8011 = vunpack.i.h.s16 %v7898
      %v8012 = vunpack.i.l.s16 %v7900
      %v8013 = vunpack.i.h.s16 %v7900
      %v8014 = vunpack.i.l.s16 %v7902
      %v8015 = vunpack.i.h.s16 %v7902
      %v8016 = vunpack.i.l.s16 %v7904
      %v8017 = vunpack.i.h.s16 %v7904
      %v8018 = vunpack.i.l.s16 %v7906
      %v8019 = vunpack.i.l.s16 %v7912
      %v8020 = vunpack.i.h.s16 %v7912
      %v8021 = vunpack.i.l.s16 %v7914
      %v8022 = vunpack.i.h.s16 %v7914
      %v8023 = vunpack.i.l.s16 %v7916
      %v8024 = vunpack.i.h.s16 %v7916
      %v8025 = vunpack.i.l.s16 %v7918
      %v8026 = vunpack.i.h.s16 %v7918
      %v8027 = vunpack.i.l.s16 %v7920
      %v8028 = vunpack.i.l.s16 %v7926
      %v8029 = vunpack.i.h.s16 %v7926
      %v8030 = vunpack.i.l.s16 %v7928
      %v8031 = vunpack.i.h.s16 %v7928
      %v8032 = vunpack.i.l.s16 %v7930
      %v8033 = vunpack.i.h.s16 %v7930
      %v8034 = vunpack.i.l.s16 %v7932
      %v8035 = vunpack.i.h.s16 %v7932
      %v8036 = vunpack.i.l.s16 %v7934
      %v8037 = vunpack.i.l.s16 %v7940
      %v8038 = vunpack.i.h.s16 %v7940
      %v8039 = vunpack.i.l.s16 %v7942
      %v8040 = vunpack.i.h.s16 %v7942
      %v8041 = vunpack.i.l.s16 %v7944
      %v8042 = vunpack.i.h.s16 %v7944
      %v8043 = vunpack.i.l.s16 %v7946
      %v8044 = vunpack.i.h.s16 %v7946
      %v8045 = vunpack.i.l.s16 %v7948
      %v8046 = vunpack.i.l.s16 %v7954
      %v8047 = vunpack.i.h.s16 %v7954
      %v8048 = vunpack.i.l.s16 %v7956
      %v8049 = vunpack.i.h.s16 %v7956
      %v8050 = vunpack.i.l.s16 %v7958
      %v8051 = vunpack.i.h.s16 %v7958
      %v8052 = vunpack.i.l.s16 %v7960
      %v8053 = vunpack.i.h.s16 %v7960
      %v8054 = vunpack.i.l.s16 %v7962
      %v8055 = vunpack.i.l.s16 %v7968
      %v8056 = vunpack.i.h.s16 %v7968
      %v8057 = vunpack.i.l.s16 %v7970
      %v8058 = vunpack.i.h.s16 %v7970
      %v8059 = vunpack.i.l.s16 %v7972
      %v8060 = vunpack.i.h.s16 %v7972
      %v8061 = vunpack.i.l.s16 %v7974
      %v8062 = vunpack.i.h.s16 %v7974
      %v8063 = vunpack.i.l.s16 %v7976
      %v8064 = vunpack.i.l.s16 %v7982
      %v8065 = vunpack.i.h.s16 %v7982
      %v8066 = vunpack.i.l.s16 %v7984
      %v8067 = vunpack.i.h.s16 %v7984
      %v8068 = vunpack.i.l.s16 %v7986
      %v8069 = vunpack.i.h.s16 %v7986
      %v8070 = vunpack.i.l.s16 %v7988
      %v8071 = vunpack.i.h.s16 %v7988
      %v8072 = vunpack.i.l.s16 %v7990
      %v8073 = vpack.i.b16 %v7993, %v7992
      %v8074 = vpack.i.b16 %v7995, %v7994
      %v8075 = vpack.i.b16 %v7997, %v7996
      %v8076 = vpack.i.b16 %v7999, %v7998
      %v8077 = vpack.i.b16 %v8001, %v8000
      %v8078 = vpack.i.b16 %v8003, %v8002
      %v8079 = vpack.i.b16 %v8005, %v8004
      %v8080 = vpack.i.b16 %v8007, %v8006
      %v8081 = vpack.i.b16 %v8009, %v8008
      %v8082 = vpack.i.b16 %v8011, %v8010
      %v8083 = vpack.i.b16 %v8013, %v8012
      %v8084 = vpack.i.b16 %v8015, %v8014
      %v8085 = vpack.i.b16 %v8017, %v8016
      %v8086 = vpack.i.b16 %v8019, %v8018
      %v8087 = vpack.i.b16 %v8021, %v8020
      %v8088 = vpack.i.b16 %v8023, %v8022
      %v8089 = vpack.i.b16 %v8025, %v8024
      %v8090 = vpack.i.b16 %v8027, %v8026
      %v8091 = vpack.i.b16 %v8029, %v8028
      %v8092 = vpack.i.b16 %v8031, %v8030
      %v8093 = vpack.i.b16 %v8033, %v8032
      %v8094 = vpack.i.b16 %v8035, %v8034
      %v8095 = vpack.i.b16 %v8037, %v8036
      %v8096 = vpack.i.b16 %v8039, %v8038
      %v8097 = vpack.i.b16 %v8041, %v8040
      %v8098 = vpack.i.b16 %v8043, %v8042
      %v8099 = vpack.i.b16 %v8045, %v8044
      %v8100 = vpack.i.b16 %v8047, %v8046
      %v8101 = vpack.i.b16 %v8049, %v8048
      %v8102 = vpack.i.b16 %v8051, %v8050
      %v8103 = vpack.i.b16 %v8053, %v8052
      %v8104 = vpack.i.b16 %v8055, %v8054
      %v8105 = vpack.i.b16 %v8057, %v8056
      %v8106 = vpack.i.b16 %v8059, %v8058
      %v8107 = vpack.i.b16 %v8061, %v8060
      %v8108 = vpack.i.b16 %v8063, %v8062
      %v8109 = vpack.i.b16 %v8065, %v8064
      %v8110 = vpack.i.b16 %v8067, %v8066
      %v8111 = vpack.i.b16 %v8069, %v8068
      %v8112 = vpack.i.b16 %v8071, %v8070
      %8115 = vst [vmem:[#allocation1] ss:$4 sm:$0xff] %v8073
      %s8117 = scalar_lea.vmem [#allocation1], 1
      %8118 = vst [vmem:[%s8117] ss:$4 sm:$0xff] %v8074
      %s8120 = scalar_lea.vmem [#allocation1], 2
      %8121 = vst [vmem:[%s8120] ss:$4 sm:$0xff] %v8075
      %s8123 = scalar_lea.vmem [#allocation1], 3
      %8124 = vst [vmem:[%s8123] ss:$4 sm:$0xff] %v8076
      %s8126 = scalar_lea.vmem [#allocation1], 32
      %8127 = vst [vmem:[%s8126] ss:$4 sm:$0xff] %v8077
      %s8129 = scalar_lea.vmem [#allocation1], 33
      %8130 = vst [vmem:[%s8129] ss:$4 sm:$0xff] %v8078
      %s8132 = scalar_lea.vmem [#allocation1], 34
      %8133 = vst [vmem:[%s8132] ss:$4 sm:$0xff] %v8079
      %s8135 = scalar_lea.vmem [#allocation1], 35
      %8136 = vst [vmem:[%s8135] ss:$4 sm:$0xff] %v8080
      %v8137 = vld [vmem:[#allocation1] sm:$0xff]
      %v8139 = vld [vmem:[#allocation1 + $0x20] sm:$0xff]
      %8142 = vst [vmem:[#allocation1] ss:$4 sm:$0xff] %v8081
      %8144 = vst [vmem:[%s8117] ss:$4 sm:$0xff] %v8082
      %8146 = vst [vmem:[%s8120] ss:$4 sm:$0xff] %v8083
      %8148 = vst [vmem:[%s8123] ss:$4 sm:$0xff] %v8084
      %8150 = vst [vmem:[%s8126] ss:$4 sm:$0xff] %v8085
      %8152 = vst [vmem:[%s8129] ss:$4 sm:$0xff] %v8086
      %8154 = vst [vmem:[%s8132] ss:$4 sm:$0xff] %v8087
      %8156 = vst [vmem:[%s8135] ss:$4 sm:$0xff] %v8088
      %v8157 = vld [vmem:[#allocation1] sm:$0xff]
      %v8159 = vld [vmem:[#allocation1 + $0x20] sm:$0xff]
      %8162 = vst [vmem:[#allocation1] ss:$4 sm:$0xff] %v8089
      %8164 = vst [vmem:[%s8117] ss:$4 sm:$0xff] %v8090
      %8166 = vst [vmem:[%s8120] ss:$4 sm:$0xff] %v8091
      %8168 = vst [vmem:[%s8123] ss:$4 sm:$0xff] %v8092
      %8170 = vst [vmem:[%s8126] ss:$4 sm:$0xff] %v8093
      %8172 = vst [vmem:[%s8129] ss:$4 sm:$0xff] %v8094
      %8174 = vst [vmem:[%s8132] ss:$4 sm:$0xff] %v8095
      %8176 = vst [vmem:[%s8135] ss:$4 sm:$0xff] %v8096
      %v8177 = vld [vmem:[#allocation1] sm:$0xff]
      %v8179 = vld [vmem:[#allocation1 + $0x20] sm:$0xff]
      %8182 = vst [vmem:[#allocation1] ss:$4 sm:$0xff] %v8097
      %8184 = vst [vmem:[%s8117] ss:$4 sm:$0xff] %v8098
      %8186 = vst [vmem:[%s8120] ss:$4 sm:$0xff] %v8099
      %8188 = vst [vmem:[%s8123] ss:$4 sm:$0xff] %v8100
      %8190 = vst [vmem:[%s8126] ss:$4 sm:$0xff] %v8101
      %8192 = vst [vmem:[%s8129] ss:$4 sm:$0xff] %v8102
      %8194 = vst [vmem:[%s8132] ss:$4 sm:$0xff] %v8103
      %8196 = vst [vmem:[%s8135] ss:$4 sm:$0xff] %v8104
      %v8197 = vld [vmem:[#allocation1] sm:$0xff]
      %v8199 = vld [vmem:[#allocation1 + $0x20] sm:$0xff]
      %8202 = vst [vmem:[#allocation1] ss:$4 sm:$0xff] %v8105
      %8204 = vst [vmem:[%s8117] ss:$4 sm:$0xff] %v8106
      %8206 = vst [vmem:[%s8120] ss:$4 sm:$0xff] %v8107
      %8208 = vst [vmem:[%s8123] ss:$4 sm:$0xff] %v8108
      %8210 = vst [vmem:[%s8126] ss:$4 sm:$0xff] %v8109
      %8212 = vst [vmem:[%s8129] ss:$4 sm:$0xff] %v8110
      %8214 = vst [vmem:[%s8132] ss:$4 sm:$0xff] %v8111
      %8216 = vst [vmem:[%s8135] ss:$4 sm:$0xff] %v8112
      %v8217 = vld [vmem:[#allocation1] sm:$0xff]
      %v8219 = vld [vmem:[#allocation1 + $0x20] sm:$0xff]
      %8222 = vst [vmem:[#allocation1] ss:$4 sm:$0xff] %v8072
      %v8223 = vld [vmem:[#allocation1] sm:$0xff]
      %8225 = vrot.lane.b32.xlu0 %v8137, 32
      %v8226 = vpop.permute.xlu0 %8225
      %8227 = vrot.lane.b32.xlu0 %v8139, 32
      %v8228 = vpop.permute.xlu0 %8227
      %8229 = vrot.lane.b32.xlu0 %v8157, 32
      %v8230 = vpop.permute.xlu0 %8229
      %8231 = vrot.lane.b32.xlu0 %v8159, 32
      %v8232 = vpop.permute.xlu0 %8231
      %8233 = vrot.lane.b32.xlu0 %v8177, 32
      %v8234 = vpop.permute.xlu0 %8233
      %8235 = vrot.lane.b32.xlu0 %v8179, 32
      %v8236 = vpop.permute.xlu0 %8235
      %8237 = vrot.lane.b32.xlu0 %v8197, 32
      %v8238 = vpop.permute.xlu0 %8237
      %8239 = vrot.lane.b32.xlu0 %v8199, 32
      %v8240 = vpop.permute.xlu0 %8239
      %8241 = vrot.lane.b32.xlu0 %v8217, 32
      %v8242 = vpop.permute.xlu0 %8241
      %8243 = vrot.lane.b32.xlu0 %v8219, 32
      %v8244 = vpop.permute.xlu0 %8243
      %8245 = vrot.lane.b32.xlu0 %v8223, 32
      %v8246 = vpop.permute.xlu0 %8245
      %8258 = vst.msk [vmem:[#allocation4 + $0xc] sm:$0xf] %vm2862, %v8226
      %8259 = vst.msk [vmem:[#allocation4 + $0x1c] sm:$0xf] %vm2862, %v8228
      %8260 = vst.msk [vmem:[#allocation4 + $0x2c] sm:$0xf] %vm2862, %v8230
      %8261 = vst.msk [vmem:[#allocation4 + $0x3c] sm:$0xf] %vm2862, %v8232
      %8262 = vst.msk [vmem:[#allocation4 + $0x4c] sm:$0xf] %vm2862, %v8234
      %8263 = vst.msk [vmem:[#allocation4 + $0x5c] sm:$0xf] %vm2862, %v8236
      %8264 = vst.msk [vmem:[#allocation4 + $0x6c] sm:$0xf] %vm2862, %v8238
      %8265 = vst.msk [vmem:[#allocation4 + $0x7c] sm:$0xf] %vm2862, %v8240
      %8266 = vst.msk [vmem:[#allocation4 + $0x8c] sm:$0xf] %vm2862, %v8242
      %8267 = vst.msk [vmem:[#allocation4 + $0x9c] sm:$0xf] %vm2862, %v8244
      %v8268 = vld [vmem:[#allocation4 + $0xac] sm:$0x1]
      %v8269 = vsel %vm2874, %v8246, %v8268
      %8270 = vst [vmem:[#allocation4 + $0xac] sm:$0x1] %v8269
      %v8271 = vld [vmem:[%s7389] sm:$0xf]
      %v8272 = vld [vmem:[%s7389 + $0x4] sm:$0x1]
      %v8273 = vld [vmem:[%s7389 + $0xc] sm:$0xf]
      %v8274 = vld [vmem:[%s7389 + $0x10] sm:$0x1]
      %v8275 = vld [vmem:[%s7389 + $0x18] sm:$0xf]
      %v8276 = vld [vmem:[%s7389 + $0x1c] sm:$0x1]
      %v8277 = vld [vmem:[%s7389 + $0x24] sm:$0xf]
      %v8278 = vld [vmem:[%s7389 + $0x28] sm:$0x1]
      %v8279 = vld [vmem:[%s7389 + $0x30] sm:$0xf]
      %v8280 = vld [vmem:[%s7389 + $0x34] sm:$0x1]
      %v8281 = vld [vmem:[%s7389 + $0x3c] sm:$0xf]
      %v8282 = vld [vmem:[%s7389 + $0x40] sm:$0x1]
      %v8283 = vld [vmem:[%s7389 + $0x48] sm:$0xf]
      %v8284 = vld [vmem:[%s7389 + $0x4c] sm:$0x1]
      %v8285 = vld [vmem:[%s7389 + $0x54] sm:$0xf]
      %v8286 = vld [vmem:[%s7389 + $0x58] sm:$0x1]
      %v8287 = vld [vmem:[%s7389 + $0x60] sm:$0xf]
      %v8288 = vld [vmem:[%s7389 + $0x64] sm:$0x1]
      %v8307 = vrot.slane %v8271, 3
      %v8308 = vrot.slane %v8272, 3
      %v8309 = vrot.slane %v8273, 3
      %v8310 = vrot.slane %v8274, 3
      %v8311 = vrot.slane %v8275, 3
      %v8312 = vrot.slane %v8276, 3
      %v8313 = vrot.slane %v8277, 3
      %v8314 = vrot.slane %v8278, 3
      %v8315 = vrot.slane %v8279, 3
      %v8316 = vrot.slane %v8280, 3
      %v8317 = vrot.slane %v8281, 3
      %v8318 = vrot.slane %v8282, 3
      %v8319 = vrot.slane %v8283, 3
      %v8320 = vrot.slane %v8284, 3
      %v8321 = vrot.slane %v8285, 3
      %v8322 = vrot.slane %v8286, 3
      %v8323 = vrot.slane %v8287, 3
      %v8324 = vrot.slane %v8288, 3
      %v8327 = vsel %vm2041, %v8271, %v8307
      %v8329 = vsel %vm2046, %v8271, %v8307
      %v8331 = vrot.slane %v8329, 1
      %v8332 = vsel %vm2050, %v8271, %v8307
      %v8334 = vrot.slane %v8332, 2
      %v8335 = vsel %vm2054, %v8271, %v8307
      %v8337 = vrot.slane %v8335, 3
      %v8340 = vsel %vm2041, %v8272, %v8308
      %v8344 = vsel %vm2041, %v8273, %v8309
      %v8346 = vsel %vm2046, %v8273, %v8309
      %v8348 = vrot.slane %v8346, 1
      %v8349 = vsel %vm2050, %v8273, %v8309
      %v8351 = vrot.slane %v8349, 2
      %v8352 = vsel %vm2054, %v8273, %v8309
      %v8354 = vrot.slane %v8352, 3
      %v8357 = vsel %vm2041, %v8274, %v8310
      %v8361 = vsel %vm2041, %v8275, %v8311
      %v8363 = vsel %vm2046, %v8275, %v8311
      %v8365 = vrot.slane %v8363, 1
      %v8366 = vsel %vm2050, %v8275, %v8311
      %v8368 = vrot.slane %v8366, 2
      %v8369 = vsel %vm2054, %v8275, %v8311
      %v8371 = vrot.slane %v8369, 3
      %v8374 = vsel %vm2041, %v8276, %v8312
      %v8378 = vsel %vm2041, %v8277, %v8313
      %v8380 = vsel %vm2046, %v8277, %v8313
      %v8382 = vrot.slane %v8380, 1
      %v8383 = vsel %vm2050, %v8277, %v8313
      %v8385 = vrot.slane %v8383, 2
      %v8386 = vsel %vm2054, %v8277, %v8313
      %v8388 = vrot.slane %v8386, 3
      %v8391 = vsel %vm2041, %v8278, %v8314
      %v8395 = vsel %vm2041, %v8279, %v8315
      %v8397 = vsel %vm2046, %v8279, %v8315
      %v8399 = vrot.slane %v8397, 1
      %v8400 = vsel %vm2050, %v8279, %v8315
      %v8402 = vrot.slane %v8400, 2
      %v8403 = vsel %vm2054, %v8279, %v8315
      %v8405 = vrot.slane %v8403, 3
      %v8408 = vsel %vm2041, %v8280, %v8316
      %v8412 = vsel %vm2041, %v8281, %v8317
      %v8414 = vsel %vm2046, %v8281, %v8317
      %v8416 = vrot.slane %v8414, 1
      %v8417 = vsel %vm2050, %v8281, %v8317
      %v8419 = vrot.slane %v8417, 2
      %v8420 = vsel %vm2054, %v8281, %v8317
      %v8422 = vrot.slane %v8420, 3
      %v8425 = vsel %vm2041, %v8282, %v8318
      %v8429 = vsel %vm2041, %v8283, %v8319
      %v8431 = vsel %vm2046, %v8283, %v8319
      %v8433 = vrot.slane %v8431, 1
      %v8434 = vsel %vm2050, %v8283, %v8319
      %v8436 = vrot.slane %v8434, 2
      %v8437 = vsel %vm2054, %v8283, %v8319
      %v8439 = vrot.slane %v8437, 3
      %v8442 = vsel %vm2041, %v8284, %v8320
      %v8446 = vsel %vm2041, %v8285, %v8321
      %v8448 = vsel %vm2046, %v8285, %v8321
      %v8450 = vrot.slane %v8448, 1
      %v8451 = vsel %vm2050, %v8285, %v8321
      %v8453 = vrot.slane %v8451, 2
      %v8454 = vsel %vm2054, %v8285, %v8321
      %v8456 = vrot.slane %v8454, 3
      %v8459 = vsel %vm2041, %v8286, %v8322
      %v8463 = vsel %vm2041, %v8287, %v8323
      %v8465 = vsel %vm2046, %v8287, %v8323
      %v8467 = vrot.slane %v8465, 1
      %v8468 = vsel %vm2050, %v8287, %v8323
      %v8470 = vrot.slane %v8468, 2
      %v8471 = vsel %vm2054, %v8287, %v8323
      %v8473 = vrot.slane %v8471, 3
      %v8476 = vsel %vm2041, %v8288, %v8324
      %v8478 = vunpack.i.h.s16 %v8327
      %v8479 = vunpack.i.l.s16 %v8331
      %v8480 = vunpack.i.h.s16 %v8331
      %v8481 = vunpack.i.l.s16 %v8334
      %v8482 = vunpack.i.h.s16 %v8334
      %v8483 = vunpack.i.l.s16 %v8337
      %v8484 = vunpack.i.h.s16 %v8337
      %v8485 = vunpack.i.l.s16 %v8340
      %v8486 = vunpack.i.h.s16 %v8340
      %v8487 = vunpack.i.h.s16 %v8344
      %v8488 = vunpack.i.l.s16 %v8348
      %v8489 = vunpack.i.h.s16 %v8348
      %v8490 = vunpack.i.l.s16 %v8351
      %v8491 = vunpack.i.h.s16 %v8351
      %v8492 = vunpack.i.l.s16 %v8354
      %v8493 = vunpack.i.h.s16 %v8354
      %v8494 = vunpack.i.l.s16 %v8357
      %v8495 = vunpack.i.h.s16 %v8357
      %v8496 = vunpack.i.h.s16 %v8361
      %v8497 = vunpack.i.l.s16 %v8365
      %v8498 = vunpack.i.h.s16 %v8365
      %v8499 = vunpack.i.l.s16 %v8368
      %v8500 = vunpack.i.h.s16 %v8368
      %v8501 = vunpack.i.l.s16 %v8371
      %v8502 = vunpack.i.h.s16 %v8371
      %v8503 = vunpack.i.l.s16 %v8374
      %v8504 = vunpack.i.h.s16 %v8374
      %v8505 = vunpack.i.h.s16 %v8378
      %v8506 = vunpack.i.l.s16 %v8382
      %v8507 = vunpack.i.h.s16 %v8382
      %v8508 = vunpack.i.l.s16 %v8385
      %v8509 = vunpack.i.h.s16 %v8385
      %v8510 = vunpack.i.l.s16 %v8388
      %v8511 = vunpack.i.h.s16 %v8388
      %v8512 = vunpack.i.l.s16 %v8391
      %v8513 = vunpack.i.h.s16 %v8391
      %v8514 = vunpack.i.h.s16 %v8395
      %v8515 = vunpack.i.l.s16 %v8399
      %v8516 = vunpack.i.h.s16 %v8399
      %v8517 = vunpack.i.l.s16 %v8402
      %v8518 = vunpack.i.h.s16 %v8402
      %v8519 = vunpack.i.l.s16 %v8405
      %v8520 = vunpack.i.h.s16 %v8405
      %v8521 = vunpack.i.l.s16 %v8408
      %v8522 = vunpack.i.h.s16 %v8408
      %v8523 = vunpack.i.h.s16 %v8412
      %v8524 = vunpack.i.l.s16 %v8416
      %v8525 = vunpack.i.h.s16 %v8416
      %v8526 = vunpack.i.l.s16 %v8419
      %v8527 = vunpack.i.h.s16 %v8419
      %v8528 = vunpack.i.l.s16 %v8422
      %v8529 = vunpack.i.h.s16 %v8422
      %v8530 = vunpack.i.l.s16 %v8425
      %v8531 = vunpack.i.h.s16 %v8425
      %v8532 = vunpack.i.h.s16 %v8429
      %v8533 = vunpack.i.l.s16 %v8433
      %v8534 = vunpack.i.h.s16 %v8433
      %v8535 = vunpack.i.l.s16 %v8436
      %v8536 = vunpack.i.h.s16 %v8436
      %v8537 = vunpack.i.l.s16 %v8439
      %v8538 = vunpack.i.h.s16 %v8439
      %v8539 = vunpack.i.l.s16 %v8442
      %v8540 = vunpack.i.h.s16 %v8442
      %v8541 = vunpack.i.h.s16 %v8446
      %v8542 = vunpack.i.l.s16 %v8450
      %v8543 = vunpack.i.h.s16 %v8450
      %v8544 = vunpack.i.l.s16 %v8453
      %v8545 = vunpack.i.h.s16 %v8453
      %v8546 = vunpack.i.l.s16 %v8456
      %v8547 = vunpack.i.h.s16 %v8456
      %v8548 = vunpack.i.l.s16 %v8459
      %v8549 = vunpack.i.h.s16 %v8459
      %v8550 = vunpack.i.h.s16 %v8463
      %v8551 = vunpack.i.l.s16 %v8467
      %v8552 = vunpack.i.h.s16 %v8467
      %v8553 = vunpack.i.l.s16 %v8470
      %v8554 = vunpack.i.h.s16 %v8470
      %v8555 = vunpack.i.l.s16 %v8473
      %v8556 = vunpack.i.h.s16 %v8473
      %v8557 = vunpack.i.l.s16 %v8476
      %v8558 = vunpack.i.h.s16 %v8476
      %v8559 = vpack.i.b16 %v8479, %v8478
      %v8560 = vpack.i.b16 %v8481, %v8480
      %v8561 = vpack.i.b16 %v8483, %v8482
      %v8562 = vpack.i.b16 %v8485, %v8484
      %v8563 = vpack.i.b16 %v8487, %v8486
      %v8564 = vpack.i.b16 %v8489, %v8488
      %v8565 = vpack.i.b16 %v8491, %v8490
      %v8566 = vpack.i.b16 %v8493, %v8492
      %v8567 = vpack.i.b16 %v8495, %v8494
      %v8568 = vpack.i.b16 %v8497, %v8496
      %v8569 = vpack.i.b16 %v8499, %v8498
      %v8570 = vpack.i.b16 %v8501, %v8500
      %v8571 = vpack.i.b16 %v8503, %v8502
      %v8572 = vpack.i.b16 %v8505, %v8504
      %v8573 = vpack.i.b16 %v8507, %v8506
      %v8574 = vpack.i.b16 %v8509, %v8508
      %v8575 = vpack.i.b16 %v8511, %v8510
      %v8576 = vpack.i.b16 %v8513, %v8512
      %v8577 = vpack.i.b16 %v8515, %v8514
      %v8578 = vpack.i.b16 %v8517, %v8516
      %v8579 = vpack.i.b16 %v8519, %v8518
      %v8580 = vpack.i.b16 %v8521, %v8520
      %v8581 = vpack.i.b16 %v8523, %v8522
      %v8582 = vpack.i.b16 %v8525, %v8524
      %v8583 = vpack.i.b16 %v8527, %v8526
      %v8584 = vpack.i.b16 %v8529, %v8528
      %v8585 = vpack.i.b16 %v8531, %v8530
      %v8586 = vpack.i.b16 %v8533, %v8532
      %v8587 = vpack.i.b16 %v8535, %v8534
      %v8588 = vpack.i.b16 %v8537, %v8536
      %v8589 = vpack.i.b16 %v8539, %v8538
      %v8590 = vpack.i.b16 %v8541, %v8540
      %v8591 = vpack.i.b16 %v8543, %v8542
      %v8592 = vpack.i.b16 %v8545, %v8544
      %v8593 = vpack.i.b16 %v8547, %v8546
      %v8594 = vpack.i.b16 %v8549, %v8548
      %v8595 = vpack.i.b16 %v8551, %v8550
      %v8596 = vpack.i.b16 %v8553, %v8552
      %v8597 = vpack.i.b16 %v8555, %v8554
      %v8598 = vpack.i.b16 %v8557, %v8556
      %8601 = vst [vmem:[#allocation1] ss:$4 sm:$0xff] %v8559
      %s8603 = scalar_lea.vmem [#allocation1], 1
      %8604 = vst [vmem:[%s8603] ss:$4 sm:$0xff] %v8560
      %s8606 = scalar_lea.vmem [#allocation1], 2
      %8607 = vst [vmem:[%s8606] ss:$4 sm:$0xff] %v8561
      %s8609 = scalar_lea.vmem [#allocation1], 3
      %8610 = vst [vmem:[%s8609] ss:$4 sm:$0xff] %v8562
      %s8612 = scalar_lea.vmem [#allocation1], 32
      %8613 = vst [vmem:[%s8612] ss:$4 sm:$0xff] %v8563
      %s8615 = scalar_lea.vmem [#allocation1], 33
      %8616 = vst [vmem:[%s8615] ss:$4 sm:$0xff] %v8564
      %s8618 = scalar_lea.vmem [#allocation1], 34
      %8619 = vst [vmem:[%s8618] ss:$4 sm:$0xff] %v8565
      %s8621 = scalar_lea.vmem [#allocation1], 35
      %8622 = vst [vmem:[%s8621] ss:$4 sm:$0xff] %v8566
      %v8623 = vld [vmem:[#allocation1] sm:$0xff]
      %v8625 = vld [vmem:[#allocation1 + $0x20] sm:$0xff]
      %8628 = vst [vmem:[#allocation1] ss:$4 sm:$0xff] %v8567
      %8630 = vst [vmem:[%s8603] ss:$4 sm:$0xff] %v8568
      %8632 = vst [vmem:[%s8606] ss:$4 sm:$0xff] %v8569
      %8634 = vst [vmem:[%s8609] ss:$4 sm:$0xff] %v8570
      %8636 = vst [vmem:[%s8612] ss:$4 sm:$0xff] %v8571
      %8638 = vst [vmem:[%s8615] ss:$4 sm:$0xff] %v8572
      %8640 = vst [vmem:[%s8618] ss:$4 sm:$0xff] %v8573
      %8642 = vst [vmem:[%s8621] ss:$4 sm:$0xff] %v8574
      %v8643 = vld [vmem:[#allocation1] sm:$0xff]
      %v8645 = vld [vmem:[#allocation1 + $0x20] sm:$0xff]
      %8648 = vst [vmem:[#allocation1] ss:$4 sm:$0xff] %v8575
      %8650 = vst [vmem:[%s8603] ss:$4 sm:$0xff] %v8576
      %8652 = vst [vmem:[%s8606] ss:$4 sm:$0xff] %v8577
      %8654 = vst [vmem:[%s8609] ss:$4 sm:$0xff] %v8578
      %8656 = vst [vmem:[%s8612] ss:$4 sm:$0xff] %v8579
      %8658 = vst [vmem:[%s8615] ss:$4 sm:$0xff] %v8580
      %8660 = vst [vmem:[%s8618] ss:$4 sm:$0xff] %v8581
      %8662 = vst [vmem:[%s8621] ss:$4 sm:$0xff] %v8582
      %v8663 = vld [vmem:[#allocation1] sm:$0xff]
      %v8665 = vld [vmem:[#allocation1 + $0x20] sm:$0xff]
      %8668 = vst [vmem:[#allocation1] ss:$4 sm:$0xff] %v8583
      %8670 = vst [vmem:[%s8603] ss:$4 sm:$0xff] %v8584
      %8672 = vst [vmem:[%s8606] ss:$4 sm:$0xff] %v8585
      %8674 = vst [vmem:[%s8609] ss:$4 sm:$0xff] %v8586
      %8676 = vst [vmem:[%s8612] ss:$4 sm:$0xff] %v8587
      %8678 = vst [vmem:[%s8615] ss:$4 sm:$0xff] %v8588
      %8680 = vst [vmem:[%s8618] ss:$4 sm:$0xff] %v8589
      %8682 = vst [vmem:[%s8621] ss:$4 sm:$0xff] %v8590
      %v8683 = vld [vmem:[#allocation1] sm:$0xff]
      %v8685 = vld [vmem:[#allocation1 + $0x20] sm:$0xff]
      %8688 = vst [vmem:[#allocation1] ss:$4 sm:$0xff] %v8591
      %8690 = vst [vmem:[%s8603] ss:$4 sm:$0xff] %v8592
      %8692 = vst [vmem:[%s8606] ss:$4 sm:$0xff] %v8593
      %8694 = vst [vmem:[%s8609] ss:$4 sm:$0xff] %v8594
      %8696 = vst [vmem:[%s8612] ss:$4 sm:$0xff] %v8595
      %8698 = vst [vmem:[%s8615] ss:$4 sm:$0xff] %v8596
      %8700 = vst [vmem:[%s8618] ss:$4 sm:$0xff] %v8597
      %8702 = vst [vmem:[%s8621] ss:$4 sm:$0xff] %v8598
      %v8703 = vld [vmem:[#allocation1] sm:$0xff]
      %v8705 = vld [vmem:[#allocation1 + $0x20] sm:$0xff]
      %8708 = vst [vmem:[#allocation1] ss:$4 sm:$0xff] %v8558
      %v8709 = vld [vmem:[#allocation1] sm:$0xff]
      %8711 = vrot.lane.b32.xlu0 %v8623, 64
      %v8712 = vpop.permute.xlu0 %8711
      %8713 = vrot.lane.b32.xlu0 %v8625, 64
      %v8714 = vpop.permute.xlu0 %8713
      %8715 = vrot.lane.b32.xlu0 %v8643, 64
      %v8716 = vpop.permute.xlu0 %8715
      %8717 = vrot.lane.b32.xlu0 %v8645, 64
      %v8718 = vpop.permute.xlu0 %8717
      %8719 = vrot.lane.b32.xlu0 %v8663, 64
      %v8720 = vpop.permute.xlu0 %8719
      %8721 = vrot.lane.b32.xlu0 %v8665, 64
      %v8722 = vpop.permute.xlu0 %8721
      %8723 = vrot.lane.b32.xlu0 %v8683, 64
      %v8724 = vpop.permute.xlu0 %8723
      %8725 = vrot.lane.b32.xlu0 %v8685, 64
      %v8726 = vpop.permute.xlu0 %8725
      %8727 = vrot.lane.b32.xlu0 %v8703, 64
      %v8728 = vpop.permute.xlu0 %8727
      %8729 = vrot.lane.b32.xlu0 %v8705, 64
      %v8730 = vpop.permute.xlu0 %8729
      %8731 = vrot.lane.b32.xlu0 %v8709, 64
      %v8732 = vpop.permute.xlu0 %8731
      %8744 = vst.msk [vmem:[#allocation4 + $0xc] sm:$0xf] %vm3351, %v8712
      %8745 = vst.msk [vmem:[#allocation4 + $0x1c] sm:$0xf] %vm3351, %v8714
      %8746 = vst.msk [vmem:[#allocation4 + $0x2c] sm:$0xf] %vm3351, %v8716
      %8747 = vst.msk [vmem:[#allocation4 + $0x3c] sm:$0xf] %vm3351, %v8718
      %8748 = vst.msk [vmem:[#allocation4 + $0x4c] sm:$0xf] %vm3351, %v8720
      %8749 = vst.msk [vmem:[#allocation4 + $0x5c] sm:$0xf] %vm3351, %v8722
      %8750 = vst.msk [vmem:[#allocation4 + $0x6c] sm:$0xf] %vm3351, %v8724
      %8751 = vst.msk [vmem:[#allocation4 + $0x7c] sm:$0xf] %vm3351, %v8726
      %8752 = vst.msk [vmem:[#allocation4 + $0x8c] sm:$0xf] %vm3351, %v8728
      %8753 = vst.msk [vmem:[#allocation4 + $0x9c] sm:$0xf] %vm3351, %v8730
      %v8754 = vld [vmem:[#allocation4 + $0xac] sm:$0x1]
      %v8755 = vsel %vm3363, %v8732, %v8754
      %8756 = vst [vmem:[#allocation4 + $0xac] sm:$0x1] %v8755
      %v8757 = vld [vmem:[%s7389 + $0x4] sm:$0xe]
      %v8758 = vld [vmem:[%s7389 + $0x8] sm:$0x3]
      %v8759 = vld [vmem:[%s7389 + $0x10] sm:$0xe]
      %v8760 = vld [vmem:[%s7389 + $0x14] sm:$0x3]
      %v8761 = vld [vmem:[%s7389 + $0x1c] sm:$0xe]
      %v8762 = vld [vmem:[%s7389 + $0x20] sm:$0x3]
      %v8763 = vld [vmem:[%s7389 + $0x28] sm:$0xe]
      %v8764 = vld [vmem:[%s7389 + $0x2c] sm:$0x3]
      %v8765 = vld [vmem:[%s7389 + $0x34] sm:$0xe]
      %v8766 = vld [vmem:[%s7389 + $0x38] sm:$0x3]
      %v8767 = vld [vmem:[%s7389 + $0x40] sm:$0xe]
      %v8768 = vld [vmem:[%s7389 + $0x44] sm:$0x3]
      %v8769 = vld [vmem:[%s7389 + $0x4c] sm:$0xe]
      %v8770 = vld [vmem:[%s7389 + $0x50] sm:$0x3]
      %v8771 = vld [vmem:[%s7389 + $0x58] sm:$0xe]
      %v8772 = vld [vmem:[%s7389 + $0x5c] sm:$0x3]
      %v8773 = vld [vmem:[%s7389 + $0x64] sm:$0xe]
      %v8774 = vld [vmem:[%s7389 + $0x68] sm:$0x3]
      %8776 = vst [vmem:[#allocation1] sm:$0xff] %v8757
      %8778 = vst [vmem:[#allocation1 + $0x20] sm:$0xff] %v8758
      %s8779 = scalar_lea.vmem [#allocation1], 1
      %v8780 = vld [vmem:[%s8779] ss:$4 sm:$0xff]
      %s8782 = scalar_lea.vmem [#allocation1], 2
      %v8783 = vld [vmem:[%s8782] ss:$4 sm:$0xff]
      %s8785 = scalar_lea.vmem [#allocation1], 3
      %v8786 = vld [vmem:[%s8785] ss:$4 sm:$0xff]
      %s8788 = scalar_lea.vmem [#allocation1], 32
      %v8789 = vld [vmem:[%s8788] ss:$4 sm:$0xff]
      %s8791 = scalar_lea.vmem [#allocation1], 33
      %v8792 = vld [vmem:[%s8791] ss:$4 sm:$0xff]
      %8795 = vst [vmem:[#allocation1] sm:$0xff] %v8759
      %8797 = vst [vmem:[#allocation1 + $0x20] sm:$0xff] %v8760
      %v8798 = vld [vmem:[%s8779] ss:$4 sm:$0xff]
      %v8800 = vld [vmem:[%s8782] ss:$4 sm:$0xff]
      %v8802 = vld [vmem:[%s8785] ss:$4 sm:$0xff]
      %v8804 = vld [vmem:[%s8788] ss:$4 sm:$0xff]
      %v8806 = vld [vmem:[%s8791] ss:$4 sm:$0xff]
      %8809 = vst [vmem:[#allocation1] sm:$0xff] %v8761
      %8811 = vst [vmem:[#allocation1 + $0x20] sm:$0xff] %v8762
      %v8812 = vld [vmem:[%s8779] ss:$4 sm:$0xff]
      %v8814 = vld [vmem:[%s8782] ss:$4 sm:$0xff]
      %v8816 = vld [vmem:[%s8785] ss:$4 sm:$0xff]
      %v8818 = vld [vmem:[%s8788] ss:$4 sm:$0xff]
      %v8820 = vld [vmem:[%s8791] ss:$4 sm:$0xff]
      %8823 = vst [vmem:[#allocation1] sm:$0xff] %v8763
      %8825 = vst [vmem:[#allocation1 + $0x20] sm:$0xff] %v8764
      %v8826 = vld [vmem:[%s8779] ss:$4 sm:$0xff]
      %v8828 = vld [vmem:[%s8782] ss:$4 sm:$0xff]
      %v8830 = vld [vmem:[%s8785] ss:$4 sm:$0xff]
      %v8832 = vld [vmem:[%s8788] ss:$4 sm:$0xff]
      %v8834 = vld [vmem:[%s8791] ss:$4 sm:$0xff]
      %8837 = vst [vmem:[#allocation1] sm:$0xff] %v8765
      %8839 = vst [vmem:[#allocation1 + $0x20] sm:$0xff] %v8766
      %v8840 = vld [vmem:[%s8779] ss:$4 sm:$0xff]
      %v8842 = vld [vmem:[%s8782] ss:$4 sm:$0xff]
      %v8844 = vld [vmem:[%s8785] ss:$4 sm:$0xff]
      %v8846 = vld [vmem:[%s8788] ss:$4 sm:$0xff]
      %v8848 = vld [vmem:[%s8791] ss:$4 sm:$0xff]
      %8851 = vst [vmem:[#allocation1] sm:$0xff] %v8767
      %8853 = vst [vmem:[#allocation1 + $0x20] sm:$0xff] %v8768
      %v8854 = vld [vmem:[%s8779] ss:$4 sm:$0xff]
      %v8856 = vld [vmem:[%s8782] ss:$4 sm:$0xff]
      %v8858 = vld [vmem:[%s8785] ss:$4 sm:$0xff]
      %v8860 = vld [vmem:[%s8788] ss:$4 sm:$0xff]
      %v8862 = vld [vmem:[%s8791] ss:$4 sm:$0xff]
      %8865 = vst [vmem:[#allocation1] sm:$0xff] %v8769
      %8867 = vst [vmem:[#allocation1 + $0x20] sm:$0xff] %v8770
      %v8868 = vld [vmem:[%s8779] ss:$4 sm:$0xff]
      %v8870 = vld [vmem:[%s8782] ss:$4 sm:$0xff]
      %v8872 = vld [vmem:[%s8785] ss:$4 sm:$0xff]
      %v8874 = vld [vmem:[%s8788] ss:$4 sm:$0xff]
      %v8876 = vld [vmem:[%s8791] ss:$4 sm:$0xff]
      %8879 = vst [vmem:[#allocation1] sm:$0xff] %v8771
      %8881 = vst [vmem:[#allocation1 + $0x20] sm:$0xff] %v8772
      %v8882 = vld [vmem:[%s8779] ss:$4 sm:$0xff]
      %v8884 = vld [vmem:[%s8782] ss:$4 sm:$0xff]
      %v8886 = vld [vmem:[%s8785] ss:$4 sm:$0xff]
      %v8888 = vld [vmem:[%s8788] ss:$4 sm:$0xff]
      %v8890 = vld [vmem:[%s8791] ss:$4 sm:$0xff]
      %8893 = vst [vmem:[#allocation1] sm:$0xff] %v8773
      %8895 = vst [vmem:[#allocation1 + $0x20] sm:$0xff] %v8774
      %v8896 = vld [vmem:[%s8779] ss:$4 sm:$0xff]
      %v8898 = vld [vmem:[%s8782] ss:$4 sm:$0xff]
      %v8900 = vld [vmem:[%s8785] ss:$4 sm:$0xff]
      %v8902 = vld [vmem:[%s8788] ss:$4 sm:$0xff]
      %v8904 = vld [vmem:[%s8791] ss:$4 sm:$0xff]
      %v8906 = vunpack.i.h.s16 %v8780
      %v8907 = vunpack.i.l.s16 %v8783
      %v8908 = vunpack.i.h.s16 %v8783
      %v8909 = vunpack.i.l.s16 %v8786
      %v8910 = vunpack.i.h.s16 %v8786
      %v8911 = vunpack.i.l.s16 %v8789
      %v8912 = vunpack.i.h.s16 %v8789
      %v8913 = vunpack.i.l.s16 %v8792
      %v8914 = vunpack.i.h.s16 %v8792
      %v8915 = vunpack.i.h.s16 %v8798
      %v8916 = vunpack.i.l.s16 %v8800
      %v8917 = vunpack.i.h.s16 %v8800
      %v8918 = vunpack.i.l.s16 %v8802
      %v8919 = vunpack.i.h.s16 %v8802
      %v8920 = vunpack.i.l.s16 %v8804
      %v8921 = vunpack.i.h.s16 %v8804
      %v8922 = vunpack.i.l.s16 %v8806
      %v8923 = vunpack.i.h.s16 %v8806
      %v8924 = vunpack.i.h.s16 %v8812
      %v8925 = vunpack.i.l.s16 %v8814
      %v8926 = vunpack.i.h.s16 %v8814
      %v8927 = vunpack.i.l.s16 %v8816
      %v8928 = vunpack.i.h.s16 %v8816
      %v8929 = vunpack.i.l.s16 %v8818
      %v8930 = vunpack.i.h.s16 %v8818
      %v8931 = vunpack.i.l.s16 %v8820
      %v8932 = vunpack.i.h.s16 %v8820
      %v8933 = vunpack.i.h.s16 %v8826
      %v8934 = vunpack.i.l.s16 %v8828
      %v8935 = vunpack.i.h.s16 %v8828
      %v8936 = vunpack.i.l.s16 %v8830
      %v8937 = vunpack.i.h.s16 %v8830
      %v8938 = vunpack.i.l.s16 %v8832
      %v8939 = vunpack.i.h.s16 %v8832
      %v8940 = vunpack.i.l.s16 %v8834
      %v8941 = vunpack.i.h.s16 %v8834
      %v8942 = vunpack.i.h.s16 %v8840
      %v8943 = vunpack.i.l.s16 %v8842
      %v8944 = vunpack.i.h.s16 %v8842
      %v8945 = vunpack.i.l.s16 %v8844
      %v8946 = vunpack.i.h.s16 %v8844
      %v8947 = vunpack.i.l.s16 %v8846
      %v8948 = vunpack.i.h.s16 %v8846
      %v8949 = vunpack.i.l.s16 %v8848
      %v8950 = vunpack.i.h.s16 %v8848
      %v8951 = vunpack.i.h.s16 %v8854
      %v8952 = vunpack.i.l.s16 %v8856
      %v8953 = vunpack.i.h.s16 %v8856
      %v8954 = vunpack.i.l.s16 %v8858
      %v8955 = vunpack.i.h.s16 %v8858
      %v8956 = vunpack.i.l.s16 %v8860
      %v8957 = vunpack.i.h.s16 %v8860
      %v8958 = vunpack.i.l.s16 %v8862
      %v8959 = vunpack.i.h.s16 %v8862
      %v8960 = vunpack.i.h.s16 %v8868
      %v8961 = vunpack.i.l.s16 %v8870
      %v8962 = vunpack.i.h.s16 %v8870
      %v8963 = vunpack.i.l.s16 %v8872
      %v8964 = vunpack.i.h.s16 %v8872
      %v8965 = vunpack.i.l.s16 %v8874
      %v8966 = vunpack.i.h.s16 %v8874
      %v8967 = vunpack.i.l.s16 %v8876
      %v8968 = vunpack.i.h.s16 %v8876
      %v8969 = vunpack.i.h.s16 %v8882
      %v8970 = vunpack.i.l.s16 %v8884
      %v8971 = vunpack.i.h.s16 %v8884
      %v8972 = vunpack.i.l.s16 %v8886
      %v8973 = vunpack.i.h.s16 %v8886
      %v8974 = vunpack.i.l.s16 %v8888
      %v8975 = vunpack.i.h.s16 %v8888
      %v8976 = vunpack.i.l.s16 %v8890
      %v8977 = vunpack.i.h.s16 %v8890
      %v8978 = vunpack.i.h.s16 %v8896
      %v8979 = vunpack.i.l.s16 %v8898
      %v8980 = vunpack.i.h.s16 %v8898
      %v8981 = vunpack.i.l.s16 %v8900
      %v8982 = vunpack.i.h.s16 %v8900
      %v8983 = vunpack.i.l.s16 %v8902
      %v8984 = vunpack.i.h.s16 %v8902
      %v8985 = vunpack.i.l.s16 %v8904
      %v8986 = vunpack.i.h.s16 %v8904
      %v8987 = vpack.i.b16 %v8907, %v8906
      %v8988 = vpack.i.b16 %v8909, %v8908
      %v8989 = vpack.i.b16 %v8911, %v8910
      %v8990 = vpack.i.b16 %v8913, %v8912
      %v8991 = vpack.i.b16 %v8915, %v8914
      %v8992 = vpack.i.b16 %v8917, %v8916
      %v8993 = vpack.i.b16 %v8919, %v8918
      %v8994 = vpack.i.b16 %v8921, %v8920
      %v8995 = vpack.i.b16 %v8923, %v8922
      %v8996 = vpack.i.b16 %v8925, %v8924
      %v8997 = vpack.i.b16 %v8927, %v8926
      %v8998 = vpack.i.b16 %v8929, %v8928
      %v8999 = vpack.i.b16 %v8931, %v8930
      %v9000 = vpack.i.b16 %v8933, %v8932
      %v9001 = vpack.i.b16 %v8935, %v8934
      %v9002 = vpack.i.b16 %v8937, %v8936
      %v9003 = vpack.i.b16 %v8939, %v8938
      %v9004 = vpack.i.b16 %v8941, %v8940
      %v9005 = vpack.i.b16 %v8943, %v8942
      %v9006 = vpack.i.b16 %v8945, %v8944
      %v9007 = vpack.i.b16 %v8947, %v8946
      %v9008 = vpack.i.b16 %v8949, %v8948
      %v9009 = vpack.i.b16 %v8951, %v8950
      %v9010 = vpack.i.b16 %v8953, %v8952
      %v9011 = vpack.i.b16 %v8955, %v8954
      %v9012 = vpack.i.b16 %v8957, %v8956
      %v9013 = vpack.i.b16 %v8959, %v8958
      %v9014 = vpack.i.b16 %v8961, %v8960
      %v9015 = vpack.i.b16 %v8963, %v8962
      %v9016 = vpack.i.b16 %v8965, %v8964
      %v9017 = vpack.i.b16 %v8967, %v8966
      %v9018 = vpack.i.b16 %v8969, %v8968
      %v9019 = vpack.i.b16 %v8971, %v8970
      %v9020 = vpack.i.b16 %v8973, %v8972
      %v9021 = vpack.i.b16 %v8975, %v8974
      %v9022 = vpack.i.b16 %v8977, %v8976
      %v9023 = vpack.i.b16 %v8979, %v8978
      %v9024 = vpack.i.b16 %v8981, %v8980
      %v9025 = vpack.i.b16 %v8983, %v8982
      %v9026 = vpack.i.b16 %v8985, %v8984
      %9029 = vst [vmem:[#allocation1] ss:$4 sm:$0xff] %v8987
      %s9031 = scalar_lea.vmem [#allocation1], 1
      %9032 = vst [vmem:[%s9031] ss:$4 sm:$0xff] %v8988
      %s9034 = scalar_lea.vmem [#allocation1], 2
      %9035 = vst [vmem:[%s9034] ss:$4 sm:$0xff] %v8989
      %s9037 = scalar_lea.vmem [#allocation1], 3
      %9038 = vst [vmem:[%s9037] ss:$4 sm:$0xff] %v8990
      %s9040 = scalar_lea.vmem [#allocation1], 32
      %9041 = vst [vmem:[%s9040] ss:$4 sm:$0xff] %v8991
      %s9043 = scalar_lea.vmem [#allocation1], 33
      %9044 = vst [vmem:[%s9043] ss:$4 sm:$0xff] %v8992
      %s9046 = scalar_lea.vmem [#allocation1], 34
      %9047 = vst [vmem:[%s9046] ss:$4 sm:$0xff] %v8993
      %s9049 = scalar_lea.vmem [#allocation1], 35
      %9050 = vst [vmem:[%s9049] ss:$4 sm:$0xff] %v8994
      %v9051 = vld [vmem:[#allocation1] sm:$0xff]
      %v9053 = vld [vmem:[#allocation1 + $0x20] sm:$0xff]
      %9056 = vst [vmem:[#allocation1] ss:$4 sm:$0xff] %v8995
      %9058 = vst [vmem:[%s9031] ss:$4 sm:$0xff] %v8996
      %9060 = vst [vmem:[%s9034] ss:$4 sm:$0xff] %v8997
      %9062 = vst [vmem:[%s9037] ss:$4 sm:$0xff] %v8998
      %9064 = vst [vmem:[%s9040] ss:$4 sm:$0xff] %v8999
      %9066 = vst [vmem:[%s9043] ss:$4 sm:$0xff] %v9000
      %9068 = vst [vmem:[%s9046] ss:$4 sm:$0xff] %v9001
      %9070 = vst [vmem:[%s9049] ss:$4 sm:$0xff] %v9002
      %v9071 = vld [vmem:[#allocation1] sm:$0xff]
      %v9073 = vld [vmem:[#allocation1 + $0x20] sm:$0xff]
      %9076 = vst [vmem:[#allocation1] ss:$4 sm:$0xff] %v9003
      %9078 = vst [vmem:[%s9031] ss:$4 sm:$0xff] %v9004
      %9080 = vst [vmem:[%s9034] ss:$4 sm:$0xff] %v9005
      %9082 = vst [vmem:[%s9037] ss:$4 sm:$0xff] %v9006
      %9084 = vst [vmem:[%s9040] ss:$4 sm:$0xff] %v9007
      %9086 = vst [vmem:[%s9043] ss:$4 sm:$0xff] %v9008
      %9088 = vst [vmem:[%s9046] ss:$4 sm:$0xff] %v9009
      %9090 = vst [vmem:[%s9049] ss:$4 sm:$0xff] %v9010
      %v9091 = vld [vmem:[#allocation1] sm:$0xff]
      %v9093 = vld [vmem:[#allocation1 + $0x20] sm:$0xff]
      %9096 = vst [vmem:[#allocation1] ss:$4 sm:$0xff] %v9011
      %9098 = vst [vmem:[%s9031] ss:$4 sm:$0xff] %v9012
      %9100 = vst [vmem:[%s9034] ss:$4 sm:$0xff] %v9013
      %9102 = vst [vmem:[%s9037] ss:$4 sm:$0xff] %v9014
      %9104 = vst [vmem:[%s9040] ss:$4 sm:$0xff] %v9015
      %9106 = vst [vmem:[%s9043] ss:$4 sm:$0xff] %v9016
      %9108 = vst [vmem:[%s9046] ss:$4 sm:$0xff] %v9017
      %9110 = vst [vmem:[%s9049] ss:$4 sm:$0xff] %v9018
      %v9111 = vld [vmem:[#allocation1] sm:$0xff]
      %v9113 = vld [vmem:[#allocation1 + $0x20] sm:$0xff]
      %9116 = vst [vmem:[#allocation1] ss:$4 sm:$0xff] %v9019
      %9118 = vst [vmem:[%s9031] ss:$4 sm:$0xff] %v9020
      %9120 = vst [vmem:[%s9034] ss:$4 sm:$0xff] %v9021
      %9122 = vst [vmem:[%s9037] ss:$4 sm:$0xff] %v9022
      %9124 = vst [vmem:[%s9040] ss:$4 sm:$0xff] %v9023
      %9126 = vst [vmem:[%s9043] ss:$4 sm:$0xff] %v9024
      %9128 = vst [vmem:[%s9046] ss:$4 sm:$0xff] %v9025
      %9130 = vst [vmem:[%s9049] ss:$4 sm:$0xff] %v9026
      %v9131 = vld [vmem:[#allocation1] sm:$0xff]
      %v9133 = vld [vmem:[#allocation1 + $0x20] sm:$0xff]
      %9136 = vst [vmem:[#allocation1] ss:$4 sm:$0xff] %v8986
      %v9137 = vld [vmem:[#allocation1] sm:$0xff]
      %9139 = vrot.lane.b32.xlu0 %v9051, 96
      %v9140 = vpop.permute.xlu0 %9139
      %9141 = vrot.lane.b32.xlu0 %v9053, 96
      %v9142 = vpop.permute.xlu0 %9141
      %9143 = vrot.lane.b32.xlu0 %v9071, 96
      %v9144 = vpop.permute.xlu0 %9143
      %9145 = vrot.lane.b32.xlu0 %v9073, 96
      %v9146 = vpop.permute.xlu0 %9145
      %9147 = vrot.lane.b32.xlu0 %v9091, 96
      %v9148 = vpop.permute.xlu0 %9147
      %9149 = vrot.lane.b32.xlu0 %v9093, 96
      %v9150 = vpop.permute.xlu0 %9149
      %9151 = vrot.lane.b32.xlu0 %v9111, 96
      %v9152 = vpop.permute.xlu0 %9151
      %9153 = vrot.lane.b32.xlu0 %v9113, 96
      %v9154 = vpop.permute.xlu0 %9153
      %9155 = vrot.lane.b32.xlu0 %v9131, 96
      %v9156 = vpop.permute.xlu0 %9155
      %9157 = vrot.lane.b32.xlu0 %v9133, 96
      %v9158 = vpop.permute.xlu0 %9157
      %9159 = vrot.lane.b32.xlu0 %v9137, 96
      %v9160 = vpop.permute.xlu0 %9159
      %9172 = vst.msk [vmem:[#allocation4 + $0xc] sm:$0xf] %vm3782, %v9140
      %9173 = vst.msk [vmem:[#allocation4 + $0x1c] sm:$0xf] %vm3782, %v9142
      %9174 = vst.msk [vmem:[#allocation4 + $0x2c] sm:$0xf] %vm3782, %v9144
      %9175 = vst.msk [vmem:[#allocation4 + $0x3c] sm:$0xf] %vm3782, %v9146
      %9176 = vst.msk [vmem:[#allocation4 + $0x4c] sm:$0xf] %vm3782, %v9148
      %9177 = vst.msk [vmem:[#allocation4 + $0x5c] sm:$0xf] %vm3782, %v9150
      %9178 = vst.msk [vmem:[#allocation4 + $0x6c] sm:$0xf] %vm3782, %v9152
      %9179 = vst.msk [vmem:[#allocation4 + $0x7c] sm:$0xf] %vm3782, %v9154
      %9180 = vst.msk [vmem:[#allocation4 + $0x8c] sm:$0xf] %vm3782, %v9156
      %9181 = vst.msk [vmem:[#allocation4 + $0x9c] sm:$0xf] %vm3782, %v9158
      %v9182 = vld [vmem:[#allocation4 + $0xac] sm:$0x1]
      %v9183 = vsel %vm3794, %v9160, %v9182
      %9184 = vst [vmem:[#allocation4 + $0xac] sm:$0x1] %v9183
      %v9185 = vld [vmem:[#allocation4] sm:$0xff]
      %v9186 = vld [vmem:[#allocation4 + $0x8] sm:$0xff]
      %v9187 = vld [vmem:[#allocation4 + $0x10] sm:$0xff]
      %v9188 = vld [vmem:[#allocation4 + $0x18] sm:$0xff]
      %v9189 = vld [vmem:[#allocation4 + $0x20] sm:$0xff]
      %v9190 = vld [vmem:[#allocation4 + $0x28] sm:$0xff]
      %v9191 = vld [vmem:[#allocation4 + $0x30] sm:$0xff]
      %v9192 = vld [vmem:[#allocation4 + $0x38] sm:$0xff]
      %v9193 = vld [vmem:[#allocation4 + $0x40] sm:$0xff]
      %v9194 = vld [vmem:[#allocation4 + $0x48] sm:$0xff]
      %v9195 = vld [vmem:[#allocation4 + $0x50] sm:$0xff]
      %v9196 = vld [vmem:[#allocation4 + $0x58] sm:$0xff]
      %v9197 = vld [vmem:[#allocation4 + $0x60] sm:$0xff]
      %v9198 = vld [vmem:[#allocation4 + $0x68] sm:$0xff]
      %v9199 = vld [vmem:[#allocation4 + $0x70] sm:$0xff]
      %v9200 = vld [vmem:[#allocation4 + $0x78] sm:$0xff]
      %v9201 = vld [vmem:[#allocation4 + $0x80] sm:$0xff]
      %v9202 = vld [vmem:[#allocation4 + $0x88] sm:$0xff]
      %v9203 = vld [vmem:[#allocation4 + $0x90] sm:$0xff]
      %v9204 = vld [vmem:[#allocation4 + $0x98] sm:$0xff]
      %v9205 = vld [vmem:[#allocation4 + $0xa0] sm:$0x11]
      %v9206 = vld [vmem:[#allocation4 + $0xa8] sm:$0x11]
      %v9207 = vld [vmem:[%s3] sm:$0xf]
      %v9208 = vld [vmem:[%s3 + $0x4] sm:$0xf]
      %v9209 = vld [vmem:[%s3 + $0x8] sm:$0xf]
      %v9210 = vld [vmem:[%s3 + $0xc] sm:$0xf]
      %v9211 = vld [vmem:[%s3 + $0x10] sm:$0xf]
      %v9212 = vld [vmem:[%s3 + $0x14] sm:$0xf]
      %v9213 = vld [vmem:[%s3 + $0x18] sm:$0xf]
      %v9214 = vld [vmem:[%s3 + $0x1c] sm:$0xf]
      %v9215 = vld [vmem:[%s3 + $0x20] sm:$0xf]
      %v9216 = vld [vmem:[%s3 + $0x24] sm:$0xf]
      %v9217 = vld [vmem:[%s3 + $0x28] sm:$0xf]
      %v9218 = vld [vmem:[%s3 + $0x2c] sm:$0xf]
      %v9219 = vld [vmem:[%s3 + $0x30] sm:$0xf]
      %v9220 = vld [vmem:[%s3 + $0x34] sm:$0xf]
      %v9221 = vld [vmem:[%s3 + $0x38] sm:$0xf]
      %v9222 = vld [vmem:[%s3 + $0x3c] sm:$0xf]
      %v9223 = vld [vmem:[%s3 + $0x40] sm:$0xf]
      %v9224 = vld [vmem:[%s3 + $0x44] sm:$0xf]
      %v9225 = vld [vmem:[%s3 + $0x48] sm:$0xf]
      %v9226 = vld [vmem:[%s3 + $0x4c] sm:$0xf]
      %v9227 = vld [vmem:[%s3 + $0x50] sm:$0xf]
      %v9228 = vld [vmem:[%s3 + $0x54] sm:$0xf]
      %v9229 = vld [vmem:[%s3 + $0x58] sm:$0xf]
      %v9230 = vld [vmem:[%s3 + $0x5c] sm:$0xf]
      %v9231 = vld [vmem:[%s3 + $0x60] sm:$0xf]
      %v9232 = vld [vmem:[%s3 + $0x64] sm:$0xf]
      %v9233 = vld [vmem:[%s3 + $0x68] sm:$0xf]
      %v9234 = vld [vmem:[%s3 + $0x6c] sm:$0xf]
      %v9235 = vld [vmem:[%s3 + $0x70] sm:$0xf]
      %v9236 = vld [vmem:[%s3 + $0x74] sm:$0xf]
      %v9237 = vld [vmem:[%s3 + $0x78] sm:$0xf]
      %v9238 = vld [vmem:[%s3 + $0x7c] sm:$0xf]
      %v9239 = vld [vmem:[%s3 + $0x80] sm:$0xf]
      %v9240 = vld [vmem:[%s3 + $0x84] sm:$0xf]
      %v9241 = vld [vmem:[%s3 + $0x88] sm:$0xf]
      %v9242 = vld [vmem:[%s3 + $0x8c] sm:$0xf]
      %v9243 = vld [vmem:[%s3 + $0x90] sm:$0xf]
      %v9244 = vld [vmem:[%s3 + $0x94] sm:$0xf]
      %v9245 = vld [vmem:[%s3 + $0x98] sm:$0xf]
      %v9246 = vld [vmem:[%s3 + $0x9c] sm:$0xf]
      %v9247 = vld [vmem:[%s3 + $0xa0] sm:$0xf]
      %v9248 = vld [vmem:[%s3 + $0xa4] sm:$0xf]
      %v9249 = vld [vmem:[%s3 + $0xa8] sm:$0xf]
      %v9250 = vld [vmem:[%s3 + $0xac] sm:$0xf]
      %v9251 = vld [vmem:[%s3 + $0xb0] sm:$0xf]
      %v9252 = vld [vmem:[%s3 + $0xb4] sm:$0xf]
      %v9253 = vld [vmem:[%s3 + $0xb8] sm:$0xf]
      %v9254 = vld [vmem:[%s3 + $0xbc] sm:$0xf]
      %v9255 = vld [vmem:[%s3 + $0xc0] sm:$0xf]
      %v9256 = vld [vmem:[%s3 + $0xc4] sm:$0xf]
      %v9257 = vld [vmem:[%s3 + $0xc8] sm:$0xf]
      %v9258 = vld [vmem:[%s3 + $0xcc] sm:$0xf]
      %v9259 = vld [vmem:[%s3 + $0xd0] sm:$0xf]
      %v9260 = vld [vmem:[%s3 + $0xd4] sm:$0xf]
      %v9261 = vld [vmem:[%s3 + $0xd8] sm:$0xf]
      %v9262 = vld [vmem:[%s3 + $0xdc] sm:$0xf]
      %v9263 = vld [vmem:[%s3 + $0xe0] sm:$0xf]
      %v9264 = vld [vmem:[%s3 + $0xe4] sm:$0xf]
      %v9265 = vld [vmem:[%s3 + $0xe8] sm:$0xf]
      %v9266 = vld [vmem:[%s3 + $0xec] sm:$0xf]
      %v9267 = vld [vmem:[%s3 + $0xf0] sm:$0xf]
      %v9268 = vld [vmem:[%s3 + $0xf4] sm:$0xf]
      %v9269 = vld [vmem:[%s3 + $0xf8] sm:$0xf]
      %v9270 = vld [vmem:[%s3 + $0xfc] sm:$0xf]
      %v9272 = vperm.slane %v281, 0
      %v9296 = vunpack.c.l.b16 %v9185
      %v9297 = vunpack.c.h.b16 %v9185
      %v9298 = vunpack.c.l.b16 %v9186
      %v9299 = vunpack.c.h.b16 %v9186
      %v9300 = vunpack.c.l.b16 %v9187
      %v9301 = vunpack.c.h.b16 %v9187
      %v9302 = vunpack.c.l.b16 %v9188
      %v9303 = vunpack.c.h.b16 %v9188
      %v9304 = vunpack.c.l.b16 %v9189
      %v9305 = vunpack.c.h.b16 %v9189
      %v9306 = vunpack.c.l.b16 %v9190
      %v9307 = vunpack.c.h.b16 %v9190
      %v9308 = vunpack.c.l.b16 %v9191
      %v9309 = vunpack.c.h.b16 %v9191
      %v9310 = vunpack.c.l.b16 %v9192
      %v9311 = vunpack.c.h.b16 %v9192
      %v9312 = vunpack.c.l.b16 %v9193
      %v9313 = vunpack.c.h.b16 %v9193
      %v9314 = vunpack.c.l.b16 %v9194
      %v9315 = vunpack.c.h.b16 %v9194
      %v9316 = vunpack.c.l.b16 %v9195
      %v9317 = vunpack.c.h.b16 %v9195
      %v9318 = vunpack.c.l.b16 %v9196
      %v9319 = vunpack.c.h.b16 %v9196
      %v9320 = vunpack.c.l.b16 %v9197
      %v9321 = vunpack.c.h.b16 %v9197
      %v9322 = vunpack.c.l.b16 %v9198
      %v9323 = vunpack.c.h.b16 %v9198
      %v9324 = vunpack.c.l.b16 %v9199
      %v9325 = vunpack.c.h.b16 %v9199
      %v9326 = vunpack.c.l.b16 %v9200
      %v9327 = vunpack.c.h.b16 %v9200
      %v9328 = vunpack.c.l.b16 %v9201
      %v9329 = vunpack.c.h.b16 %v9201
      %v9330 = vunpack.c.l.b16 %v9202
      %v9331 = vunpack.c.h.b16 %v9202
      %v9332 = vunpack.c.l.b16 %v9203
      %v9333 = vunpack.c.h.b16 %v9203
      %v9334 = vunpack.c.l.b16 %v9204
      %v9335 = vunpack.c.h.b16 %v9204
      %v9336 = vunpack.c.l.b16 %v9205
      %v9337 = vunpack.c.h.b16 %v9205
      %v9338 = vunpack.c.l.b16 %v9206
      %v9339 = vunpack.c.h.b16 %v9206
      %v9340 = vpack.c.b16 %v9300, %v9296
      %v9341 = vpack.c.b16 %v9301, %v9297
      %v9342 = vpack.c.b16 %v9302, %v9298
      %v9343 = vpack.c.b16 %v9303, %v9299
      %v9344 = vpack.c.b16 %v9308, %v9304
      %v9345 = vpack.c.b16 %v9309, %v9305
      %v9346 = vpack.c.b16 %v9310, %v9306
      %v9347 = vpack.c.b16 %v9311, %v9307
      %v9348 = vpack.c.b16 %v9316, %v9312
      %v9349 = vpack.c.b16 %v9317, %v9313
      %v9350 = vpack.c.b16 %v9318, %v9314
      %v9351 = vpack.c.b16 %v9319, %v9315
      %v9352 = vpack.c.b16 %v9324, %v9320
      %v9353 = vpack.c.b16 %v9325, %v9321
      %v9354 = vpack.c.b16 %v9326, %v9322
      %v9355 = vpack.c.b16 %v9327, %v9323
      %v9356 = vpack.c.b16 %v9332, %v9328
      %v9357 = vpack.c.b16 %v9333, %v9329
      %v9358 = vpack.c.b16 %v9334, %v9330
      %v9359 = vpack.c.b16 %v9335, %v9331
      %v9360 = vpack.c.b16 %v9336, %v9336
      %v9361 = vpack.c.b16 %v9337, %v9337
      %v9362 = vpack.c.b16 %v9338, %v9338
      %v9363 = vpack.c.b16 %v9339, %v9339
      %v9452 = vunpack.c.l.b16 %v9207
      %v9453 = vunpack.c.l.b16 %v9208
      %v9454 = vunpack.c.l.b16 %v9209
      %v9455 = vunpack.c.l.b16 %v9210
      %v9456 = vunpack.c.l.b16 %v9211
      %v9457 = vunpack.c.l.b16 %v9212
      %v9458 = vunpack.c.l.b16 %v9213
      %v9459 = vunpack.c.l.b16 %v9214
      %v9460 = vunpack.c.l.b16 %v9215
      %v9461 = vunpack.c.l.b16 %v9216
      %v9462 = vunpack.c.l.b16 %v9217
      %v9463 = vunpack.c.l.b16 %v9218
      %v9464 = vunpack.c.l.b16 %v9219
      %v9465 = vunpack.c.l.b16 %v9220
      %v9466 = vunpack.c.l.b16 %v9221
      %v9467 = vunpack.c.l.b16 %v9222
      %v9468 = vunpack.c.l.b16 %v9223
      %v9469 = vunpack.c.l.b16 %v9224
      %v9470 = vunpack.c.l.b16 %v9225
      %v9471 = vunpack.c.l.b16 %v9226
      %v9472 = vunpack.c.l.b16 %v9227
      %v9473 = vunpack.c.l.b16 %v9228
      %v9474 = vunpack.c.l.b16 %v9229
      %v9475 = vunpack.c.l.b16 %v9230
      %v9476 = vunpack.c.l.b16 %v9231
      %v9477 = vunpack.c.l.b16 %v9232
      %v9478 = vunpack.c.l.b16 %v9233
      %v9479 = vunpack.c.l.b16 %v9234
      %v9480 = vunpack.c.l.b16 %v9235
      %v9481 = vunpack.c.l.b16 %v9236
      %v9482 = vunpack.c.l.b16 %v9237
      %v9483 = vunpack.c.l.b16 %v9238
      %v9484 = vunpack.c.l.b16 %v9239
      %v9485 = vunpack.c.l.b16 %v9240
      %v9486 = vunpack.c.l.b16 %v9241
      %v9487 = vunpack.c.l.b16 %v9242
      %v9488 = vunpack.c.l.b16 %v9243
      %v9489 = vunpack.c.l.b16 %v9244
      %v9490 = vunpack.c.l.b16 %v9245
      %v9491 = vunpack.c.l.b16 %v9246
      %v9492 = vunpack.c.l.b16 %v9247
      %v9493 = vunpack.c.l.b16 %v9248
      %v9494 = vunpack.c.l.b16 %v9249
      %v9495 = vunpack.c.l.b16 %v9250
      %v9496 = vunpack.c.l.b16 %v9251
      %v9497 = vunpack.c.l.b16 %v9252
      %v9498 = vunpack.c.l.b16 %v9253
      %v9499 = vunpack.c.l.b16 %v9254
      %v9500 = vunpack.c.l.b16 %v9255
      %v9501 = vunpack.c.l.b16 %v9256
      %v9502 = vunpack.c.l.b16 %v9257
      %v9503 = vunpack.c.l.b16 %v9258
      %v9504 = vunpack.c.l.b16 %v9259
      %v9505 = vunpack.c.l.b16 %v9260
      %v9506 = vunpack.c.l.b16 %v9261
      %v9507 = vunpack.c.l.b16 %v9262
      %v9508 = vunpack.c.l.b16 %v9263
      %v9509 = vunpack.c.l.b16 %v9264
      %v9510 = vunpack.c.l.b16 %v9265
      %v9511 = vunpack.c.l.b16 %v9266
      %v9512 = vunpack.c.l.b16 %v9267
      %v9513 = vunpack.c.l.b16 %v9268
      %v9514 = vunpack.c.l.b16 %v9269
      %v9515 = vunpack.c.l.b16 %v9270
      %v9516 = vpack.c.b16 %v9453, %v9452
      %v9517 = vpack.c.b16 %v9455, %v9454
      %v9518 = vpack.c.b16 %v9457, %v9456
      %v9519 = vpack.c.b16 %v9459, %v9458
      %v9520 = vpack.c.b16 %v9461, %v9460
      %v9521 = vpack.c.b16 %v9463, %v9462
      %v9522 = vpack.c.b16 %v9465, %v9464
      %v9523 = vpack.c.b16 %v9467, %v9466
      %v9524 = vpack.c.b16 %v9469, %v9468
      %v9525 = vpack.c.b16 %v9471, %v9470
      %v9526 = vpack.c.b16 %v9473, %v9472
      %v9527 = vpack.c.b16 %v9475, %v9474
      %v9528 = vpack.c.b16 %v9477, %v9476
      %v9529 = vpack.c.b16 %v9479, %v9478
      %v9530 = vpack.c.b16 %v9481, %v9480
      %v9531 = vpack.c.b16 %v9483, %v9482
      %v9532 = vpack.c.b16 %v9485, %v9484
      %v9533 = vpack.c.b16 %v9487, %v9486
      %v9534 = vpack.c.b16 %v9489, %v9488
      %v9535 = vpack.c.b16 %v9491, %v9490
      %v9536 = vpack.c.b16 %v9493, %v9492
      %v9537 = vpack.c.b16 %v9495, %v9494
      %v9538 = vpack.c.b16 %v9497, %v9496
      %v9539 = vpack.c.b16 %v9499, %v9498
      %v9540 = vpack.c.b16 %v9501, %v9500
      %v9541 = vpack.c.b16 %v9503, %v9502
      %v9542 = vpack.c.b16 %v9505, %v9504
      %v9543 = vpack.c.b16 %v9507, %v9506
      %v9544 = vpack.c.b16 %v9509, %v9508
      %v9545 = vpack.c.b16 %v9511, %v9510
      %v9546 = vpack.c.b16 %v9513, %v9512
      %v9547 = vpack.c.b16 %v9515, %v9514
      %9580 = vmatpush.bf16.msra.mxu0 %v9523
      %9581 = vmatpush.bf16.msra.mxu0 %v9522
      %9582 = vmatpush.bf16.msra.mxu0 %v9521
      %9583 = vmatpush.bf16.msra.mxu0 %v9520
      %9584 = vmatpush.bf16.msra.mxu0 %v9519
      %9585 = vmatpush.bf16.msra.mxu0 %v9518
      %9586 = vmatpush.bf16.msra.mxu0 %v9517
      %9587 = vmatpush.bf16.msra.mxu0 %v9516
      %9588 = vmatmul.bf16.gmra.mxu0 %v9340
      %v9589 = vpop.f32.mrf.mxu0
      %v9590 = vadd.f32 %v9272, %v9589
      %v9591 = vpop.f32.mrf.mxu0
      %v9592 = vadd.f32 %v9272, %v9591
      %9593 = vmatmul.bf16.gmra.mxu0 %v9344
      %v9594 = vpop.f32.mrf.mxu0
      %v9595 = vadd.f32 %v9272, %v9594
      %v9596 = vpop.f32.mrf.mxu0
      %v9597 = vadd.f32 %v9272, %v9596
      %9598 = vmatmul.bf16.gmra.mxu0 %v9348
      %v9599 = vpop.f32.mrf.mxu0
      %v9600 = vadd.f32 %v9272, %v9599
      %v9601 = vpop.f32.mrf.mxu0
      %v9602 = vadd.f32 %v9272, %v9601
      %9603 = vmatmul.bf16.gmra.mxu0 %v9352
      %v9604 = vpop.f32.mrf.mxu0
      %v9605 = vadd.f32 %v9272, %v9604
      %v9606 = vpop.f32.mrf.mxu0
      %v9607 = vadd.f32 %v9272, %v9606
      %9608 = vmatmul.bf16.gmra.mxu0 %v9356
      %v9609 = vpop.f32.mrf.mxu0
      %v9610 = vadd.f32 %v9272, %v9609
      %v9611 = vpop.f32.mrf.mxu0
      %v9612 = vadd.f32 %v9272, %v9611
      %9613 = vmatmul.bf16.gmra.mxu0 %v9360
      %v9614 = vpop.f32.mrf.mxu0
      %v9615 = vadd.f32 %v9272, %v9614
      %v9616 = vpop.f32.mrf.mxu0
      %9617 = vdwg.mxu0
      %9618 = vmatpush.bf16.msra.mxu0 %v9531
      %9619 = vmatpush.bf16.msra.mxu0 %v9530
      %9620 = vmatpush.bf16.msra.mxu0 %v9529
      %9621 = vmatpush.bf16.msra.mxu0 %v9528
      %9622 = vmatpush.bf16.msra.mxu0 %v9527
      %9623 = vmatpush.bf16.msra.mxu0 %v9526
      %9624 = vmatpush.bf16.msra.mxu0 %v9525
      %9625 = vmatpush.bf16.msra.mxu0 %v9524
      %9626 = vmatmul.bf16.gmra.mxu0 %v9341
      %v9627 = vpop.f32.mrf.mxu0
      %v9628 = vadd.f32 %v9590, %v9627
      %v9629 = vpop.f32.mrf.mxu0
      %v9630 = vadd.f32 %v9592, %v9629
      %9631 = vmatmul.bf16.gmra.mxu0 %v9345
      %v9632 = vpop.f32.mrf.mxu0
      %v9633 = vadd.f32 %v9595, %v9632
      %v9634 = vpop.f32.mrf.mxu0
      %v9635 = vadd.f32 %v9597, %v9634
      %9636 = vmatmul.bf16.gmra.mxu0 %v9349
      %v9637 = vpop.f32.mrf.mxu0
      %v9638 = vadd.f32 %v9600, %v9637
      %v9639 = vpop.f32.mrf.mxu0
      %v9640 = vadd.f32 %v9602, %v9639
      %9641 = vmatmul.bf16.gmra.mxu0 %v9353
      %v9642 = vpop.f32.mrf.mxu0
      %v9643 = vadd.f32 %v9605, %v9642
      %v9644 = vpop.f32.mrf.mxu0
      %v9645 = vadd.f32 %v9607, %v9644
      %9646 = vmatmul.bf16.gmra.mxu0 %v9357
      %v9647 = vpop.f32.mrf.mxu0
      %v9648 = vadd.f32 %v9610, %v9647
      %v9649 = vpop.f32.mrf.mxu0
      %v9650 = vadd.f32 %v9612, %v9649
      %9651 = vmatmul.bf16.gmra.mxu0 %v9361
      %v9652 = vpop.f32.mrf.mxu0
      %v9653 = vadd.f32 %v9615, %v9652
      %v9654 = vpop.f32.mrf.mxu0
      %9655 = vdwg.mxu0
      %9656 = vmatpush.bf16.msra.mxu0 %v9539
      %9657 = vmatpush.bf16.msra.mxu0 %v9538
      %9658 = vmatpush.bf16.msra.mxu0 %v9537
      %9659 = vmatpush.bf16.msra.mxu0 %v9536
      %9660 = vmatpush.bf16.msra.mxu0 %v9535
      %9661 = vmatpush.bf16.msra.mxu0 %v9534
      %9662 = vmatpush.bf16.msra.mxu0 %v9533
      %9663 = vmatpush.bf16.msra.mxu0 %v9532
      %9664 = vmatmul.bf16.gmra.mxu0 %v9342
      %v9665 = vpop.f32.mrf.mxu0
      %v9666 = vadd.f32 %v9628, %v9665
      %v9667 = vpop.f32.mrf.mxu0
      %v9668 = vadd.f32 %v9630, %v9667
      %9669 = vmatmul.bf16.gmra.mxu0 %v9346
      %v9670 = vpop.f32.mrf.mxu0
      %v9671 = vadd.f32 %v9633, %v9670
      %v9672 = vpop.f32.mrf.mxu0
      %v9673 = vadd.f32 %v9635, %v9672
      %9674 = vmatmul.bf16.gmra.mxu0 %v9350
      %v9675 = vpop.f32.mrf.mxu0
      %v9676 = vadd.f32 %v9638, %v9675
      %v9677 = vpop.f32.mrf.mxu0
      %v9678 = vadd.f32 %v9640, %v9677
      %9679 = vmatmul.bf16.gmra.mxu0 %v9354
      %v9680 = vpop.f32.mrf.mxu0
      %v9681 = vadd.f32 %v9643, %v9680
      %v9682 = vpop.f32.mrf.mxu0
      %v9683 = vadd.f32 %v9645, %v9682
      %9684 = vmatmul.bf16.gmra.mxu0 %v9358
      %v9685 = vpop.f32.mrf.mxu0
      %v9686 = vadd.f32 %v9648, %v9685
      %v9687 = vpop.f32.mrf.mxu0
      %v9688 = vadd.f32 %v9650, %v9687
      %9689 = vmatmul.bf16.gmra.mxu0 %v9362
      %v9690 = vpop.f32.mrf.mxu0
      %v9691 = vadd.f32 %v9653, %v9690
      %v9692 = vpop.f32.mrf.mxu0
      %9693 = vdwg.mxu0
      %9694 = vmatpush.bf16.msra.mxu0 %v9547
      %9695 = vmatpush.bf16.msra.mxu0 %v9546
      %9696 = vmatpush.bf16.msra.mxu0 %v9545
      %9697 = vmatpush.bf16.msra.mxu0 %v9544
      %9698 = vmatpush.bf16.msra.mxu0 %v9543
      %9699 = vmatpush.bf16.msra.mxu0 %v9542
      %9700 = vmatpush.bf16.msra.mxu0 %v9541
      %9701 = vmatpush.bf16.msra.mxu0 %v9540
      %9702 = vmatmul.bf16.gmra.mxu0 %v9343
      %v9703 = vpop.f32.mrf.mxu0
      %v9704 = vadd.f32 %v9666, %v9703
      %v9705 = vpop.f32.mrf.mxu0
      %v9706 = vadd.f32 %v9668, %v9705
      %9707 = vmatmul.bf16.gmra.mxu0 %v9347
      %v9708 = vpop.f32.mrf.mxu0
      %v9709 = vadd.f32 %v9671, %v9708
      %v9710 = vpop.f32.mrf.mxu0
      %v9711 = vadd.f32 %v9673, %v9710
      %9712 = vmatmul.bf16.gmra.mxu0 %v9351
      %v9713 = vpop.f32.mrf.mxu0
      %v9714 = vadd.f32 %v9676, %v9713
      %v9715 = vpop.f32.mrf.mxu0
      %v9716 = vadd.f32 %v9678, %v9715
      %9717 = vmatmul.bf16.gmra.mxu0 %v9355
      %v9718 = vpop.f32.mrf.mxu0
      %v9719 = vadd.f32 %v9681, %v9718
      %v9720 = vpop.f32.mrf.mxu0
      %v9721 = vadd.f32 %v9683, %v9720
      %9722 = vmatmul.bf16.gmra.mxu0 %v9359
      %v9723 = vpop.f32.mrf.mxu0
      %v9724 = vadd.f32 %v9686, %v9723
      %v9725 = vpop.f32.mrf.mxu0
      %v9726 = vadd.f32 %v9688, %v9725
      %9727 = vmatmul.bf16.gmra.mxu0 %v9363
      %v9728 = vpop.f32.mrf.mxu0
      %v9729 = vadd.f32 %v9691, %v9728
      %v9730 = vpop.f32.mrf.mxu0
      %9731 = vdwg.mxu0
      %v9732 = vmax.f32 %v9704, 0.0
      %v9733 = vmax.f32 %v9706, 0.0
      %v9734 = vmax.f32 %v9709, 0.0
      %v9735 = vmax.f32 %v9711, 0.0
      %v9736 = vmax.f32 %v9714, 0.0
      %v9737 = vmax.f32 %v9716, 0.0
      %v9738 = vmax.f32 %v9719, 0.0
      %v9739 = vmax.f32 %v9721, 0.0
      %v9740 = vmax.f32 %v9724, 0.0
      %v9741 = vmax.f32 %v9726, 0.0
      %v9742 = vmax.f32 %v9729, 0.0
      %v9743 = vpack.c.bf16 %v9732, %v9732
      %v9744 = vpack.c.bf16 %v9733, %v9733
      %v9745 = vpack.c.bf16 %v9734, %v9734
      %v9746 = vpack.c.bf16 %v9735, %v9735
      %v9747 = vpack.c.bf16 %v9736, %v9736
      %v9748 = vpack.c.bf16 %v9737, %v9737
      %v9749 = vpack.c.bf16 %v9738, %v9738
      %v9750 = vpack.c.bf16 %v9739, %v9739
      %v9751 = vpack.c.bf16 %v9740, %v9740
      %v9752 = vpack.c.bf16 %v9741, %v9741
      %v9753 = vpack.c.bf16 %v9742, %v9742
      %v9765 = vrot.slane %v9743, 3
      %v9766 = vrot.slane %v9744, 3
      %v9767 = vrot.slane %v9745, 3
      %v9768 = vrot.slane %v9746, 3
      %v9769 = vrot.slane %v9747, 3
      %v9770 = vrot.slane %v9748, 3
      %v9771 = vrot.slane %v9749, 3
      %v9772 = vrot.slane %v9750, 3
      %v9773 = vrot.slane %v9751, 3
      %v9774 = vrot.slane %v9752, 3
      %v9775 = vrot.slane %v9753, 3
      %v9778 = vsel %vm2041, %v9743, %v9765
      %v9780 = vsel %vm2046, %v9743, %v9765
      %v9782 = vrot.slane %v9780, 1
      %v9783 = vsel %vm2050, %v9743, %v9765
      %v9785 = vrot.slane %v9783, 2
      %v9786 = vsel %vm2054, %v9743, %v9765
      %v9788 = vrot.slane %v9786, 3
      %v9791 = vsel %vm2041, %v9744, %v9766
      %v9793 = vsel %vm2046, %v9744, %v9766
      %v9795 = vrot.slane %v9793, 1
      %v9796 = vsel %vm2050, %v9744, %v9766
      %v9798 = vrot.slane %v9796, 2
      %v9799 = vsel %vm2054, %v9744, %v9766
      %v9801 = vrot.slane %v9799, 3
      %v9804 = vsel %vm2041, %v9745, %v9767
      %v9806 = vsel %vm2046, %v9745, %v9767
      %v9808 = vrot.slane %v9806, 1
      %v9809 = vsel %vm2050, %v9745, %v9767
      %v9811 = vrot.slane %v9809, 2
      %v9812 = vsel %vm2054, %v9745, %v9767
      %v9814 = vrot.slane %v9812, 3
      %v9817 = vsel %vm2041, %v9746, %v9768
      %v9819 = vsel %vm2046, %v9746, %v9768
      %v9821 = vrot.slane %v9819, 1
      %v9822 = vsel %vm2050, %v9746, %v9768
      %v9824 = vrot.slane %v9822, 2
      %v9825 = vsel %vm2054, %v9746, %v9768
      %v9827 = vrot.slane %v9825, 3
      %v9830 = vsel %vm2041, %v9747, %v9769
      %v9832 = vsel %vm2046, %v9747, %v9769
      %v9834 = vrot.slane %v9832, 1
      %v9835 = vsel %vm2050, %v9747, %v9769
      %v9837 = vrot.slane %v9835, 2
      %v9838 = vsel %vm2054, %v9747, %v9769
      %v9840 = vrot.slane %v9838, 3
      %v9843 = vsel %vm2041, %v9748, %v9770
      %v9845 = vsel %vm2046, %v9748, %v9770
      %v9847 = vrot.slane %v9845, 1
      %v9848 = vsel %vm2050, %v9748, %v9770
      %v9850 = vrot.slane %v9848, 2
      %v9851 = vsel %vm2054, %v9748, %v9770
      %v9853 = vrot.slane %v9851, 3
      %v9856 = vsel %vm2041, %v9749, %v9771
      %v9858 = vsel %vm2046, %v9749, %v9771
      %v9860 = vrot.slane %v9858, 1
      %v9861 = vsel %vm2050, %v9749, %v9771
      %v9863 = vrot.slane %v9861, 2
      %v9864 = vsel %vm2054, %v9749, %v9771
      %v9866 = vrot.slane %v9864, 3
      %v9869 = vsel %vm2041, %v9750, %v9772
      %v9871 = vsel %vm2046, %v9750, %v9772
      %v9873 = vrot.slane %v9871, 1
      %v9874 = vsel %vm2050, %v9750, %v9772
      %v9876 = vrot.slane %v9874, 2
      %v9877 = vsel %vm2054, %v9750, %v9772
      %v9879 = vrot.slane %v9877, 3
      %v9882 = vsel %vm2041, %v9751, %v9773
      %v9884 = vsel %vm2046, %v9751, %v9773
      %v9886 = vrot.slane %v9884, 1
      %v9887 = vsel %vm2050, %v9751, %v9773
      %v9889 = vrot.slane %v9887, 2
      %v9890 = vsel %vm2054, %v9751, %v9773
      %v9892 = vrot.slane %v9890, 3
      %v9895 = vsel %vm2041, %v9752, %v9774
      %v9897 = vsel %vm2046, %v9752, %v9774
      %v9899 = vrot.slane %v9897, 1
      %v9900 = vsel %vm2050, %v9752, %v9774
      %v9902 = vrot.slane %v9900, 2
      %v9903 = vsel %vm2054, %v9752, %v9774
      %v9905 = vrot.slane %v9903, 3
      %v9908 = vsel %vm2041, %v9753, %v9775
      %v9910 = vunpack.i.l.s16 %v9778
      %v9911 = vunpack.i.h.s16 %v9778
      %v9912 = vunpack.i.l.s16 %v9782
      %v9913 = vunpack.i.h.s16 %v9782
      %v9914 = vunpack.i.l.s16 %v9785
      %v9915 = vunpack.i.h.s16 %v9785
      %v9916 = vunpack.i.l.s16 %v9788
      %v9917 = vunpack.i.h.s16 %v9788
      %v9918 = vunpack.i.l.s16 %v9791
      %v9919 = vunpack.i.h.s16 %v9791
      %v9920 = vunpack.i.l.s16 %v9795
      %v9921 = vunpack.i.h.s16 %v9795
      %v9922 = vunpack.i.l.s16 %v9798
      %v9923 = vunpack.i.h.s16 %v9798
      %v9924 = vunpack.i.l.s16 %v9801
      %v9925 = vunpack.i.h.s16 %v9801
      %v9926 = vunpack.i.l.s16 %v9804
      %v9927 = vunpack.i.h.s16 %v9804
      %v9928 = vunpack.i.l.s16 %v9808
      %v9929 = vunpack.i.h.s16 %v9808
      %v9930 = vunpack.i.l.s16 %v9811
      %v9931 = vunpack.i.h.s16 %v9811
      %v9932 = vunpack.i.l.s16 %v9814
      %v9933 = vunpack.i.h.s16 %v9814
      %v9934 = vunpack.i.l.s16 %v9817
      %v9935 = vunpack.i.h.s16 %v9817
      %v9936 = vunpack.i.l.s16 %v9821
      %v9937 = vunpack.i.h.s16 %v9821
      %v9938 = vunpack.i.l.s16 %v9824
      %v9939 = vunpack.i.h.s16 %v9824
      %v9940 = vunpack.i.l.s16 %v9827
      %v9941 = vunpack.i.h.s16 %v9827
      %v9942 = vunpack.i.l.s16 %v9830
      %v9943 = vunpack.i.h.s16 %v9830
      %v9944 = vunpack.i.l.s16 %v9834
      %v9945 = vunpack.i.h.s16 %v9834
      %v9946 = vunpack.i.l.s16 %v9837
      %v9947 = vunpack.i.h.s16 %v9837
      %v9948 = vunpack.i.l.s16 %v9840
      %v9949 = vunpack.i.h.s16 %v9840
      %v9950 = vunpack.i.l.s16 %v9843
      %v9951 = vunpack.i.h.s16 %v9843
      %v9952 = vunpack.i.l.s16 %v9847
      %v9953 = vunpack.i.h.s16 %v9847
      %v9954 = vunpack.i.l.s16 %v9850
      %v9955 = vunpack.i.h.s16 %v9850
      %v9956 = vunpack.i.l.s16 %v9853
      %v9957 = vunpack.i.h.s16 %v9853
      %v9958 = vunpack.i.l.s16 %v9856
      %v9959 = vunpack.i.h.s16 %v9856
      %v9960 = vunpack.i.l.s16 %v9860
      %v9961 = vunpack.i.h.s16 %v9860
      %v9962 = vunpack.i.l.s16 %v9863
      %v9963 = vunpack.i.h.s16 %v9863
      %v9964 = vunpack.i.l.s16 %v9866
      %v9965 = vunpack.i.h.s16 %v9866
      %v9966 = vunpack.i.l.s16 %v9869
      %v9967 = vunpack.i.h.s16 %v9869
      %v9968 = vunpack.i.l.s16 %v9873
      %v9969 = vunpack.i.h.s16 %v9873
      %v9970 = vunpack.i.l.s16 %v9876
      %v9971 = vunpack.i.h.s16 %v9876
      %v9972 = vunpack.i.l.s16 %v9879
      %v9973 = vunpack.i.h.s16 %v9879
      %v9974 = vunpack.i.l.s16 %v9882
      %v9975 = vunpack.i.h.s16 %v9882
      %v9976 = vunpack.i.l.s16 %v9886
      %v9977 = vunpack.i.h.s16 %v9886
      %v9978 = vunpack.i.l.s16 %v9889
      %v9979 = vunpack.i.h.s16 %v9889
      %v9980 = vunpack.i.l.s16 %v9892
      %v9981 = vunpack.i.h.s16 %v9892
      %v9982 = vunpack.i.l.s16 %v9895
      %v9983 = vunpack.i.h.s16 %v9895
      %v9984 = vunpack.i.l.s16 %v9899
      %v9985 = vunpack.i.h.s16 %v9899
      %v9986 = vunpack.i.l.s16 %v9902
      %v9987 = vunpack.i.h.s16 %v9902
      %v9988 = vunpack.i.l.s16 %v9905
      %v9989 = vunpack.i.h.s16 %v9905
      %v9990 = vunpack.i.l.s16 %v9908
      %v9991 = vpack.i.b16 %v9911, %v9910
      %v9992 = vpack.i.b16 %v9913, %v9912
      %v9993 = vpack.i.b16 %v9915, %v9914
      %v9994 = vpack.i.b16 %v9917, %v9916
      %v9996 = vpack.i.b16 %v9920, %v9919
      %v9997 = vpack.i.b16 %v9922, %v9921
      %v9998 = vpack.i.b16 %v9924, %v9923
      %v9999 = vpack.i.b16 %v9926, %v9925
      %v10001 = vpack.i.b16 %v9929, %v9928
      %v10002 = vpack.i.b16 %v9931, %v9930
      %v10003 = vpack.i.b16 %v9933, %v9932
      %v10004 = vpack.i.b16 %v9935, %v9934
      %v10006 = vpack.i.b16 %v9938, %v9937
      %v10007 = vpack.i.b16 %v9940, %v9939
      %v10008 = vpack.i.b16 %v9942, %v9941
      %v10009 = vpack.i.b16 %v9944, %v9943
      %v10011 = vpack.i.b16 %v9947, %v9946
      %v10012 = vpack.i.b16 %v9949, %v9948
      %v10013 = vpack.i.b16 %v9951, %v9950
      %v10014 = vpack.i.b16 %v9953, %v9952
      %v10016 = vpack.i.b16 %v9956, %v9955
      %v10017 = vpack.i.b16 %v9958, %v9957
      %v10018 = vpack.i.b16 %v9960, %v9959
      %v10019 = vpack.i.b16 %v9962, %v9961
      %v10021 = vpack.i.b16 %v9965, %v9964
      %v10022 = vpack.i.b16 %v9967, %v9966
      %v10023 = vpack.i.b16 %v9969, %v9968
      %v10024 = vpack.i.b16 %v9971, %v9970
      %v10026 = vpack.i.b16 %v9974, %v9973
      %v10027 = vpack.i.b16 %v9976, %v9975
      %v10028 = vpack.i.b16 %v9978, %v9977
      %v10029 = vpack.i.b16 %v9980, %v9979
      %v10031 = vpack.i.b16 %v9983, %v9982
      %v10032 = vpack.i.b16 %v9985, %v9984
      %v10033 = vpack.i.b16 %v9987, %v9986
      %v10034 = vpack.i.b16 %v9989, %v9988
      %10037 = vst [vmem:[#allocation1] ss:$4 sm:$0xff] %v9991
      %s10039 = scalar_lea.vmem [#allocation1], 1
      %10040 = vst [vmem:[%s10039] ss:$4 sm:$0xff] %v9992
      %s10042 = scalar_lea.vmem [#allocation1], 2
      %10043 = vst [vmem:[%s10042] ss:$4 sm:$0xff] %v9993
      %s10045 = scalar_lea.vmem [#allocation1], 3
      %10046 = vst [vmem:[%s10045] ss:$4 sm:$0xff] %v9994
      %s10048 = scalar_lea.vmem [#allocation1], 32
      %10049 = vst [vmem:[%s10048] ss:$4 sm:$0xff] %v9918
      %v10050 = vld [vmem:[#allocation1] sm:$0xff]
      %v10051 = vld [vmem:[#allocation1 + $0x20] sm:$0xff]
      %10053 = vst [vmem:[#allocation1] ss:$4 sm:$0xff] %v9996
      %10055 = vst [vmem:[%s10039] ss:$4 sm:$0xff] %v9997
      %10057 = vst [vmem:[%s10042] ss:$4 sm:$0xff] %v9998
      %10059 = vst [vmem:[%s10045] ss:$4 sm:$0xff] %v9999
      %10061 = vst [vmem:[%s10048] ss:$4 sm:$0xff] %v9927
      %v10062 = vld [vmem:[#allocation1] sm:$0xff]
      %v10063 = vld [vmem:[#allocation1 + $0x20] sm:$0xff]
      %10065 = vst [vmem:[#allocation1] ss:$4 sm:$0xff] %v10001
      %10067 = vst [vmem:[%s10039] ss:$4 sm:$0xff] %v10002
      %10069 = vst [vmem:[%s10042] ss:$4 sm:$0xff] %v10003
      %10071 = vst [vmem:[%s10045] ss:$4 sm:$0xff] %v10004
      %10073 = vst [vmem:[%s10048] ss:$4 sm:$0xff] %v9936
      %v10074 = vld [vmem:[#allocation1] sm:$0xff]
      %v10075 = vld [vmem:[#allocation1 + $0x20] sm:$0xff]
      %10077 = vst [vmem:[#allocation1] ss:$4 sm:$0xff] %v10006
      %10079 = vst [vmem:[%s10039] ss:$4 sm:$0xff] %v10007
      %10081 = vst [vmem:[%s10042] ss:$4 sm:$0xff] %v10008
      %10083 = vst [vmem:[%s10045] ss:$4 sm:$0xff] %v10009
      %10085 = vst [vmem:[%s10048] ss:$4 sm:$0xff] %v9945
      %v10086 = vld [vmem:[#allocation1] sm:$0xff]
      %v10087 = vld [vmem:[#allocation1 + $0x20] sm:$0xff]
      %10089 = vst [vmem:[#allocation1] ss:$4 sm:$0xff] %v10011
      %10091 = vst [vmem:[%s10039] ss:$4 sm:$0xff] %v10012
      %10093 = vst [vmem:[%s10042] ss:$4 sm:$0xff] %v10013
      %10095 = vst [vmem:[%s10045] ss:$4 sm:$0xff] %v10014
      %10097 = vst [vmem:[%s10048] ss:$4 sm:$0xff] %v9954
      %v10098 = vld [vmem:[#allocation1] sm:$0xff]
      %v10099 = vld [vmem:[#allocation1 + $0x20] sm:$0xff]
      %10101 = vst [vmem:[#allocation1] ss:$4 sm:$0xff] %v10016
      %10103 = vst [vmem:[%s10039] ss:$4 sm:$0xff] %v10017
      %10105 = vst [vmem:[%s10042] ss:$4 sm:$0xff] %v10018
      %10107 = vst [vmem:[%s10045] ss:$4 sm:$0xff] %v10019
      %10109 = vst [vmem:[%s10048] ss:$4 sm:$0xff] %v9963
      %v10110 = vld [vmem:[#allocation1] sm:$0xff]
      %v10111 = vld [vmem:[#allocation1 + $0x20] sm:$0xff]
      %10113 = vst [vmem:[#allocation1] ss:$4 sm:$0xff] %v10021
      %10115 = vst [vmem:[%s10039] ss:$4 sm:$0xff] %v10022
      %10117 = vst [vmem:[%s10042] ss:$4 sm:$0xff] %v10023
      %10119 = vst [vmem:[%s10045] ss:$4 sm:$0xff] %v10024
      %10121 = vst [vmem:[%s10048] ss:$4 sm:$0xff] %v9972
      %v10122 = vld [vmem:[#allocation1] sm:$0xff]
      %v10123 = vld [vmem:[#allocation1 + $0x20] sm:$0xff]
      %10125 = vst [vmem:[#allocation1] ss:$4 sm:$0xff] %v10026
      %10127 = vst [vmem:[%s10039] ss:$4 sm:$0xff] %v10027
      %10129 = vst [vmem:[%s10042] ss:$4 sm:$0xff] %v10028
      %10131 = vst [vmem:[%s10045] ss:$4 sm:$0xff] %v10029
      %10133 = vst [vmem:[%s10048] ss:$4 sm:$0xff] %v9981
      %v10134 = vld [vmem:[#allocation1] sm:$0xff]
      %v10135 = vld [vmem:[#allocation1 + $0x20] sm:$0xff]
      %10137 = vst [vmem:[#allocation1] ss:$4 sm:$0xff] %v10031
      %10139 = vst [vmem:[%s10039] ss:$4 sm:$0xff] %v10032
      %10141 = vst [vmem:[%s10042] ss:$4 sm:$0xff] %v10033
      %10143 = vst [vmem:[%s10045] ss:$4 sm:$0xff] %v10034
      %10145 = vst [vmem:[%s10048] ss:$4 sm:$0xff] %v9990
      %v10146 = vld [vmem:[#allocation1] sm:$0xff]
      %v10147 = vld [vmem:[#allocation1 + $0x20] sm:$0xff]
      %vm10166 = vcmask 519168
      %10167 = vst.msk [vmem:[#allocation3] sm:$0xf] %vm10166, %v10050
      %vm10168 = vcmask 516096
      %vm10169 = vmand %vm10168, %vm2442
      %v10170 = vld [vmem:[#allocation3 + $0x4] sm:$0x1]
      %v10171 = vsel %vm10169, %v10051, %v10170
      %10172 = vst [vmem:[#allocation3 + $0x4] sm:$0x1] %v10171
      %10173 = vst.msk [vmem:[#allocation3 + $0x8] sm:$0xf] %vm10166, %v10062
      %v10174 = vld [vmem:[#allocation3 + $0xc] sm:$0x1]
      %v10175 = vsel %vm10169, %v10063, %v10174
      %10176 = vst [vmem:[#allocation3 + $0xc] sm:$0x1] %v10175
      %10177 = vst.msk [vmem:[#allocation3 + $0x10] sm:$0xf] %vm10166, %v10074
      %v10178 = vld [vmem:[#allocation3 + $0x14] sm:$0x1]
      %v10179 = vsel %vm10169, %v10075, %v10178
      %10180 = vst [vmem:[#allocation3 + $0x14] sm:$0x1] %v10179
      %10181 = vst.msk [vmem:[#allocation3 + $0x18] sm:$0xf] %vm10166, %v10086
      %v10182 = vld [vmem:[#allocation3 + $0x1c] sm:$0x1]
      %v10183 = vsel %vm10169, %v10087, %v10182
      %10184 = vst [vmem:[#allocation3 + $0x1c] sm:$0x1] %v10183
      %10185 = vst.msk [vmem:[#allocation3 + $0x20] sm:$0xf] %vm10166, %v10098
      %v10186 = vld [vmem:[#allocation3 + $0x24] sm:$0x1]
      %v10187 = vsel %vm10169, %v10099, %v10186
      %10188 = vst [vmem:[#allocation3 + $0x24] sm:$0x1] %v10187
      %10189 = vst.msk [vmem:[#allocation3 + $0x28] sm:$0xf] %vm10166, %v10110
      %v10190 = vld [vmem:[#allocation3 + $0x2c] sm:$0x1]
      %v10191 = vsel %vm10169, %v10111, %v10190
      %10192 = vst [vmem:[#allocation3 + $0x2c] sm:$0x1] %v10191
      %10193 = vst.msk [vmem:[#allocation3 + $0x30] sm:$0xf] %vm10166, %v10122
      %v10194 = vld [vmem:[#allocation3 + $0x34] sm:$0x1]
      %v10195 = vsel %vm10169, %v10123, %v10194
      %10196 = vst [vmem:[#allocation3 + $0x34] sm:$0x1] %v10195
      %10197 = vst.msk [vmem:[#allocation3 + $0x38] sm:$0xf] %vm10166, %v10134
      %v10198 = vld [vmem:[#allocation3 + $0x3c] sm:$0x1]
      %v10199 = vsel %vm10169, %v10135, %v10198
      %10200 = vst [vmem:[#allocation3 + $0x3c] sm:$0x1] %v10199
      %10201 = vst.msk [vmem:[#allocation3 + $0x40] sm:$0xf] %vm10166, %v10146
      %v10202 = vld [vmem:[#allocation3 + $0x44] sm:$0x1]
      %v10203 = vsel %vm10169, %v10147, %v10202
      %10204 = vst [vmem:[#allocation3 + $0x44] sm:$0x1] %v10203
      %v10205 = vld [vmem:[#allocation3] sm:$0xf]
      %v10206 = vld [vmem:[#allocation3 + $0x8] sm:$0xf]
      %v10207 = vld [vmem:[#allocation3 + $0x10] sm:$0xf]
      %v10208 = vld [vmem:[#allocation3 + $0x18] sm:$0xf]
      %v10209 = vld [vmem:[#allocation3 + $0x20] sm:$0xf]
      %v10210 = vld [vmem:[#allocation3 + $0x28] sm:$0xf]
      %v10211 = vld [vmem:[#allocation3 + $0x30] sm:$0xf]
      %v10219 = vrot.slane %v10205, 3
      %v10220 = vrot.slane %v10206, 3
      %v10221 = vrot.slane %v10207, 3
      %v10222 = vrot.slane %v10208, 3
      %v10223 = vrot.slane %v10209, 3
      %v10224 = vrot.slane %v10210, 3
      %v10225 = vrot.slane %v10211, 3
      %v10228 = vsel %vm2041, %v10205, %v10219
      %v10230 = vsel %vm2046, %v10205, %v10219
      %v10232 = vrot.slane %v10230, 1
      %v10233 = vsel %vm2050, %v10205, %v10219
      %v10235 = vrot.slane %v10233, 2
      %v10236 = vsel %vm2054, %v10205, %v10219
      %v10238 = vrot.slane %v10236, 3
      %v10241 = vsel %vm2041, %v10206, %v10220
      %v10243 = vsel %vm2046, %v10206, %v10220
      %v10245 = vrot.slane %v10243, 1
      %v10246 = vsel %vm2050, %v10206, %v10220
      %v10248 = vrot.slane %v10246, 2
      %v10249 = vsel %vm2054, %v10206, %v10220
      %v10251 = vrot.slane %v10249, 3
      %v10254 = vsel %vm2041, %v10207, %v10221
      %v10256 = vsel %vm2046, %v10207, %v10221
      %v10258 = vrot.slane %v10256, 1
      %v10259 = vsel %vm2050, %v10207, %v10221
      %v10261 = vrot.slane %v10259, 2
      %v10262 = vsel %vm2054, %v10207, %v10221
      %v10264 = vrot.slane %v10262, 3
      %v10267 = vsel %vm2041, %v10208, %v10222
      %v10269 = vsel %vm2046, %v10208, %v10222
      %v10271 = vrot.slane %v10269, 1
      %v10272 = vsel %vm2050, %v10208, %v10222
      %v10274 = vrot.slane %v10272, 2
      %v10275 = vsel %vm2054, %v10208, %v10222
      %v10277 = vrot.slane %v10275, 3
      %v10280 = vsel %vm2041, %v10209, %v10223
      %v10282 = vsel %vm2046, %v10209, %v10223
      %v10284 = vrot.slane %v10282, 1
      %v10285 = vsel %vm2050, %v10209, %v10223
      %v10287 = vrot.slane %v10285, 2
      %v10288 = vsel %vm2054, %v10209, %v10223
      %v10290 = vrot.slane %v10288, 3
      %v10293 = vsel %vm2041, %v10210, %v10224
      %v10295 = vsel %vm2046, %v10210, %v10224
      %v10297 = vrot.slane %v10295, 1
      %v10298 = vsel %vm2050, %v10210, %v10224
      %v10300 = vrot.slane %v10298, 2
      %v10301 = vsel %vm2054, %v10210, %v10224
      %v10303 = vrot.slane %v10301, 3
      %v10306 = vsel %vm2041, %v10211, %v10225
      %v10308 = vsel %vm2046, %v10211, %v10225
      %v10310 = vrot.slane %v10308, 1
      %v10311 = vsel %vm2050, %v10211, %v10225
      %v10313 = vrot.slane %v10311, 2
      %v10314 = vsel %vm2054, %v10211, %v10225
      %v10316 = vrot.slane %v10314, 3
      %v10317 = vunpack.i.l.s16 %v10228
      %v10318 = vunpack.i.h.s16 %v10228
      %v10319 = vunpack.i.l.s16 %v10232
      %v10320 = vunpack.i.h.s16 %v10232
      %v10321 = vunpack.i.l.s16 %v10235
      %v10322 = vunpack.i.h.s16 %v10235
      %v10323 = vunpack.i.l.s16 %v10238
      %v10324 = vunpack.i.l.s16 %v10241
      %v10325 = vunpack.i.h.s16 %v10241
      %v10326 = vunpack.i.l.s16 %v10245
      %v10327 = vunpack.i.h.s16 %v10245
      %v10328 = vunpack.i.l.s16 %v10248
      %v10329 = vunpack.i.h.s16 %v10248
      %v10330 = vunpack.i.l.s16 %v10251
      %v10331 = vunpack.i.l.s16 %v10254
      %v10332 = vunpack.i.h.s16 %v10254
      %v10333 = vunpack.i.l.s16 %v10258
      %v10334 = vunpack.i.h.s16 %v10258
      %v10335 = vunpack.i.l.s16 %v10261
      %v10336 = vunpack.i.h.s16 %v10261
      %v10337 = vunpack.i.l.s16 %v10264
      %v10338 = vunpack.i.l.s16 %v10267
      %v10339 = vunpack.i.h.s16 %v10267
      %v10340 = vunpack.i.l.s16 %v10271
      %v10341 = vunpack.i.h.s16 %v10271
      %v10342 = vunpack.i.l.s16 %v10274
      %v10343 = vunpack.i.h.s16 %v10274
      %v10344 = vunpack.i.l.s16 %v10277
      %v10345 = vunpack.i.l.s16 %v10280
      %v10346 = vunpack.i.h.s16 %v10280
      %v10347 = vunpack.i.l.s16 %v10284
      %v10348 = vunpack.i.h.s16 %v10284
      %v10349 = vunpack.i.l.s16 %v10287
      %v10350 = vunpack.i.h.s16 %v10287
      %v10351 = vunpack.i.l.s16 %v10290
      %v10352 = vunpack.i.l.s16 %v10293
      %v10353 = vunpack.i.h.s16 %v10293
      %v10354 = vunpack.i.l.s16 %v10297
      %v10355 = vunpack.i.h.s16 %v10297
      %v10356 = vunpack.i.l.s16 %v10300
      %v10357 = vunpack.i.h.s16 %v10300
      %v10358 = vunpack.i.l.s16 %v10303
      %v10359 = vunpack.i.l.s16 %v10306
      %v10360 = vunpack.i.h.s16 %v10306
      %v10361 = vunpack.i.l.s16 %v10310
      %v10362 = vunpack.i.h.s16 %v10310
      %v10363 = vunpack.i.l.s16 %v10313
      %v10364 = vunpack.i.h.s16 %v10313
      %v10365 = vunpack.i.l.s16 %v10316
      %v10366 = vpack.i.b16 %v10318, %v10317
      %v10367 = vpack.i.b16 %v10320, %v10319
      %v10368 = vpack.i.b16 %v10322, %v10321
      %v10369 = vpack.i.b16 %v10324, %v10323
      %v10370 = vpack.i.b16 %v10326, %v10325
      %v10371 = vpack.i.b16 %v10328, %v10327
      %v10372 = vpack.i.b16 %v10330, %v10329
      %v10373 = vpack.i.b16 %v10332, %v10331
      %v10374 = vpack.i.b16 %v10334, %v10333
      %v10375 = vpack.i.b16 %v10336, %v10335
      %v10376 = vpack.i.b16 %v10338, %v10337
      %v10377 = vpack.i.b16 %v10340, %v10339
      %v10378 = vpack.i.b16 %v10342, %v10341
      %v10379 = vpack.i.b16 %v10344, %v10343
      %v10380 = vpack.i.b16 %v10346, %v10345
      %v10381 = vpack.i.b16 %v10348, %v10347
      %v10382 = vpack.i.b16 %v10350, %v10349
      %v10383 = vpack.i.b16 %v10352, %v10351
      %v10384 = vpack.i.b16 %v10354, %v10353
      %v10385 = vpack.i.b16 %v10356, %v10355
      %v10386 = vpack.i.b16 %v10358, %v10357
      %v10387 = vpack.i.b16 %v10360, %v10359
      %v10388 = vpack.i.b16 %v10362, %v10361
      %v10389 = vpack.i.b16 %v10364, %v10363
      %10392 = vst [vmem:[#allocation1] ss:$4 sm:$0xff] %v10366
      %s10394 = scalar_lea.vmem [#allocation1], 1
      %10395 = vst [vmem:[%s10394] ss:$4 sm:$0xff] %v10367
      %s10397 = scalar_lea.vmem [#allocation1], 2
      %10398 = vst [vmem:[%s10397] ss:$4 sm:$0xff] %v10368
      %s10400 = scalar_lea.vmem [#allocation1], 3
      %10401 = vst [vmem:[%s10400] ss:$4 sm:$0xff] %v10369
      %s10403 = scalar_lea.vmem [#allocation1], 32
      %10404 = vst [vmem:[%s10403] ss:$4 sm:$0xff] %v10370
      %s10406 = scalar_lea.vmem [#allocation1], 33
      %10407 = vst [vmem:[%s10406] ss:$4 sm:$0xff] %v10371
      %s10409 = scalar_lea.vmem [#allocation1], 34
      %10410 = vst [vmem:[%s10409] ss:$4 sm:$0xff] %v10372
      %s10412 = scalar_lea.vmem [#allocation1], 35
      %10413 = vst [vmem:[%s10412] ss:$4 sm:$0xff] %v10373
      %v10414 = vld [vmem:[#allocation1] sm:$0xff]
      %v10415 = vld [vmem:[#allocation1 + $0x20] sm:$0xff]
      %10417 = vst [vmem:[#allocation1] ss:$4 sm:$0xff] %v10374
      %10419 = vst [vmem:[%s10394] ss:$4 sm:$0xff] %v10375
      %10421 = vst [vmem:[%s10397] ss:$4 sm:$0xff] %v10376
      %10423 = vst [vmem:[%s10400] ss:$4 sm:$0xff] %v10377
      %10425 = vst [vmem:[%s10403] ss:$4 sm:$0xff] %v10378
      %10427 = vst [vmem:[%s10406] ss:$4 sm:$0xff] %v10379
      %10429 = vst [vmem:[%s10409] ss:$4 sm:$0xff] %v10380
      %10431 = vst [vmem:[%s10412] ss:$4 sm:$0xff] %v10381
      %v10432 = vld [vmem:[#allocation1] sm:$0xff]
      %v10433 = vld [vmem:[#allocation1 + $0x20] sm:$0xff]
      %10435 = vst [vmem:[#allocation1] ss:$4 sm:$0xff] %v10382
      %10437 = vst [vmem:[%s10394] ss:$4 sm:$0xff] %v10383
      %10439 = vst [vmem:[%s10397] ss:$4 sm:$0xff] %v10384
      %10441 = vst [vmem:[%s10400] ss:$4 sm:$0xff] %v10385
      %10443 = vst [vmem:[%s10403] ss:$4 sm:$0xff] %v10386
      %10445 = vst [vmem:[%s10406] ss:$4 sm:$0xff] %v10387
      %10447 = vst [vmem:[%s10409] ss:$4 sm:$0xff] %v10388
      %10449 = vst [vmem:[%s10412] ss:$4 sm:$0xff] %v10389
      %v10450 = vld [vmem:[#allocation1] sm:$0xff]
      %v10451 = vld [vmem:[#allocation1 + $0x20] sm:$0xff]
      %10453 = vst [vmem:[#allocation1] ss:$4 sm:$0xff] %v10365
      %v10454 = vld [vmem:[#allocation1] sm:$0xff]
      %10462 = vst.msk [vmem:[#allocation5] sm:$0xf] %vm10166, %v10414
      %10463 = vst.msk [vmem:[#allocation5 + $0x14] sm:$0xf] %vm10166, %v10415
      %10464 = vst.msk [vmem:[#allocation5 + $0x28] sm:$0xf] %vm10166, %v10432
      %10465 = vst.msk [vmem:[#allocation5 + $0x3c] sm:$0xf] %vm10166, %v10433
      %10466 = vst.msk [vmem:[#allocation5 + $0x50] sm:$0xf] %vm10166, %v10450
      %10467 = vst.msk [vmem:[#allocation5 + $0x64] sm:$0xf] %vm10166, %v10451
      %v10468 = vld [vmem:[#allocation5 + $0x78] sm:$0x1]
      %v10469 = vsel %vm10169, %v10454, %v10468
      %10470 = vst [vmem:[#allocation5 + $0x78] sm:$0x1] %v10469
      %v10471 = vld [vmem:[#allocation3] sm:$0xf]
      %v10472 = vld [vmem:[#allocation3 + $0x8] sm:$0xf]
      %v10473 = vld [vmem:[#allocation3 + $0x10] sm:$0xf]
      %v10474 = vld [vmem:[#allocation3 + $0x18] sm:$0xf]
      %v10475 = vld [vmem:[#allocation3 + $0x20] sm:$0xf]
      %v10476 = vld [vmem:[#allocation3 + $0x28] sm:$0xf]
      %v10477 = vld [vmem:[#allocation3 + $0x30] sm:$0xf]
      %v10485 = vrot.slane %v10471, 3
      %v10486 = vrot.slane %v10472, 3
      %v10487 = vrot.slane %v10473, 3
      %v10488 = vrot.slane %v10474, 3
      %v10489 = vrot.slane %v10475, 3
      %v10490 = vrot.slane %v10476, 3
      %v10491 = vrot.slane %v10477, 3
      %v10494 = vsel %vm2041, %v10471, %v10485
      %v10496 = vsel %vm2046, %v10471, %v10485
      %v10498 = vrot.slane %v10496, 1
      %v10499 = vsel %vm2050, %v10471, %v10485
      %v10501 = vrot.slane %v10499, 2
      %v10502 = vsel %vm2054, %v10471, %v10485
      %v10504 = vrot.slane %v10502, 3
      %v10507 = vsel %vm2041, %v10472, %v10486
      %v10509 = vsel %vm2046, %v10472, %v10486
      %v10511 = vrot.slane %v10509, 1
      %v10512 = vsel %vm2050, %v10472, %v10486
      %v10514 = vrot.slane %v10512, 2
      %v10515 = vsel %vm2054, %v10472, %v10486
      %v10517 = vrot.slane %v10515, 3
      %v10520 = vsel %vm2041, %v10473, %v10487
      %v10522 = vsel %vm2046, %v10473, %v10487
      %v10524 = vrot.slane %v10522, 1
      %v10525 = vsel %vm2050, %v10473, %v10487
      %v10527 = vrot.slane %v10525, 2
      %v10528 = vsel %vm2054, %v10473, %v10487
      %v10530 = vrot.slane %v10528, 3
      %v10533 = vsel %vm2041, %v10474, %v10488
      %v10535 = vsel %vm2046, %v10474, %v10488
      %v10537 = vrot.slane %v10535, 1
      %v10538 = vsel %vm2050, %v10474, %v10488
      %v10540 = vrot.slane %v10538, 2
      %v10541 = vsel %vm2054, %v10474, %v10488
      %v10543 = vrot.slane %v10541, 3
      %v10546 = vsel %vm2041, %v10475, %v10489
      %v10548 = vsel %vm2046, %v10475, %v10489
      %v10550 = vrot.slane %v10548, 1
      %v10551 = vsel %vm2050, %v10475, %v10489
      %v10553 = vrot.slane %v10551, 2
      %v10554 = vsel %vm2054, %v10475, %v10489
      %v10556 = vrot.slane %v10554, 3
      %v10559 = vsel %vm2041, %v10476, %v10490
      %v10561 = vsel %vm2046, %v10476, %v10490
      %v10563 = vrot.slane %v10561, 1
      %v10564 = vsel %vm2050, %v10476, %v10490
      %v10566 = vrot.slane %v10564, 2
      %v10567 = vsel %vm2054, %v10476, %v10490
      %v10569 = vrot.slane %v10567, 3
      %v10572 = vsel %vm2041, %v10477, %v10491
      %v10574 = vsel %vm2046, %v10477, %v10491
      %v10576 = vrot.slane %v10574, 1
      %v10577 = vsel %vm2050, %v10477, %v10491
      %v10579 = vrot.slane %v10577, 2
      %v10580 = vsel %vm2054, %v10477, %v10491
      %v10582 = vrot.slane %v10580, 3
      %v10583 = vunpack.i.h.s16 %v10494
      %v10584 = vunpack.i.l.s16 %v10498
      %v10585 = vunpack.i.h.s16 %v10498
      %v10586 = vunpack.i.l.s16 %v10501
      %v10587 = vunpack.i.h.s16 %v10501
      %v10588 = vunpack.i.l.s16 %v10504
      %v10589 = vunpack.i.h.s16 %v10504
      %v10590 = vunpack.i.h.s16 %v10507
      %v10591 = vunpack.i.l.s16 %v10511
      %v10592 = vunpack.i.h.s16 %v10511
      %v10593 = vunpack.i.l.s16 %v10514
      %v10594 = vunpack.i.h.s16 %v10514
      %v10595 = vunpack.i.l.s16 %v10517
      %v10596 = vunpack.i.h.s16 %v10517
      %v10597 = vunpack.i.h.s16 %v10520
      %v10598 = vunpack.i.l.s16 %v10524
      %v10599 = vunpack.i.h.s16 %v10524
      %v10600 = vunpack.i.l.s16 %v10527
      %v10601 = vunpack.i.h.s16 %v10527
      %v10602 = vunpack.i.l.s16 %v10530
      %v10603 = vunpack.i.h.s16 %v10530
      %v10604 = vunpack.i.h.s16 %v10533
      %v10605 = vunpack.i.l.s16 %v10537
      %v10606 = vunpack.i.h.s16 %v10537
      %v10607 = vunpack.i.l.s16 %v10540
      %v10608 = vunpack.i.h.s16 %v10540
      %v10609 = vunpack.i.l.s16 %v10543
      %v10610 = vunpack.i.h.s16 %v10543
      %v10611 = vunpack.i.h.s16 %v10546
      %v10612 = vunpack.i.l.s16 %v10550
      %v10613 = vunpack.i.h.s16 %v10550
      %v10614 = vunpack.i.l.s16 %v10553
      %v10615 = vunpack.i.h.s16 %v10553
      %v10616 = vunpack.i.l.s16 %v10556
      %v10617 = vunpack.i.h.s16 %v10556
      %v10618 = vunpack.i.h.s16 %v10559
      %v10619 = vunpack.i.l.s16 %v10563
      %v10620 = vunpack.i.h.s16 %v10563
      %v10621 = vunpack.i.l.s16 %v10566
      %v10622 = vunpack.i.h.s16 %v10566
      %v10623 = vunpack.i.l.s16 %v10569
      %v10624 = vunpack.i.h.s16 %v10569
      %v10625 = vunpack.i.h.s16 %v10572
      %v10626 = vunpack.i.l.s16 %v10576
      %v10627 = vunpack.i.h.s16 %v10576
      %v10628 = vunpack.i.l.s16 %v10579
      %v10629 = vunpack.i.h.s16 %v10579
      %v10630 = vunpack.i.l.s16 %v10582
      %v10631 = vunpack.i.h.s16 %v10582
      %v10632 = vpack.i.b16 %v10584, %v10583
      %v10633 = vpack.i.b16 %v10586, %v10585
      %v10634 = vpack.i.b16 %v10588, %v10587
      %v10635 = vpack.i.b16 %v10590, %v10589
      %v10636 = vpack.i.b16 %v10592, %v10591
      %v10637 = vpack.i.b16 %v10594, %v10593
      %v10638 = vpack.i.b16 %v10596, %v10595
      %v10639 = vpack.i.b16 %v10598, %v10597
      %v10640 = vpack.i.b16 %v10600, %v10599
      %v10641 = vpack.i.b16 %v10602, %v10601
      %v10642 = vpack.i.b16 %v10604, %v10603
      %v10643 = vpack.i.b16 %v10606, %v10605
      %v10644 = vpack.i.b16 %v10608, %v10607
      %v10645 = vpack.i.b16 %v10610, %v10609
      %v10646 = vpack.i.b16 %v10612, %v10611
      %v10647 = vpack.i.b16 %v10614, %v10613
      %v10648 = vpack.i.b16 %v10616, %v10615
      %v10649 = vpack.i.b16 %v10618, %v10617
      %v10650 = vpack.i.b16 %v10620, %v10619
      %v10651 = vpack.i.b16 %v10622, %v10621
      %v10652 = vpack.i.b16 %v10624, %v10623
      %v10653 = vpack.i.b16 %v10626, %v10625
      %v10654 = vpack.i.b16 %v10628, %v10627
      %v10655 = vpack.i.b16 %v10630, %v10629
      %10658 = vst [vmem:[#allocation1] ss:$4 sm:$0xff] %v10632
      %s10660 = scalar_lea.vmem [#allocation1], 1
      %10661 = vst [vmem:[%s10660] ss:$4 sm:$0xff] %v10633
      %s10663 = scalar_lea.vmem [#allocation1], 2
      %10664 = vst [vmem:[%s10663] ss:$4 sm:$0xff] %v10634
      %s10666 = scalar_lea.vmem [#allocation1], 3
      %10667 = vst [vmem:[%s10666] ss:$4 sm:$0xff] %v10635
      %s10669 = scalar_lea.vmem [#allocation1], 32
      %10670 = vst [vmem:[%s10669] ss:$4 sm:$0xff] %v10636
      %s10672 = scalar_lea.vmem [#allocation1], 33
      %10673 = vst [vmem:[%s10672] ss:$4 sm:$0xff] %v10637
      %s10675 = scalar_lea.vmem [#allocation1], 34
      %10676 = vst [vmem:[%s10675] ss:$4 sm:$0xff] %v10638
      %s10678 = scalar_lea.vmem [#allocation1], 35
      %10679 = vst [vmem:[%s10678] ss:$4 sm:$0xff] %v10639
      %v10680 = vld [vmem:[#allocation1] sm:$0xff]
      %v10682 = vld [vmem:[#allocation1 + $0x20] sm:$0xff]
      %10685 = vst [vmem:[#allocation1] ss:$4 sm:$0xff] %v10640
      %10687 = vst [vmem:[%s10660] ss:$4 sm:$0xff] %v10641
      %10689 = vst [vmem:[%s10663] ss:$4 sm:$0xff] %v10642
      %10691 = vst [vmem:[%s10666] ss:$4 sm:$0xff] %v10643
      %10693 = vst [vmem:[%s10669] ss:$4 sm:$0xff] %v10644
      %10695 = vst [vmem:[%s10672] ss:$4 sm:$0xff] %v10645
      %10697 = vst [vmem:[%s10675] ss:$4 sm:$0xff] %v10646
      %10699 = vst [vmem:[%s10678] ss:$4 sm:$0xff] %v10647
      %v10700 = vld [vmem:[#allocation1] sm:$0xff]
      %v10702 = vld [vmem:[#allocation1 + $0x20] sm:$0xff]
      %10705 = vst [vmem:[#allocation1] ss:$4 sm:$0xff] %v10648
      %10707 = vst [vmem:[%s10660] ss:$4 sm:$0xff] %v10649
      %10709 = vst [vmem:[%s10663] ss:$4 sm:$0xff] %v10650
      %10711 = vst [vmem:[%s10666] ss:$4 sm:$0xff] %v10651
      %10713 = vst [vmem:[%s10669] ss:$4 sm:$0xff] %v10652
      %10715 = vst [vmem:[%s10672] ss:$4 sm:$0xff] %v10653
      %10717 = vst [vmem:[%s10675] ss:$4 sm:$0xff] %v10654
      %10719 = vst [vmem:[%s10678] ss:$4 sm:$0xff] %v10655
      %v10720 = vld [vmem:[#allocation1] sm:$0xff]
      %v10722 = vld [vmem:[#allocation1 + $0x20] sm:$0xff]
      %10725 = vst [vmem:[#allocation1] ss:$4 sm:$0xff] %v10631
      %v10726 = vld [vmem:[#allocation1] sm:$0xff]
      %10728 = vrot.lane.b32.xlu0 %v10680, 64
      %v10729 = vpop.permute.xlu0 %10728
      %10730 = vrot.lane.b32.xlu0 %v10682, 64
      %v10731 = vpop.permute.xlu0 %10730
      %10732 = vrot.lane.b32.xlu0 %v10700, 64
      %v10733 = vpop.permute.xlu0 %10732
      %10734 = vrot.lane.b32.xlu0 %v10702, 64
      %v10735 = vpop.permute.xlu0 %10734
      %10736 = vrot.lane.b32.xlu0 %v10720, 64
      %v10737 = vpop.permute.xlu0 %10736
      %10738 = vrot.lane.b32.xlu0 %v10722, 64
      %v10739 = vpop.permute.xlu0 %10738
      %10740 = vrot.lane.b32.xlu0 %v10726, 64
      %v10741 = vpop.permute.xlu0 %10740
      %vm10749 = vcmask 1043968
      %10750 = vst.msk [vmem:[#allocation5] sm:$0xf] %vm10749, %v10729
      %10751 = vst.msk [vmem:[#allocation5 + $0x14] sm:$0xf] %vm10749, %v10731
      %10752 = vst.msk [vmem:[#allocation5 + $0x28] sm:$0xf] %vm10749, %v10733
      %10753 = vst.msk [vmem:[#allocation5 + $0x3c] sm:$0xf] %vm10749, %v10735
      %10754 = vst.msk [vmem:[#allocation5 + $0x50] sm:$0xf] %vm10749, %v10737
      %10755 = vst.msk [vmem:[#allocation5 + $0x64] sm:$0xf] %vm10749, %v10739
      %vm10756 = vcmask 1040896
      %vm10757 = vmand %vm10756, %vm2442
      %v10758 = vld [vmem:[#allocation5 + $0x78] sm:$0x1]
      %v10759 = vsel %vm10757, %v10741, %v10758
      %10760 = vst [vmem:[#allocation5 + $0x78] sm:$0x1] %v10759
      %v10761 = vld [vmem:[#allocation3] sm:$0xe]
      %v10762 = vld [vmem:[#allocation3 + $0x4] sm:$0x1]
      %v10763 = vld [vmem:[#allocation3 + $0x8] sm:$0xe]
      %v10764 = vld [vmem:[#allocation3 + $0xc] sm:$0x1]
      %v10765 = vld [vmem:[#allocation3 + $0x10] sm:$0xe]
      %v10766 = vld [vmem:[#allocation3 + $0x14] sm:$0x1]
      %v10767 = vld [vmem:[#allocation3 + $0x18] sm:$0xe]
      %v10768 = vld [vmem:[#allocation3 + $0x1c] sm:$0x1]
      %v10769 = vld [vmem:[#allocation3 + $0x20] sm:$0xe]
      %v10770 = vld [vmem:[#allocation3 + $0x24] sm:$0x1]
      %v10771 = vld [vmem:[#allocation3 + $0x28] sm:$0xe]
      %v10772 = vld [vmem:[#allocation3 + $0x2c] sm:$0x1]
      %v10773 = vld [vmem:[#allocation3 + $0x30] sm:$0xe]
      %v10774 = vld [vmem:[#allocation3 + $0x34] sm:$0x1]
      %10776 = vst [vmem:[#allocation1] sm:$0xff] %v10761
      %10778 = vst [vmem:[#allocation1 + $0x20] sm:$0xff] %v10762
      %s10779 = scalar_lea.vmem [#allocation1], 1
      %v10780 = vld [vmem:[%s10779] ss:$4 sm:$0xff]
      %s10782 = scalar_lea.vmem [#allocation1], 2
      %v10783 = vld [vmem:[%s10782] ss:$4 sm:$0xff]
      %s10785 = scalar_lea.vmem [#allocation1], 3
      %v10786 = vld [vmem:[%s10785] ss:$4 sm:$0xff]
      %s10788 = scalar_lea.vmem [#allocation1], 32
      %v10789 = vld [vmem:[%s10788] ss:$4 sm:$0xff]
      %10792 = vst [vmem:[#allocation1] sm:$0xff] %v10763
      %10794 = vst [vmem:[#allocation1 + $0x20] sm:$0xff] %v10764
      %v10795 = vld [vmem:[%s10779] ss:$4 sm:$0xff]
      %v10797 = vld [vmem:[%s10782] ss:$4 sm:$0xff]
      %v10799 = vld [vmem:[%s10785] ss:$4 sm:$0xff]
      %v10801 = vld [vmem:[%s10788] ss:$4 sm:$0xff]
      %10804 = vst [vmem:[#allocation1] sm:$0xff] %v10765
      %10806 = vst [vmem:[#allocation1 + $0x20] sm:$0xff] %v10766
      %v10807 = vld [vmem:[%s10779] ss:$4 sm:$0xff]
      %v10809 = vld [vmem:[%s10782] ss:$4 sm:$0xff]
      %v10811 = vld [vmem:[%s10785] ss:$4 sm:$0xff]
      %v10813 = vld [vmem:[%s10788] ss:$4 sm:$0xff]
      %10816 = vst [vmem:[#allocation1] sm:$0xff] %v10767
      %10818 = vst [vmem:[#allocation1 + $0x20] sm:$0xff] %v10768
      %v10819 = vld [vmem:[%s10779] ss:$4 sm:$0xff]
      %v10821 = vld [vmem:[%s10782] ss:$4 sm:$0xff]
      %v10823 = vld [vmem:[%s10785] ss:$4 sm:$0xff]
      %v10825 = vld [vmem:[%s10788] ss:$4 sm:$0xff]
      %10828 = vst [vmem:[#allocation1] sm:$0xff] %v10769
      %10830 = vst [vmem:[#allocation1 + $0x20] sm:$0xff] %v10770
      %v10831 = vld [vmem:[%s10779] ss:$4 sm:$0xff]
      %v10833 = vld [vmem:[%s10782] ss:$4 sm:$0xff]
      %v10835 = vld [vmem:[%s10785] ss:$4 sm:$0xff]
      %v10837 = vld [vmem:[%s10788] ss:$4 sm:$0xff]
      %10840 = vst [vmem:[#allocation1] sm:$0xff] %v10771
      %10842 = vst [vmem:[#allocation1 + $0x20] sm:$0xff] %v10772
      %v10843 = vld [vmem:[%s10779] ss:$4 sm:$0xff]
      %v10845 = vld [vmem:[%s10782] ss:$4 sm:$0xff]
      %v10847 = vld [vmem:[%s10785] ss:$4 sm:$0xff]
      %v10849 = vld [vmem:[%s10788] ss:$4 sm:$0xff]
      %10852 = vst [vmem:[#allocation1] sm:$0xff] %v10773
      %10854 = vst [vmem:[#allocation1 + $0x20] sm:$0xff] %v10774
      %v10855 = vld [vmem:[%s10779] ss:$4 sm:$0xff]
      %v10857 = vld [vmem:[%s10782] ss:$4 sm:$0xff]
      %v10859 = vld [vmem:[%s10785] ss:$4 sm:$0xff]
      %v10861 = vld [vmem:[%s10788] ss:$4 sm:$0xff]
      %v10863 = vunpack.i.l.s16 %v10780
      %v10864 = vunpack.i.h.s16 %v10780
      %v10865 = vunpack.i.l.s16 %v10783
      %v10866 = vunpack.i.h.s16 %v10783
      %v10867 = vunpack.i.l.s16 %v10786
      %v10868 = vunpack.i.h.s16 %v10786
      %v10869 = vunpack.i.l.s16 %v10789
      %v10870 = vunpack.i.l.s16 %v10795
      %v10871 = vunpack.i.h.s16 %v10795
      %v10872 = vunpack.i.l.s16 %v10797
      %v10873 = vunpack.i.h.s16 %v10797
      %v10874 = vunpack.i.l.s16 %v10799
      %v10875 = vunpack.i.h.s16 %v10799
      %v10876 = vunpack.i.l.s16 %v10801
      %v10877 = vunpack.i.l.s16 %v10807
      %v10878 = vunpack.i.h.s16 %v10807
      %v10879 = vunpack.i.l.s16 %v10809
      %v10880 = vunpack.i.h.s16 %v10809
      %v10881 = vunpack.i.l.s16 %v10811
      %v10882 = vunpack.i.h.s16 %v10811
      %v10883 = vunpack.i.l.s16 %v10813
      %v10884 = vunpack.i.l.s16 %v10819
      %v10885 = vunpack.i.h.s16 %v10819
      %v10886 = vunpack.i.l.s16 %v10821
      %v10887 = vunpack.i.h.s16 %v10821
      %v10888 = vunpack.i.l.s16 %v10823
      %v10889 = vunpack.i.h.s16 %v10823
      %v10890 = vunpack.i.l.s16 %v10825
      %v10891 = vunpack.i.l.s16 %v10831
      %v10892 = vunpack.i.h.s16 %v10831
      %v10893 = vunpack.i.l.s16 %v10833
      %v10894 = vunpack.i.h.s16 %v10833
      %v10895 = vunpack.i.l.s16 %v10835
      %v10896 = vunpack.i.h.s16 %v10835
      %v10897 = vunpack.i.l.s16 %v10837
      %v10898 = vunpack.i.l.s16 %v10843
      %v10899 = vunpack.i.h.s16 %v10843
      %v10900 = vunpack.i.l.s16 %v10845
      %v10901 = vunpack.i.h.s16 %v10845
      %v10902 = vunpack.i.l.s16 %v10847
      %v10903 = vunpack.i.h.s16 %v10847
      %v10904 = vunpack.i.l.s16 %v10849
      %v10905 = vunpack.i.l.s16 %v10855
      %v10906 = vunpack.i.h.s16 %v10855
      %v10907 = vunpack.i.l.s16 %v10857
      %v10908 = vunpack.i.h.s16 %v10857
      %v10909 = vunpack.i.l.s16 %v10859
      %v10910 = vunpack.i.h.s16 %v10859
      %v10911 = vunpack.i.l.s16 %v10861
      %v10912 = vpack.i.b16 %v10864, %v10863
      %v10913 = vpack.i.b16 %v10866, %v10865
      %v10914 = vpack.i.b16 %v10868, %v10867
      %v10915 = vpack.i.b16 %v10870, %v10869
      %v10916 = vpack.i.b16 %v10872, %v10871
      %v10917 = vpack.i.b16 %v10874, %v10873
      %v10918 = vpack.i.b16 %v10876, %v10875
      %v10919 = vpack.i.b16 %v10878, %v10877
      %v10920 = vpack.i.b16 %v10880, %v10879
      %v10921 = vpack.i.b16 %v10882, %v10881
      %v10922 = vpack.i.b16 %v10884, %v10883
      %v10923 = vpack.i.b16 %v10886, %v10885
      %v10924 = vpack.i.b16 %v10888, %v10887
      %v10925 = vpack.i.b16 %v10890, %v10889
      %v10926 = vpack.i.b16 %v10892, %v10891
      %v10927 = vpack.i.b16 %v10894, %v10893
      %v10928 = vpack.i.b16 %v10896, %v10895
      %v10929 = vpack.i.b16 %v10898, %v10897
      %v10930 = vpack.i.b16 %v10900, %v10899
      %v10931 = vpack.i.b16 %v10902, %v10901
      %v10932 = vpack.i.b16 %v10904, %v10903
      %v10933 = vpack.i.b16 %v10906, %v10905
      %v10934 = vpack.i.b16 %v10908, %v10907
      %v10935 = vpack.i.b16 %v10910, %v10909
      %10938 = vst [vmem:[#allocation1] ss:$4 sm:$0xff] %v10912
      %s10940 = scalar_lea.vmem [#allocation1], 1
      %10941 = vst [vmem:[%s10940] ss:$4 sm:$0xff] %v10913
      %s10943 = scalar_lea.vmem [#allocation1], 2
      %10944 = vst [vmem:[%s10943] ss:$4 sm:$0xff] %v10914
      %s10946 = scalar_lea.vmem [#allocation1], 3
      %10947 = vst [vmem:[%s10946] ss:$4 sm:$0xff] %v10915
      %s10949 = scalar_lea.vmem [#allocation1], 32
      %10950 = vst [vmem:[%s10949] ss:$4 sm:$0xff] %v10916
      %s10952 = scalar_lea.vmem [#allocation1], 33
      %10953 = vst [vmem:[%s10952] ss:$4 sm:$0xff] %v10917
      %s10955 = scalar_lea.vmem [#allocation1], 34
      %10956 = vst [vmem:[%s10955] ss:$4 sm:$0xff] %v10918
      %s10958 = scalar_lea.vmem [#allocation1], 35
      %10959 = vst [vmem:[%s10958] ss:$4 sm:$0xff] %v10919
      %v10960 = vld [vmem:[#allocation1] sm:$0xff]
      %v10961 = vld [vmem:[#allocation1 + $0x20] sm:$0xff]
      %10963 = vst [vmem:[#allocation1] ss:$4 sm:$0xff] %v10920
      %10965 = vst [vmem:[%s10940] ss:$4 sm:$0xff] %v10921
      %10967 = vst [vmem:[%s10943] ss:$4 sm:$0xff] %v10922
      %10969 = vst [vmem:[%s10946] ss:$4 sm:$0xff] %v10923
      %10971 = vst [vmem:[%s10949] ss:$4 sm:$0xff] %v10924
      %10973 = vst [vmem:[%s10952] ss:$4 sm:$0xff] %v10925
      %10975 = vst [vmem:[%s10955] ss:$4 sm:$0xff] %v10926
      %10977 = vst [vmem:[%s10958] ss:$4 sm:$0xff] %v10927
      %v10978 = vld [vmem:[#allocation1] sm:$0xff]
      %v10979 = vld [vmem:[#allocation1 + $0x20] sm:$0xff]
      %10981 = vst [vmem:[#allocation1] ss:$4 sm:$0xff] %v10928
      %10983 = vst [vmem:[%s10940] ss:$4 sm:$0xff] %v10929
      %10985 = vst [vmem:[%s10943] ss:$4 sm:$0xff] %v10930
      %10987 = vst [vmem:[%s10946] ss:$4 sm:$0xff] %v10931
      %10989 = vst [vmem:[%s10949] ss:$4 sm:$0xff] %v10932
      %10991 = vst [vmem:[%s10952] ss:$4 sm:$0xff] %v10933
      %10993 = vst [vmem:[%s10955] ss:$4 sm:$0xff] %v10934
      %10995 = vst [vmem:[%s10958] ss:$4 sm:$0xff] %v10935
      %v10996 = vld [vmem:[#allocation1] sm:$0xff]
      %v10997 = vld [vmem:[#allocation1 + $0x20] sm:$0xff]
      %10999 = vst [vmem:[#allocation1] ss:$4 sm:$0xff] %v10911
      %v11000 = vld [vmem:[#allocation1] sm:$0xff]
      %11008 = vst.msk [vmem:[#allocation5 + $0x4] sm:$0xf] %vm10166, %v10960
      %11009 = vst.msk [vmem:[#allocation5 + $0x18] sm:$0xf] %vm10166, %v10961
      %11010 = vst.msk [vmem:[#allocation5 + $0x2c] sm:$0xf] %vm10166, %v10978
      %11011 = vst.msk [vmem:[#allocation5 + $0x40] sm:$0xf] %vm10166, %v10979
      %11012 = vst.msk [vmem:[#allocation5 + $0x54] sm:$0xf] %vm10166, %v10996
      %11013 = vst.msk [vmem:[#allocation5 + $0x68] sm:$0xf] %vm10166, %v10997
      %v11014 = vld [vmem:[#allocation5 + $0x7c] sm:$0x1]
      %v11015 = vsel %vm10169, %v11000, %v11014
      %11016 = vst [vmem:[#allocation5 + $0x7c] sm:$0x1] %v11015
      %s11017 = scalar_lea.vmem [#allocation3], 8
      %v11018 = vld [vmem:[%s11017] sm:$0xf]
      %v11019 = vld [vmem:[%s11017 + $0x8] sm:$0xf]
      %v11020 = vld [vmem:[%s11017 + $0x10] sm:$0xf]
      %v11021 = vld [vmem:[%s11017 + $0x18] sm:$0xf]
      %v11022 = vld [vmem:[%s11017 + $0x20] sm:$0xf]
      %v11023 = vld [vmem:[%s11017 + $0x28] sm:$0xf]
      %v11024 = vld [vmem:[%s11017 + $0x30] sm:$0xf]
      %v11032 = vrot.slane %v11018, 3
      %v11033 = vrot.slane %v11019, 3
      %v11034 = vrot.slane %v11020, 3
      %v11035 = vrot.slane %v11021, 3
      %v11036 = vrot.slane %v11022, 3
      %v11037 = vrot.slane %v11023, 3
      %v11038 = vrot.slane %v11024, 3
      %v11041 = vsel %vm2041, %v11018, %v11032
      %v11043 = vsel %vm2046, %v11018, %v11032
      %v11045 = vrot.slane %v11043, 1
      %v11046 = vsel %vm2050, %v11018, %v11032
      %v11048 = vrot.slane %v11046, 2
      %v11049 = vsel %vm2054, %v11018, %v11032
      %v11051 = vrot.slane %v11049, 3
      %v11054 = vsel %vm2041, %v11019, %v11033
      %v11056 = vsel %vm2046, %v11019, %v11033
      %v11058 = vrot.slane %v11056, 1
      %v11059 = vsel %vm2050, %v11019, %v11033
      %v11061 = vrot.slane %v11059, 2
      %v11062 = vsel %vm2054, %v11019, %v11033
      %v11064 = vrot.slane %v11062, 3
      %v11067 = vsel %vm2041, %v11020, %v11034
      %v11069 = vsel %vm2046, %v11020, %v11034
      %v11071 = vrot.slane %v11069, 1
      %v11072 = vsel %vm2050, %v11020, %v11034
      %v11074 = vrot.slane %v11072, 2
      %v11075 = vsel %vm2054, %v11020, %v11034
      %v11077 = vrot.slane %v11075, 3
      %v11080 = vsel %vm2041, %v11021, %v11035
      %v11082 = vsel %vm2046, %v11021, %v11035
      %v11084 = vrot.slane %v11082, 1
      %v11085 = vsel %vm2050, %v11021, %v11035
      %v11087 = vrot.slane %v11085, 2
      %v11088 = vsel %vm2054, %v11021, %v11035
      %v11090 = vrot.slane %v11088, 3
      %v11093 = vsel %vm2041, %v11022, %v11036
      %v11095 = vsel %vm2046, %v11022, %v11036
      %v11097 = vrot.slane %v11095, 1
      %v11098 = vsel %vm2050, %v11022, %v11036
      %v11100 = vrot.slane %v11098, 2
      %v11101 = vsel %vm2054, %v11022, %v11036
      %v11103 = vrot.slane %v11101, 3
      %v11106 = vsel %vm2041, %v11023, %v11037
      %v11108 = vsel %vm2046, %v11023, %v11037
      %v11110 = vrot.slane %v11108, 1
      %v11111 = vsel %vm2050, %v11023, %v11037
      %v11113 = vrot.slane %v11111, 2
      %v11114 = vsel %vm2054, %v11023, %v11037
      %v11116 = vrot.slane %v11114, 3
      %v11119 = vsel %vm2041, %v11024, %v11038
      %v11121 = vsel %vm2046, %v11024, %v11038
      %v11123 = vrot.slane %v11121, 1
      %v11124 = vsel %vm2050, %v11024, %v11038
      %v11126 = vrot.slane %v11124, 2
      %v11127 = vsel %vm2054, %v11024, %v11038
      %v11129 = vrot.slane %v11127, 3
      %v11130 = vunpack.i.l.s16 %v11041
      %v11131 = vunpack.i.h.s16 %v11041
      %v11132 = vunpack.i.l.s16 %v11045
      %v11133 = vunpack.i.h.s16 %v11045
      %v11134 = vunpack.i.l.s16 %v11048
      %v11135 = vunpack.i.h.s16 %v11048
      %v11136 = vunpack.i.l.s16 %v11051
      %v11137 = vunpack.i.l.s16 %v11054
      %v11138 = vunpack.i.h.s16 %v11054
      %v11139 = vunpack.i.l.s16 %v11058
      %v11140 = vunpack.i.h.s16 %v11058
      %v11141 = vunpack.i.l.s16 %v11061
      %v11142 = vunpack.i.h.s16 %v11061
      %v11143 = vunpack.i.l.s16 %v11064
      %v11144 = vunpack.i.l.s16 %v11067
      %v11145 = vunpack.i.h.s16 %v11067
      %v11146 = vunpack.i.l.s16 %v11071
      %v11147 = vunpack.i.h.s16 %v11071
      %v11148 = vunpack.i.l.s16 %v11074
      %v11149 = vunpack.i.h.s16 %v11074
      %v11150 = vunpack.i.l.s16 %v11077
      %v11151 = vunpack.i.l.s16 %v11080
      %v11152 = vunpack.i.h.s16 %v11080
      %v11153 = vunpack.i.l.s16 %v11084
      %v11154 = vunpack.i.h.s16 %v11084
      %v11155 = vunpack.i.l.s16 %v11087
      %v11156 = vunpack.i.h.s16 %v11087
      %v11157 = vunpack.i.l.s16 %v11090
      %v11158 = vunpack.i.l.s16 %v11093
      %v11159 = vunpack.i.h.s16 %v11093
      %v11160 = vunpack.i.l.s16 %v11097
      %v11161 = vunpack.i.h.s16 %v11097
      %v11162 = vunpack.i.l.s16 %v11100
      %v11163 = vunpack.i.h.s16 %v11100
      %v11164 = vunpack.i.l.s16 %v11103
      %v11165 = vunpack.i.l.s16 %v11106
      %v11166 = vunpack.i.h.s16 %v11106
      %v11167 = vunpack.i.l.s16 %v11110
      %v11168 = vunpack.i.h.s16 %v11110
      %v11169 = vunpack.i.l.s16 %v11113
      %v11170 = vunpack.i.h.s16 %v11113
      %v11171 = vunpack.i.l.s16 %v11116
      %v11172 = vunpack.i.l.s16 %v11119
      %v11173 = vunpack.i.h.s16 %v11119
      %v11174 = vunpack.i.l.s16 %v11123
      %v11175 = vunpack.i.h.s16 %v11123
      %v11176 = vunpack.i.l.s16 %v11126
      %v11177 = vunpack.i.h.s16 %v11126
      %v11178 = vunpack.i.l.s16 %v11129
      %v11179 = vpack.i.b16 %v11131, %v11130
      %v11180 = vpack.i.b16 %v11133, %v11132
      %v11181 = vpack.i.b16 %v11135, %v11134
      %v11182 = vpack.i.b16 %v11137, %v11136
      %v11183 = vpack.i.b16 %v11139, %v11138
      %v11184 = vpack.i.b16 %v11141, %v11140
      %v11185 = vpack.i.b16 %v11143, %v11142
      %v11186 = vpack.i.b16 %v11145, %v11144
      %v11187 = vpack.i.b16 %v11147, %v11146
      %v11188 = vpack.i.b16 %v11149, %v11148
      %v11189 = vpack.i.b16 %v11151, %v11150
      %v11190 = vpack.i.b16 %v11153, %v11152
      %v11191 = vpack.i.b16 %v11155, %v11154
      %v11192 = vpack.i.b16 %v11157, %v11156
      %v11193 = vpack.i.b16 %v11159, %v11158
      %v11194 = vpack.i.b16 %v11161, %v11160
      %v11195 = vpack.i.b16 %v11163, %v11162
      %v11196 = vpack.i.b16 %v11165, %v11164
      %v11197 = vpack.i.b16 %v11167, %v11166
      %v11198 = vpack.i.b16 %v11169, %v11168
      %v11199 = vpack.i.b16 %v11171, %v11170
      %v11200 = vpack.i.b16 %v11173, %v11172
      %v11201 = vpack.i.b16 %v11175, %v11174
      %v11202 = vpack.i.b16 %v11177, %v11176
      %11205 = vst [vmem:[#allocation1] ss:$4 sm:$0xff] %v11179
      %s11207 = scalar_lea.vmem [#allocation1], 1
      %11208 = vst [vmem:[%s11207] ss:$4 sm:$0xff] %v11180
      %s11210 = scalar_lea.vmem [#allocation1], 2
      %11211 = vst [vmem:[%s11210] ss:$4 sm:$0xff] %v11181
      %s11213 = scalar_lea.vmem [#allocation1], 3
      %11214 = vst [vmem:[%s11213] ss:$4 sm:$0xff] %v11182
      %s11216 = scalar_lea.vmem [#allocation1], 32
      %11217 = vst [vmem:[%s11216] ss:$4 sm:$0xff] %v11183
      %s11219 = scalar_lea.vmem [#allocation1], 33
      %11220 = vst [vmem:[%s11219] ss:$4 sm:$0xff] %v11184
      %s11222 = scalar_lea.vmem [#allocation1], 34
      %11223 = vst [vmem:[%s11222] ss:$4 sm:$0xff] %v11185
      %s11225 = scalar_lea.vmem [#allocation1], 35
      %11226 = vst [vmem:[%s11225] ss:$4 sm:$0xff] %v11186
      %v11227 = vld [vmem:[#allocation1] sm:$0xff]
      %v11229 = vld [vmem:[#allocation1 + $0x20] sm:$0xff]
      %11232 = vst [vmem:[#allocation1] ss:$4 sm:$0xff] %v11187
      %11234 = vst [vmem:[%s11207] ss:$4 sm:$0xff] %v11188
      %11236 = vst [vmem:[%s11210] ss:$4 sm:$0xff] %v11189
      %11238 = vst [vmem:[%s11213] ss:$4 sm:$0xff] %v11190
      %11240 = vst [vmem:[%s11216] ss:$4 sm:$0xff] %v11191
      %11242 = vst [vmem:[%s11219] ss:$4 sm:$0xff] %v11192
      %11244 = vst [vmem:[%s11222] ss:$4 sm:$0xff] %v11193
      %11246 = vst [vmem:[%s11225] ss:$4 sm:$0xff] %v11194
      %v11247 = vld [vmem:[#allocation1] sm:$0xff]
      %v11249 = vld [vmem:[#allocation1 + $0x20] sm:$0xff]
      %11252 = vst [vmem:[#allocation1] ss:$4 sm:$0xff] %v11195
      %11254 = vst [vmem:[%s11207] ss:$4 sm:$0xff] %v11196
      %11256 = vst [vmem:[%s11210] ss:$4 sm:$0xff] %v11197
      %11258 = vst [vmem:[%s11213] ss:$4 sm:$0xff] %v11198
      %11260 = vst [vmem:[%s11216] ss:$4 sm:$0xff] %v11199
      %11262 = vst [vmem:[%s11219] ss:$4 sm:$0xff] %v11200
      %11264 = vst [vmem:[%s11222] ss:$4 sm:$0xff] %v11201
      %11266 = vst [vmem:[%s11225] ss:$4 sm:$0xff] %v11202
      %v11267 = vld [vmem:[#allocation1] sm:$0xff]
      %v11269 = vld [vmem:[#allocation1 + $0x20] sm:$0xff]
      %11272 = vst [vmem:[#allocation1] ss:$4 sm:$0xff] %v11178
      %v11273 = vld [vmem:[#allocation1] sm:$0xff]
      %11275 = vrot.lane.b32.xlu0 %v11227, 64
      %v11276 = vpop.permute.xlu0 %11275
      %11277 = vrot.lane.b32.xlu0 %v11229, 64
      %v11278 = vpop.permute.xlu0 %11277
      %11279 = vrot.lane.b32.xlu0 %v11247, 64
      %v11280 = vpop.permute.xlu0 %11279
      %11281 = vrot.lane.b32.xlu0 %v11249, 64
      %v11282 = vpop.permute.xlu0 %11281
      %11283 = vrot.lane.b32.xlu0 %v11267, 64
      %v11284 = vpop.permute.xlu0 %11283
      %11285 = vrot.lane.b32.xlu0 %v11269, 64
      %v11286 = vpop.permute.xlu0 %11285
      %11287 = vrot.lane.b32.xlu0 %v11273, 64
      %v11288 = vpop.permute.xlu0 %11287
      %11296 = vst.msk [vmem:[#allocation5 + $0x4] sm:$0xf] %vm10749, %v11276
      %11297 = vst.msk [vmem:[#allocation5 + $0x18] sm:$0xf] %vm10749, %v11278
      %11298 = vst.msk [vmem:[#allocation5 + $0x2c] sm:$0xf] %vm10749, %v11280
      %11299 = vst.msk [vmem:[#allocation5 + $0x40] sm:$0xf] %vm10749, %v11282
      %11300 = vst.msk [vmem:[#allocation5 + $0x54] sm:$0xf] %vm10749, %v11284
      %11301 = vst.msk [vmem:[#allocation5 + $0x68] sm:$0xf] %vm10749, %v11286
      %v11302 = vld [vmem:[#allocation5 + $0x7c] sm:$0x1]
      %v11303 = vsel %vm10757, %v11288, %v11302
      %11304 = vst [vmem:[#allocation5 + $0x7c] sm:$0x1] %v11303
      %v11305 = vld [vmem:[%s11017] sm:$0xf]
      %v11306 = vld [vmem:[%s11017 + $0x8] sm:$0xf]
      %v11307 = vld [vmem:[%s11017 + $0x10] sm:$0xf]
      %v11308 = vld [vmem:[%s11017 + $0x18] sm:$0xf]
      %v11309 = vld [vmem:[%s11017 + $0x20] sm:$0xf]
      %v11310 = vld [vmem:[%s11017 + $0x28] sm:$0xf]
      %v11311 = vld [vmem:[%s11017 + $0x30] sm:$0xf]
      %v11319 = vrot.slane %v11305, 3
      %v11320 = vrot.slane %v11306, 3
      %v11321 = vrot.slane %v11307, 3
      %v11322 = vrot.slane %v11308, 3
      %v11323 = vrot.slane %v11309, 3
      %v11324 = vrot.slane %v11310, 3
      %v11325 = vrot.slane %v11311, 3
      %v11328 = vsel %vm2041, %v11305, %v11319
      %v11330 = vsel %vm2046, %v11305, %v11319
      %v11332 = vrot.slane %v11330, 1
      %v11333 = vsel %vm2050, %v11305, %v11319
      %v11335 = vrot.slane %v11333, 2
      %v11336 = vsel %vm2054, %v11305, %v11319
      %v11338 = vrot.slane %v11336, 3
      %v11341 = vsel %vm2041, %v11306, %v11320
      %v11343 = vsel %vm2046, %v11306, %v11320
      %v11345 = vrot.slane %v11343, 1
      %v11346 = vsel %vm2050, %v11306, %v11320
      %v11348 = vrot.slane %v11346, 2
      %v11349 = vsel %vm2054, %v11306, %v11320
      %v11351 = vrot.slane %v11349, 3
      %v11354 = vsel %vm2041, %v11307, %v11321
      %v11356 = vsel %vm2046, %v11307, %v11321
      %v11358 = vrot.slane %v11356, 1
      %v11359 = vsel %vm2050, %v11307, %v11321
      %v11361 = vrot.slane %v11359, 2
      %v11362 = vsel %vm2054, %v11307, %v11321
      %v11364 = vrot.slane %v11362, 3
      %v11367 = vsel %vm2041, %v11308, %v11322
      %v11369 = vsel %vm2046, %v11308, %v11322
      %v11371 = vrot.slane %v11369, 1
      %v11372 = vsel %vm2050, %v11308, %v11322
      %v11374 = vrot.slane %v11372, 2
      %v11375 = vsel %vm2054, %v11308, %v11322
      %v11377 = vrot.slane %v11375, 3
      %v11380 = vsel %vm2041, %v11309, %v11323
      %v11382 = vsel %vm2046, %v11309, %v11323
      %v11384 = vrot.slane %v11382, 1
      %v11385 = vsel %vm2050, %v11309, %v11323
      %v11387 = vrot.slane %v11385, 2
      %v11388 = vsel %vm2054, %v11309, %v11323
      %v11390 = vrot.slane %v11388, 3
      %v11393 = vsel %vm2041, %v11310, %v11324
      %v11395 = vsel %vm2046, %v11310, %v11324
      %v11397 = vrot.slane %v11395, 1
      %v11398 = vsel %vm2050, %v11310, %v11324
      %v11400 = vrot.slane %v11398, 2
      %v11401 = vsel %vm2054, %v11310, %v11324
      %v11403 = vrot.slane %v11401, 3
      %v11406 = vsel %vm2041, %v11311, %v11325
      %v11408 = vsel %vm2046, %v11311, %v11325
      %v11410 = vrot.slane %v11408, 1
      %v11411 = vsel %vm2050, %v11311, %v11325
      %v11413 = vrot.slane %v11411, 2
      %v11414 = vsel %vm2054, %v11311, %v11325
      %v11416 = vrot.slane %v11414, 3
      %v11417 = vunpack.i.h.s16 %v11328
      %v11418 = vunpack.i.l.s16 %v11332
      %v11419 = vunpack.i.h.s16 %v11332
      %v11420 = vunpack.i.l.s16 %v11335
      %v11421 = vunpack.i.h.s16 %v11335
      %v11422 = vunpack.i.l.s16 %v11338
      %v11423 = vunpack.i.h.s16 %v11338
      %v11424 = vunpack.i.h.s16 %v11341
      %v11425 = vunpack.i.l.s16 %v11345
      %v11426 = vunpack.i.h.s16 %v11345
      %v11427 = vunpack.i.l.s16 %v11348
      %v11428 = vunpack.i.h.s16 %v11348
      %v11429 = vunpack.i.l.s16 %v11351
      %v11430 = vunpack.i.h.s16 %v11351
      %v11431 = vunpack.i.h.s16 %v11354
      %v11432 = vunpack.i.l.s16 %v11358
      %v11433 = vunpack.i.h.s16 %v11358
      %v11434 = vunpack.i.l.s16 %v11361
      %v11435 = vunpack.i.h.s16 %v11361
      %v11436 = vunpack.i.l.s16 %v11364
      %v11437 = vunpack.i.h.s16 %v11364
      %v11438 = vunpack.i.h.s16 %v11367
      %v11439 = vunpack.i.l.s16 %v11371
      %v11440 = vunpack.i.h.s16 %v11371
      %v11441 = vunpack.i.l.s16 %v11374
      %v11442 = vunpack.i.h.s16 %v11374
      %v11443 = vunpack.i.l.s16 %v11377
      %v11444 = vunpack.i.h.s16 %v11377
      %v11445 = vunpack.i.h.s16 %v11380
      %v11446 = vunpack.i.l.s16 %v11384
      %v11447 = vunpack.i.h.s16 %v11384
      %v11448 = vunpack.i.l.s16 %v11387
      %v11449 = vunpack.i.h.s16 %v11387
      %v11450 = vunpack.i.l.s16 %v11390
      %v11451 = vunpack.i.h.s16 %v11390
      %v11452 = vunpack.i.h.s16 %v11393
      %v11453 = vunpack.i.l.s16 %v11397
      %v11454 = vunpack.i.h.s16 %v11397
      %v11455 = vunpack.i.l.s16 %v11400
      %v11456 = vunpack.i.h.s16 %v11400
      %v11457 = vunpack.i.l.s16 %v11403
      %v11458 = vunpack.i.h.s16 %v11403
      %v11459 = vunpack.i.h.s16 %v11406
      %v11460 = vunpack.i.l.s16 %v11410
      %v11461 = vunpack.i.h.s16 %v11410
      %v11462 = vunpack.i.l.s16 %v11413
      %v11463 = vunpack.i.h.s16 %v11413
      %v11464 = vunpack.i.l.s16 %v11416
      %v11465 = vunpack.i.h.s16 %v11416
      %v11466 = vpack.i.b16 %v11418, %v11417
      %v11467 = vpack.i.b16 %v11420, %v11419
      %v11468 = vpack.i.b16 %v11422, %v11421
      %v11469 = vpack.i.b16 %v11424, %v11423
      %v11470 = vpack.i.b16 %v11426, %v11425
      %v11471 = vpack.i.b16 %v11428, %v11427
      %v11472 = vpack.i.b16 %v11430, %v11429
      %v11473 = vpack.i.b16 %v11432, %v11431
      %v11474 = vpack.i.b16 %v11434, %v11433
      %v11475 = vpack.i.b16 %v11436, %v11435
      %v11476 = vpack.i.b16 %v11438, %v11437
      %v11477 = vpack.i.b16 %v11440, %v11439
      %v11478 = vpack.i.b16 %v11442, %v11441
      %v11479 = vpack.i.b16 %v11444, %v11443
      %v11480 = vpack.i.b16 %v11446, %v11445
      %v11481 = vpack.i.b16 %v11448, %v11447
      %v11482 = vpack.i.b16 %v11450, %v11449
      %v11483 = vpack.i.b16 %v11452, %v11451
      %v11484 = vpack.i.b16 %v11454, %v11453
      %v11485 = vpack.i.b16 %v11456, %v11455
      %v11486 = vpack.i.b16 %v11458, %v11457
      %v11487 = vpack.i.b16 %v11460, %v11459
      %v11488 = vpack.i.b16 %v11462, %v11461
      %v11489 = vpack.i.b16 %v11464, %v11463
      %11492 = vst [vmem:[#allocation1] ss:$4 sm:$0xff] %v11466
      %s11494 = scalar_lea.vmem [#allocation1], 1
      %11495 = vst [vmem:[%s11494] ss:$4 sm:$0xff] %v11467
      %s11497 = scalar_lea.vmem [#allocation1], 2
      %11498 = vst [vmem:[%s11497] ss:$4 sm:$0xff] %v11468
      %s11500 = scalar_lea.vmem [#allocation1], 3
      %11501 = vst [vmem:[%s11500] ss:$4 sm:$0xff] %v11469
      %s11503 = scalar_lea.vmem [#allocation1], 32
      %11504 = vst [vmem:[%s11503] ss:$4 sm:$0xff] %v11470
      %s11506 = scalar_lea.vmem [#allocation1], 33
      %11507 = vst [vmem:[%s11506] ss:$4 sm:$0xff] %v11471
      %s11509 = scalar_lea.vmem [#allocation1], 34
      %11510 = vst [vmem:[%s11509] ss:$4 sm:$0xff] %v11472
      %s11512 = scalar_lea.vmem [#allocation1], 35
      %11513 = vst [vmem:[%s11512] ss:$4 sm:$0xff] %v11473
      %v11514 = vld [vmem:[#allocation1] sm:$0xff]
      %v11515 = vld [vmem:[#allocation1 + $0x20] sm:$0xff]
      %11517 = vst [vmem:[#allocation1] ss:$4 sm:$0xff] %v11474
      %11519 = vst [vmem:[%s11494] ss:$4 sm:$0xff] %v11475
      %11521 = vst [vmem:[%s11497] ss:$4 sm:$0xff] %v11476
      %11523 = vst [vmem:[%s11500] ss:$4 sm:$0xff] %v11477
      %11525 = vst [vmem:[%s11503] ss:$4 sm:$0xff] %v11478
      %11527 = vst [vmem:[%s11506] ss:$4 sm:$0xff] %v11479
      %11529 = vst [vmem:[%s11509] ss:$4 sm:$0xff] %v11480
      %11531 = vst [vmem:[%s11512] ss:$4 sm:$0xff] %v11481
      %v11532 = vld [vmem:[#allocation1] sm:$0xff]
      %v11533 = vld [vmem:[#allocation1 + $0x20] sm:$0xff]
      %11535 = vst [vmem:[#allocation1] ss:$4 sm:$0xff] %v11482
      %11537 = vst [vmem:[%s11494] ss:$4 sm:$0xff] %v11483
      %11539 = vst [vmem:[%s11497] ss:$4 sm:$0xff] %v11484
      %11541 = vst [vmem:[%s11500] ss:$4 sm:$0xff] %v11485
      %11543 = vst [vmem:[%s11503] ss:$4 sm:$0xff] %v11486
      %11545 = vst [vmem:[%s11506] ss:$4 sm:$0xff] %v11487
      %11547 = vst [vmem:[%s11509] ss:$4 sm:$0xff] %v11488
      %11549 = vst [vmem:[%s11512] ss:$4 sm:$0xff] %v11489
      %v11550 = vld [vmem:[#allocation1] sm:$0xff]
      %v11551 = vld [vmem:[#allocation1 + $0x20] sm:$0xff]
      %11553 = vst [vmem:[#allocation1] ss:$4 sm:$0xff] %v11465
      %v11554 = vld [vmem:[#allocation1] sm:$0xff]
      %11562 = vst.msk [vmem:[#allocation5 + $0x8] sm:$0xf] %vm10166, %v11514
      %11563 = vst.msk [vmem:[#allocation5 + $0x1c] sm:$0xf] %vm10166, %v11515
      %11564 = vst.msk [vmem:[#allocation5 + $0x30] sm:$0xf] %vm10166, %v11532
      %11565 = vst.msk [vmem:[#allocation5 + $0x44] sm:$0xf] %vm10166, %v11533
      %11566 = vst.msk [vmem:[#allocation5 + $0x58] sm:$0xf] %vm10166, %v11550
      %11567 = vst.msk [vmem:[#allocation5 + $0x6c] sm:$0xf] %vm10166, %v11551
      %v11568 = vld [vmem:[#allocation5 + $0x80] sm:$0x1]
      %v11569 = vsel %vm10169, %v11554, %v11568
      %11570 = vst [vmem:[#allocation5 + $0x80] sm:$0x1] %v11569
      %v11571 = vld [vmem:[%s11017] sm:$0xe]
      %v11572 = vld [vmem:[%s11017 + $0x4] sm:$0x1]
      %v11573 = vld [vmem:[%s11017 + $0x8] sm:$0xe]
      %v11574 = vld [vmem:[%s11017 + $0xc] sm:$0x1]
      %v11575 = vld [vmem:[%s11017 + $0x10] sm:$0xe]
      %v11576 = vld [vmem:[%s11017 + $0x14] sm:$0x1]
      %v11577 = vld [vmem:[%s11017 + $0x18] sm:$0xe]
      %v11578 = vld [vmem:[%s11017 + $0x1c] sm:$0x1]
      %v11579 = vld [vmem:[%s11017 + $0x20] sm:$0xe]
      %v11580 = vld [vmem:[%s11017 + $0x24] sm:$0x1]
      %v11581 = vld [vmem:[%s11017 + $0x28] sm:$0xe]
      %v11582 = vld [vmem:[%s11017 + $0x2c] sm:$0x1]
      %v11583 = vld [vmem:[%s11017 + $0x30] sm:$0xe]
      %v11584 = vld [vmem:[%s11017 + $0x34] sm:$0x1]
      %11586 = vst [vmem:[#allocation1] sm:$0xff] %v11571
      %11588 = vst [vmem:[#allocation1 + $0x20] sm:$0xff] %v11572
      %s11589 = scalar_lea.vmem [#allocation1], 1
      %v11590 = vld [vmem:[%s11589] ss:$4 sm:$0xff]
      %s11592 = scalar_lea.vmem [#allocation1], 2
      %v11593 = vld [vmem:[%s11592] ss:$4 sm:$0xff]
      %s11595 = scalar_lea.vmem [#allocation1], 3
      %v11596 = vld [vmem:[%s11595] ss:$4 sm:$0xff]
      %s11598 = scalar_lea.vmem [#allocation1], 32
      %v11599 = vld [vmem:[%s11598] ss:$4 sm:$0xff]
      %11602 = vst [vmem:[#allocation1] sm:$0xff] %v11573
      %11604 = vst [vmem:[#allocation1 + $0x20] sm:$0xff] %v11574
      %v11605 = vld [vmem:[%s11589] ss:$4 sm:$0xff]
      %v11607 = vld [vmem:[%s11592] ss:$4 sm:$0xff]
      %v11609 = vld [vmem:[%s11595] ss:$4 sm:$0xff]
      %v11611 = vld [vmem:[%s11598] ss:$4 sm:$0xff]
      %11614 = vst [vmem:[#allocation1] sm:$0xff] %v11575
      %11616 = vst [vmem:[#allocation1 + $0x20] sm:$0xff] %v11576
      %v11617 = vld [vmem:[%s11589] ss:$4 sm:$0xff]
      %v11619 = vld [vmem:[%s11592] ss:$4 sm:$0xff]
      %v11621 = vld [vmem:[%s11595] ss:$4 sm:$0xff]
      %v11623 = vld [vmem:[%s11598] ss:$4 sm:$0xff]
      %11626 = vst [vmem:[#allocation1] sm:$0xff] %v11577
      %11628 = vst [vmem:[#allocation1 + $0x20] sm:$0xff] %v11578
      %v11629 = vld [vmem:[%s11589] ss:$4 sm:$0xff]
      %v11631 = vld [vmem:[%s11592] ss:$4 sm:$0xff]
      %v11633 = vld [vmem:[%s11595] ss:$4 sm:$0xff]
      %v11635 = vld [vmem:[%s11598] ss:$4 sm:$0xff]
      %11638 = vst [vmem:[#allocation1] sm:$0xff] %v11579
      %11640 = vst [vmem:[#allocation1 + $0x20] sm:$0xff] %v11580
      %v11641 = vld [vmem:[%s11589] ss:$4 sm:$0xff]
      %v11643 = vld [vmem:[%s11592] ss:$4 sm:$0xff]
      %v11645 = vld [vmem:[%s11595] ss:$4 sm:$0xff]
      %v11647 = vld [vmem:[%s11598] ss:$4 sm:$0xff]
      %11650 = vst [vmem:[#allocation1] sm:$0xff] %v11581
      %11652 = vst [vmem:[#allocation1 + $0x20] sm:$0xff] %v11582
      %v11653 = vld [vmem:[%s11589] ss:$4 sm:$0xff]
      %v11655 = vld [vmem:[%s11592] ss:$4 sm:$0xff]
      %v11657 = vld [vmem:[%s11595] ss:$4 sm:$0xff]
      %v11659 = vld [vmem:[%s11598] ss:$4 sm:$0xff]
      %11662 = vst [vmem:[#allocation1] sm:$0xff] %v11583
      %11664 = vst [vmem:[#allocation1 + $0x20] sm:$0xff] %v11584
      %v11665 = vld [vmem:[%s11589] ss:$4 sm:$0xff]
      %v11667 = vld [vmem:[%s11592] ss:$4 sm:$0xff]
      %v11669 = vld [vmem:[%s11595] ss:$4 sm:$0xff]
      %v11671 = vld [vmem:[%s11598] ss:$4 sm:$0xff]
      %v11673 = vunpack.i.l.s16 %v11590
      %v11674 = vunpack.i.h.s16 %v11590
      %v11675 = vunpack.i.l.s16 %v11593
      %v11676 = vunpack.i.h.s16 %v11593
      %v11677 = vunpack.i.l.s16 %v11596
      %v11678 = vunpack.i.h.s16 %v11596
      %v11679 = vunpack.i.l.s16 %v11599
      %v11680 = vunpack.i.l.s16 %v11605
      %v11681 = vunpack.i.h.s16 %v11605
      %v11682 = vunpack.i.l.s16 %v11607
      %v11683 = vunpack.i.h.s16 %v11607
      %v11684 = vunpack.i.l.s16 %v11609
      %v11685 = vunpack.i.h.s16 %v11609
      %v11686 = vunpack.i.l.s16 %v11611
      %v11687 = vunpack.i.l.s16 %v11617
      %v11688 = vunpack.i.h.s16 %v11617
      %v11689 = vunpack.i.l.s16 %v11619
      %v11690 = vunpack.i.h.s16 %v11619
      %v11691 = vunpack.i.l.s16 %v11621
      %v11692 = vunpack.i.h.s16 %v11621
      %v11693 = vunpack.i.l.s16 %v11623
      %v11694 = vunpack.i.l.s16 %v11629
      %v11695 = vunpack.i.h.s16 %v11629
      %v11696 = vunpack.i.l.s16 %v11631
      %v11697 = vunpack.i.h.s16 %v11631
      %v11698 = vunpack.i.l.s16 %v11633
      %v11699 = vunpack.i.h.s16 %v11633
      %v11700 = vunpack.i.l.s16 %v11635
      %v11701 = vunpack.i.l.s16 %v11641
      %v11702 = vunpack.i.h.s16 %v11641
      %v11703 = vunpack.i.l.s16 %v11643
      %v11704 = vunpack.i.h.s16 %v11643
      %v11705 = vunpack.i.l.s16 %v11645
      %v11706 = vunpack.i.h.s16 %v11645
      %v11707 = vunpack.i.l.s16 %v11647
      %v11708 = vunpack.i.l.s16 %v11653
      %v11709 = vunpack.i.h.s16 %v11653
      %v11710 = vunpack.i.l.s16 %v11655
      %v11711 = vunpack.i.h.s16 %v11655
      %v11712 = vunpack.i.l.s16 %v11657
      %v11713 = vunpack.i.h.s16 %v11657
      %v11714 = vunpack.i.l.s16 %v11659
      %v11715 = vunpack.i.l.s16 %v11665
      %v11716 = vunpack.i.h.s16 %v11665
      %v11717 = vunpack.i.l.s16 %v11667
      %v11718 = vunpack.i.h.s16 %v11667
      %v11719 = vunpack.i.l.s16 %v11669
      %v11720 = vunpack.i.h.s16 %v11669
      %v11721 = vunpack.i.l.s16 %v11671
      %v11722 = vpack.i.b16 %v11674, %v11673
      %v11723 = vpack.i.b16 %v11676, %v11675
      %v11724 = vpack.i.b16 %v11678, %v11677
      %v11725 = vpack.i.b16 %v11680, %v11679
      %v11726 = vpack.i.b16 %v11682, %v11681
      %v11727 = vpack.i.b16 %v11684, %v11683
      %v11728 = vpack.i.b16 %v11686, %v11685
      %v11729 = vpack.i.b16 %v11688, %v11687
      %v11730 = vpack.i.b16 %v11690, %v11689
      %v11731 = vpack.i.b16 %v11692, %v11691
      %v11732 = vpack.i.b16 %v11694, %v11693
      %v11733 = vpack.i.b16 %v11696, %v11695
      %v11734 = vpack.i.b16 %v11698, %v11697
      %v11735 = vpack.i.b16 %v11700, %v11699
      %v11736 = vpack.i.b16 %v11702, %v11701
      %v11737 = vpack.i.b16 %v11704, %v11703
      %v11738 = vpack.i.b16 %v11706, %v11705
      %v11739 = vpack.i.b16 %v11708, %v11707
      %v11740 = vpack.i.b16 %v11710, %v11709
      %v11741 = vpack.i.b16 %v11712, %v11711
      %v11742 = vpack.i.b16 %v11714, %v11713
      %v11743 = vpack.i.b16 %v11716, %v11715
      %v11744 = vpack.i.b16 %v11718, %v11717
      %v11745 = vpack.i.b16 %v11720, %v11719
      %11748 = vst [vmem:[#allocation1] ss:$4 sm:$0xff] %v11722
      %s11750 = scalar_lea.vmem [#allocation1], 1
      %11751 = vst [vmem:[%s11750] ss:$4 sm:$0xff] %v11723
      %s11753 = scalar_lea.vmem [#allocation1], 2
      %11754 = vst [vmem:[%s11753] ss:$4 sm:$0xff] %v11724
      %s11756 = scalar_lea.vmem [#allocation1], 3
      %11757 = vst [vmem:[%s11756] ss:$4 sm:$0xff] %v11725
      %s11759 = scalar_lea.vmem [#allocation1], 32
      %11760 = vst [vmem:[%s11759] ss:$4 sm:$0xff] %v11726
      %s11762 = scalar_lea.vmem [#allocation1], 33
      %11763 = vst [vmem:[%s11762] ss:$4 sm:$0xff] %v11727
      %s11765 = scalar_lea.vmem [#allocation1], 34
      %11766 = vst [vmem:[%s11765] ss:$4 sm:$0xff] %v11728
      %s11768 = scalar_lea.vmem [#allocation1], 35
      %11769 = vst [vmem:[%s11768] ss:$4 sm:$0xff] %v11729
      %v11770 = vld [vmem:[#allocation1] sm:$0xff]
      %v11772 = vld [vmem:[#allocation1 + $0x20] sm:$0xff]
      %11775 = vst [vmem:[#allocation1] ss:$4 sm:$0xff] %v11730
      %11777 = vst [vmem:[%s11750] ss:$4 sm:$0xff] %v11731
      %11779 = vst [vmem:[%s11753] ss:$4 sm:$0xff] %v11732
      %11781 = vst [vmem:[%s11756] ss:$4 sm:$0xff] %v11733
      %11783 = vst [vmem:[%s11759] ss:$4 sm:$0xff] %v11734
      %11785 = vst [vmem:[%s11762] ss:$4 sm:$0xff] %v11735
      %11787 = vst [vmem:[%s11765] ss:$4 sm:$0xff] %v11736
      %11789 = vst [vmem:[%s11768] ss:$4 sm:$0xff] %v11737
      %v11790 = vld [vmem:[#allocation1] sm:$0xff]
      %v11792 = vld [vmem:[#allocation1 + $0x20] sm:$0xff]
      %11795 = vst [vmem:[#allocation1] ss:$4 sm:$0xff] %v11738
      %11797 = vst [vmem:[%s11750] ss:$4 sm:$0xff] %v11739
      %11799 = vst [vmem:[%s11753] ss:$4 sm:$0xff] %v11740
      %11801 = vst [vmem:[%s11756] ss:$4 sm:$0xff] %v11741
      %11803 = vst [vmem:[%s11759] ss:$4 sm:$0xff] %v11742
      %11805 = vst [vmem:[%s11762] ss:$4 sm:$0xff] %v11743
      %11807 = vst [vmem:[%s11765] ss:$4 sm:$0xff] %v11744
      %11809 = vst [vmem:[%s11768] ss:$4 sm:$0xff] %v11745
      %v11810 = vld [vmem:[#allocation1] sm:$0xff]
      %v11812 = vld [vmem:[#allocation1 + $0x20] sm:$0xff]
      %11815 = vst [vmem:[#allocation1] ss:$4 sm:$0xff] %v11721
      %v11816 = vld [vmem:[#allocation1] sm:$0xff]
      %11818 = vrot.lane.b32.xlu0 %v11770, 64
      %v11819 = vpop.permute.xlu0 %11818
      %11820 = vrot.lane.b32.xlu0 %v11772, 64
      %v11821 = vpop.permute.xlu0 %11820
      %11822 = vrot.lane.b32.xlu0 %v11790, 64
      %v11823 = vpop.permute.xlu0 %11822
      %11824 = vrot.lane.b32.xlu0 %v11792, 64
      %v11825 = vpop.permute.xlu0 %11824
      %11826 = vrot.lane.b32.xlu0 %v11810, 64
      %v11827 = vpop.permute.xlu0 %11826
      %11828 = vrot.lane.b32.xlu0 %v11812, 64
      %v11829 = vpop.permute.xlu0 %11828
      %11830 = vrot.lane.b32.xlu0 %v11816, 64
      %v11831 = vpop.permute.xlu0 %11830
      %11839 = vst.msk [vmem:[#allocation5 + $0x8] sm:$0xf] %vm10749, %v11819
      %11840 = vst.msk [vmem:[#allocation5 + $0x1c] sm:$0xf] %vm10749, %v11821
      %11841 = vst.msk [vmem:[#allocation5 + $0x30] sm:$0xf] %vm10749, %v11823
      %11842 = vst.msk [vmem:[#allocation5 + $0x44] sm:$0xf] %vm10749, %v11825
      %11843 = vst.msk [vmem:[#allocation5 + $0x58] sm:$0xf] %vm10749, %v11827
      %11844 = vst.msk [vmem:[#allocation5 + $0x6c] sm:$0xf] %vm10749, %v11829
      %v11845 = vld [vmem:[#allocation5 + $0x80] sm:$0x1]
      %v11846 = vsel %vm10757, %v11831, %v11845
      %11847 = vst [vmem:[#allocation5 + $0x80] sm:$0x1] %v11846
      %s11848 = scalar_lea.vmem [#allocation3], 16
      %v11849 = vld [vmem:[%s11848] sm:$0xf]
      %v11850 = vld [vmem:[%s11848 + $0x8] sm:$0xf]
      %v11851 = vld [vmem:[%s11848 + $0x10] sm:$0xf]
      %v11852 = vld [vmem:[%s11848 + $0x18] sm:$0xf]
      %v11853 = vld [vmem:[%s11848 + $0x20] sm:$0xf]
      %v11854 = vld [vmem:[%s11848 + $0x28] sm:$0xf]
      %v11855 = vld [vmem:[%s11848 + $0x30] sm:$0xf]
      %v11863 = vrot.slane %v11849, 3
      %v11864 = vrot.slane %v11850, 3
      %v11865 = vrot.slane %v11851, 3
      %v11866 = vrot.slane %v11852, 3
      %v11867 = vrot.slane %v11853, 3
      %v11868 = vrot.slane %v11854, 3
      %v11869 = vrot.slane %v11855, 3
      %v11872 = vsel %vm2041, %v11849, %v11863
      %v11874 = vsel %vm2046, %v11849, %v11863
      %v11876 = vrot.slane %v11874, 1
      %v11877 = vsel %vm2050, %v11849, %v11863
      %v11879 = vrot.slane %v11877, 2
      %v11880 = vsel %vm2054, %v11849, %v11863
      %v11882 = vrot.slane %v11880, 3
      %v11885 = vsel %vm2041, %v11850, %v11864
      %v11887 = vsel %vm2046, %v11850, %v11864
      %v11889 = vrot.slane %v11887, 1
      %v11890 = vsel %vm2050, %v11850, %v11864
      %v11892 = vrot.slane %v11890, 2
      %v11893 = vsel %vm2054, %v11850, %v11864
      %v11895 = vrot.slane %v11893, 3
      %v11898 = vsel %vm2041, %v11851, %v11865
      %v11900 = vsel %vm2046, %v11851, %v11865
      %v11902 = vrot.slane %v11900, 1
      %v11903 = vsel %vm2050, %v11851, %v11865
      %v11905 = vrot.slane %v11903, 2
      %v11906 = vsel %vm2054, %v11851, %v11865
      %v11908 = vrot.slane %v11906, 3
      %v11911 = vsel %vm2041, %v11852, %v11866
      %v11913 = vsel %vm2046, %v11852, %v11866
      %v11915 = vrot.slane %v11913, 1
      %v11916 = vsel %vm2050, %v11852, %v11866
      %v11918 = vrot.slane %v11916, 2
      %v11919 = vsel %vm2054, %v11852, %v11866
      %v11921 = vrot.slane %v11919, 3
      %v11924 = vsel %vm2041, %v11853, %v11867
      %v11926 = vsel %vm2046, %v11853, %v11867
      %v11928 = vrot.slane %v11926, 1
      %v11929 = vsel %vm2050, %v11853, %v11867
      %v11931 = vrot.slane %v11929, 2
      %v11932 = vsel %vm2054, %v11853, %v11867
      %v11934 = vrot.slane %v11932, 3
      %v11937 = vsel %vm2041, %v11854, %v11868
      %v11939 = vsel %vm2046, %v11854, %v11868
      %v11941 = vrot.slane %v11939, 1
      %v11942 = vsel %vm2050, %v11854, %v11868
      %v11944 = vrot.slane %v11942, 2
      %v11945 = vsel %vm2054, %v11854, %v11868
      %v11947 = vrot.slane %v11945, 3
      %v11950 = vsel %vm2041, %v11855, %v11869
      %v11952 = vsel %vm2046, %v11855, %v11869
      %v11954 = vrot.slane %v11952, 1
      %v11955 = vsel %vm2050, %v11855, %v11869
      %v11957 = vrot.slane %v11955, 2
      %v11958 = vsel %vm2054, %v11855, %v11869
      %v11960 = vrot.slane %v11958, 3
      %v11961 = vunpack.i.l.s16 %v11872
      %v11962 = vunpack.i.h.s16 %v11872
      %v11963 = vunpack.i.l.s16 %v11876
      %v11964 = vunpack.i.h.s16 %v11876
      %v11965 = vunpack.i.l.s16 %v11879
      %v11966 = vunpack.i.h.s16 %v11879
      %v11967 = vunpack.i.l.s16 %v11882
      %v11968 = vunpack.i.l.s16 %v11885
      %v11969 = vunpack.i.h.s16 %v11885
      %v11970 = vunpack.i.l.s16 %v11889
      %v11971 = vunpack.i.h.s16 %v11889
      %v11972 = vunpack.i.l.s16 %v11892
      %v11973 = vunpack.i.h.s16 %v11892
      %v11974 = vunpack.i.l.s16 %v11895
      %v11975 = vunpack.i.l.s16 %v11898
      %v11976 = vunpack.i.h.s16 %v11898
      %v11977 = vunpack.i.l.s16 %v11902
      %v11978 = vunpack.i.h.s16 %v11902
      %v11979 = vunpack.i.l.s16 %v11905
      %v11980 = vunpack.i.h.s16 %v11905
      %v11981 = vunpack.i.l.s16 %v11908
      %v11982 = vunpack.i.l.s16 %v11911
      %v11983 = vunpack.i.h.s16 %v11911
      %v11984 = vunpack.i.l.s16 %v11915
      %v11985 = vunpack.i.h.s16 %v11915
      %v11986 = vunpack.i.l.s16 %v11918
      %v11987 = vunpack.i.h.s16 %v11918
      %v11988 = vunpack.i.l.s16 %v11921
      %v11989 = vunpack.i.l.s16 %v11924
      %v11990 = vunpack.i.h.s16 %v11924
      %v11991 = vunpack.i.l.s16 %v11928
      %v11992 = vunpack.i.h.s16 %v11928
      %v11993 = vunpack.i.l.s16 %v11931
      %v11994 = vunpack.i.h.s16 %v11931
      %v11995 = vunpack.i.l.s16 %v11934
      %v11996 = vunpack.i.l.s16 %v11937
      %v11997 = vunpack.i.h.s16 %v11937
      %v11998 = vunpack.i.l.s16 %v11941
      %v11999 = vunpack.i.h.s16 %v11941
      %v12000 = vunpack.i.l.s16 %v11944
      %v12001 = vunpack.i.h.s16 %v11944
      %v12002 = vunpack.i.l.s16 %v11947
      %v12003 = vunpack.i.l.s16 %v11950
      %v12004 = vunpack.i.h.s16 %v11950
      %v12005 = vunpack.i.l.s16 %v11954
      %v12006 = vunpack.i.h.s16 %v11954
      %v12007 = vunpack.i.l.s16 %v11957
      %v12008 = vunpack.i.h.s16 %v11957
      %v12009 = vunpack.i.l.s16 %v11960
      %v12010 = vpack.i.b16 %v11962, %v11961
      %v12011 = vpack.i.b16 %v11964, %v11963
      %v12012 = vpack.i.b16 %v11966, %v11965
      %v12013 = vpack.i.b16 %v11968, %v11967
      %v12014 = vpack.i.b16 %v11970, %v11969
      %v12015 = vpack.i.b16 %v11972, %v11971
      %v12016 = vpack.i.b16 %v11974, %v11973
      %v12017 = vpack.i.b16 %v11976, %v11975
      %v12018 = vpack.i.b16 %v11978, %v11977
      %v12019 = vpack.i.b16 %v11980, %v11979
      %v12020 = vpack.i.b16 %v11982, %v11981
      %v12021 = vpack.i.b16 %v11984, %v11983
      %v12022 = vpack.i.b16 %v11986, %v11985
      %v12023 = vpack.i.b16 %v11988, %v11987
      %v12024 = vpack.i.b16 %v11990, %v11989
      %v12025 = vpack.i.b16 %v11992, %v11991
      %v12026 = vpack.i.b16 %v11994, %v11993
      %v12027 = vpack.i.b16 %v11996, %v11995
      %v12028 = vpack.i.b16 %v11998, %v11997
      %v12029 = vpack.i.b16 %v12000, %v11999
      %v12030 = vpack.i.b16 %v12002, %v12001
      %v12031 = vpack.i.b16 %v12004, %v12003
      %v12032 = vpack.i.b16 %v12006, %v12005
      %v12033 = vpack.i.b16 %v12008, %v12007
      %12036 = vst [vmem:[#allocation1] ss:$4 sm:$0xff] %v12010
      %s12038 = scalar_lea.vmem [#allocation1], 1
      %12039 = vst [vmem:[%s12038] ss:$4 sm:$0xff] %v12011
      %s12041 = scalar_lea.vmem [#allocation1], 2
      %12042 = vst [vmem:[%s12041] ss:$4 sm:$0xff] %v12012
      %s12044 = scalar_lea.vmem [#allocation1], 3
      %12045 = vst [vmem:[%s12044] ss:$4 sm:$0xff] %v12013
      %s12047 = scalar_lea.vmem [#allocation1], 32
      %12048 = vst [vmem:[%s12047] ss:$4 sm:$0xff] %v12014
      %s12050 = scalar_lea.vmem [#allocation1], 33
      %12051 = vst [vmem:[%s12050] ss:$4 sm:$0xff] %v12015
      %s12053 = scalar_lea.vmem [#allocation1], 34
      %12054 = vst [vmem:[%s12053] ss:$4 sm:$0xff] %v12016
      %s12056 = scalar_lea.vmem [#allocation1], 35
      %12057 = vst [vmem:[%s12056] ss:$4 sm:$0xff] %v12017
      %v12058 = vld [vmem:[#allocation1] sm:$0xff]
      %v12059 = vld [vmem:[#allocation1 + $0x20] sm:$0xff]
      %12061 = vst [vmem:[#allocation1] ss:$4 sm:$0xff] %v12018
      %12063 = vst [vmem:[%s12038] ss:$4 sm:$0xff] %v12019
      %12065 = vst [vmem:[%s12041] ss:$4 sm:$0xff] %v12020
      %12067 = vst [vmem:[%s12044] ss:$4 sm:$0xff] %v12021
      %12069 = vst [vmem:[%s12047] ss:$4 sm:$0xff] %v12022
      %12071 = vst [vmem:[%s12050] ss:$4 sm:$0xff] %v12023
      %12073 = vst [vmem:[%s12053] ss:$4 sm:$0xff] %v12024
      %12075 = vst [vmem:[%s12056] ss:$4 sm:$0xff] %v12025
      %v12076 = vld [vmem:[#allocation1] sm:$0xff]
      %v12077 = vld [vmem:[#allocation1 + $0x20] sm:$0xff]
      %12079 = vst [vmem:[#allocation1] ss:$4 sm:$0xff] %v12026
      %12081 = vst [vmem:[%s12038] ss:$4 sm:$0xff] %v12027
      %12083 = vst [vmem:[%s12041] ss:$4 sm:$0xff] %v12028
      %12085 = vst [vmem:[%s12044] ss:$4 sm:$0xff] %v12029
      %12087 = vst [vmem:[%s12047] ss:$4 sm:$0xff] %v12030
      %12089 = vst [vmem:[%s12050] ss:$4 sm:$0xff] %v12031
      %12091 = vst [vmem:[%s12053] ss:$4 sm:$0xff] %v12032
      %12093 = vst [vmem:[%s12056] ss:$4 sm:$0xff] %v12033
      %v12094 = vld [vmem:[#allocation1] sm:$0xff]
      %v12095 = vld [vmem:[#allocation1 + $0x20] sm:$0xff]
      %12097 = vst [vmem:[#allocation1] ss:$4 sm:$0xff] %v12009
      %v12098 = vld [vmem:[#allocation1] sm:$0xff]
      %12106 = vst.msk [vmem:[#allocation5 + $0xc] sm:$0xf] %vm10166, %v12058
      %12107 = vst.msk [vmem:[#allocation5 + $0x20] sm:$0xf] %vm10166, %v12059
      %12108 = vst.msk [vmem:[#allocation5 + $0x34] sm:$0xf] %vm10166, %v12076
      %12109 = vst.msk [vmem:[#allocation5 + $0x48] sm:$0xf] %vm10166, %v12077
      %12110 = vst.msk [vmem:[#allocation5 + $0x5c] sm:$0xf] %vm10166, %v12094
      %12111 = vst.msk [vmem:[#allocation5 + $0x70] sm:$0xf] %vm10166, %v12095
      %v12112 = vld [vmem:[#allocation5 + $0x84] sm:$0x1]
      %v12113 = vsel %vm10169, %v12098, %v12112
      %12114 = vst [vmem:[#allocation5 + $0x84] sm:$0x1] %v12113
      %v12115 = vld [vmem:[%s11848] sm:$0xf]
      %v12116 = vld [vmem:[%s11848 + $0x8] sm:$0xf]
      %v12117 = vld [vmem:[%s11848 + $0x10] sm:$0xf]
      %v12118 = vld [vmem:[%s11848 + $0x18] sm:$0xf]
      %v12119 = vld [vmem:[%s11848 + $0x20] sm:$0xf]
      %v12120 = vld [vmem:[%s11848 + $0x28] sm:$0xf]
      %v12121 = vld [vmem:[%s11848 + $0x30] sm:$0xf]
      %v12129 = vrot.slane %v12115, 3
      %v12130 = vrot.slane %v12116, 3
      %v12131 = vrot.slane %v12117, 3
      %v12132 = vrot.slane %v12118, 3
      %v12133 = vrot.slane %v12119, 3
      %v12134 = vrot.slane %v12120, 3
      %v12135 = vrot.slane %v12121, 3
      %v12138 = vsel %vm2041, %v12115, %v12129
      %v12140 = vsel %vm2046, %v12115, %v12129
      %v12142 = vrot.slane %v12140, 1
      %v12143 = vsel %vm2050, %v12115, %v12129
      %v12145 = vrot.slane %v12143, 2
      %v12146 = vsel %vm2054, %v12115, %v12129
      %v12148 = vrot.slane %v12146, 3
      %v12151 = vsel %vm2041, %v12116, %v12130
      %v12153 = vsel %vm2046, %v12116, %v12130
      %v12155 = vrot.slane %v12153, 1
      %v12156 = vsel %vm2050, %v12116, %v12130
      %v12158 = vrot.slane %v12156, 2
      %v12159 = vsel %vm2054, %v12116, %v12130
      %v12161 = vrot.slane %v12159, 3
      %v12164 = vsel %vm2041, %v12117, %v12131
      %v12166 = vsel %vm2046, %v12117, %v12131
      %v12168 = vrot.slane %v12166, 1
      %v12169 = vsel %vm2050, %v12117, %v12131
      %v12171 = vrot.slane %v12169, 2
      %v12172 = vsel %vm2054, %v12117, %v12131
      %v12174 = vrot.slane %v12172, 3
      %v12177 = vsel %vm2041, %v12118, %v12132
      %v12179 = vsel %vm2046, %v12118, %v12132
      %v12181 = vrot.slane %v12179, 1
      %v12182 = vsel %vm2050, %v12118, %v12132
      %v12184 = vrot.slane %v12182, 2
      %v12185 = vsel %vm2054, %v12118, %v12132
      %v12187 = vrot.slane %v12185, 3
      %v12190 = vsel %vm2041, %v12119, %v12133
      %v12192 = vsel %vm2046, %v12119, %v12133
      %v12194 = vrot.slane %v12192, 1
      %v12195 = vsel %vm2050, %v12119, %v12133
      %v12197 = vrot.slane %v12195, 2
      %v12198 = vsel %vm2054, %v12119, %v12133
      %v12200 = vrot.slane %v12198, 3
      %v12203 = vsel %vm2041, %v12120, %v12134
      %v12205 = vsel %vm2046, %v12120, %v12134
      %v12207 = vrot.slane %v12205, 1
      %v12208 = vsel %vm2050, %v12120, %v12134
      %v12210 = vrot.slane %v12208, 2
      %v12211 = vsel %vm2054, %v12120, %v12134
      %v12213 = vrot.slane %v12211, 3
      %v12216 = vsel %vm2041, %v12121, %v12135
      %v12218 = vsel %vm2046, %v12121, %v12135
      %v12220 = vrot.slane %v12218, 1
      %v12221 = vsel %vm2050, %v12121, %v12135
      %v12223 = vrot.slane %v12221, 2
      %v12224 = vsel %vm2054, %v12121, %v12135
      %v12226 = vrot.slane %v12224, 3
      %v12227 = vunpack.i.h.s16 %v12138
      %v12228 = vunpack.i.l.s16 %v12142
      %v12229 = vunpack.i.h.s16 %v12142
      %v12230 = vunpack.i.l.s16 %v12145
      %v12231 = vunpack.i.h.s16 %v12145
      %v12232 = vunpack.i.l.s16 %v12148
      %v12233 = vunpack.i.h.s16 %v12148
      %v12234 = vunpack.i.h.s16 %v12151
      %v12235 = vunpack.i.l.s16 %v12155
      %v12236 = vunpack.i.h.s16 %v12155
      %v12237 = vunpack.i.l.s16 %v12158
      %v12238 = vunpack.i.h.s16 %v12158
      %v12239 = vunpack.i.l.s16 %v12161
      %v12240 = vunpack.i.h.s16 %v12161
      %v12241 = vunpack.i.h.s16 %v12164
      %v12242 = vunpack.i.l.s16 %v12168
      %v12243 = vunpack.i.h.s16 %v12168
      %v12244 = vunpack.i.l.s16 %v12171
      %v12245 = vunpack.i.h.s16 %v12171
      %v12246 = vunpack.i.l.s16 %v12174
      %v12247 = vunpack.i.h.s16 %v12174
      %v12248 = vunpack.i.h.s16 %v12177
      %v12249 = vunpack.i.l.s16 %v12181
      %v12250 = vunpack.i.h.s16 %v12181
      %v12251 = vunpack.i.l.s16 %v12184
      %v12252 = vunpack.i.h.s16 %v12184
      %v12253 = vunpack.i.l.s16 %v12187
      %v12254 = vunpack.i.h.s16 %v12187
      %v12255 = vunpack.i.h.s16 %v12190
      %v12256 = vunpack.i.l.s16 %v12194
      %v12257 = vunpack.i.h.s16 %v12194
      %v12258 = vunpack.i.l.s16 %v12197
      %v12259 = vunpack.i.h.s16 %v12197
      %v12260 = vunpack.i.l.s16 %v12200
      %v12261 = vunpack.i.h.s16 %v12200
      %v12262 = vunpack.i.h.s16 %v12203
      %v12263 = vunpack.i.l.s16 %v12207
      %v12264 = vunpack.i.h.s16 %v12207
      %v12265 = vunpack.i.l.s16 %v12210
      %v12266 = vunpack.i.h.s16 %v12210
      %v12267 = vunpack.i.l.s16 %v12213
      %v12268 = vunpack.i.h.s16 %v12213
      %v12269 = vunpack.i.h.s16 %v12216
      %v12270 = vunpack.i.l.s16 %v12220
      %v12271 = vunpack.i.h.s16 %v12220
      %v12272 = vunpack.i.l.s16 %v12223
      %v12273 = vunpack.i.h.s16 %v12223
      %v12274 = vunpack.i.l.s16 %v12226
      %v12275 = vunpack.i.h.s16 %v12226
      %v12276 = vpack.i.b16 %v12228, %v12227
      %v12277 = vpack.i.b16 %v12230, %v12229
      %v12278 = vpack.i.b16 %v12232, %v12231
      %v12279 = vpack.i.b16 %v12234, %v12233
      %v12280 = vpack.i.b16 %v12236, %v12235
      %v12281 = vpack.i.b16 %v12238, %v12237
      %v12282 = vpack.i.b16 %v12240, %v12239
      %v12283 = vpack.i.b16 %v12242, %v12241
      %v12284 = vpack.i.b16 %v12244, %v12243
      %v12285 = vpack.i.b16 %v12246, %v12245
      %v12286 = vpack.i.b16 %v12248, %v12247
      %v12287 = vpack.i.b16 %v12250, %v12249
      %v12288 = vpack.i.b16 %v12252, %v12251
      %v12289 = vpack.i.b16 %v12254, %v12253
      %v12290 = vpack.i.b16 %v12256, %v12255
      %v12291 = vpack.i.b16 %v12258, %v12257
      %v12292 = vpack.i.b16 %v12260, %v12259
      %v12293 = vpack.i.b16 %v12262, %v12261
      %v12294 = vpack.i.b16 %v12264, %v12263
      %v12295 = vpack.i.b16 %v12266, %v12265
      %v12296 = vpack.i.b16 %v12268, %v12267
      %v12297 = vpack.i.b16 %v12270, %v12269
      %v12298 = vpack.i.b16 %v12272, %v12271
      %v12299 = vpack.i.b16 %v12274, %v12273
      %12302 = vst [vmem:[#allocation1] ss:$4 sm:$0xff] %v12276
      %s12304 = scalar_lea.vmem [#allocation1], 1
      %12305 = vst [vmem:[%s12304] ss:$4 sm:$0xff] %v12277
      %s12307 = scalar_lea.vmem [#allocation1], 2
      %12308 = vst [vmem:[%s12307] ss:$4 sm:$0xff] %v12278
      %s12310 = scalar_lea.vmem [#allocation1], 3
      %12311 = vst [vmem:[%s12310] ss:$4 sm:$0xff] %v12279
      %s12313 = scalar_lea.vmem [#allocation1], 32
      %12314 = vst [vmem:[%s12313] ss:$4 sm:$0xff] %v12280
      %s12316 = scalar_lea.vmem [#allocation1], 33
      %12317 = vst [vmem:[%s12316] ss:$4 sm:$0xff] %v12281
      %s12319 = scalar_lea.vmem [#allocation1], 34
      %12320 = vst [vmem:[%s12319] ss:$4 sm:$0xff] %v12282
      %s12322 = scalar_lea.vmem [#allocation1], 35
      %12323 = vst [vmem:[%s12322] ss:$4 sm:$0xff] %v12283
      %v12324 = vld [vmem:[#allocation1] sm:$0xff]
      %v12326 = vld [vmem:[#allocation1 + $0x20] sm:$0xff]
      %12329 = vst [vmem:[#allocation1] ss:$4 sm:$0xff] %v12284
      %12331 = vst [vmem:[%s12304] ss:$4 sm:$0xff] %v12285
      %12333 = vst [vmem:[%s12307] ss:$4 sm:$0xff] %v12286
      %12335 = vst [vmem:[%s12310] ss:$4 sm:$0xff] %v12287
      %12337 = vst [vmem:[%s12313] ss:$4 sm:$0xff] %v12288
      %12339 = vst [vmem:[%s12316] ss:$4 sm:$0xff] %v12289
      %12341 = vst [vmem:[%s12319] ss:$4 sm:$0xff] %v12290
      %12343 = vst [vmem:[%s12322] ss:$4 sm:$0xff] %v12291
      %v12344 = vld [vmem:[#allocation1] sm:$0xff]
      %v12346 = vld [vmem:[#allocation1 + $0x20] sm:$0xff]
      %12349 = vst [vmem:[#allocation1] ss:$4 sm:$0xff] %v12292
      %12351 = vst [vmem:[%s12304] ss:$4 sm:$0xff] %v12293
      %12353 = vst [vmem:[%s12307] ss:$4 sm:$0xff] %v12294
      %12355 = vst [vmem:[%s12310] ss:$4 sm:$0xff] %v12295
      %12357 = vst [vmem:[%s12313] ss:$4 sm:$0xff] %v12296
      %12359 = vst [vmem:[%s12316] ss:$4 sm:$0xff] %v12297
      %12361 = vst [vmem:[%s12319] ss:$4 sm:$0xff] %v12298
      %12363 = vst [vmem:[%s12322] ss:$4 sm:$0xff] %v12299
      %v12364 = vld [vmem:[#allocation1] sm:$0xff]
      %v12366 = vld [vmem:[#allocation1 + $0x20] sm:$0xff]
      %12369 = vst [vmem:[#allocation1] ss:$4 sm:$0xff] %v12275
      %v12370 = vld [vmem:[#allocation1] sm:$0xff]
      %12372 = vrot.lane.b32.xlu0 %v12324, 64
      %v12373 = vpop.permute.xlu0 %12372
      %12374 = vrot.lane.b32.xlu0 %v12326, 64
      %v12375 = vpop.permute.xlu0 %12374
      %12376 = vrot.lane.b32.xlu0 %v12344, 64
      %v12377 = vpop.permute.xlu0 %12376
      %12378 = vrot.lane.b32.xlu0 %v12346, 64
      %v12379 = vpop.permute.xlu0 %12378
      %12380 = vrot.lane.b32.xlu0 %v12364, 64
      %v12381 = vpop.permute.xlu0 %12380
      %12382 = vrot.lane.b32.xlu0 %v12366, 64
      %v12383 = vpop.permute.xlu0 %12382
      %12384 = vrot.lane.b32.xlu0 %v12370, 64
      %v12385 = vpop.permute.xlu0 %12384
      %12393 = vst.msk [vmem:[#allocation5 + $0xc] sm:$0xf] %vm10749, %v12373
      %12394 = vst.msk [vmem:[#allocation5 + $0x20] sm:$0xf] %vm10749, %v12375
      %12395 = vst.msk [vmem:[#allocation5 + $0x34] sm:$0xf] %vm10749, %v12377
      %12396 = vst.msk [vmem:[#allocation5 + $0x48] sm:$0xf] %vm10749, %v12379
      %12397 = vst.msk [vmem:[#allocation5 + $0x5c] sm:$0xf] %vm10749, %v12381
      %12398 = vst.msk [vmem:[#allocation5 + $0x70] sm:$0xf] %vm10749, %v12383
      %v12399 = vld [vmem:[#allocation5 + $0x84] sm:$0x1]
      %v12400 = vsel %vm10757, %v12385, %v12399
      %12401 = vst [vmem:[#allocation5 + $0x84] sm:$0x1] %v12400
      %v12402 = vld [vmem:[%s11848] sm:$0xe]
      %v12403 = vld [vmem:[%s11848 + $0x4] sm:$0x1]
      %v12404 = vld [vmem:[%s11848 + $0x8] sm:$0xe]
      %v12405 = vld [vmem:[%s11848 + $0xc] sm:$0x1]
      %v12406 = vld [vmem:[%s11848 + $0x10] sm:$0xe]
      %v12407 = vld [vmem:[%s11848 + $0x14] sm:$0x1]
      %v12408 = vld [vmem:[%s11848 + $0x18] sm:$0xe]
      %v12409 = vld [vmem:[%s11848 + $0x1c] sm:$0x1]
      %v12410 = vld [vmem:[%s11848 + $0x20] sm:$0xe]
      %v12411 = vld [vmem:[%s11848 + $0x24] sm:$0x1]
      %v12412 = vld [vmem:[%s11848 + $0x28] sm:$0xe]
      %v12413 = vld [vmem:[%s11848 + $0x2c] sm:$0x1]
      %v12414 = vld [vmem:[%s11848 + $0x30] sm:$0xe]
      %v12415 = vld [vmem:[%s11848 + $0x34] sm:$0x1]
      %12417 = vst [vmem:[#allocation1] sm:$0xff] %v12402
      %12419 = vst [vmem:[#allocation1 + $0x20] sm:$0xff] %v12403
      %s12420 = scalar_lea.vmem [#allocation1], 1
      %v12421 = vld [vmem:[%s12420] ss:$4 sm:$0xff]
      %s12423 = scalar_lea.vmem [#allocation1], 2
      %v12424 = vld [vmem:[%s12423] ss:$4 sm:$0xff]
      %s12426 = scalar_lea.vmem [#allocation1], 3
      %v12427 = vld [vmem:[%s12426] ss:$4 sm:$0xff]
      %s12429 = scalar_lea.vmem [#allocation1], 32
      %v12430 = vld [vmem:[%s12429] ss:$4 sm:$0xff]
      %12433 = vst [vmem:[#allocation1] sm:$0xff] %v12404
      %12435 = vst [vmem:[#allocation1 + $0x20] sm:$0xff] %v12405
      %v12436 = vld [vmem:[%s12420] ss:$4 sm:$0xff]
      %v12438 = vld [vmem:[%s12423] ss:$4 sm:$0xff]
      %v12440 = vld [vmem:[%s12426] ss:$4 sm:$0xff]
      %v12442 = vld [vmem:[%s12429] ss:$4 sm:$0xff]
      %12445 = vst [vmem:[#allocation1] sm:$0xff] %v12406
      %12447 = vst [vmem:[#allocation1 + $0x20] sm:$0xff] %v12407
      %v12448 = vld [vmem:[%s12420] ss:$4 sm:$0xff]
      %v12450 = vld [vmem:[%s12423] ss:$4 sm:$0xff]
      %v12452 = vld [vmem:[%s12426] ss:$4 sm:$0xff]
      %v12454 = vld [vmem:[%s12429] ss:$4 sm:$0xff]
      %12457 = vst [vmem:[#allocation1] sm:$0xff] %v12408
      %12459 = vst [vmem:[#allocation1 + $0x20] sm:$0xff] %v12409
      %v12460 = vld [vmem:[%s12420] ss:$4 sm:$0xff]
      %v12462 = vld [vmem:[%s12423] ss:$4 sm:$0xff]
      %v12464 = vld [vmem:[%s12426] ss:$4 sm:$0xff]
      %v12466 = vld [vmem:[%s12429] ss:$4 sm:$0xff]
      %12469 = vst [vmem:[#allocation1] sm:$0xff] %v12410
      %12471 = vst [vmem:[#allocation1 + $0x20] sm:$0xff] %v12411
      %v12472 = vld [vmem:[%s12420] ss:$4 sm:$0xff]
      %v12474 = vld [vmem:[%s12423] ss:$4 sm:$0xff]
      %v12476 = vld [vmem:[%s12426] ss:$4 sm:$0xff]
      %v12478 = vld [vmem:[%s12429] ss:$4 sm:$0xff]
      %12481 = vst [vmem:[#allocation1] sm:$0xff] %v12412
      %12483 = vst [vmem:[#allocation1 + $0x20] sm:$0xff] %v12413
      %v12484 = vld [vmem:[%s12420] ss:$4 sm:$0xff]
      %v12486 = vld [vmem:[%s12423] ss:$4 sm:$0xff]
      %v12488 = vld [vmem:[%s12426] ss:$4 sm:$0xff]
      %v12490 = vld [vmem:[%s12429] ss:$4 sm:$0xff]
      %12493 = vst [vmem:[#allocation1] sm:$0xff] %v12414
      %12495 = vst [vmem:[#allocation1 + $0x20] sm:$0xff] %v12415
      %v12496 = vld [vmem:[%s12420] ss:$4 sm:$0xff]
      %v12498 = vld [vmem:[%s12423] ss:$4 sm:$0xff]
      %v12500 = vld [vmem:[%s12426] ss:$4 sm:$0xff]
      %v12502 = vld [vmem:[%s12429] ss:$4 sm:$0xff]
      %v12504 = vunpack.i.l.s16 %v12421
      %v12505 = vunpack.i.h.s16 %v12421
      %v12506 = vunpack.i.l.s16 %v12424
      %v12507 = vunpack.i.h.s16 %v12424
      %v12508 = vunpack.i.l.s16 %v12427
      %v12509 = vunpack.i.h.s16 %v12427
      %v12510 = vunpack.i.l.s16 %v12430
      %v12511 = vunpack.i.l.s16 %v12436
      %v12512 = vunpack.i.h.s16 %v12436
      %v12513 = vunpack.i.l.s16 %v12438
      %v12514 = vunpack.i.h.s16 %v12438
      %v12515 = vunpack.i.l.s16 %v12440
      %v12516 = vunpack.i.h.s16 %v12440
      %v12517 = vunpack.i.l.s16 %v12442
      %v12518 = vunpack.i.l.s16 %v12448
      %v12519 = vunpack.i.h.s16 %v12448
      %v12520 = vunpack.i.l.s16 %v12450
      %v12521 = vunpack.i.h.s16 %v12450
      %v12522 = vunpack.i.l.s16 %v12452
      %v12523 = vunpack.i.h.s16 %v12452
      %v12524 = vunpack.i.l.s16 %v12454
      %v12525 = vunpack.i.l.s16 %v12460
      %v12526 = vunpack.i.h.s16 %v12460
      %v12527 = vunpack.i.l.s16 %v12462
      %v12528 = vunpack.i.h.s16 %v12462
      %v12529 = vunpack.i.l.s16 %v12464
      %v12530 = vunpack.i.h.s16 %v12464
      %v12531 = vunpack.i.l.s16 %v12466
      %v12532 = vunpack.i.l.s16 %v12472
      %v12533 = vunpack.i.h.s16 %v12472
      %v12534 = vunpack.i.l.s16 %v12474
      %v12535 = vunpack.i.h.s16 %v12474
      %v12536 = vunpack.i.l.s16 %v12476
      %v12537 = vunpack.i.h.s16 %v12476
      %v12538 = vunpack.i.l.s16 %v12478
      %v12539 = vunpack.i.l.s16 %v12484
      %v12540 = vunpack.i.h.s16 %v12484
      %v12541 = vunpack.i.l.s16 %v12486
      %v12542 = vunpack.i.h.s16 %v12486
      %v12543 = vunpack.i.l.s16 %v12488
      %v12544 = vunpack.i.h.s16 %v12488
      %v12545 = vunpack.i.l.s16 %v12490
      %v12546 = vunpack.i.l.s16 %v12496
      %v12547 = vunpack.i.h.s16 %v12496
      %v12548 = vunpack.i.l.s16 %v12498
      %v12549 = vunpack.i.h.s16 %v12498
      %v12550 = vunpack.i.l.s16 %v12500
      %v12551 = vunpack.i.h.s16 %v12500
      %v12552 = vunpack.i.l.s16 %v12502
      %v12553 = vpack.i.b16 %v12505, %v12504
      %v12554 = vpack.i.b16 %v12507, %v12506
      %v12555 = vpack.i.b16 %v12509, %v12508
      %v12556 = vpack.i.b16 %v12511, %v12510
      %v12557 = vpack.i.b16 %v12513, %v12512
      %v12558 = vpack.i.b16 %v12515, %v12514
      %v12559 = vpack.i.b16 %v12517, %v12516
      %v12560 = vpack.i.b16 %v12519, %v12518
      %v12561 = vpack.i.b16 %v12521, %v12520
      %v12562 = vpack.i.b16 %v12523, %v12522
      %v12563 = vpack.i.b16 %v12525, %v12524
      %v12564 = vpack.i.b16 %v12527, %v12526
      %v12565 = vpack.i.b16 %v12529, %v12528
      %v12566 = vpack.i.b16 %v12531, %v12530
      %v12567 = vpack.i.b16 %v12533, %v12532
      %v12568 = vpack.i.b16 %v12535, %v12534
      %v12569 = vpack.i.b16 %v12537, %v12536
      %v12570 = vpack.i.b16 %v12539, %v12538
      %v12571 = vpack.i.b16 %v12541, %v12540
      %v12572 = vpack.i.b16 %v12543, %v12542
      %v12573 = vpack.i.b16 %v12545, %v12544
      %v12574 = vpack.i.b16 %v12547, %v12546
      %v12575 = vpack.i.b16 %v12549, %v12548
      %v12576 = vpack.i.b16 %v12551, %v12550
      %12579 = vst [vmem:[#allocation1] ss:$4 sm:$0xff] %v12553
      %s12581 = scalar_lea.vmem [#allocation1], 1
      %12582 = vst [vmem:[%s12581] ss:$4 sm:$0xff] %v12554
      %s12584 = scalar_lea.vmem [#allocation1], 2
      %12585 = vst [vmem:[%s12584] ss:$4 sm:$0xff] %v12555
      %s12587 = scalar_lea.vmem [#allocation1], 3
      %12588 = vst [vmem:[%s12587] ss:$4 sm:$0xff] %v12556
      %s12590 = scalar_lea.vmem [#allocation1], 32
      %12591 = vst [vmem:[%s12590] ss:$4 sm:$0xff] %v12557
      %s12593 = scalar_lea.vmem [#allocation1], 33
      %12594 = vst [vmem:[%s12593] ss:$4 sm:$0xff] %v12558
      %s12596 = scalar_lea.vmem [#allocation1], 34
      %12597 = vst [vmem:[%s12596] ss:$4 sm:$0xff] %v12559
      %s12599 = scalar_lea.vmem [#allocation1], 35
      %12600 = vst [vmem:[%s12599] ss:$4 sm:$0xff] %v12560
      %v12601 = vld [vmem:[#allocation1] sm:$0xff]
      %v12602 = vld [vmem:[#allocation1 + $0x20] sm:$0xff]
      %12604 = vst [vmem:[#allocation1] ss:$4 sm:$0xff] %v12561
      %12606 = vst [vmem:[%s12581] ss:$4 sm:$0xff] %v12562
      %12608 = vst [vmem:[%s12584] ss:$4 sm:$0xff] %v12563
      %12610 = vst [vmem:[%s12587] ss:$4 sm:$0xff] %v12564
      %12612 = vst [vmem:[%s12590] ss:$4 sm:$0xff] %v12565
      %12614 = vst [vmem:[%s12593] ss:$4 sm:$0xff] %v12566
      %12616 = vst [vmem:[%s12596] ss:$4 sm:$0xff] %v12567
      %12618 = vst [vmem:[%s12599] ss:$4 sm:$0xff] %v12568
      %v12619 = vld [vmem:[#allocation1] sm:$0xff]
      %v12620 = vld [vmem:[#allocation1 + $0x20] sm:$0xff]
      %12622 = vst [vmem:[#allocation1] ss:$4 sm:$0xff] %v12569
      %12624 = vst [vmem:[%s12581] ss:$4 sm:$0xff] %v12570
      %12626 = vst [vmem:[%s12584] ss:$4 sm:$0xff] %v12571
      %12628 = vst [vmem:[%s12587] ss:$4 sm:$0xff] %v12572
      %12630 = vst [vmem:[%s12590] ss:$4 sm:$0xff] %v12573
      %12632 = vst [vmem:[%s12593] ss:$4 sm:$0xff] %v12574
      %12634 = vst [vmem:[%s12596] ss:$4 sm:$0xff] %v12575
      %12636 = vst [vmem:[%s12599] ss:$4 sm:$0xff] %v12576
      %v12637 = vld [vmem:[#allocation1] sm:$0xff]
      %v12638 = vld [vmem:[#allocation1 + $0x20] sm:$0xff]
      %12640 = vst [vmem:[#allocation1] ss:$4 sm:$0xff] %v12552
      %v12641 = vld [vmem:[#allocation1] sm:$0xff]
      %12649 = vst.msk [vmem:[#allocation5 + $0x10] sm:$0xf] %vm10166, %v12601
      %12650 = vst.msk [vmem:[#allocation5 + $0x24] sm:$0xf] %vm10166, %v12602
      %12651 = vst.msk [vmem:[#allocation5 + $0x38] sm:$0xf] %vm10166, %v12619
      %12652 = vst.msk [vmem:[#allocation5 + $0x4c] sm:$0xf] %vm10166, %v12620
      %12653 = vst.msk [vmem:[#allocation5 + $0x60] sm:$0xf] %vm10166, %v12637
      %12654 = vst.msk [vmem:[#allocation5 + $0x74] sm:$0xf] %vm10166, %v12638
      %v12655 = vld [vmem:[#allocation5 + $0x88] sm:$0x1]
      %v12656 = vsel %vm10169, %v12641, %v12655
      %12657 = vst [vmem:[#allocation5 + $0x88] sm:$0x1] %v12656
      %v12658 = vld [vmem:[#allocation5] sm:$0xff]
      %v12659 = vld [vmem:[#allocation5 + $0x8] sm:$0xff]
      %v12660 = vld [vmem:[#allocation5 + $0x10] sm:$0xf]
      %v12661 = vld [vmem:[#allocation5 + $0x14] sm:$0xff]
      %v12662 = vld [vmem:[#allocation5 + $0x1c] sm:$0xff]
      %v12663 = vld [vmem:[#allocation5 + $0x24] sm:$0xf]
      %v12664 = vld [vmem:[#allocation5 + $0x28] sm:$0xff]
      %v12665 = vld [vmem:[#allocation5 + $0x30] sm:$0xff]
      %v12666 = vld [vmem:[#allocation5 + $0x38] sm:$0xf]
      %v12667 = vld [vmem:[#allocation5 + $0x3c] sm:$0xff]
      %v12668 = vld [vmem:[#allocation5 + $0x44] sm:$0xff]
      %v12669 = vld [vmem:[#allocation5 + $0x4c] sm:$0xf]
      %v12670 = vld [vmem:[#allocation5 + $0x50] sm:$0xff]
      %v12671 = vld [vmem:[#allocation5 + $0x58] sm:$0xff]
      %v12672 = vld [vmem:[#allocation5 + $0x60] sm:$0xf]
      %v12673 = vld [vmem:[#allocation5 + $0x64] sm:$0xff]
      %v12674 = vld [vmem:[#allocation5 + $0x6c] sm:$0xff]
      %v12675 = vld [vmem:[#allocation5 + $0x74] sm:$0xf]
      %v12676 = vld [vmem:[#allocation5 + $0x78] sm:$0x11]
      %v12677 = vld [vmem:[#allocation5 + $0x80] sm:$0x11]
      %v12678 = vld [vmem:[#allocation5 + $0x88] sm:$0x1]
      %v12679 = vld [vmem:[%s5] sm:$0xf]
      %v12680 = vld [vmem:[%s5 + $0x4] sm:$0xf]
      %v12681 = vld [vmem:[%s5 + $0x8] sm:$0xf]
      %v12682 = vld [vmem:[%s5 + $0xc] sm:$0xf]
      %v12683 = vld [vmem:[%s5 + $0x10] sm:$0xf]
      %v12684 = vld [vmem:[%s5 + $0x14] sm:$0xf]
      %v12685 = vld [vmem:[%s5 + $0x18] sm:$0xf]
      %v12686 = vld [vmem:[%s5 + $0x1c] sm:$0xf]
      %v12687 = vld [vmem:[%s5 + $0x20] sm:$0xf]
      %v12688 = vld [vmem:[%s5 + $0x24] sm:$0xf]
      %v12689 = vld [vmem:[%s5 + $0x28] sm:$0xf]
      %v12690 = vld [vmem:[%s5 + $0x2c] sm:$0xf]
      %v12691 = vld [vmem:[%s5 + $0x30] sm:$0xf]
      %v12692 = vld [vmem:[%s5 + $0x34] sm:$0xf]
      %v12693 = vld [vmem:[%s5 + $0x38] sm:$0xf]
      %v12694 = vld [vmem:[%s5 + $0x3c] sm:$0xf]
      %v12695 = vld [vmem:[%s5 + $0x40] sm:$0xf]
      %v12696 = vld [vmem:[%s5 + $0x44] sm:$0xf]
      %v12697 = vld [vmem:[%s5 + $0x48] sm:$0xf]
      %v12698 = vld [vmem:[%s5 + $0x4c] sm:$0xf]
      %v12699 = vld [vmem:[%s5 + $0x50] sm:$0xf]
      %v12700 = vld [vmem:[%s5 + $0x54] sm:$0xf]
      %v12701 = vld [vmem:[%s5 + $0x58] sm:$0xf]
      %v12702 = vld [vmem:[%s5 + $0x5c] sm:$0xf]
      %v12703 = vld [vmem:[%s5 + $0x60] sm:$0xf]
      %v12704 = vld [vmem:[%s5 + $0x64] sm:$0xf]
      %v12705 = vld [vmem:[%s5 + $0x68] sm:$0xf]
      %v12706 = vld [vmem:[%s5 + $0x6c] sm:$0xf]
      %v12707 = vld [vmem:[%s5 + $0x70] sm:$0xf]
      %v12708 = vld [vmem:[%s5 + $0x74] sm:$0xf]
      %v12709 = vld [vmem:[%s5 + $0x78] sm:$0xf]
      %v12710 = vld [vmem:[%s5 + $0x7c] sm:$0xf]
      %v12711 = vld [vmem:[%s5 + $0x80] sm:$0xf]
      %v12712 = vld [vmem:[%s5 + $0x84] sm:$0xf]
      %v12713 = vld [vmem:[%s5 + $0x88] sm:$0xf]
      %v12714 = vld [vmem:[%s5 + $0x8c] sm:$0xf]
      %v12715 = vld [vmem:[%s5 + $0x90] sm:$0xf]
      %v12716 = vld [vmem:[%s5 + $0x94] sm:$0xf]
      %v12717 = vld [vmem:[%s5 + $0x98] sm:$0xf]
      %v12718 = vld [vmem:[%s5 + $0x9c] sm:$0xf]
      %v12719 = vld [vmem:[%s5 + $0xa0] sm:$0xf]
      %v12720 = vld [vmem:[%s5 + $0xa4] sm:$0xf]
      %v12721 = vld [vmem:[%s5 + $0xa8] sm:$0xf]
      %v12722 = vld [vmem:[%s5 + $0xac] sm:$0xf]
      %v12723 = vld [vmem:[%s5 + $0xb0] sm:$0xf]
      %v12724 = vld [vmem:[%s5 + $0xb4] sm:$0xf]
      %v12725 = vld [vmem:[%s5 + $0xb8] sm:$0xf]
      %v12726 = vld [vmem:[%s5 + $0xbc] sm:$0xf]
      %v12727 = vld [vmem:[%s5 + $0xc0] sm:$0xf]
      %v12728 = vld [vmem:[%s5 + $0xc4] sm:$0xf]
      %v12729 = vld [vmem:[%s5 + $0xc8] sm:$0xf]
      %v12730 = vld [vmem:[%s5 + $0xcc] sm:$0xf]
      %v12731 = vld [vmem:[%s5 + $0xd0] sm:$0xf]
      %v12732 = vld [vmem:[%s5 + $0xd4] sm:$0xf]
      %v12733 = vld [vmem:[%s5 + $0xd8] sm:$0xf]
      %v12734 = vld [vmem:[%s5 + $0xdc] sm:$0xf]
      %v12735 = vld [vmem:[%s5 + $0xe0] sm:$0xf]
      %v12736 = vld [vmem:[%s5 + $0xe4] sm:$0xf]
      %v12737 = vld [vmem:[%s5 + $0xe8] sm:$0xf]
      %v12738 = vld [vmem:[%s5 + $0xec] sm:$0xf]
      %v12739 = vld [vmem:[%s5 + $0xf0] sm:$0xf]
      %v12740 = vld [vmem:[%s5 + $0xf4] sm:$0xf]
      %v12741 = vld [vmem:[%s5 + $0xf8] sm:$0xf]
      %v12742 = vld [vmem:[%s5 + $0xfc] sm:$0xf]
      %v12743 = vld [vmem:[%s5 + $0x100] sm:$0xf]
      %v12744 = vld [vmem:[%s5 + $0x104] sm:$0xf]
      %v12745 = vld [vmem:[%s5 + $0x108] sm:$0xf]
      %v12746 = vld [vmem:[%s5 + $0x10c] sm:$0xf]
      %v12747 = vld [vmem:[%s5 + $0x110] sm:$0xf]
      %v12748 = vld [vmem:[%s5 + $0x114] sm:$0xf]
      %v12749 = vld [vmem:[%s5 + $0x118] sm:$0xf]
      %v12750 = vld [vmem:[%s5 + $0x11c] sm:$0xf]
      %v12752 = vperm.slane %v282, 0
      %v12775 = vunpack.c.l.b16 %v12658
      %v12776 = vunpack.c.h.b16 %v12658
      %v12777 = vunpack.c.l.b16 %v12659
      %v12778 = vunpack.c.h.b16 %v12659
      %v12779 = vunpack.c.l.b16 %v12660
      %v12780 = vunpack.c.l.b16 %v12661
      %v12781 = vunpack.c.h.b16 %v12661
      %v12782 = vunpack.c.l.b16 %v12662
      %v12783 = vunpack.c.h.b16 %v12662
      %v12784 = vunpack.c.l.b16 %v12663
      %v12785 = vunpack.c.l.b16 %v12664
      %v12786 = vunpack.c.h.b16 %v12664
      %v12787 = vunpack.c.l.b16 %v12665
      %v12788 = vunpack.c.h.b16 %v12665
      %v12789 = vunpack.c.l.b16 %v12666
      %v12790 = vunpack.c.l.b16 %v12667
      %v12791 = vunpack.c.h.b16 %v12667
      %v12792 = vunpack.c.l.b16 %v12668
      %v12793 = vunpack.c.h.b16 %v12668
      %v12794 = vunpack.c.l.b16 %v12669
      %v12795 = vunpack.c.l.b16 %v12670
      %v12796 = vunpack.c.h.b16 %v12670
      %v12797 = vunpack.c.l.b16 %v12671
      %v12798 = vunpack.c.h.b16 %v12671
      %v12799 = vunpack.c.l.b16 %v12672
      %v12800 = vunpack.c.l.b16 %v12673
      %v12801 = vunpack.c.h.b16 %v12673
      %v12802 = vunpack.c.l.b16 %v12674
      %v12803 = vunpack.c.h.b16 %v12674
      %v12804 = vunpack.c.l.b16 %v12675
      %v12805 = vunpack.c.l.b16 %v12676
      %v12806 = vunpack.c.h.b16 %v12676
      %v12807 = vunpack.c.l.b16 %v12677
      %v12808 = vunpack.c.h.b16 %v12677
      %v12809 = vunpack.c.l.b16 %v12678
      %v12810 = vpack.c.b16 %v12780, %v12775
      %v12811 = vpack.c.b16 %v12781, %v12776
      %v12812 = vpack.c.b16 %v12782, %v12777
      %v12813 = vpack.c.b16 %v12783, %v12778
      %v12814 = vpack.c.b16 %v12784, %v12779
      %v12815 = vpack.c.b16 %v12790, %v12785
      %v12816 = vpack.c.b16 %v12791, %v12786
      %v12817 = vpack.c.b16 %v12792, %v12787
      %v12818 = vpack.c.b16 %v12793, %v12788
      %v12819 = vpack.c.b16 %v12794, %v12789
      %v12820 = vpack.c.b16 %v12800, %v12795
      %v12821 = vpack.c.b16 %v12801, %v12796
      %v12822 = vpack.c.b16 %v12802, %v12797
      %v12823 = vpack.c.b16 %v12803, %v12798
      %v12824 = vpack.c.b16 %v12804, %v12799
      %v12825 = vpack.c.b16 %v12805, %v12805
      %v12826 = vpack.c.b16 %v12806, %v12806
      %v12827 = vpack.c.b16 %v12807, %v12807
      %v12828 = vpack.c.b16 %v12808, %v12808
      %v12829 = vpack.c.b16 %v12809, %v12809
      %v12918 = vunpack.c.l.b16 %v12679
      %v12919 = vunpack.c.l.b16 %v12680
      %v12920 = vunpack.c.l.b16 %v12681
      %v12921 = vunpack.c.l.b16 %v12682
      %v12922 = vunpack.c.l.b16 %v12683
      %v12923 = vunpack.c.l.b16 %v12684
      %v12924 = vunpack.c.l.b16 %v12685
      %v12925 = vunpack.c.l.b16 %v12686
      %v12926 = vunpack.c.l.b16 %v12687
      %v12927 = vunpack.c.l.b16 %v12688
      %v12928 = vunpack.c.l.b16 %v12689
      %v12929 = vunpack.c.l.b16 %v12690
      %v12930 = vunpack.c.l.b16 %v12691
      %v12931 = vunpack.c.l.b16 %v12692
      %v12932 = vunpack.c.l.b16 %v12693
      %v12933 = vunpack.c.l.b16 %v12694
      %v12934 = vunpack.c.l.b16 %v12695
      %v12935 = vunpack.c.l.b16 %v12696
      %v12936 = vunpack.c.l.b16 %v12697
      %v12937 = vunpack.c.l.b16 %v12698
      %v12938 = vunpack.c.l.b16 %v12699
      %v12939 = vunpack.c.l.b16 %v12700
      %v12940 = vunpack.c.l.b16 %v12701
      %v12941 = vunpack.c.l.b16 %v12702
      %v12942 = vunpack.c.l.b16 %v12703
      %v12943 = vunpack.c.l.b16 %v12704
      %v12944 = vunpack.c.l.b16 %v12705
      %v12945 = vunpack.c.l.b16 %v12706
      %v12946 = vunpack.c.l.b16 %v12707
      %v12947 = vunpack.c.l.b16 %v12708
      %v12948 = vunpack.c.l.b16 %v12709
      %v12949 = vunpack.c.l.b16 %v12710
      %v12950 = vunpack.c.l.b16 %v12711
      %v12951 = vunpack.c.l.b16 %v12712
      %v12952 = vunpack.c.l.b16 %v12713
      %v12953 = vunpack.c.l.b16 %v12714
      %v12954 = vunpack.c.l.b16 %v12715
      %v12955 = vunpack.c.l.b16 %v12716
      %v12956 = vunpack.c.l.b16 %v12717
      %v12957 = vunpack.c.l.b16 %v12718
      %v12958 = vunpack.c.l.b16 %v12719
      %v12959 = vunpack.c.l.b16 %v12720
      %v12960 = vunpack.c.l.b16 %v12721
      %v12961 = vunpack.c.l.b16 %v12722
      %v12962 = vunpack.c.l.b16 %v12723
      %v12963 = vunpack.c.l.b16 %v12724
      %v12964 = vunpack.c.l.b16 %v12725
      %v12965 = vunpack.c.l.b16 %v12726
      %v12966 = vunpack.c.l.b16 %v12727
      %v12967 = vunpack.c.l.b16 %v12728
      %v12968 = vunpack.c.l.b16 %v12729
      %v12969 = vunpack.c.l.b16 %v12730
      %v12970 = vunpack.c.l.b16 %v12731
      %v12971 = vunpack.c.l.b16 %v12732
      %v12972 = vunpack.c.l.b16 %v12733
      %v12973 = vunpack.c.l.b16 %v12734
      %v12974 = vunpack.c.l.b16 %v12735
      %v12975 = vunpack.c.l.b16 %v12736
      %v12976 = vunpack.c.l.b16 %v12737
      %v12977 = vunpack.c.l.b16 %v12738
      %v12978 = vunpack.c.l.b16 %v12739
      %v12979 = vunpack.c.l.b16 %v12740
      %v12980 = vunpack.c.l.b16 %v12741
      %v12981 = vunpack.c.l.b16 %v12742
      %v12982 = vunpack.c.l.b16 %v12743
      %v12983 = vunpack.c.l.b16 %v12744
      %v12984 = vunpack.c.l.b16 %v12745
      %v12985 = vunpack.c.l.b16 %v12746
      %v12986 = vunpack.c.l.b16 %v12747
      %v12987 = vunpack.c.l.b16 %v12748
      %v12988 = vunpack.c.l.b16 %v12749
      %v12989 = vunpack.c.l.b16 %v12750
      %v12990 = vpack.c.b16 %v12919, %v12918
      %v12991 = vpack.c.b16 %v12921, %v12920
      %v12992 = vpack.c.b16 %v12923, %v12922
      %v12993 = vpack.c.b16 %v12925, %v12924
      %v12994 = vpack.c.b16 %v12927, %v12926
      %v12995 = vpack.c.b16 %v12929, %v12928
      %v12996 = vpack.c.b16 %v12931, %v12930
      %v12997 = vpack.c.b16 %v12933, %v12932
      %v12998 = vpack.c.b16 %v12935, %v12934
      %v12999 = vpack.c.b16 %v12937, %v12936
      %v13000 = vpack.c.b16 %v12939, %v12938
      %v13001 = vpack.c.b16 %v12941, %v12940
      %v13002 = vpack.c.b16 %v12943, %v12942
      %v13003 = vpack.c.b16 %v12945, %v12944
      %v13004 = vpack.c.b16 %v12947, %v12946
      %v13005 = vpack.c.b16 %v12949, %v12948
      %v13006 = vpack.c.b16 %v12951, %v12950
      %v13007 = vpack.c.b16 %v12953, %v12952
      %v13008 = vpack.c.b16 %v12955, %v12954
      %v13009 = vpack.c.b16 %v12957, %v12956
      %v13010 = vpack.c.b16 %v12959, %v12958
      %v13011 = vpack.c.b16 %v12961, %v12960
      %v13012 = vpack.c.b16 %v12963, %v12962
      %v13013 = vpack.c.b16 %v12965, %v12964
      %v13014 = vpack.c.b16 %v12967, %v12966
      %v13015 = vpack.c.b16 %v12969, %v12968
      %v13016 = vpack.c.b16 %v12971, %v12970
      %v13017 = vpack.c.b16 %v12973, %v12972
      %v13018 = vpack.c.b16 %v12975, %v12974
      %v13019 = vpack.c.b16 %v12977, %v12976
      %v13020 = vpack.c.b16 %v12979, %v12978
      %v13021 = vpack.c.b16 %v12981, %v12980
      %v13022 = vpack.c.b16 %v12983, %v12982
      %v13023 = vpack.c.b16 %v12985, %v12984
      %v13024 = vpack.c.b16 %v12987, %v12986
      %v13025 = vpack.c.b16 %v12989, %v12988
      %vm13062 = vcmask 523264
      %v13064 = vsel %vm13062, %v12814, 0
      %v13067 = vsel %vm13062, %v12819, 0
      %v13070 = vsel %vm13062, %v12824, 0
      %v13073 = vsel %vm13062, %v12829, 0
      %13075 = vmatpush.bf16.msra.mxu0 %v12997
      %13076 = vmatpush.bf16.msra.mxu0 %v12996
      %13077 = vmatpush.bf16.msra.mxu0 %v12995
      %13078 = vmatpush.bf16.msra.mxu0 %v12994
      %13079 = vmatpush.bf16.msra.mxu0 %v12993
      %13080 = vmatpush.bf16.msra.mxu0 %v12992
      %13081 = vmatpush.bf16.msra.mxu0 %v12991
      %13082 = vmatpush.bf16.msra.mxu0 %v12990
      %13083 = vmatmul.bf16.gmra.mxu0 %v12810
      %v13084 = vpop.f32.mrf.mxu0
      %v13085 = vadd.f32 %v12752, %v13084
      %v13086 = vpop.f32.mrf.mxu0
      %v13087 = vadd.f32 %v12752, %v13086
      %13088 = vmatmul.bf16.gmra.mxu0 %v12815
      %v13089 = vpop.f32.mrf.mxu0
      %v13090 = vadd.f32 %v12752, %v13089
      %v13091 = vpop.f32.mrf.mxu0
      %v13092 = vadd.f32 %v12752, %v13091
      %13093 = vmatmul.bf16.gmra.mxu0 %v12820
      %v13094 = vpop.f32.mrf.mxu0
      %v13095 = vadd.f32 %v12752, %v13094
      %v13096 = vpop.f32.mrf.mxu0
      %v13097 = vadd.f32 %v12752, %v13096
      %13098 = vmatmul.bf16.gmra.mxu0 %v12825
      %v13099 = vpop.f32.mrf.mxu0
      %v13100 = vadd.f32 %v12752, %v13099
      %v13101 = vpop.f32.mrf.mxu0
      %13102 = vdwg.mxu0
      %13103 = vmatpush.bf16.msra.mxu0 %v13005
      %13104 = vmatpush.bf16.msra.mxu0 %v13004
      %13105 = vmatpush.bf16.msra.mxu0 %v13003
      %13106 = vmatpush.bf16.msra.mxu0 %v13002
      %13107 = vmatpush.bf16.msra.mxu0 %v13001
      %13108 = vmatpush.bf16.msra.mxu0 %v13000
      %13109 = vmatpush.bf16.msra.mxu0 %v12999
      %13110 = vmatpush.bf16.msra.mxu0 %v12998
      %13111 = vmatmul.bf16.gmra.mxu0 %v12811
      %v13112 = vpop.f32.mrf.mxu0
      %v13113 = vadd.f32 %v13085, %v13112
      %v13114 = vpop.f32.mrf.mxu0
      %v13115 = vadd.f32 %v13087, %v13114
      %13116 = vmatmul.bf16.gmra.mxu0 %v12816
      %v13117 = vpop.f32.mrf.mxu0
      %v13118 = vadd.f32 %v13090, %v13117
      %v13119 = vpop.f32.mrf.mxu0
      %v13120 = vadd.f32 %v13092, %v13119
      %13121 = vmatmul.bf16.gmra.mxu0 %v12821
      %v13122 = vpop.f32.mrf.mxu0
      %v13123 = vadd.f32 %v13095, %v13122
      %v13124 = vpop.f32.mrf.mxu0
      %v13125 = vadd.f32 %v13097, %v13124
      %13126 = vmatmul.bf16.gmra.mxu0 %v12826
      %v13127 = vpop.f32.mrf.mxu0
      %v13128 = vadd.f32 %v13100, %v13127
      %v13129 = vpop.f32.mrf.mxu0
      %13130 = vdwg.mxu0
      %13131 = vmatpush.bf16.msra.mxu0 %v13013
      %13132 = vmatpush.bf16.msra.mxu0 %v13012
      %13133 = vmatpush.bf16.msra.mxu0 %v13011
      %13134 = vmatpush.bf16.msra.mxu0 %v13010
      %13135 = vmatpush.bf16.msra.mxu0 %v13009
      %13136 = vmatpush.bf16.msra.mxu0 %v13008
      %13137 = vmatpush.bf16.msra.mxu0 %v13007
      %13138 = vmatpush.bf16.msra.mxu0 %v13006
      %13139 = vmatmul.bf16.gmra.mxu0 %v12812
      %v13140 = vpop.f32.mrf.mxu0
      %v13141 = vadd.f32 %v13113, %v13140
      %v13142 = vpop.f32.mrf.mxu0
      %v13143 = vadd.f32 %v13115, %v13142
      %13144 = vmatmul.bf16.gmra.mxu0 %v12817
      %v13145 = vpop.f32.mrf.mxu0
      %v13146 = vadd.f32 %v13118, %v13145
      %v13147 = vpop.f32.mrf.mxu0
      %v13148 = vadd.f32 %v13120, %v13147
      %13149 = vmatmul.bf16.gmra.mxu0 %v12822
      %v13150 = vpop.f32.mrf.mxu0
      %v13151 = vadd.f32 %v13123, %v13150
      %v13152 = vpop.f32.mrf.mxu0
      %v13153 = vadd.f32 %v13125, %v13152
      %13154 = vmatmul.bf16.gmra.mxu0 %v12827
      %v13155 = vpop.f32.mrf.mxu0
      %v13156 = vadd.f32 %v13128, %v13155
      %v13157 = vpop.f32.mrf.mxu0
      %13158 = vdwg.mxu0
      %13159 = vmatpush.bf16.msra.mxu0 %v13021
      %13160 = vmatpush.bf16.msra.mxu0 %v13020
      %13161 = vmatpush.bf16.msra.mxu0 %v13019
      %13162 = vmatpush.bf16.msra.mxu0 %v13018
      %13163 = vmatpush.bf16.msra.mxu0 %v13017
      %13164 = vmatpush.bf16.msra.mxu0 %v13016
      %13165 = vmatpush.bf16.msra.mxu0 %v13015
      %13166 = vmatpush.bf16.msra.mxu0 %v13014
      %13167 = vmatmul.bf16.gmra.mxu0 %v12813
      %v13168 = vpop.f32.mrf.mxu0
      %v13169 = vadd.f32 %v13141, %v13168
      %v13170 = vpop.f32.mrf.mxu0
      %v13171 = vadd.f32 %v13143, %v13170
      %13172 = vmatmul.bf16.gmra.mxu0 %v12818
      %v13173 = vpop.f32.mrf.mxu0
      %v13174 = vadd.f32 %v13146, %v13173
      %v13175 = vpop.f32.mrf.mxu0
      %v13176 = vadd.f32 %v13148, %v13175
      %13177 = vmatmul.bf16.gmra.mxu0 %v12823
      %v13178 = vpop.f32.mrf.mxu0
      %v13179 = vadd.f32 %v13151, %v13178
      %v13180 = vpop.f32.mrf.mxu0
      %v13181 = vadd.f32 %v13153, %v13180
      %13182 = vmatmul.bf16.gmra.mxu0 %v12828
      %v13183 = vpop.f32.mrf.mxu0
      %v13184 = vadd.f32 %v13156, %v13183
      %v13185 = vpop.f32.mrf.mxu0
      %13186 = vdwg.mxu0
      %13187 = vmatpush.bf16.msra.mxu0 0
      %13188 = vmatpush.bf16.msra.mxu0 0
      %13189 = vmatpush.bf16.msra.mxu0 0
      %13190 = vmatpush.bf16.msra.mxu0 0
      %13191 = vmatpush.bf16.msra.mxu0 %v13025
      %13192 = vmatpush.bf16.msra.mxu0 %v13024
      %13193 = vmatpush.bf16.msra.mxu0 %v13023
      %13194 = vmatpush.bf16.msra.mxu0 %v13022
      %13195 = vmatmul.bf16.gmra.mxu0 %v13064
      %v13196 = vpop.f32.mrf.mxu0
      %v13197 = vadd.f32 %v13169, %v13196
      %v13198 = vpop.f32.mrf.mxu0
      %v13199 = vadd.f32 %v13171, %v13198
      %13200 = vmatmul.bf16.gmra.mxu0 %v13067
      %v13201 = vpop.f32.mrf.mxu0
      %v13202 = vadd.f32 %v13174, %v13201
      %v13203 = vpop.f32.mrf.mxu0
      %v13204 = vadd.f32 %v13176, %v13203
      %13205 = vmatmul.bf16.gmra.mxu0 %v13070
      %v13206 = vpop.f32.mrf.mxu0
      %v13207 = vadd.f32 %v13179, %v13206
      %v13208 = vpop.f32.mrf.mxu0
      %v13209 = vadd.f32 %v13181, %v13208
      %13210 = vmatmul.bf16.gmra.mxu0 %v13073
      %v13211 = vpop.f32.mrf.mxu0
      %v13212 = vadd.f32 %v13184, %v13211
      %v13213 = vpop.f32.mrf.mxu0
      %13214 = vdwg.mxu0
      %v13215 = vmax.f32 %v13197, 0.0
      %v13216 = vmax.f32 %v13199, 0.0
      %v13217 = vmax.f32 %v13202, 0.0
      %v13218 = vmax.f32 %v13204, 0.0
      %v13219 = vmax.f32 %v13207, 0.0
      %v13220 = vmax.f32 %v13209, 0.0
      %v13221 = vmax.f32 %v13212, 0.0
      %13222 = vst.msk [vmem:[%s278] sm:$0xff] %vm13062, %v13215
      %13223 = vst.msk [vmem:[%s278 + $0x8] sm:$0xff] %vm13062, %v13216
      %13224 = vst.msk [vmem:[%s278 + $0x10] sm:$0xff] %vm13062, %v13217
      %13225 = vst.msk [vmem:[%s278 + $0x18] sm:$0xff] %vm13062, %v13218
      %13226 = vst.msk [vmem:[%s278 + $0x20] sm:$0xff] %vm13062, %v13219
      %13227 = vst.msk [vmem:[%s278 + $0x28] sm:$0xff] %vm13062, %v13220
      %vm13228 = vcmask 516096
      %13229 = vst.msk [vmem:[%s278 + $0x30] sm:$0x1] %vm13228, %v13221
      %p13230 = scmp.lt.s32.totalorder %s18, 1
      %s13231 = scalar_select %p13230, %s18, 1
      %s13232 = smul.addr %s13231, 7
      %s13233 = smul.addr %s13232, 8
      %s13234 = scalar_lea.vmem %s7, %s13233
      // Predicated region
      $region49: #{convnet_forward.1} parent=47 // pred_check
        %p13235 = pneg %p188
      $region50: #{convnet_forward.1} parent=47 // pred_check_branch
        %13237 = sbr.rel (%p13235) target = $region52
      $region51: #{convnet_forward.1} parent=47 // pred_region
        _
      $region52: #{convnet_forward.1} parent=47 // pred_fallthru
        _
    $region48: #{convnet_forward.1} parent=5 // pred_fallthru
      _
    %p13238 = scmp.le.s32.totalorder 2, %s13
    // Predicated region
    $region53: #{convnet_forward.1} parent=5 // pred_check
      %p13239 = pneg %p13238
    $region54: #{convnet_forward.1} parent=5 // pred_check_branch
      %13241 = sbr.rel (%p13239) target = $region56
    $region55: #{convnet_forward.1} parent=5 // pred_region
      %s13242 = ssub.s32 %s13, 2
      // Predicated region
      $region57: #{convnet_forward.1} parent=55 // pred_check
        %p13243 = pneg %p194
      $region58: #{convnet_forward.1} parent=55 // pred_check_branch
        %13245 = sbr.rel (%p13243) target = $region60
      $region59: #{convnet_forward.1} parent=55 // pred_region
        %p13246 = scmp.lt.s32.totalorder %s19, 1
        %s13247 = scalar_select %p13246, %s19, 1
        %s13248 = smul.addr %s13247, 7
        %s13249 = smul.addr %s13248, 8
        %s13250 = scalar_lea.vmem %s7, %s13249
      $region60: #{convnet_forward.1} parent=55 // pred_fallthru
        _
    $region56: #{convnet_forward.1} parent=5 // pred_fallthru
      _
  $region6: #{convnet_forward.1} parent=0 // loop_footer
    %s17 = sadd.s32 1, %s13
  $region7: #{convnet_forward.1} parent=0 // loop_footer_branch
    %12 = sbr.rel target = $region3
  $region8: #{convnet_forward.1} parent=0 // loop_exit
    _

</llo_original>
